<compile_context>
chip_gen: v7x
topology: tpu7x:2x2x1
jax: 0.10.0
libtpu: 0.0.40
codegen_flags: <defaults>
</compile_context>

<pallas_src>
import functools
import numpy as np
import jax
import jax.numpy as jnp
from jax import lax
from jax.experimental import pallas as pl
from jax.experimental.pallas import tpu as pltpu

_SQRT_5E4 = float(np.sqrt(50000.0))


def _largest_tile(n, max_tile, align):
    """Largest divisor of n that is <= max_tile and a multiple of `align`
    (or n itself if n <= max_tile)."""
    if n <= max_tile:
        return n
    t = (max_tile // align) * align
    while t >= align:
        if n % t == 0:
            return t
        t -= align
    return n


# --------------------------------------------------------------------------
# Pallas kernels
# --------------------------------------------------------------------------
def _normalize_kernel(x_ref, o_ref):
    # x = x * rsqrt(sum(x**2)) * sqrt(50000); one batch element per grid step.
    x = x_ref[...]                                    # (1, img, img)
    ss = jnp.sum(x * x, keepdims=True)                # (1, 1, 1)
    o_ref[...] = x * (lax.rsqrt(ss) * _SQRT_5E4)


def _apply_phase_kernel(ar_ref, ai_ref, c_ref, s_ref, or_ref, oi_ref):
    # out = (ar + i*ai) * (c + i*s); cos/sin tables precomputed in XLA,
    # broadcast over batch (pure VPU mul/add, HBM-bound).
    ar = ar_ref[...]                                  # (1, tH, W)
    ai = ai_ref[...]
    c = c_ref[...]                                    # (tH, W)
    s = s_ref[...]
    or_ref[...] = ar * c - ai * s
    oi_ref[...] = ar * s + ai * c


def _masked_sum_kernel(inten_ref, mask_ref, o_ref):
    # o[b, k] += sum_n mask[k, n] * inten[b, n] over spatial tiles; the output
    # block index is constant across the reduction axis, so o_ref stays
    # VMEM-resident and we accumulate into it directly (no scratch).
    @pl.when(pl.program_id(1) == 0)
    def _():
        o_ref[...] = jnp.zeros_like(o_ref)

    m = mask_ref[...].astype(jnp.float32)             # (K, tN), bf16 -> f32 (exact 0/1)
    o_ref[...] += jnp.einsum("bn,kn->bk", inten_ref[...], m,
                             preferred_element_type=jnp.float32)


# --------------------------------------------------------------------------
# Pallas wrappers
# --------------------------------------------------------------------------
def pallas_normalize(x):
    B, H, W = x.shape
    spec = pl.BlockSpec((1, H, W), lambda b: (b, 0, 0))
    return pl.pallas_call(
        _normalize_kernel,
        out_shape=jax.ShapeDtypeStruct((B, H, W), jnp.float32),
        grid=(B,),
        in_specs=[spec],
        out_specs=spec,
        compiler_params=pltpu.CompilerParams(dimension_semantics=("parallel",)),
    )(x)


def pallas_apply_phase(ar, ai, cos_t, sin_t):
    # ar, ai: (B, H, W) planar field; cos_t, sin_t: (H, W) precomputed tables.
    # Grid is (rows, batch) with batch innermost: the table block index does not
    # depend on b, so the cos/sin tiles are fetched once per row block (not once
    # per batch element), and the leading parallel axis is the row axis.
    B, H, W = ar.shape
    tH = _largest_tile(H, 256, 8)
    field_spec = pl.BlockSpec((1, tH, W), lambda h, b: (b, h, 0))
    table_spec = pl.BlockSpec((tH, W), lambda h, b: (h, 0))
    return pl.pallas_call(
        _apply_phase_kernel,
        out_shape=(jax.ShapeDtypeStruct((B, H, W), jnp.float32),
                   jax.ShapeDtypeStruct((B, H, W), jnp.float32)),
        grid=(H // tH, B),
        in_specs=[field_spec, field_spec, table_spec, table_spec],
        out_specs=(field_spec, field_spec),
        compiler_params=pltpu.CompilerParams(
            dimension_semantics=("parallel", "parallel")),
    )(ar, ai, cos_t, sin_t)


def pallas_masked_sum(inten, mask):
    # inten: (B, N) float32 = |X|^2; mask: (K, N) bfloat16 {0,1} -> (B, K) float32.
    B, N = inten.shape
    K = mask.shape[0]
    tN = _largest_tile(N, 32768, 128)
    n_steps = N // tN
    n_par = 2 if n_steps % 2 == 0 else 1       # leading parallel axis -> both v7x TCs
    n_red = n_steps // n_par

    inten_spec = pl.BlockSpec((B, tN), lambda p, r: (0, p * n_red + r))
    mask_spec = pl.BlockSpec((K, tN), lambda p, r: (0, p * n_red + r))
    out_spec = pl.BlockSpec((None, B, K), lambda p, r: (p, 0, 0))

    partial = pl.pallas_call(
        _masked_sum_kernel,
        out_shape=jax.ShapeDtypeStruct((n_par, B, K), jnp.float32),
        grid=(n_par, n_red),
        in_specs=[inten_spec, mask_spec],
        out_specs=out_spec,
        compiler_params=pltpu.CompilerParams(
            dimension_semantics=("parallel", "arbitrary")),
    )(inten, mask)
    return partial.sum(axis=0)                 # combine per-core partial sums (tiny)


# --------------------------------------------------------------------------
# ONN2 forward (JAX glue around the Pallas kernels)
# --------------------------------------------------------------------------
def _propagation(field_c, eta):
    # ifft2(fft2(field) * exp(i*z*p)); the frequency-domain multiply is plain XLA
    # complex math so it fuses with the FFT boundary conversions (no planar round trip).
    return jnp.fft.ifft2(jnp.fft.fft2(field_c) * eta)


@functools.partial(jax.jit, static_argnames=("array_size", "image_size"))
def onn2_forward(x, phase1, phase2, zp, zp_ext, mask, *, array_size, image_size):
    S = array_size
    B = x.shape[0]
    f = x[:, 0, :, :].astype(jnp.float32)                 # squeeze NCHW channel (C=1)

    # x = x / sum(x**2, (1,2,3))**0.5 * sqrt(50000)
    f = pallas_normalize(f)

    # Precompute complex transfer functions and DOE cos/sin ONCE per call
    # (EUP trig done once, not per batch element / grid step).
    eta = jnp.exp(1j * zp)                                 # (S, S)   complex64
    eta_ext = jnp.exp(1j * zp_ext)                         # (2S, 2S) complex64
    c1, s1 = jnp.cos(phase1), jnp.sin(phase1)
    c2, s2 = jnp.cos(phase2), jnp.sin(phase2)

    # ZeroPad2d((array_size - image_size)/2)
    pad = (S - image_size) // 2
    f = jnp.pad(f, ((0, 0), (pad, pad), (pad, pad)))

    # propagation(distance, p)
    g = _propagation(f.astype(jnp.complex64), eta)

    # * DOE(1) = exp(i*phase1)  (spatial; Pallas)
    gr, gi = pallas_apply_phase(jnp.real(g), jnp.imag(g), c1, s1)

    # ZeroPad2d(array_size/2) -> (B, 2S, 2S); recombine+pad fuse in XLA before the FFT.
    p2 = S // 2
    g2 = jnp.pad(gr + 1j * gi, ((0, 0), (p2, p2), (p2, p2)))

    # propagation(distance, p_extended)
    g2 = _propagation(g2, eta_ext)

    # center crop: [:, :, 256:768, 256:768] in the reference (array_size=512),
    # i.e. [S//2 : S//2 + S] of the 2S grid.  The slice fuses with the real/imag
    # split feeding the DOE-2 kernel, so only the cropped window is read.
    lo = S // 2
    win = g2[:, lo:lo + S, lo:lo + S]

    # * DOE(2), final propagation
    Xr, Xi = pallas_apply_phase(jnp.real(win), jnp.imag(win), c2, s2)
    Xc = _propagation(Xr + 1j * Xi, eta)                   # (B, S, S) complex64

    # res = sum_{h,w} |X * mask|^2  -> (B, 10); mask is binary so mask == mask**2.
    # Intensity is computed in XLA (fuses with the ifft output read); the masked
    # reduction is the Pallas kernel.
    # TODO(synk): `sum_func` is not defined in the reference snippet; assuming spatial sum.
    inten = jnp.real(Xc) ** 2 + jnp.imag(Xc) ** 2          # (B, S, S) float32
    res = pallas_masked_sum(inten.reshape(B, S * S),
                            mask.reshape(mask.shape[0], S * S))

    X = Xc[:, None, :, :]                                  # back to NCHW, complex64
    return X, res


# --------------------------------------------------------------------------
# Deterministic parameter / constant construction (the module's __init__)
# --------------------------------------------------------------------------
def make_onn2_params(array_size, image_size, aperture_size, wavelength, distance, key):
    S = array_size
    K = 2.0 * np.pi / wavelength

    def make_p(n):
        border = np.pi * n / aperture_size
        arr = np.linspace(-border, border, n + 1)[:n]
        xv, yv = np.meshgrid(arr, arr, indexing="ij")
        xx = xv ** 2 + yv ** 2
        U = np.roll(xx, (n // 2, n // 2), axis=(0, 1))
        # Clamp the evanescent region (reference would produce NaN there); for the
        # demo config K**2 - U is strictly positive so this is a no-op.
        return np.sqrt(np.maximum(K ** 2 - U, 0.0)).astype(np.float32)

    p = make_p(S)
    p_ext = make_p(2 * S)

    # 10 detector windows (config.coords analogue), within [-S/100, S/100].
    coords = [(cx, cy) for cy in (-0.5, 0.5) for cx in np.linspace(-0.9, 0.9, 5)]
    l = np.linspace(-S / 100.0, S / 100.0, S)
    Yg, Xg = np.meshgrid(l, l, indexing="ij")
    half = image_size / 200.0
    mask = np.stack([
        ((Xg > cx - half) & (Xg < cx + half) & (Yg > cy - half) & (Yg < cy + half))
        for (cx, cy) in coords
    ]).astype(np.float32)                                  # (10, S, S), values {0,1}

    k1, k2 = jax.random.split(key)
    phase1 = jax.random.uniform(k1, (S, S), dtype=jnp.float32)   # ~ torch.rand
    phase2 = jax.random.uniform(k2, (S, S), dtype=jnp.float32)

    return dict(
        phase1=phase1,
        phase2=phase2,
        zp=jnp.asarray(distance * p, dtype=jnp.float32),
        zp_ext=jnp.asarray(distance * p_ext, dtype=jnp.float32),
        # bf16 is exact for {0,1} and halves the dominant HBM stream of the
        # masked-reduction kernel.
        mask=jnp.asarray(mask, dtype=jnp.bfloat16),
    )


if __name__ == "__main__":
    # Small but self-consistent config (the reference module hard-codes 512;
    # here array_size=128, image_size=64, with the crop generalized to S//2:S//2+S).
    array_size, image_size = 128, 64
    aperture_size, wavelength, distance = 1.0, 2e-3, 1e-2

    key = jax.random.PRNGKey(0)
    kx, kparams = jax.random.split(key)
    params = make_onn2_params(array_size, image_size, aperture_size,
                              wavelength, distance, kparams)

    x = jax.random.uniform(kx, (2, 1, image_size, image_size), dtype=jnp.float32)

    X, res = onn2_forward(x, params["phase1"], params["phase2"],
                          params["zp"], params["zp_ext"], params["mask"],
                          array_size=array_size, image_size=image_size)
    jax.block_until_ready((X, res))

    assert X.shape == (2, 1, array_size, array_size) and X.dtype == jnp.complex64
    assert res.shape == (2, 10) and res.dtype == jnp.float32
    assert bool(jnp.all(jnp.isfinite(res)))
    print("KERNEL_OK")
</pallas_src>

<mosaic_0001>
module attributes {stable_mosaic.version = 11 : i64} {
  func.func @_normalize_kernel(%arg0: i32, %arg1: memref<1x64x64xf32, #tpu.memory_space<vmem>>, %arg2: memref<1x64x64xf32, #tpu.memory_space<vmem>>) attributes {dimension_semantics = [#tpu.dimension_semantics<parallel>], iteration_bounds = array<i64: 2>, scalar_prefetch = 0 : i64, scratch_operands = 0 : i64, tpu.core_type = #tpu.core_type<tc>, window_params = [{transform_indices = @transform_0, window_bounds = array<i64: 1, 64, 64>}, {transform_indices = @transform_1, window_bounds = array<i64: 1, 64, 64>}]} {
    %c0 = arith.constant 0 : index
    %c0_0 = arith.constant 0 : index
    %c0_1 = arith.constant 0 : index
    %0 = vector.load %arg1[%c0, %c0_0, %c0_1] : memref<1x64x64xf32, #tpu.memory_space<vmem>>, vector<1x64x64xf32>
    %1 = arith.mulf %0, %0 : vector<1x64x64xf32>
    %2 = vector.shape_cast %1 : vector<1x64x64xf32> to vector<1x1x64x64xf32>
    %cst = arith.constant dense<0.000000e+00> : vector<1xf32>
    %3 = vector.multi_reduction <add>, %2, %cst [1, 2, 3] : vector<1x1x64x64xf32> to vector<1xf32>
    %4 = vector.shape_cast %3 : vector<1xf32> to vector<1x1x1x1xf32>
    %5 = vector.extract %4[0, 0, 0, 0] : f32 from vector<1x1x1x1xf32>
    %6 = vector.broadcast %5 : f32 to vector<1x1x1xf32>
    %7 = math.rsqrt %6 : vector<1x1x1xf32>
    %cst_2 = arith.constant 223.606796 : f32
    %8 = vector.broadcast %cst_2 : f32 to vector<1x1x1xf32>
    %9 = arith.mulf %7, %8 : vector<1x1x1xf32>
    %10 = vector.broadcast %9 : vector<1x1x1xf32> to vector<1x64x64xf32>
    %11 = arith.mulf %0, %10 : vector<1x64x64xf32>
    %c0_3 = arith.constant 0 : index
    %c0_4 = arith.constant 0 : index
    %c0_5 = arith.constant 0 : index
    %12 = vector.load %arg2[%c0_3, %c0_4, %c0_5] : memref<1x64x64xf32, #tpu.memory_space<vmem>>, vector<1x64x64xf32>
    tpu.vector_store %arg2[%c0_3, %c0_4, %c0_5], %11 {strides = array<i32>} : memref<1x64x64xf32, #tpu.memory_space<vmem>>, vector<1x64x64xf32>,
    return
  }
  func.func @transform_0(%arg0: i32) -> (i32, i32, i32) {
    %c0_i32 = arith.constant 0 : i32
    %c0_i32_0 = arith.constant 0 : i32
    %c0_i32_1 = arith.constant 0 : i32
    return %arg0, %c0_i32, %c0_i32_0 : i32, i32, i32
  }
  func.func @transform_1(%arg0: i32) -> (i32, i32, i32) {
    %c0_i32 = arith.constant 0 : i32
    %c0_i32_0 = arith.constant 0 : i32
    %c0_i32_1 = arith.constant 0 : i32
    return %arg0, %c0_i32, %c0_i32_0 : i32, i32, i32
  }
}

module attributes {stable_mosaic.version = 11 : i64} {
  func.func @_apply_phase_kernel(%arg0: i32, %arg1: i32, %arg2: memref<1x128x128xf32, #tpu.memory_space<vmem>>, %arg3: memref<1x128x128xf32, #tpu.memory_space<vmem>>, %arg4: memref<128x128xf32, #tpu.memory_space<vmem>>, %arg5: memref<128x128xf32, #tpu.memory_space<vmem>>, %arg6: memref<1x128x128xf32, #tpu.memory_space<vmem>>, %arg7: memref<1x128x128xf32, #tpu.memory_space<vmem>>) attributes {dimension_semantics = [#tpu.dimension_semantics<parallel>, #tpu.dimension_semantics<parallel>], iteration_bounds = array<i64: 1, 2>, scalar_prefetch = 0 : i64, scratch_operands = 0 : i64, tpu.core_type = #tpu.core_type<tc>, window_params = [{transform_indices = @transform_0, window_bounds = array<i64: 1, 128, 128>}, {transform_indices = @transform_1, window_bounds = array<i64: 1, 128, 128>}, {transform_indices = @transform_2, window_bounds = array<i64: 128, 128>}, {transform_indices = @transform_3, window_bounds = array<i64: 128, 128>}, {transform_indices = @transform_4, window_bounds = array<i64: 1, 128, 128>}, {transform_indices = @transform_5, window_bounds = array<i64: 1, 128, 128>}]} {
    %c0 = arith.constant 0 : index
    %c0_0 = arith.constant 0 : index
    %c0_1 = arith.constant 0 : index
    %0 = vector.load %arg2[%c0, %c0_0, %c0_1] : memref<1x128x128xf32, #tpu.memory_space<vmem>>, vector<1x128x128xf32>
    %c0_2 = arith.constant 0 : index
    %c0_3 = arith.constant 0 : index
    %c0_4 = arith.constant 0 : index
    %1 = vector.load %arg3[%c0_2, %c0_3, %c0_4] : memref<1x128x128xf32, #tpu.memory_space<vmem>>, vector<1x128x128xf32>
    %c0_5 = arith.constant 0 : index
    %c0_6 = arith.constant 0 : index
    %2 = vector.load %arg4[%c0_5, %c0_6] : memref<128x128xf32, #tpu.memory_space<vmem>>, vector<128x128xf32>
    %c0_7 = arith.constant 0 : index
    %c0_8 = arith.constant 0 : index
    %3 = vector.load %arg5[%c0_7, %c0_8] : memref<128x128xf32, #tpu.memory_space<vmem>>, vector<128x128xf32>
    %4 = vector.shape_cast %2 : vector<128x128xf32> to vector<1x128x128xf32>
    %5 = arith.mulf %0, %4 : vector<1x128x128xf32>
    %6 = vector.shape_cast %3 : vector<128x128xf32> to vector<1x128x128xf32>
    %7 = arith.mulf %1, %6 : vector<1x128x128xf32>
    %8 = arith.subf %5, %7 : vector<1x128x128xf32>
    %c0_9 = arith.constant 0 : index
    %c0_10 = arith.constant 0 : index
    %c0_11 = arith.constant 0 : index
    %9 = vector.load %arg6[%c0_9, %c0_10, %c0_11] : memref<1x128x128xf32, #tpu.memory_space<vmem>>, vector<1x128x128xf32>
    tpu.vector_store %arg6[%c0_9, %c0_10, %c0_11], %8 {strides = array<i32>} : memref<1x128x128xf32, #tpu.memory_space<vmem>>, vector<1x128x128xf32>,
    %10 = vector.shape_cast %3 : vector<128x128xf32> to vector<1x128x128xf32>
    %11 = arith.mulf %0, %10 : vector<1x128x128xf32>
    %12 = vector.shape_cast %2 : vector<128x128xf32> to vector<1x128x128xf32>
    %13 = arith.mulf %1, %12 : vector<1x128x128xf32>
    %14 = arith.addf %11, %13 : vector<1x128x128xf32>
    %c0_12 = arith.constant 0 : index
    %c0_13 = arith.constant 0 : index
    %c0_14 = arith.constant 0 : index
    %15 = vector.load %arg7[%c0_12, %c0_13, %c0_14] : memref<1x128x128xf32, #tpu.memory_space<vmem>>, vector<1x128x128xf32>
    tpu.vector_store %arg7[%c0_12, %c0_13, %c0_14], %14 {strides = array<i32>} : memref<1x128x128xf32, #tpu.memory_space<vmem>>, vector<1x128x128xf32>,
    return
  }
  func.func @transform_0(%arg0: i32, %arg1: i32) -> (i32, i32, i32) {
    %c0_i32 = arith.constant 0 : i32
    %c0_i32_0 = arith.constant 0 : i32
    return %arg1, %arg0, %c0_i32 : i32, i32, i32
  }
  func.func @transform_1(%arg0: i32, %arg1: i32) -> (i32, i32, i32) {
    %c0_i32 = arith.constant 0 : i32
    %c0_i32_0 = arith.constant 0 : i32
    return %arg1, %arg0, %c0_i32 : i32, i32, i32
  }
  func.func @transform_2(%arg0: i32, %arg1: i32) -> (i32, i32) {
    %c0_i32 = arith.constant 0 : i32
    %c0_i32_0 = arith.constant 0 : i32
    return %arg0, %c0_i32 : i32, i32
  }
  func.func @transform_3(%arg0: i32, %arg1: i32) -> (i32, i32) {
    %c0_i32 = arith.constant 0 : i32
    %c0_i32_0 = arith.constant 0 : i32
    return %arg0, %c0_i32 : i32, i32
  }
  func.func @transform_4(%arg0: i32, %arg1: i32) -> (i32, i32, i32) {
    %c0_i32 = arith.constant 0 : i32
    %c0_i32_0 = arith.constant 0 : i32
    return %arg1, %arg0, %c0_i32 : i32, i32, i32
  }
  func.func @transform_5(%arg0: i32, %arg1: i32) -> (i32, i32, i32) {
    %c0_i32 = arith.constant 0 : i32
    %c0_i32_0 = arith.constant 0 : i32
    return %arg1, %arg0, %c0_i32 : i32, i32, i32
  }
}

module attributes {stable_mosaic.version = 11 : i64} {
  func.func @_masked_sum_kernel(%arg0: i32, %arg1: i32, %arg2: memref<2x16384xf32, #tpu.memory_space<vmem>>, %arg3: memref<10x16384xbf16, #tpu.memory_space<vmem>>, %arg4: memref<1x2x10xf32, #tpu.memory_space<vmem>>) attributes {dimension_semantics = [#tpu.dimension_semantics<parallel>, #tpu.dimension_semantics<arbitrary>], iteration_bounds = array<i64: 1, 1>, scalar_prefetch = 0 : i64, scratch_operands = 0 : i64, tpu.core_type = #tpu.core_type<tc>, window_params = [{transform_indices = @transform_0, window_bounds = array<i64: 2, 16384>}, {transform_indices = @transform_1, window_bounds = array<i64: 10, 16384>}, {transform_indices = @transform_2, window_bounds = array<i64: 1, 2, 10>}]} {
    %c0_i32 = arith.constant 0 : i32
    %0 = arith.cmpi eq, %arg1, %c0_i32 : i32
    %1 = arith.extui %0 : i1 to i32
    %c0_i32_0 = arith.constant 0 : i32
    %2 = arith.cmpi ne, %1, %c0_i32_0 : i32
    scf.if %2 {
      %cst_10 = arith.constant 0.000000e+00 : f32
      %13 = vector.broadcast %cst_10 : f32 to vector<2x10xf32>
      %c0_11 = arith.constant 0 : index
      %c0_12 = arith.constant 0 : index
      %c0_13 = arith.constant 0 : index
      %14 = vector.load %arg4[%c0_11, %c0_12, %c0_13] : memref<1x2x10xf32, #tpu.memory_space<vmem>>, vector<1x2x10xf32>
      %15 = vector.shape_cast %14 : vector<1x2x10xf32> to vector<2x10xf32>
      %16 = vector.shape_cast %13 : vector<2x10xf32> to vector<1x2x10xf32>
      tpu.vector_store %arg4[%c0_11, %c0_12, %c0_13], %16 {strides = array<i32>} : memref<1x2x10xf32, #tpu.memory_space<vmem>>, vector<1x2x10xf32>,
    } else {
    }
    %c0 = arith.constant 0 : index
    %c0_1 = arith.constant 0 : index
    %3 = vector.load %arg3[%c0, %c0_1] : memref<10x16384xbf16, #tpu.memory_space<vmem>>, vector<10x16384xbf16>
    %4 = arith.extf %3 : vector<10x16384xbf16> to vector<10x16384xf32>
    %c0_2 = arith.constant 0 : index
    %c0_3 = arith.constant 0 : index
    %c0_4 = arith.constant 0 : index
    %5 = vector.load %arg4[%c0_2, %c0_3, %c0_4] : memref<1x2x10xf32, #tpu.memory_space<vmem>>, vector<1x2x10xf32>
    %6 = vector.shape_cast %5 : vector<1x2x10xf32> to vector<2x10xf32>
    %c0_5 = arith.constant 0 : index
    %c0_6 = arith.constant 0 : index
    %7 = vector.load %arg2[%c0_5, %c0_6] : memref<2x16384xf32, #tpu.memory_space<vmem>>, vector<2x16384xf32>
    "tpu.trace_start"() <{level = 10 : i32, message = "bn,kn->bk"}> : () -> ()
    %cst = arith.constant dense<0.000000e+00> : vector<2x10xf32>
    %8 = tpu.matmul %7, %4, %cst {dimension_numbers = #tpu.dot_dimension_numbers<[1], [1], [0], [0], [0, 0, 1, 0], [], []>} : vector<2x16384xf32>, vector<10x16384xf32>, vector<2x10xf32> -> vector<2x10xf32>
    "tpu.trace_stop"() : () -> ()
    %9 = arith.addf %6, %8 : vector<2x10xf32>
    %c0_7 = arith.constant 0 : index
    %c0_8 = arith.constant 0 : index
    %c0_9 = arith.constant 0 : index
    %10 = vector.load %arg4[%c0_7, %c0_8, %c0_9] : memref<1x2x10xf32, #tpu.memory_space<vmem>>, vector<1x2x10xf32>
    %11 = vector.shape_cast %10 : vector<1x2x10xf32> to vector<2x10xf32>
    %12 = vector.shape_cast %9 : vector<2x10xf32> to vector<1x2x10xf32>
    tpu.vector_store %arg4[%c0_7, %c0_8, %c0_9], %12 {strides = array<i32>} : memref<1x2x10xf32, #tpu.memory_space<vmem>>, vector<1x2x10xf32>,
    return
  }
  func.func @transform_0(%arg0: i32, %arg1: i32) -> (i32, i32) {
    %c1_i32 = arith.constant 1 : i32
    %0 = arith.muli %arg0, %c1_i32 : i32
    %1 = arith.addi %0, %arg1 : i32
    %c0_i32 = arith.constant 0 : i32
    %c0_i32_0 = arith.constant 0 : i32
    return %c0_i32, %1 : i32, i32
  }
  func.func @transform_1(%arg0: i32, %arg1: i32) -> (i32, i32) {
    %c1_i32 = arith.constant 1 : i32
    %0 = arith.muli %arg0, %c1_i32 : i32
    %1 = arith.addi %0, %arg1 : i32
    %c0_i32 = arith.constant 0 : i32
    %c0_i32_0 = arith.constant 0 : i32
    return %c0_i32, %1 : i32, i32
  }
  func.func @transform_2(%arg0: i32, %arg1: i32) -> (i32, i32, i32) {
    %c0_i32 = arith.constant 0 : i32
    %c0_i32_0 = arith.constant 0 : i32
    %c0_i32_1 = arith.constant 0 : i32
    return %arg0, %c0_i32, %c0_i32_0 : i32, i32, i32
  }
}

</mosaic_0001>

<llo_original>
// kernel: onn2_forward.4
$region0: #{onn2_forward.4}
  #allocation0 [shape = 'u32[]', space=smem, size = 0x4, offset = 0x4, fixed_abs, tag = 'smem constant byte address 0x4 - core index']
  #allocation1 [shape = 'u32[144,128]{1,0:T(1,128)}', space=vmem, size = 0x12000, scoped, tag = 'internal scratch']
  %s0 = inlined_call_operand.hbm [shape: f32[2,64,64], index: 0, kind: input, shape index: {}]
  %s1 = inlined_call_operand.vmem [shape: f32[2,64,64], index: 1, kind: output, shape index: {}]
  %s2 = sld [smem:[#allocation0]]
  $region41: #{onn2_forward.4} parent=0
    _
  %s4 = ssub.s32 1, %s2
  %s5 = scalar_select 0, %s4, %s2
  $region1: #{onn2_forward.4} parent=0
    #allocation2 [shape = 'u8[65536]{0}', space=vmem, size = 0x10000, scoped, tag = 'input window, operand 0']
    #allocation3 [shape = 's32[2]{0}', space=sflag, size = 0x8, scoped, tag = 'scoped memory for onn2_forward.4']
    %6 = vsyncpa [#allocation3], 0
    %s7 = scalar_lea.sflag [#allocation3], 1
    %8 = vsyncpa %s7, 0
    loop: start=0, step=1, limit=4
    $region2: #{onn2_forward.4} parent=1 // loop_pre_header
      _
    $region3: #{onn2_forward.4} parent=1 // loop_header
      %s10 = sphi 0, %s14
      %p11 = scmp.ge.s32.totalorder %s10, 4
      %s20 = sphi 0, %s22
      %s23 = sphi 0, %s20
      %s24 = sphi 0, %s23
      %s40 = sphi 0, %s24
      %s46 = sphi 0, %s48
      %s49 = sphi 0, %s46
      %s50 = sphi 0, %s49
      %s66 = sphi 0, %s50
    $region4: #{onn2_forward.4} parent=1 // loop_header_branch
      %13 = sbr.rel (%p11) target = $region8
    $region5: #{onn2_forward.4} parent=1 // loop_body
      %s15 = ssub.s32 %s10, 1
      %s16 = ssub.s32 %s10, 2
      %s17 = sadd.s32 %s10, 1
      %s18 = ssub.s32 %s10, %s17
      %p19 = scmp.eq.s32.totalorder %s18, 0
      %s21 = sadd.s32 %s20, 1
      %s22 = scalar_select %p19, %s20, %s21
      %p25 = pneg %p19
      %p26 = scmp.eq.s32.totalorder %s10, 1
      %p27 = por %p25, %p26
      %p28 = scmp.ne.s32.totalorder %s20, %s23
      %p29 = scmp.eq.s32.totalorder %s10, 0
      %p30 = por %p28, %p29
      %p31 = scmp.ne.s32.totalorder %s20, %s23
      %p32 = scmp.eq.s32.totalorder %s15, 1
      %p33 = por %p31, %p32
      %p34 = scmp.ne.s32.totalorder %s23, %s24
      %p35 = scmp.eq.s32.totalorder %s15, 0
      %p36 = por %p34, %p35
      %p37 = scmp.ne.s32.totalorder %s23, %s24
      %p38 = scmp.eq.s32.totalorder %s16, 1
      %p39 = por %p37, %p38
      %p41 = scmp.ne.s32.totalorder %s24, %s40
      %p42 = scmp.eq.s32.totalorder %s16, 0
      %p43 = por %p41, %p42
      %s44 = ssub.s32 %s10, %s17
      %p45 = scmp.eq.s32.totalorder %s44, 0
      %s47 = sadd.s32 %s46, 1
      %s48 = scalar_select %p45, %s46, %s47
      %p51 = pneg %p45
      %p52 = scmp.eq.s32.totalorder %s10, 1
      %p53 = por %p51, %p52
      %p54 = scmp.ne.s32.totalorder %s46, %s49
      %p55 = scmp.eq.s32.totalorder %s10, 0
      %p56 = por %p54, %p55
      %p57 = scmp.ne.s32.totalorder %s46, %s49
      %p58 = scmp.eq.s32.totalorder %s15, 1
      %p59 = por %p57, %p58
      %p60 = scmp.ne.s32.totalorder %s49, %s50
      %p61 = scmp.eq.s32.totalorder %s15, 0
      %p62 = por %p60, %p61
      %p63 = scmp.ne.s32.totalorder %s49, %s50
      %p64 = scmp.eq.s32.totalorder %s16, 1
      %p65 = por %p63, %p64
      %p67 = scmp.ne.s32.totalorder %s50, %s66
      %p68 = scmp.eq.s32.totalorder %s16, 0
      %p69 = por %p67, %p68
      %p70 = scmp.le.s32.totalorder 1, %s10
      %p71 = scmp.lt.s32.totalorder %s10, 3
      %p72 = pnand %p70, %p71
      %p73 = pneg %p72
      // Predicated region
      $region9: #{onn2_forward.4} parent=5 // pred_check
        _
      $region10: #{onn2_forward.4} parent=5 // pred_check_branch
        %75 = sbr.rel (%p72) target = $region12
      $region11: #{onn2_forward.4} parent=5 // pred_region
        %s76 = ssub.s32 %s10, 1
      $region12: #{onn2_forward.4} parent=5 // pred_fallthru
        _
      %p77 = scmp.lt.s32.totalorder %s10, 2
      // Predicated region
      $region13: #{onn2_forward.4} parent=5 // pred_check
        %p78 = pneg %p77
      $region14: #{onn2_forward.4} parent=5 // pred_check_branch
        %80 = sbr.rel (%p78) target = $region16
      $region15: #{onn2_forward.4} parent=5 // pred_region
        // Predicated region
        $region17: #{onn2_forward.4} parent=15 // pred_check
          %p81 = pneg %p30
        $region18: #{onn2_forward.4} parent=15 // pred_check_branch
          %83 = sbr.rel (%p81) target = $region20
        $region19: #{onn2_forward.4} parent=15 // pred_region
          %s84 = sand.u32 %s20, 1
          %s85 = scalar_lea.sflag [#allocation3], %s84
          %s86 = sand.u32 %s20, 1
          %s87 = smul.addr %s86, 64
          %s88 = scalar_lea.vmem [#allocation2], %s87
          %s90 = ssub.s32 1024, 1024
          %91 = vsyncadd %s85, %s90
          %s92 = smul.addr %s10, 8
          %s93 = smul.addr %s92, 128
          %s94 = scalar_lea.hbm %s0, %s93
          %s95 = sshll.u32 %s88, 4
          %s96 = int_to_ptr.vmem [resolvable:$true] %s95
          %101 = dma.hbm_to_vmem [thread:$0]  %s94, 1024, %s96, %s85, 128, 128, 8
        $region20: #{onn2_forward.4} parent=15 // pred_fallthru
          _
      $region16: #{onn2_forward.4} parent=5 // pred_fallthru
        _
      %p102 = scmp.le.s32.totalorder 1, %s10
      %p103 = scmp.lt.s32.totalorder %s10, 3
      %p104 = pnand %p102, %p103
      %p105 = pneg %p104
      // Predicated region
      $region21: #{onn2_forward.4} parent=5 // pred_check
        _
      $region22: #{onn2_forward.4} parent=5 // pred_check_branch
        %107 = sbr.rel (%p104) target = $region24
      $region23: #{onn2_forward.4} parent=5 // pred_region
        %s108 = ssub.s32 %s10, 1
        %s109 = sand.u32 %s23, 1
        %s110 = scalar_lea.sflag [#allocation3], %s109
        %s111 = sand.u32 %s23, 1
        %s112 = smul.addr %s111, 64
        %s113 = scalar_lea.vmem [#allocation2], %s112
        // Predicated region
        $region25: #{onn2_forward.4} parent=23 // pred_check
          %p114 = pneg %p36
        $region26: #{onn2_forward.4} parent=23 // pred_check_branch
          %116 = sbr.rel (%p114) target = $region28
        $region27: #{onn2_forward.4} parent=23 // pred_region
          %117 = dma.done %s110, 1024
        $region28: #{onn2_forward.4} parent=23 // pred_fallthru
          _
        %s118 = sand.u32 %s23, 1
        %s119 = scalar_lea.sflag [#allocation3], %s118
        %s120 = sand.u32 %s23, 1
        %s121 = smul.addr %s120, 64
        %s122 = scalar_lea.vmem [#allocation2], %s121
        %p123 = pneg %p36
        %p124 = pneg %p33
        %p125 = pneg %p62
        %p126 = pneg %p59
        %p127 = scmp.lt.s32.totalorder %s15, 1
        %s128 = scalar_select %p127, %s15, 1
        %s129 = smul.addr %s128, 8
        %s130 = smul.addr %s129, 8
        %s131 = scalar_lea.vmem %s1, %s130
        %p132 = scmp.lt.s32.totalorder %s15, 1
        %s133 = scalar_select %p132, %s15, 1
        %s134 = smul.addr %s133, 8
        %s135 = smul.addr %s134, 8
        %s136 = scalar_lea.vmem %s1, %s135
        %v137 = vld [vmem:[%s113] sm:$0xff]
        %v138 = vld [vmem:[%s113 + $0x8] sm:$0xff]
        %v139 = vld [vmem:[%s113 + $0x10] sm:$0xff]
        %v140 = vld [vmem:[%s113 + $0x18] sm:$0xff]
        %v141 = vld [vmem:[%s113 + $0x20] sm:$0xff]
        %v142 = vld [vmem:[%s113 + $0x28] sm:$0xff]
        %v143 = vld [vmem:[%s113 + $0x30] sm:$0xff]
        %v144 = vld [vmem:[%s113 + $0x38] sm:$0xff]
        %v145 = vmul.f32 %v137, %v137
        %v146 = vmul.f32 %v138, %v138
        %v147 = vmul.f32 %v139, %v139
        %v148 = vmul.f32 %v140, %v140
        %v149 = vmul.f32 %v141, %v141
        %v150 = vmul.f32 %v142, %v142
        %v151 = vmul.f32 %v143, %v143
        %v152 = vmul.f32 %v144, %v144
        %vm153 = vcmask 523264
        %v154 = vsel %vm153, %v145, 0.0
        %v155 = vsel %vm153, %v146, 0.0
        %v156 = vadd.f32 %v154, %v155
        %v157 = vsel %vm153, %v147, 0.0
        %v158 = vadd.f32 %v156, %v157
        %v159 = vsel %vm153, %v148, 0.0
        %v160 = vadd.f32 %v158, %v159
        %v161 = vsel %vm153, %v149, 0.0
        %v162 = vadd.f32 %v160, %v161
        %v163 = vsel %vm153, %v150, 0.0
        %v164 = vadd.f32 %v162, %v163
        %v165 = vsel %vm153, %v151, 0.0
        %v166 = vadd.f32 %v164, %v165
        %v167 = vsel %vm153, %v152, 0.0
        %v168 = vadd.f32 %v166, %v167
        %169 = vadd.xlane.f32.xlu0 %v168
        %v170 = vpop.xlane.xlu0 %169
        %v171 = vrot.slane %v170, 4
        %v172 = vadd.f32 %v170, %v171
        %v173 = vrot.slane %v172, 2
        %v174 = vadd.f32 %v172, %v173
        %v175 = vrot.slane %v174, 1
        %v176 = vadd.f32 %v174, %v175
        %s177 = vtos %v176
        %v178 = vstv %s177
        %v179 = vrsqrt.pop %v178
        %v180 = vmul.f32 %v179, 223.6068
        %v181 = vmul.f32 %v137, %v180
        %v182 = vmul.f32 %v138, %v180
        %v183 = vmul.f32 %v139, %v180
        %v184 = vmul.f32 %v140, %v180
        %v185 = vmul.f32 %v141, %v180
        %v186 = vmul.f32 %v142, %v180
        %v187 = vmul.f32 %v143, %v180
        %v188 = vmul.f32 %v144, %v180
        %189 = vst.msk [vmem:[%s136] sm:$0xff] %vm153, %v181
        %190 = vst.msk [vmem:[%s136 + $0x8] sm:$0xff] %vm153, %v182
        %191 = vst.msk [vmem:[%s136 + $0x10] sm:$0xff] %vm153, %v183
        %192 = vst.msk [vmem:[%s136 + $0x18] sm:$0xff] %vm153, %v184
        %193 = vst.msk [vmem:[%s136 + $0x20] sm:$0xff] %vm153, %v185
        %194 = vst.msk [vmem:[%s136 + $0x28] sm:$0xff] %vm153, %v186
        %195 = vst.msk [vmem:[%s136 + $0x30] sm:$0xff] %vm153, %v187
        %196 = vst.msk [vmem:[%s136 + $0x38] sm:$0xff] %vm153, %v188
        %p197 = scmp.lt.s32.totalorder %s15, 1
        %s198 = scalar_select %p197, %s15, 1
        %s199 = smul.addr %s198, 8
        %s200 = smul.addr %s199, 8
        %s201 = scalar_lea.vmem %s1, %s200
        // Predicated region
        $region29: #{onn2_forward.4} parent=23 // pred_check
          %p202 = pneg %p59
        $region30: #{onn2_forward.4} parent=23 // pred_check_branch
          %204 = sbr.rel (%p202) target = $region32
        $region31: #{onn2_forward.4} parent=23 // pred_region
          _
        $region32: #{onn2_forward.4} parent=23 // pred_fallthru
          _
      $region24: #{onn2_forward.4} parent=5 // pred_fallthru
        _
      %p205 = scmp.le.s32.totalorder 2, %s10
      // Predicated region
      $region33: #{onn2_forward.4} parent=5 // pred_check
        %p206 = pneg %p205
      $region34: #{onn2_forward.4} parent=5 // pred_check_branch
        %208 = sbr.rel (%p206) target = $region36
      $region35: #{onn2_forward.4} parent=5 // pred_region
        %s209 = ssub.s32 %s10, 2
        // Predicated region
        $region37: #{onn2_forward.4} parent=35 // pred_check
          %p210 = pneg %p65
        $region38: #{onn2_forward.4} parent=35 // pred_check_branch
          %212 = sbr.rel (%p210) target = $region40
        $region39: #{onn2_forward.4} parent=35 // pred_region
          %p213 = scmp.lt.s32.totalorder %s16, 1
          %s214 = scalar_select %p213, %s16, 1
          %s215 = smul.addr %s214, 8
          %s216 = smul.addr %s215, 8
          %s217 = scalar_lea.vmem %s1, %s216
        $region40: #{onn2_forward.4} parent=35 // pred_fallthru
          _
      $region36: #{onn2_forward.4} parent=5 // pred_fallthru
        _
    $region6: #{onn2_forward.4} parent=1 // loop_footer
      %s14 = sadd.s32 1, %s10
    $region7: #{onn2_forward.4} parent=1 // loop_footer_branch
      %9 = sbr.rel target = $region3
    $region8: #{onn2_forward.4} parent=1 // loop_exit
      _
    %218 = vsyncpa [#allocation3], 1
    %s219 = scalar_lea.sflag [#allocation3], 1
    %220 = vsyncpa %s219, 1

// kernel: onn2_forward.5
$region0: #{onn2_forward.5}
  #allocation0 [shape = 'u32[]', space=smem, size = 0x4, offset = 0x4, fixed_abs, tag = 'smem constant byte address 0x4 - core index']
  #allocation1 [shape = 'u32[144,128]{1,0:T(1,128)}', space=vmem, size = 0x12000, scoped, tag = 'internal scratch']
  %s0 = inlined_call_operand.vmem [shape: f32[2,128,128], index: 0, kind: input, shape index: {}]
  %s1 = inlined_call_operand.vmem [shape: f32[2,128,128], index: 1, kind: input, shape index: {}]
  %s2 = inlined_call_operand.vmem [shape: f32[128,128], index: 2, kind: input, shape index: {}]
  %s3 = inlined_call_operand.vmem [shape: f32[128,128], index: 3, kind: input, shape index: {}]
  %s4 = inlined_call_operand.vmem [shape: f32[2,128,128], index: 4, kind: output, shape index: {0}]
  %s5 = inlined_call_operand.vmem [shape: f32[2,128,128], index: 5, kind: output, shape index: {1}]
  %6 = xla_tuple %s4, %s5
  %s7 = sld [smem:[#allocation0]]
  $region57: #{onn2_forward.5} parent=0
    _
  %s9 = ssub.s32 1, %s7
  %s10 = scalar_select 0, %s9, %s7
  loop: start=0, step=1, limit=4
  $region2: #{onn2_forward.5} parent=0 // loop_pre_header
    _
  $region3: #{onn2_forward.5} parent=0 // loop_header
    %s12 = sphi 0, %s16
    %p13 = scmp.ge.s32.totalorder %s12, 4
    %s19 = sphi 0, %s31
    %s20 = sphi 0, %s27
    %s21 = sphi 0, %s19
    %s22 = sphi 0, %s20
    %s23 = sphi 0, %s21
    %s24 = sphi 0, %s22
    %s36 = sphi 0, %s38
    %s39 = sphi 0, %s36
    %s40 = sphi 0, %s39
    %s56 = sphi 0, %s40
    %s64 = sphi 0, %s66
    %s67 = sphi 0, %s64
    %s68 = sphi 0, %s67
    %s84 = sphi 0, %s68
    %s90 = sphi 0, %s92
    %s93 = sphi 0, %s90
    %s94 = sphi 0, %s93
    %s110 = sphi 0, %s94
    %s116 = sphi 0, %s118
    %s119 = sphi 0, %s116
    %s120 = sphi 0, %s119
    %s136 = sphi 0, %s120
    %s144 = sphi 0, %s146
    %s147 = sphi 0, %s144
    %s148 = sphi 0, %s147
    %s164 = sphi 0, %s148
    %s172 = sphi 0, %s174
    %s175 = sphi 0, %s172
    %s176 = sphi 0, %s175
    %s192 = sphi 0, %s176
  $region4: #{onn2_forward.5} parent=0 // loop_header_branch
    %15 = sbr.rel (%p13) target = $region8
  $region5: #{onn2_forward.5} parent=0 // loop_body
    %s17 = ssub.s32 %s12, 1
    %s18 = ssub.s32 %s12, 2
    %s25 = sadd.s32 1, %s20
    %p26 = scmp.ge.s32.totalorder %s25, 2
    %s27 = scalar_select %p26, 0, %s25
    %s28 = sadd.s32 1, %s19
    %s29 = scalar_select %p26, %s28, %s19
    %p30 = scmp.ge.s32.totalorder %s29, 1
    %s31 = scalar_select %p30, 0, %s29
    %s32 = ssub.s32 %s20, %s27
    %s33 = ssub.s32 %s19, %s31
    %s34 = sor.u32 %s32, %s33
    %p35 = scmp.eq.s32.totalorder %s34, 0
    %s37 = sadd.s32 %s36, 1
    %s38 = scalar_select %p35, %s36, %s37
    %p41 = pneg %p35
    %p42 = scmp.eq.s32.totalorder %s12, 1
    %p43 = por %p41, %p42
    %p44 = scmp.ne.s32.totalorder %s36, %s39
    %p45 = scmp.eq.s32.totalorder %s12, 0
    %p46 = por %p44, %p45
    %p47 = scmp.ne.s32.totalorder %s36, %s39
    %p48 = scmp.eq.s32.totalorder %s17, 1
    %p49 = por %p47, %p48
    %p50 = scmp.ne.s32.totalorder %s39, %s40
    %p51 = scmp.eq.s32.totalorder %s17, 0
    %p52 = por %p50, %p51
    %p53 = scmp.ne.s32.totalorder %s39, %s40
    %p54 = scmp.eq.s32.totalorder %s18, 1
    %p55 = por %p53, %p54
    %p57 = scmp.ne.s32.totalorder %s40, %s56
    %p58 = scmp.eq.s32.totalorder %s18, 0
    %p59 = por %p57, %p58
    %s60 = ssub.s32 %s20, %s27
    %s61 = ssub.s32 %s19, %s31
    %s62 = sor.u32 %s60, %s61
    %p63 = scmp.eq.s32.totalorder %s62, 0
    %s65 = sadd.s32 %s64, 1
    %s66 = scalar_select %p63, %s64, %s65
    %p69 = pneg %p63
    %p70 = scmp.eq.s32.totalorder %s12, 1
    %p71 = por %p69, %p70
    %p72 = scmp.ne.s32.totalorder %s64, %s67
    %p73 = scmp.eq.s32.totalorder %s12, 0
    %p74 = por %p72, %p73
    %p75 = scmp.ne.s32.totalorder %s64, %s67
    %p76 = scmp.eq.s32.totalorder %s17, 1
    %p77 = por %p75, %p76
    %p78 = scmp.ne.s32.totalorder %s67, %s68
    %p79 = scmp.eq.s32.totalorder %s17, 0
    %p80 = por %p78, %p79
    %p81 = scmp.ne.s32.totalorder %s67, %s68
    %p82 = scmp.eq.s32.totalorder %s18, 1
    %p83 = por %p81, %p82
    %p85 = scmp.ne.s32.totalorder %s68, %s84
    %p86 = scmp.eq.s32.totalorder %s18, 0
    %p87 = por %p85, %p86
    %s88 = ssub.s32 %s19, %s31
    %p89 = scmp.eq.s32.totalorder %s88, 0
    %s91 = sadd.s32 %s90, 1
    %s92 = scalar_select %p89, %s90, %s91
    %p95 = pneg %p89
    %p96 = scmp.eq.s32.totalorder %s12, 1
    %p97 = por %p95, %p96
    %p98 = scmp.ne.s32.totalorder %s90, %s93
    %p99 = scmp.eq.s32.totalorder %s12, 0
    %p100 = por %p98, %p99
    %p101 = scmp.ne.s32.totalorder %s90, %s93
    %p102 = scmp.eq.s32.totalorder %s17, 1
    %p103 = por %p101, %p102
    %p104 = scmp.ne.s32.totalorder %s93, %s94
    %p105 = scmp.eq.s32.totalorder %s17, 0
    %p106 = por %p104, %p105
    %p107 = scmp.ne.s32.totalorder %s93, %s94
    %p108 = scmp.eq.s32.totalorder %s18, 1
    %p109 = por %p107, %p108
    %p111 = scmp.ne.s32.totalorder %s94, %s110
    %p112 = scmp.eq.s32.totalorder %s18, 0
    %p113 = por %p111, %p112
    %s114 = ssub.s32 %s19, %s31
    %p115 = scmp.eq.s32.totalorder %s114, 0
    %s117 = sadd.s32 %s116, 1
    %s118 = scalar_select %p115, %s116, %s117
    %p121 = pneg %p115
    %p122 = scmp.eq.s32.totalorder %s12, 1
    %p123 = por %p121, %p122
    %p124 = scmp.ne.s32.totalorder %s116, %s119
    %p125 = scmp.eq.s32.totalorder %s12, 0
    %p126 = por %p124, %p125
    %p127 = scmp.ne.s32.totalorder %s116, %s119
    %p128 = scmp.eq.s32.totalorder %s17, 1
    %p129 = por %p127, %p128
    %p130 = scmp.ne.s32.totalorder %s119, %s120
    %p131 = scmp.eq.s32.totalorder %s17, 0
    %p132 = por %p130, %p131
    %p133 = scmp.ne.s32.totalorder %s119, %s120
    %p134 = scmp.eq.s32.totalorder %s18, 1
    %p135 = por %p133, %p134
    %p137 = scmp.ne.s32.totalorder %s120, %s136
    %p138 = scmp.eq.s32.totalorder %s18, 0
    %p139 = por %p137, %p138
    %s140 = ssub.s32 %s20, %s27
    %s141 = ssub.s32 %s19, %s31
    %s142 = sor.u32 %s140, %s141
    %p143 = scmp.eq.s32.totalorder %s142, 0
    %s145 = sadd.s32 %s144, 1
    %s146 = scalar_select %p143, %s144, %s145
    %p149 = pneg %p143
    %p150 = scmp.eq.s32.totalorder %s12, 1
    %p151 = por %p149, %p150
    %p152 = scmp.ne.s32.totalorder %s144, %s147
    %p153 = scmp.eq.s32.totalorder %s12, 0
    %p154 = por %p152, %p153
    %p155 = scmp.ne.s32.totalorder %s144, %s147
    %p156 = scmp.eq.s32.totalorder %s17, 1
    %p157 = por %p155, %p156
    %p158 = scmp.ne.s32.totalorder %s147, %s148
    %p159 = scmp.eq.s32.totalorder %s17, 0
    %p160 = por %p158, %p159
    %p161 = scmp.ne.s32.totalorder %s147, %s148
    %p162 = scmp.eq.s32.totalorder %s18, 1
    %p163 = por %p161, %p162
    %p165 = scmp.ne.s32.totalorder %s148, %s164
    %p166 = scmp.eq.s32.totalorder %s18, 0
    %p167 = por %p165, %p166
    %s168 = ssub.s32 %s20, %s27
    %s169 = ssub.s32 %s19, %s31
    %s170 = sor.u32 %s168, %s169
    %p171 = scmp.eq.s32.totalorder %s170, 0
    %s173 = sadd.s32 %s172, 1
    %s174 = scalar_select %p171, %s172, %s173
    %p177 = pneg %p171
    %p178 = scmp.eq.s32.totalorder %s12, 1
    %p179 = por %p177, %p178
    %p180 = scmp.ne.s32.totalorder %s172, %s175
    %p181 = scmp.eq.s32.totalorder %s12, 0
    %p182 = por %p180, %p181
    %p183 = scmp.ne.s32.totalorder %s172, %s175
    %p184 = scmp.eq.s32.totalorder %s17, 1
    %p185 = por %p183, %p184
    %p186 = scmp.ne.s32.totalorder %s175, %s176
    %p187 = scmp.eq.s32.totalorder %s17, 0
    %p188 = por %p186, %p187
    %p189 = scmp.ne.s32.totalorder %s175, %s176
    %p190 = scmp.eq.s32.totalorder %s18, 1
    %p191 = por %p189, %p190
    %p193 = scmp.ne.s32.totalorder %s176, %s192
    %p194 = scmp.eq.s32.totalorder %s18, 0
    %p195 = por %p193, %p194
    %p196 = scmp.le.s32.totalorder 1, %s12
    %p197 = scmp.lt.s32.totalorder %s12, 3
    %p198 = pnand %p196, %p197
    %p199 = pneg %p198
    // Predicated region
    $region9: #{onn2_forward.5} parent=5 // pred_check
      _
    $region10: #{onn2_forward.5} parent=5 // pred_check_branch
      %201 = sbr.rel (%p198) target = $region12
    $region11: #{onn2_forward.5} parent=5 // pred_region
      %s202 = ssub.s32 %s12, 1
      // Predicated region
      $region13: #{onn2_forward.5} parent=11 // pred_check
        %p203 = pneg %p106
      $region14: #{onn2_forward.5} parent=11 // pred_check_branch
        %205 = sbr.rel (%p203) target = $region16
      $region15: #{onn2_forward.5} parent=11 // pred_region
        %s206 = smul.u32 16, %s21
        %p207 = scmp.lt.s32.totalorder %s206, 15
        %s208 = scalar_select %p207, %s206, 15
        %s209 = smul.addr %s208, 8
        %s210 = scalar_lea.vmem %s2, %s209
        %s211 = smul.u32 16, %s21
      $region16: #{onn2_forward.5} parent=11 // pred_fallthru
        _
      // Predicated region
      $region17: #{onn2_forward.5} parent=11 // pred_check
        %p212 = pneg %p132
      $region18: #{onn2_forward.5} parent=11 // pred_check_branch
        %214 = sbr.rel (%p212) target = $region20
      $region19: #{onn2_forward.5} parent=11 // pred_region
        %s215 = smul.u32 16, %s21
        %p216 = scmp.lt.s32.totalorder %s215, 15
        %s217 = scalar_select %p216, %s215, 15
        %s218 = smul.addr %s217, 8
        %s219 = scalar_lea.vmem %s3, %s218
        %s220 = smul.u32 16, %s21
      $region20: #{onn2_forward.5} parent=11 // pred_fallthru
        _
    $region12: #{onn2_forward.5} parent=5 // pred_fallthru
      _
    %p221 = scmp.lt.s32.totalorder %s12, 2
    // Predicated region
    $region21: #{onn2_forward.5} parent=5 // pred_check
      %p222 = pneg %p221
    $region22: #{onn2_forward.5} parent=5 // pred_check_branch
      %224 = sbr.rel (%p222) target = $region24
    $region23: #{onn2_forward.5} parent=5 // pred_region
      // Predicated region
      $region25: #{onn2_forward.5} parent=23 // pred_check
        %p225 = pneg %p46
      $region26: #{onn2_forward.5} parent=23 // pred_check_branch
        %227 = sbr.rel (%p225) target = $region28
      $region27: #{onn2_forward.5} parent=23 // pred_region
        %s228 = smul.u32 16, %s19
        %p229 = scmp.lt.s32.totalorder %s20, 1
        %s230 = scalar_select %p229, %s20, 1
        %p231 = scmp.lt.s32.totalorder %s228, 15
        %s232 = scalar_select %p231, %s228, 15
        %s233 = smul.addr %s230, 16
        %s234 = sadd.s32 %s232, %s233
        %s235 = smul.addr %s234, 8
        %s236 = scalar_lea.vmem %s0, %s235
        %s237 = smul.u32 16, %s19
      $region28: #{onn2_forward.5} parent=23 // pred_fallthru
        _
      // Predicated region
      $region29: #{onn2_forward.5} parent=23 // pred_check
        %p238 = pneg %p74
      $region30: #{onn2_forward.5} parent=23 // pred_check_branch
        %240 = sbr.rel (%p238) target = $region32
      $region31: #{onn2_forward.5} parent=23 // pred_region
        %s241 = smul.u32 16, %s19
        %p242 = scmp.lt.s32.totalorder %s20, 1
        %s243 = scalar_select %p242, %s20, 1
        %p244 = scmp.lt.s32.totalorder %s241, 15
        %s245 = scalar_select %p244, %s241, 15
        %s246 = smul.addr %s243, 16
        %s247 = sadd.s32 %s245, %s246
        %s248 = smul.addr %s247, 8
        %s249 = scalar_lea.vmem %s1, %s248
        %s250 = smul.u32 16, %s19
      $region32: #{onn2_forward.5} parent=23 // pred_fallthru
        _
    $region24: #{onn2_forward.5} parent=5 // pred_fallthru
      _
    %p251 = scmp.le.s32.totalorder 1, %s12
    %p252 = scmp.lt.s32.totalorder %s12, 3
    %p253 = pnand %p251, %p252
    %p254 = pneg %p253
    // Predicated region
    $region33: #{onn2_forward.5} parent=5 // pred_check
      _
    $region34: #{onn2_forward.5} parent=5 // pred_check_branch
      %256 = sbr.rel (%p253) target = $region36
    $region35: #{onn2_forward.5} parent=5 // pred_region
      %s257 = ssub.s32 %s12, 1
      %s258 = smul.u32 16, %s21
      %p259 = scmp.lt.s32.totalorder %s22, 1
      %s260 = scalar_select %p259, %s22, 1
      %p261 = scmp.lt.s32.totalorder %s258, 15
      %s262 = scalar_select %p261, %s258, 15
      %s263 = smul.addr %s260, 16
      %s264 = sadd.s32 %s262, %s263
      %s265 = smul.addr %s264, 8
      %s266 = scalar_lea.vmem %s0, %s265
      %p267 = pneg %p52
      %p268 = pneg %p49
      %s269 = smul.u32 16, %s21
      %p270 = scmp.lt.s32.totalorder %s22, 1
      %s271 = scalar_select %p270, %s22, 1
      %p272 = scmp.lt.s32.totalorder %s269, 15
      %s273 = scalar_select %p272, %s269, 15
      %s274 = smul.addr %s271, 16
      %s275 = sadd.s32 %s273, %s274
      %s276 = smul.addr %s275, 8
      %s277 = scalar_lea.vmem %s1, %s276
      %p278 = pneg %p80
      %p279 = pneg %p77
      %s280 = smul.u32 16, %s21
      %p281 = scmp.lt.s32.totalorder %s280, 15
      %s282 = scalar_select %p281, %s280, 15
      %s283 = smul.addr %s282, 8
      %s284 = scalar_lea.vmem %s2, %s283
      %p285 = pneg %p106
      %p286 = pneg %p103
      %s287 = smul.u32 16, %s21
      %p288 = scmp.lt.s32.totalorder %s287, 15
      %s289 = scalar_select %p288, %s287, 15
      %s290 = smul.addr %s289, 8
      %s291 = scalar_lea.vmem %s3, %s290
      %p292 = pneg %p132
      %p293 = pneg %p129
      %p294 = pneg %p160
      %p295 = pneg %p157
      %s296 = smul.u32 16, %s21
      %p297 = scmp.lt.s32.totalorder %s22, 1
      %s298 = scalar_select %p297, %s22, 1
      %p299 = scmp.lt.s32.totalorder %s296, 15
      %s300 = scalar_select %p299, %s296, 15
      %s301 = smul.addr %s298, 16
      %s302 = sadd.s32 %s300, %s301
      %s303 = smul.addr %s302, 8
      %s304 = scalar_lea.vmem %s4, %s303
      %p305 = pneg %p188
      %p306 = pneg %p185
      %s307 = smul.u32 16, %s21
      %p308 = scmp.lt.s32.totalorder %s22, 1
      %s309 = scalar_select %p308, %s22, 1
      %p310 = scmp.lt.s32.totalorder %s307, 15
      %s311 = scalar_select %p310, %s307, 15
      %s312 = smul.addr %s309, 16
      %s313 = sadd.s32 %s311, %s312
      %s314 = smul.addr %s313, 8
      %s315 = scalar_lea.vmem %s5, %s314
      %s316 = smul.u32 16, %s21
      %p317 = scmp.lt.s32.totalorder %s22, 1
      %s318 = scalar_select %p317, %s22, 1
      %p319 = scmp.lt.s32.totalorder %s316, 15
      %s320 = scalar_select %p319, %s316, 15
      %s321 = smul.addr %s318, 16
      %s322 = sadd.s32 %s320, %s321
      %s323 = smul.addr %s322, 8
      %s324 = scalar_lea.vmem %s0, %s323
      %s325 = smul.u32 16, %s21
      %s326 = smul.u32 16, %s21
      %p327 = scmp.lt.s32.totalorder %s22, 1
      %s328 = scalar_select %p327, %s22, 1
      %p329 = scmp.lt.s32.totalorder %s326, 15
      %s330 = scalar_select %p329, %s326, 15
      %s331 = smul.addr %s328, 16
      %s332 = sadd.s32 %s330, %s331
      %s333 = smul.addr %s332, 8
      %s334 = scalar_lea.vmem %s1, %s333
      %s335 = smul.u32 16, %s21
      %s336 = smul.u32 16, %s21
      %p337 = scmp.lt.s32.totalorder %s336, 15
      %s338 = scalar_select %p337, %s336, 15
      %s339 = smul.addr %s338, 8
      %s340 = scalar_lea.vmem %s2, %s339
      %s341 = smul.u32 16, %s21
      %s342 = smul.u32 16, %s21
      %p343 = scmp.lt.s32.totalorder %s342, 15
      %s344 = scalar_select %p343, %s342, 15
      %s345 = smul.addr %s344, 8
      %s346 = scalar_lea.vmem %s3, %s345
      %s347 = smul.u32 16, %s21
      %s348 = smul.u32 16, %s21
      %p349 = scmp.lt.s32.totalorder %s22, 1
      %s350 = scalar_select %p349, %s22, 1
      %p351 = scmp.lt.s32.totalorder %s348, 15
      %s352 = scalar_select %p351, %s348, 15
      %s353 = smul.addr %s350, 16
      %s354 = sadd.s32 %s352, %s353
      %s355 = smul.addr %s354, 8
      %s356 = scalar_lea.vmem %s4, %s355
      %s357 = smul.u32 16, %s21
      %s358 = smul.u32 16, %s21
      %p359 = scmp.lt.s32.totalorder %s22, 1
      %s360 = scalar_select %p359, %s22, 1
      %p361 = scmp.lt.s32.totalorder %s358, 15
      %s362 = scalar_select %p361, %s358, 15
      %s363 = smul.addr %s360, 16
      %s364 = sadd.s32 %s362, %s363
      %s365 = smul.addr %s364, 8
      %s366 = scalar_lea.vmem %s5, %s365
      %s367 = smul.u32 16, %s21
      %v368 = vld [vmem:[%s324] sm:$0xff]
      %v369 = vld [vmem:[%s324 + $0x8] sm:$0xff]
      %v370 = vld [vmem:[%s324 + $0x10] sm:$0xff]
      %v371 = vld [vmem:[%s324 + $0x18] sm:$0xff]
      %v372 = vld [vmem:[%s324 + $0x20] sm:$0xff]
      %v373 = vld [vmem:[%s324 + $0x28] sm:$0xff]
      %v374 = vld [vmem:[%s324 + $0x30] sm:$0xff]
      %v375 = vld [vmem:[%s324 + $0x38] sm:$0xff]
      %v376 = vld [vmem:[%s324 + $0x40] sm:$0xff]
      %v377 = vld [vmem:[%s324 + $0x48] sm:$0xff]
      %v378 = vld [vmem:[%s324 + $0x50] sm:$0xff]
      %v379 = vld [vmem:[%s324 + $0x58] sm:$0xff]
      %v380 = vld [vmem:[%s324 + $0x60] sm:$0xff]
      %v381 = vld [vmem:[%s324 + $0x68] sm:$0xff]
      %v382 = vld [vmem:[%s324 + $0x70] sm:$0xff]
      %v383 = vld [vmem:[%s324 + $0x78] sm:$0xff]
      %v384 = vld [vmem:[%s334] sm:$0xff]
      %v385 = vld [vmem:[%s334 + $0x8] sm:$0xff]
      %v386 = vld [vmem:[%s334 + $0x10] sm:$0xff]
      %v387 = vld [vmem:[%s334 + $0x18] sm:$0xff]
      %v388 = vld [vmem:[%s334 + $0x20] sm:$0xff]
      %v389 = vld [vmem:[%s334 + $0x28] sm:$0xff]
      %v390 = vld [vmem:[%s334 + $0x30] sm:$0xff]
      %v391 = vld [vmem:[%s334 + $0x38] sm:$0xff]
      %v392 = vld [vmem:[%s334 + $0x40] sm:$0xff]
      %v393 = vld [vmem:[%s334 + $0x48] sm:$0xff]
      %v394 = vld [vmem:[%s334 + $0x50] sm:$0xff]
      %v395 = vld [vmem:[%s334 + $0x58] sm:$0xff]
      %v396 = vld [vmem:[%s334 + $0x60] sm:$0xff]
      %v397 = vld [vmem:[%s334 + $0x68] sm:$0xff]
      %v398 = vld [vmem:[%s334 + $0x70] sm:$0xff]
      %v399 = vld [vmem:[%s334 + $0x78] sm:$0xff]
      %v400 = vld [vmem:[%s340] sm:$0xff]
      %v401 = vld [vmem:[%s340 + $0x8] sm:$0xff]
      %v402 = vld [vmem:[%s340 + $0x10] sm:$0xff]
      %v403 = vld [vmem:[%s340 + $0x18] sm:$0xff]
      %v404 = vld [vmem:[%s340 + $0x20] sm:$0xff]
      %v405 = vld [vmem:[%s340 + $0x28] sm:$0xff]
      %v406 = vld [vmem:[%s340 + $0x30] sm:$0xff]
      %v407 = vld [vmem:[%s340 + $0x38] sm:$0xff]
      %v408 = vld [vmem:[%s340 + $0x40] sm:$0xff]
      %v409 = vld [vmem:[%s340 + $0x48] sm:$0xff]
      %v410 = vld [vmem:[%s340 + $0x50] sm:$0xff]
      %v411 = vld [vmem:[%s340 + $0x58] sm:$0xff]
      %v412 = vld [vmem:[%s340 + $0x60] sm:$0xff]
      %v413 = vld [vmem:[%s340 + $0x68] sm:$0xff]
      %v414 = vld [vmem:[%s340 + $0x70] sm:$0xff]
      %v415 = vld [vmem:[%s340 + $0x78] sm:$0xff]
      %v416 = vld [vmem:[%s346] sm:$0xff]
      %v417 = vld [vmem:[%s346 + $0x8] sm:$0xff]
      %v418 = vld [vmem:[%s346 + $0x10] sm:$0xff]
      %v419 = vld [vmem:[%s346 + $0x18] sm:$0xff]
      %v420 = vld [vmem:[%s346 + $0x20] sm:$0xff]
      %v421 = vld [vmem:[%s346 + $0x28] sm:$0xff]
      %v422 = vld [vmem:[%s346 + $0x30] sm:$0xff]
      %v423 = vld [vmem:[%s346 + $0x38] sm:$0xff]
      %v424 = vld [vmem:[%s346 + $0x40] sm:$0xff]
      %v425 = vld [vmem:[%s346 + $0x48] sm:$0xff]
      %v426 = vld [vmem:[%s346 + $0x50] sm:$0xff]
      %v427 = vld [vmem:[%s346 + $0x58] sm:$0xff]
      %v428 = vld [vmem:[%s346 + $0x60] sm:$0xff]
      %v429 = vld [vmem:[%s346 + $0x68] sm:$0xff]
      %v430 = vld [vmem:[%s346 + $0x70] sm:$0xff]
      %v431 = vld [vmem:[%s346 + $0x78] sm:$0xff]
      %v432 = vmul.f32 %v368, %v400
      %v433 = vmul.f32 %v369, %v401
      %v434 = vmul.f32 %v370, %v402
      %v435 = vmul.f32 %v371, %v403
      %v436 = vmul.f32 %v372, %v404
      %v437 = vmul.f32 %v373, %v405
      %v438 = vmul.f32 %v374, %v406
      %v439 = vmul.f32 %v375, %v407
      %v440 = vmul.f32 %v376, %v408
      %v441 = vmul.f32 %v377, %v409
      %v442 = vmul.f32 %v378, %v410
      %v443 = vmul.f32 %v379, %v411
      %v444 = vmul.f32 %v380, %v412
      %v445 = vmul.f32 %v381, %v413
      %v446 = vmul.f32 %v382, %v414
      %v447 = vmul.f32 %v383, %v415
      %v448 = vmul.f32 %v384, %v416
      %v449 = vmul.f32 %v385, %v417
      %v450 = vmul.f32 %v386, %v418
      %v451 = vmul.f32 %v387, %v419
      %v452 = vmul.f32 %v388, %v420
      %v453 = vmul.f32 %v389, %v421
      %v454 = vmul.f32 %v390, %v422
      %v455 = vmul.f32 %v391, %v423
      %v456 = vmul.f32 %v392, %v424
      %v457 = vmul.f32 %v393, %v425
      %v458 = vmul.f32 %v394, %v426
      %v459 = vmul.f32 %v395, %v427
      %v460 = vmul.f32 %v396, %v428
      %v461 = vmul.f32 %v397, %v429
      %v462 = vmul.f32 %v398, %v430
      %v463 = vmul.f32 %v399, %v431
      %v464 = vsub.f32 %v432, %v448
      %v465 = vsub.f32 %v433, %v449
      %v466 = vsub.f32 %v434, %v450
      %v467 = vsub.f32 %v435, %v451
      %v468 = vsub.f32 %v436, %v452
      %v469 = vsub.f32 %v437, %v453
      %v470 = vsub.f32 %v438, %v454
      %v471 = vsub.f32 %v439, %v455
      %v472 = vsub.f32 %v440, %v456
      %v473 = vsub.f32 %v441, %v457
      %v474 = vsub.f32 %v442, %v458
      %v475 = vsub.f32 %v443, %v459
      %v476 = vsub.f32 %v444, %v460
      %v477 = vsub.f32 %v445, %v461
      %v478 = vsub.f32 %v446, %v462
      %v479 = vsub.f32 %v447, %v463
      %480 = vst [vmem:[%s356] sm:$0xff] %v464
      %481 = vst [vmem:[%s356 + $0x8] sm:$0xff] %v465
      %482 = vst [vmem:[%s356 + $0x10] sm:$0xff] %v466
      %483 = vst [vmem:[%s356 + $0x18] sm:$0xff] %v467
      %484 = vst [vmem:[%s356 + $0x20] sm:$0xff] %v468
      %485 = vst [vmem:[%s356 + $0x28] sm:$0xff] %v469
      %486 = vst [vmem:[%s356 + $0x30] sm:$0xff] %v470
      %487 = vst [vmem:[%s356 + $0x38] sm:$0xff] %v471
      %488 = vst [vmem:[%s356 + $0x40] sm:$0xff] %v472
      %489 = vst [vmem:[%s356 + $0x48] sm:$0xff] %v473
      %490 = vst [vmem:[%s356 + $0x50] sm:$0xff] %v474
      %491 = vst [vmem:[%s356 + $0x58] sm:$0xff] %v475
      %492 = vst [vmem:[%s356 + $0x60] sm:$0xff] %v476
      %493 = vst [vmem:[%s356 + $0x68] sm:$0xff] %v477
      %494 = vst [vmem:[%s356 + $0x70] sm:$0xff] %v478
      %495 = vst [vmem:[%s356 + $0x78] sm:$0xff] %v479
      %v496 = vmul.f32 %v368, %v416
      %v497 = vmul.f32 %v369, %v417
      %v498 = vmul.f32 %v370, %v418
      %v499 = vmul.f32 %v371, %v419
      %v500 = vmul.f32 %v372, %v420
      %v501 = vmul.f32 %v373, %v421
      %v502 = vmul.f32 %v374, %v422
      %v503 = vmul.f32 %v375, %v423
      %v504 = vmul.f32 %v376, %v424
      %v505 = vmul.f32 %v377, %v425
      %v506 = vmul.f32 %v378, %v426
      %v507 = vmul.f32 %v379, %v427
      %v508 = vmul.f32 %v380, %v428
      %v509 = vmul.f32 %v381, %v429
      %v510 = vmul.f32 %v382, %v430
      %v511 = vmul.f32 %v383, %v431
      %v512 = vmul.f32 %v384, %v400
      %v513 = vmul.f32 %v385, %v401
      %v514 = vmul.f32 %v386, %v402
      %v515 = vmul.f32 %v387, %v403
      %v516 = vmul.f32 %v388, %v404
      %v517 = vmul.f32 %v389, %v405
      %v518 = vmul.f32 %v390, %v406
      %v519 = vmul.f32 %v391, %v407
      %v520 = vmul.f32 %v392, %v408
      %v521 = vmul.f32 %v393, %v409
      %v522 = vmul.f32 %v394, %v410
      %v523 = vmul.f32 %v395, %v411
      %v524 = vmul.f32 %v396, %v412
      %v525 = vmul.f32 %v397, %v413
      %v526 = vmul.f32 %v398, %v414
      %v527 = vmul.f32 %v399, %v415
      %v528 = vadd.f32 %v496, %v512
      %v529 = vadd.f32 %v497, %v513
      %v530 = vadd.f32 %v498, %v514
      %v531 = vadd.f32 %v499, %v515
      %v532 = vadd.f32 %v500, %v516
      %v533 = vadd.f32 %v501, %v517
      %v534 = vadd.f32 %v502, %v518
      %v535 = vadd.f32 %v503, %v519
      %v536 = vadd.f32 %v504, %v520
      %v537 = vadd.f32 %v505, %v521
      %v538 = vadd.f32 %v506, %v522
      %v539 = vadd.f32 %v507, %v523
      %v540 = vadd.f32 %v508, %v524
      %v541 = vadd.f32 %v509, %v525
      %v542 = vadd.f32 %v510, %v526
      %v543 = vadd.f32 %v511, %v527
      %544 = vst [vmem:[%s366] sm:$0xff] %v528
      %545 = vst [vmem:[%s366 + $0x8] sm:$0xff] %v529
      %546 = vst [vmem:[%s366 + $0x10] sm:$0xff] %v530
      %547 = vst [vmem:[%s366 + $0x18] sm:$0xff] %v531
      %548 = vst [vmem:[%s366 + $0x20] sm:$0xff] %v532
      %549 = vst [vmem:[%s366 + $0x28] sm:$0xff] %v533
      %550 = vst [vmem:[%s366 + $0x30] sm:$0xff] %v534
      %551 = vst [vmem:[%s366 + $0x38] sm:$0xff] %v535
      %552 = vst [vmem:[%s366 + $0x40] sm:$0xff] %v536
      %553 = vst [vmem:[%s366 + $0x48] sm:$0xff] %v537
      %554 = vst [vmem:[%s366 + $0x50] sm:$0xff] %v538
      %555 = vst [vmem:[%s366 + $0x58] sm:$0xff] %v539
      %556 = vst [vmem:[%s366 + $0x60] sm:$0xff] %v540
      %557 = vst [vmem:[%s366 + $0x68] sm:$0xff] %v541
      %558 = vst [vmem:[%s366 + $0x70] sm:$0xff] %v542
      %559 = vst [vmem:[%s366 + $0x78] sm:$0xff] %v543
      %s560 = smul.u32 16, %s21
      %p561 = scmp.lt.s32.totalorder %s22, 1
      %s562 = scalar_select %p561, %s22, 1
      %p563 = scmp.lt.s32.totalorder %s560, 15
      %s564 = scalar_select %p563, %s560, 15
      %s565 = smul.addr %s562, 16
      %s566 = sadd.s32 %s564, %s565
      %s567 = smul.addr %s566, 8
      %s568 = scalar_lea.vmem %s4, %s567
      %s569 = smul.u32 16, %s21
      %p570 = scmp.lt.s32.totalorder %s22, 1
      %s571 = scalar_select %p570, %s22, 1
      %p572 = scmp.lt.s32.totalorder %s569, 15
      %s573 = scalar_select %p572, %s569, 15
      %s574 = smul.addr %s571, 16
      %s575 = sadd.s32 %s573, %s574
      %s576 = smul.addr %s575, 8
      %s577 = scalar_lea.vmem %s5, %s576
      // Predicated region
      $region37: #{onn2_forward.5} parent=35 // pred_check
        %p578 = pneg %p157
      $region38: #{onn2_forward.5} parent=35 // pred_check_branch
        %580 = sbr.rel (%p578) target = $region40
      $region39: #{onn2_forward.5} parent=35 // pred_region
        %s581 = smul.u32 16, %s21
      $region40: #{onn2_forward.5} parent=35 // pred_fallthru
        _
      // Predicated region
      $region41: #{onn2_forward.5} parent=35 // pred_check
        %p582 = pneg %p185
      $region42: #{onn2_forward.5} parent=35 // pred_check_branch
        %584 = sbr.rel (%p582) target = $region44
      $region43: #{onn2_forward.5} parent=35 // pred_region
        %s585 = smul.u32 16, %s21
      $region44: #{onn2_forward.5} parent=35 // pred_fallthru
        _
    $region36: #{onn2_forward.5} parent=5 // pred_fallthru
      _
    %p586 = scmp.le.s32.totalorder 2, %s12
    // Predicated region
    $region45: #{onn2_forward.5} parent=5 // pred_check
      %p587 = pneg %p586
    $region46: #{onn2_forward.5} parent=5 // pred_check_branch
      %589 = sbr.rel (%p587) target = $region48
    $region47: #{onn2_forward.5} parent=5 // pred_region
      %s590 = ssub.s32 %s12, 2
      // Predicated region
      $region49: #{onn2_forward.5} parent=47 // pred_check
        %p591 = pneg %p163
      $region50: #{onn2_forward.5} parent=47 // pred_check_branch
        %593 = sbr.rel (%p591) target = $region52
      $region51: #{onn2_forward.5} parent=47 // pred_region
        %s594 = smul.u32 16, %s23
        %p595 = scmp.lt.s32.totalorder %s24, 1
        %s596 = scalar_select %p595, %s24, 1
        %p597 = scmp.lt.s32.totalorder %s594, 15
        %s598 = scalar_select %p597, %s594, 15
        %s599 = smul.addr %s596, 16
        %s600 = sadd.s32 %s598, %s599
        %s601 = smul.addr %s600, 8
        %s602 = scalar_lea.vmem %s4, %s601
      $region52: #{onn2_forward.5} parent=47 // pred_fallthru
        _
      // Predicated region
      $region53: #{onn2_forward.5} parent=47 // pred_check
        %p603 = pneg %p191
      $region54: #{onn2_forward.5} parent=47 // pred_check_branch
        %605 = sbr.rel (%p603) target = $region56
      $region55: #{onn2_forward.5} parent=47 // pred_region
        %s606 = smul.u32 16, %s23
        %p607 = scmp.lt.s32.totalorder %s24, 1
        %s608 = scalar_select %p607, %s24, 1
        %p609 = scmp.lt.s32.totalorder %s606, 15
        %s610 = scalar_select %p609, %s606, 15
        %s611 = smul.addr %s608, 16
        %s612 = sadd.s32 %s610, %s611
        %s613 = smul.addr %s612, 8
        %s614 = scalar_lea.vmem %s5, %s613
      $region56: #{onn2_forward.5} parent=47 // pred_fallthru
        _
    $region48: #{onn2_forward.5} parent=5 // pred_fallthru
      _
  $region6: #{onn2_forward.5} parent=0 // loop_footer
    %s16 = sadd.s32 1, %s12
  $region7: #{onn2_forward.5} parent=0 // loop_footer_branch
    %11 = sbr.rel target = $region3
  $region8: #{onn2_forward.5} parent=0 // loop_exit
    _

// kernel: custom-call
$region0: #{custom-call}
  %s0 = inlined_call_operand.vmem [shape: f32[2,1,128,128], index: 0, kind: input, shape index: {}]
  %s1 = inlined_call_operand.vmem [shape: f32[2,1,128,128], index: 1, kind: input, shape index: {}]
  %s2 = inlined_call_operand.vmem [shape: c64[2,1,128,128], index: 2, kind: output, shape index: {}]
  %s4 = scalar_lea.vmem %s2, 256
  %v5 = vld [vmem:[%s0] sm:$0xff]
  %6 = vst [vmem:[%s2] sm:$0xff] %v5
  %s7 = scalar_lea.vmem %s2, 8
  %s8 = scalar_lea.vmem %s0, 8
  %v9 = vld [vmem:[%s8] sm:$0xff]
  %10 = vst [vmem:[%s7] sm:$0xff] %v9
  %s11 = scalar_lea.vmem %s2, 16
  %s12 = scalar_lea.vmem %s0, 16
  %v13 = vld [vmem:[%s12] sm:$0xff]
  %14 = vst [vmem:[%s11] sm:$0xff] %v13
  %s15 = scalar_lea.vmem %s2, 24
  %s16 = scalar_lea.vmem %s0, 24
  %v17 = vld [vmem:[%s16] sm:$0xff]
  %18 = vst [vmem:[%s15] sm:$0xff] %v17
  %s19 = scalar_lea.vmem %s2, 32
  %s20 = scalar_lea.vmem %s0, 32
  %v21 = vld [vmem:[%s20] sm:$0xff]
  %22 = vst [vmem:[%s19] sm:$0xff] %v21
  %s23 = scalar_lea.vmem %s2, 40
  %s24 = scalar_lea.vmem %s0, 40
  %v25 = vld [vmem:[%s24] sm:$0xff]
  %26 = vst [vmem:[%s23] sm:$0xff] %v25
  %s27 = scalar_lea.vmem %s2, 48
  %s28 = scalar_lea.vmem %s0, 48
  %v29 = vld [vmem:[%s28] sm:$0xff]
  %30 = vst [vmem:[%s27] sm:$0xff] %v29
  %s31 = scalar_lea.vmem %s2, 56
  %s32 = scalar_lea.vmem %s0, 56
  %v33 = vld [vmem:[%s32] sm:$0xff]
  %34 = vst [vmem:[%s31] sm:$0xff] %v33
  %s35 = scalar_lea.vmem %s2, 64
  %s36 = scalar_lea.vmem %s0, 64
  %v37 = vld [vmem:[%s36] sm:$0xff]
  %38 = vst [vmem:[%s35] sm:$0xff] %v37
  %s39 = scalar_lea.vmem %s2, 72
  %s40 = scalar_lea.vmem %s0, 72
  %v41 = vld [vmem:[%s40] sm:$0xff]
  %42 = vst [vmem:[%s39] sm:$0xff] %v41
  %s43 = scalar_lea.vmem %s2, 80
  %s44 = scalar_lea.vmem %s0, 80
  %v45 = vld [vmem:[%s44] sm:$0xff]
  %46 = vst [vmem:[%s43] sm:$0xff] %v45
  %s47 = scalar_lea.vmem %s2, 88
  %s48 = scalar_lea.vmem %s0, 88
  %v49 = vld [vmem:[%s48] sm:$0xff]
  %50 = vst [vmem:[%s47] sm:$0xff] %v49
  %s51 = scalar_lea.vmem %s2, 96
  %s52 = scalar_lea.vmem %s0, 96
  %v53 = vld [vmem:[%s52] sm:$0xff]
  %54 = vst [vmem:[%s51] sm:$0xff] %v53
  %s55 = scalar_lea.vmem %s2, 104
  %s56 = scalar_lea.vmem %s0, 104
  %v57 = vld [vmem:[%s56] sm:$0xff]
  %58 = vst [vmem:[%s55] sm:$0xff] %v57
  %s59 = scalar_lea.vmem %s2, 112
  %s60 = scalar_lea.vmem %s0, 112
  %v61 = vld [vmem:[%s60] sm:$0xff]
  %62 = vst [vmem:[%s59] sm:$0xff] %v61
  %s63 = scalar_lea.vmem %s2, 120
  %s64 = scalar_lea.vmem %s0, 120
  %v65 = vld [vmem:[%s64] sm:$0xff]
  %66 = vst [vmem:[%s63] sm:$0xff] %v65
  %s67 = scalar_lea.vmem %s2, 128
  %s68 = scalar_lea.vmem %s0, 128
  %v69 = vld [vmem:[%s68] sm:$0xff]
  %70 = vst [vmem:[%s67] sm:$0xff] %v69
  %s71 = scalar_lea.vmem %s2, 136
  %s72 = scalar_lea.vmem %s0, 136
  %v73 = vld [vmem:[%s72] sm:$0xff]
  %74 = vst [vmem:[%s71] sm:$0xff] %v73
  %s75 = scalar_lea.vmem %s2, 144
  %s76 = scalar_lea.vmem %s0, 144
  %v77 = vld [vmem:[%s76] sm:$0xff]
  %78 = vst [vmem:[%s75] sm:$0xff] %v77
  %s79 = scalar_lea.vmem %s2, 152
  %s80 = scalar_lea.vmem %s0, 152
  %v81 = vld [vmem:[%s80] sm:$0xff]
  %82 = vst [vmem:[%s79] sm:$0xff] %v81
  %s83 = scalar_lea.vmem %s2, 160
  %s84 = scalar_lea.vmem %s0, 160
  %v85 = vld [vmem:[%s84] sm:$0xff]
  %86 = vst [vmem:[%s83] sm:$0xff] %v85
  %s87 = scalar_lea.vmem %s2, 168
  %s88 = scalar_lea.vmem %s0, 168
  %v89 = vld [vmem:[%s88] sm:$0xff]
  %90 = vst [vmem:[%s87] sm:$0xff] %v89
  %s91 = scalar_lea.vmem %s2, 176
  %s92 = scalar_lea.vmem %s0, 176
  %v93 = vld [vmem:[%s92] sm:$0xff]
  %94 = vst [vmem:[%s91] sm:$0xff] %v93
  %s95 = scalar_lea.vmem %s2, 184
  %s96 = scalar_lea.vmem %s0, 184
  %v97 = vld [vmem:[%s96] sm:$0xff]
  %98 = vst [vmem:[%s95] sm:$0xff] %v97
  %s99 = scalar_lea.vmem %s2, 192
  %s100 = scalar_lea.vmem %s0, 192
  %v101 = vld [vmem:[%s100] sm:$0xff]
  %102 = vst [vmem:[%s99] sm:$0xff] %v101
  %s103 = scalar_lea.vmem %s2, 200
  %s104 = scalar_lea.vmem %s0, 200
  %v105 = vld [vmem:[%s104] sm:$0xff]
  %106 = vst [vmem:[%s103] sm:$0xff] %v105
  %s107 = scalar_lea.vmem %s2, 208
  %s108 = scalar_lea.vmem %s0, 208
  %v109 = vld [vmem:[%s108] sm:$0xff]
  %110 = vst [vmem:[%s107] sm:$0xff] %v109
  %s111 = scalar_lea.vmem %s2, 216
  %s112 = scalar_lea.vmem %s0, 216
  %v113 = vld [vmem:[%s112] sm:$0xff]
  %114 = vst [vmem:[%s111] sm:$0xff] %v113
  %s115 = scalar_lea.vmem %s2, 224
  %s116 = scalar_lea.vmem %s0, 224
  %v117 = vld [vmem:[%s116] sm:$0xff]
  %118 = vst [vmem:[%s115] sm:$0xff] %v117
  %s119 = scalar_lea.vmem %s2, 232
  %s120 = scalar_lea.vmem %s0, 232
  %v121 = vld [vmem:[%s120] sm:$0xff]
  %122 = vst [vmem:[%s119] sm:$0xff] %v121
  %s123 = scalar_lea.vmem %s2, 240
  %s124 = scalar_lea.vmem %s0, 240
  %v125 = vld [vmem:[%s124] sm:$0xff]
  %126 = vst [vmem:[%s123] sm:$0xff] %v125
  %s127 = scalar_lea.vmem %s2, 248
  %s128 = scalar_lea.vmem %s0, 248
  %v129 = vld [vmem:[%s128] sm:$0xff]
  %130 = vst [vmem:[%s127] sm:$0xff] %v129
  %v131 = vld [vmem:[%s1] sm:$0xff]
  %132 = vst [vmem:[%s4] sm:$0xff] %v131
  %s133 = scalar_lea.vmem %s4, 8
  %s134 = scalar_lea.vmem %s1, 8
  %v135 = vld [vmem:[%s134] sm:$0xff]
  %136 = vst [vmem:[%s133] sm:$0xff] %v135
  %s137 = scalar_lea.vmem %s4, 16
  %s138 = scalar_lea.vmem %s1, 16
  %v139 = vld [vmem:[%s138] sm:$0xff]
  %140 = vst [vmem:[%s137] sm:$0xff] %v139
  %s141 = scalar_lea.vmem %s4, 24
  %s142 = scalar_lea.vmem %s1, 24
  %v143 = vld [vmem:[%s142] sm:$0xff]
  %144 = vst [vmem:[%s141] sm:$0xff] %v143
  %s145 = scalar_lea.vmem %s4, 32
  %s146 = scalar_lea.vmem %s1, 32
  %v147 = vld [vmem:[%s146] sm:$0xff]
  %148 = vst [vmem:[%s145] sm:$0xff] %v147
  %s149 = scalar_lea.vmem %s4, 40
  %s150 = scalar_lea.vmem %s1, 40
  %v151 = vld [vmem:[%s150] sm:$0xff]
  %152 = vst [vmem:[%s149] sm:$0xff] %v151
  %s153 = scalar_lea.vmem %s4, 48
  %s154 = scalar_lea.vmem %s1, 48
  %v155 = vld [vmem:[%s154] sm:$0xff]
  %156 = vst [vmem:[%s153] sm:$0xff] %v155
  %s157 = scalar_lea.vmem %s4, 56
  %s158 = scalar_lea.vmem %s1, 56
  %v159 = vld [vmem:[%s158] sm:$0xff]
  %160 = vst [vmem:[%s157] sm:$0xff] %v159
  %s161 = scalar_lea.vmem %s4, 64
  %s162 = scalar_lea.vmem %s1, 64
  %v163 = vld [vmem:[%s162] sm:$0xff]
  %164 = vst [vmem:[%s161] sm:$0xff] %v163
  %s165 = scalar_lea.vmem %s4, 72
  %s166 = scalar_lea.vmem %s1, 72
  %v167 = vld [vmem:[%s166] sm:$0xff]
  %168 = vst [vmem:[%s165] sm:$0xff] %v167
  %s169 = scalar_lea.vmem %s4, 80
  %s170 = scalar_lea.vmem %s1, 80
  %v171 = vld [vmem:[%s170] sm:$0xff]
  %172 = vst [vmem:[%s169] sm:$0xff] %v171
  %s173 = scalar_lea.vmem %s4, 88
  %s174 = scalar_lea.vmem %s1, 88
  %v175 = vld [vmem:[%s174] sm:$0xff]
  %176 = vst [vmem:[%s173] sm:$0xff] %v175
  %s177 = scalar_lea.vmem %s4, 96
  %s178 = scalar_lea.vmem %s1, 96
  %v179 = vld [vmem:[%s178] sm:$0xff]
  %180 = vst [vmem:[%s177] sm:$0xff] %v179
  %s181 = scalar_lea.vmem %s4, 104
  %s182 = scalar_lea.vmem %s1, 104
  %v183 = vld [vmem:[%s182] sm:$0xff]
  %184 = vst [vmem:[%s181] sm:$0xff] %v183
  %s185 = scalar_lea.vmem %s4, 112
  %s186 = scalar_lea.vmem %s1, 112
  %v187 = vld [vmem:[%s186] sm:$0xff]
  %188 = vst [vmem:[%s185] sm:$0xff] %v187
  %s189 = scalar_lea.vmem %s4, 120
  %s190 = scalar_lea.vmem %s1, 120
  %v191 = vld [vmem:[%s190] sm:$0xff]
  %192 = vst [vmem:[%s189] sm:$0xff] %v191
  %s193 = scalar_lea.vmem %s4, 128
  %s194 = scalar_lea.vmem %s1, 128
  %v195 = vld [vmem:[%s194] sm:$0xff]
  %196 = vst [vmem:[%s193] sm:$0xff] %v195
  %s197 = scalar_lea.vmem %s4, 136
  %s198 = scalar_lea.vmem %s1, 136
  %v199 = vld [vmem:[%s198] sm:$0xff]
  %200 = vst [vmem:[%s197] sm:$0xff] %v199
  %s201 = scalar_lea.vmem %s4, 144
  %s202 = scalar_lea.vmem %s1, 144
  %v203 = vld [vmem:[%s202] sm:$0xff]
  %204 = vst [vmem:[%s201] sm:$0xff] %v203
  %s205 = scalar_lea.vmem %s4, 152
  %s206 = scalar_lea.vmem %s1, 152
  %v207 = vld [vmem:[%s206] sm:$0xff]
  %208 = vst [vmem:[%s205] sm:$0xff] %v207
  %s209 = scalar_lea.vmem %s4, 160
  %s210 = scalar_lea.vmem %s1, 160
  %v211 = vld [vmem:[%s210] sm:$0xff]
  %212 = vst [vmem:[%s209] sm:$0xff] %v211
  %s213 = scalar_lea.vmem %s4, 168
  %s214 = scalar_lea.vmem %s1, 168
  %v215 = vld [vmem:[%s214] sm:$0xff]
  %216 = vst [vmem:[%s213] sm:$0xff] %v215
  %s217 = scalar_lea.vmem %s4, 176
  %s218 = scalar_lea.vmem %s1, 176
  %v219 = vld [vmem:[%s218] sm:$0xff]
  %220 = vst [vmem:[%s217] sm:$0xff] %v219
  %s221 = scalar_lea.vmem %s4, 184
  %s222 = scalar_lea.vmem %s1, 184
  %v223 = vld [vmem:[%s222] sm:$0xff]
  %224 = vst [vmem:[%s221] sm:$0xff] %v223
  %s225 = scalar_lea.vmem %s4, 192
  %s226 = scalar_lea.vmem %s1, 192
  %v227 = vld [vmem:[%s226] sm:$0xff]
  %228 = vst [vmem:[%s225] sm:$0xff] %v227
  %s229 = scalar_lea.vmem %s4, 200
  %s230 = scalar_lea.vmem %s1, 200
  %v231 = vld [vmem:[%s230] sm:$0xff]
  %232 = vst [vmem:[%s229] sm:$0xff] %v231
  %s233 = scalar_lea.vmem %s4, 208
  %s234 = scalar_lea.vmem %s1, 208
  %v235 = vld [vmem:[%s234] sm:$0xff]
  %236 = vst [vmem:[%s233] sm:$0xff] %v235
  %s237 = scalar_lea.vmem %s4, 216
  %s238 = scalar_lea.vmem %s1, 216
  %v239 = vld [vmem:[%s238] sm:$0xff]
  %240 = vst [vmem:[%s237] sm:$0xff] %v239
  %s241 = scalar_lea.vmem %s4, 224
  %s242 = scalar_lea.vmem %s1, 224
  %v243 = vld [vmem:[%s242] sm:$0xff]
  %244 = vst [vmem:[%s241] sm:$0xff] %v243
  %s245 = scalar_lea.vmem %s4, 232
  %s246 = scalar_lea.vmem %s1, 232
  %v247 = vld [vmem:[%s246] sm:$0xff]
  %248 = vst [vmem:[%s245] sm:$0xff] %v247
  %s249 = scalar_lea.vmem %s4, 240
  %s250 = scalar_lea.vmem %s1, 240
  %v251 = vld [vmem:[%s250] sm:$0xff]
  %252 = vst [vmem:[%s249] sm:$0xff] %v251
  %s253 = scalar_lea.vmem %s4, 248
  %s254 = scalar_lea.vmem %s1, 248
  %v255 = vld [vmem:[%s254] sm:$0xff]
  %256 = vst [vmem:[%s253] sm:$0xff] %v255

// kernel: onn2_forward.7
$region0: #{onn2_forward.7}
  #allocation0 [shape = 'u32[]', space=smem, size = 0x4, offset = 0x4, fixed_abs, tag = 'smem constant byte address 0x4 - core index']
  #allocation1 [shape = 'u32[144,128]{1,0:T(1,128)}', space=vmem, size = 0x12000, scoped, tag = 'internal scratch']
  %s0 = inlined_call_operand.vmem [shape: f32[2,16384], index: 0, kind: input, shape index: {}]
  %s1 = inlined_call_operand.vmem [shape: bf16[10,16384], index: 1, kind: input, shape index: {}]
  %s2 = inlined_call_operand.hbm [shape: f32[1,2,10], index: 2, kind: output, shape index: {}]
  %s3 = sld [smem:[#allocation0]]
  $region22: #{onn2_forward.7} parent=0
    _
  %s5 = ssub.s32 1, %s3
  %s6 = scalar_select 0, %s5, %s3
  $region1: #{onn2_forward.7} parent=0
    #allocation2 [shape = 'u8[1024]{0}', space=vmem, size = 0x400, scoped, tag = 'output window, operand 0, single buffered']
    #allocation3 [shape = 's32[1]{0}', space=sflag, size = 0x4, scoped, tag = 'scoped memory for onn2_forward.7']
    %7 = vsyncpa [#allocation3], 0
    // Predicated region
    $region2: #{onn2_forward.7} parent=1 // pred_check
      _
    $region3: #{onn2_forward.7} parent=1 // pred_check_branch
      %9 = sbr.rel (0) target = $region5
    $region4: #{onn2_forward.7} parent=1 // pred_region
      %s10 = sadd.s32 0, 0
      %s11 = smul.u32 128, %s10
      %p12 = scmp.lt.s32.totalorder %s11, 127
      %s13 = scalar_select %p12, %s11, 127
      %s14 = smul.addr %s13, 2
      %s15 = scalar_lea.vmem %s0, %s14
      %s16 = sadd.s32 0, 0
      %s17 = smul.u32 128, %s16
    $region5: #{onn2_forward.7} parent=1 // pred_fallthru
      _
    // Predicated region
    $region6: #{onn2_forward.7} parent=1 // pred_check
      _
    $region7: #{onn2_forward.7} parent=1 // pred_check_branch
      %19 = sbr.rel (0) target = $region9
    $region8: #{onn2_forward.7} parent=1 // pred_region
      %s20 = sadd.s32 0, 0
      %s21 = smul.u32 128, %s20
      %p22 = scmp.lt.s32.totalorder %s21, 127
      %s23 = scalar_select %p22, %s21, 127
      %s24 = smul.addr %s23, 4
      %s25 = scalar_lea.vmem %s1, %s24
      %s26 = sadd.s32 0, 0
      %s27 = smul.u32 128, %s26
    $region9: #{onn2_forward.7} parent=1 // pred_fallthru
      _
    %s28 = sadd.s32 0, 0
    %s29 = smul.u32 128, %s28
    %p30 = scmp.lt.s32.totalorder %s29, 127
    %s31 = scalar_select %p30, %s29, 127
    %s32 = smul.addr %s31, 2
    %s33 = scalar_lea.vmem %s0, %s32
    %s34 = sadd.s32 0, 0
    %s35 = smul.u32 128, %s34
    %p36 = scmp.lt.s32.totalorder %s35, 127
    %s37 = scalar_select %p36, %s35, 127
    %s38 = smul.addr %s37, 4
    %s39 = scalar_lea.vmem %s1, %s38
    %s40 = sadd.s32 0, 0
    %s41 = smul.u32 128, %s40
    %p42 = scmp.lt.s32.totalorder %s41, 127
    %s43 = scalar_select %p42, %s41, 127
    %s44 = smul.addr %s43, 2
    %s45 = scalar_lea.vmem %s0, %s44
    %s46 = sadd.s32 0, 0
    %s47 = smul.u32 128, %s46
    %s48 = sadd.s32 0, 0
    %s49 = smul.u32 128, %s48
    %p50 = scmp.lt.s32.totalorder %s49, 127
    %s51 = scalar_select %p50, %s49, 127
    %s52 = smul.addr %s51, 4
    %s53 = scalar_lea.vmem %s1, %s52
    %s54 = sadd.s32 0, 0
    %s55 = smul.u32 128, %s54
    %p56 = scmp.eq.s32.totalorder 0, 0
    // Predicated region
    $region10: #{onn2_forward.7} parent=1 // pred_check
      %p57 = pneg %p56
    $region11: #{onn2_forward.7} parent=1 // pred_check_branch
      %59 = sbr.rel (%p57) target = $region13
    $region12: #{onn2_forward.7} parent=1 // pred_region
      %vm60 = vcmask 74752
      %61 = vst.msk [vmem:[#allocation2] sm:$0x3] %vm60, 0.0
    $region13: #{onn2_forward.7} parent=1 // pred_fallthru
      _
    %v62 = vld [vmem:[%s53] sm:$0xff]
    %v63 = vld [vmem:[%s53 + $0x8] sm:$0xff]
    %v64 = vld [vmem:[%s53 + $0x10] sm:$0xff]
    %v65 = vld [vmem:[%s53 + $0x18] sm:$0xff]
    %v66 = vld [vmem:[%s53 + $0x20] sm:$0xff]
    %v67 = vld [vmem:[%s53 + $0x28] sm:$0xff]
    %v68 = vld [vmem:[%s53 + $0x30] sm:$0xff]
    %v69 = vld [vmem:[%s53 + $0x38] sm:$0xff]
    %v70 = vld [vmem:[%s53 + $0x40] sm:$0xff]
    %v71 = vld [vmem:[%s53 + $0x48] sm:$0xff]
    %v72 = vld [vmem:[%s53 + $0x50] sm:$0xff]
    %v73 = vld [vmem:[%s53 + $0x58] sm:$0xff]
    %v74 = vld [vmem:[%s53 + $0x60] sm:$0xff]
    %v75 = vld [vmem:[%s53 + $0x68] sm:$0xff]
    %v76 = vld [vmem:[%s53 + $0x70] sm:$0xff]
    %v77 = vld [vmem:[%s53 + $0x78] sm:$0xff]
    %v78 = vld [vmem:[%s53 + $0x80] sm:$0xff]
    %v79 = vld [vmem:[%s53 + $0x88] sm:$0xff]
    %v80 = vld [vmem:[%s53 + $0x90] sm:$0xff]
    %v81 = vld [vmem:[%s53 + $0x98] sm:$0xff]
    %v82 = vld [vmem:[%s53 + $0xa0] sm:$0xff]
    %v83 = vld [vmem:[%s53 + $0xa8] sm:$0xff]
    %v84 = vld [vmem:[%s53 + $0xb0] sm:$0xff]
    %v85 = vld [vmem:[%s53 + $0xb8] sm:$0xff]
    %v86 = vld [vmem:[%s53 + $0xc0] sm:$0xff]
    %v87 = vld [vmem:[%s53 + $0xc8] sm:$0xff]
    %v88 = vld [vmem:[%s53 + $0xd0] sm:$0xff]
    %v89 = vld [vmem:[%s53 + $0xd8] sm:$0xff]
    %v90 = vld [vmem:[%s53 + $0xe0] sm:$0xff]
    %v91 = vld [vmem:[%s53 + $0xe8] sm:$0xff]
    %v92 = vld [vmem:[%s53 + $0xf0] sm:$0xff]
    %v93 = vld [vmem:[%s53 + $0xf8] sm:$0xff]
    %v94 = vld [vmem:[%s53 + $0x100] sm:$0xff]
    %v95 = vld [vmem:[%s53 + $0x108] sm:$0xff]
    %v96 = vld [vmem:[%s53 + $0x110] sm:$0xff]
    %v97 = vld [vmem:[%s53 + $0x118] sm:$0xff]
    %v98 = vld [vmem:[%s53 + $0x120] sm:$0xff]
    %v99 = vld [vmem:[%s53 + $0x128] sm:$0xff]
    %v100 = vld [vmem:[%s53 + $0x130] sm:$0xff]
    %v101 = vld [vmem:[%s53 + $0x138] sm:$0xff]
    %v102 = vld [vmem:[%s53 + $0x140] sm:$0xff]
    %v103 = vld [vmem:[%s53 + $0x148] sm:$0xff]
    %v104 = vld [vmem:[%s53 + $0x150] sm:$0xff]
    %v105 = vld [vmem:[%s53 + $0x158] sm:$0xff]
    %v106 = vld [vmem:[%s53 + $0x160] sm:$0xff]
    %v107 = vld [vmem:[%s53 + $0x168] sm:$0xff]
    %v108 = vld [vmem:[%s53 + $0x170] sm:$0xff]
    %v109 = vld [vmem:[%s53 + $0x178] sm:$0xff]
    %v110 = vld [vmem:[%s53 + $0x180] sm:$0xff]
    %v111 = vld [vmem:[%s53 + $0x188] sm:$0xff]
    %v112 = vld [vmem:[%s53 + $0x190] sm:$0xff]
    %v113 = vld [vmem:[%s53 + $0x198] sm:$0xff]
    %v114 = vld [vmem:[%s53 + $0x1a0] sm:$0xff]
    %v115 = vld [vmem:[%s53 + $0x1a8] sm:$0xff]
    %v116 = vld [vmem:[%s53 + $0x1b0] sm:$0xff]
    %v117 = vld [vmem:[%s53 + $0x1b8] sm:$0xff]
    %v118 = vld [vmem:[%s53 + $0x1c0] sm:$0xff]
    %v119 = vld [vmem:[%s53 + $0x1c8] sm:$0xff]
    %v120 = vld [vmem:[%s53 + $0x1d0] sm:$0xff]
    %v121 = vld [vmem:[%s53 + $0x1d8] sm:$0xff]
    %v122 = vld [vmem:[%s53 + $0x1e0] sm:$0xff]
    %v123 = vld [vmem:[%s53 + $0x1e8] sm:$0xff]
    %v124 = vld [vmem:[%s53 + $0x1f0] sm:$0xff]
    %v125 = vld [vmem:[%s53 + $0x1f8] sm:$0xff]
    %v126 = vld [vmem:[%s53 + $0x200] sm:$0x11]
    %v127 = vld [vmem:[%s53 + $0x208] sm:$0x11]
    %v128 = vld [vmem:[%s53 + $0x210] sm:$0x11]
    %v129 = vld [vmem:[%s53 + $0x218] sm:$0x11]
    %v130 = vld [vmem:[%s53 + $0x220] sm:$0x11]
    %v131 = vld [vmem:[%s53 + $0x228] sm:$0x11]
    %v132 = vld [vmem:[%s53 + $0x230] sm:$0x11]
    %v133 = vld [vmem:[%s53 + $0x238] sm:$0x11]
    %v134 = vld [vmem:[%s53 + $0x240] sm:$0x11]
    %v135 = vld [vmem:[%s53 + $0x248] sm:$0x11]
    %v136 = vld [vmem:[%s53 + $0x250] sm:$0x11]
    %v137 = vld [vmem:[%s53 + $0x258] sm:$0x11]
    %v138 = vld [vmem:[%s53 + $0x260] sm:$0x11]
    %v139 = vld [vmem:[%s53 + $0x268] sm:$0x11]
    %v140 = vld [vmem:[%s53 + $0x270] sm:$0x11]
    %v141 = vld [vmem:[%s53 + $0x278] sm:$0x11]
    %v142 = vld [vmem:[%s53 + $0x280] sm:$0x11]
    %v143 = vld [vmem:[%s53 + $0x288] sm:$0x11]
    %v144 = vld [vmem:[%s53 + $0x290] sm:$0x11]
    %v145 = vld [vmem:[%s53 + $0x298] sm:$0x11]
    %v146 = vld [vmem:[%s53 + $0x2a0] sm:$0x11]
    %v147 = vld [vmem:[%s53 + $0x2a8] sm:$0x11]
    %v148 = vld [vmem:[%s53 + $0x2b0] sm:$0x11]
    %v149 = vld [vmem:[%s53 + $0x2b8] sm:$0x11]
    %v150 = vld [vmem:[%s53 + $0x2c0] sm:$0x11]
    %v151 = vld [vmem:[%s53 + $0x2c8] sm:$0x11]
    %v152 = vld [vmem:[%s53 + $0x2d0] sm:$0x11]
    %v153 = vld [vmem:[%s53 + $0x2d8] sm:$0x11]
    %v154 = vld [vmem:[%s53 + $0x2e0] sm:$0x11]
    %v155 = vld [vmem:[%s53 + $0x2e8] sm:$0x11]
    %v156 = vld [vmem:[%s53 + $0x2f0] sm:$0x11]
    %v157 = vld [vmem:[%s53 + $0x2f8] sm:$0x11]
    %v158 = vld [vmem:[%s53 + $0x300] sm:$0x11]
    %v159 = vld [vmem:[%s53 + $0x308] sm:$0x11]
    %v160 = vld [vmem:[%s53 + $0x310] sm:$0x11]
    %v161 = vld [vmem:[%s53 + $0x318] sm:$0x11]
    %v162 = vld [vmem:[%s53 + $0x320] sm:$0x11]
    %v163 = vld [vmem:[%s53 + $0x328] sm:$0x11]
    %v164 = vld [vmem:[%s53 + $0x330] sm:$0x11]
    %v165 = vld [vmem:[%s53 + $0x338] sm:$0x11]
    %v166 = vld [vmem:[%s53 + $0x340] sm:$0x11]
    %v167 = vld [vmem:[%s53 + $0x348] sm:$0x11]
    %v168 = vld [vmem:[%s53 + $0x350] sm:$0x11]
    %v169 = vld [vmem:[%s53 + $0x358] sm:$0x11]
    %v170 = vld [vmem:[%s53 + $0x360] sm:$0x11]
    %v171 = vld [vmem:[%s53 + $0x368] sm:$0x11]
    %v172 = vld [vmem:[%s53 + $0x370] sm:$0x11]
    %v173 = vld [vmem:[%s53 + $0x378] sm:$0x11]
    %v174 = vld [vmem:[%s53 + $0x380] sm:$0x11]
    %v175 = vld [vmem:[%s53 + $0x388] sm:$0x11]
    %v176 = vld [vmem:[%s53 + $0x390] sm:$0x11]
    %v177 = vld [vmem:[%s53 + $0x398] sm:$0x11]
    %v178 = vld [vmem:[%s53 + $0x3a0] sm:$0x11]
    %v179 = vld [vmem:[%s53 + $0x3a8] sm:$0x11]
    %v180 = vld [vmem:[%s53 + $0x3b0] sm:$0x11]
    %v181 = vld [vmem:[%s53 + $0x3b8] sm:$0x11]
    %v182 = vld [vmem:[%s53 + $0x3c0] sm:$0x11]
    %v183 = vld [vmem:[%s53 + $0x3c8] sm:$0x11]
    %v184 = vld [vmem:[%s53 + $0x3d0] sm:$0x11]
    %v185 = vld [vmem:[%s53 + $0x3d8] sm:$0x11]
    %v186 = vld [vmem:[%s53 + $0x3e0] sm:$0x11]
    %v187 = vld [vmem:[%s53 + $0x3e8] sm:$0x11]
    %v188 = vld [vmem:[%s53 + $0x3f0] sm:$0x11]
    %v189 = vld [vmem:[%s53 + $0x3f8] sm:$0x11]
    %v190 = vunpack.c.l.bf16 %v62
    %v191 = vunpack.c.h.bf16 %v62
    %v192 = vunpack.c.l.bf16 %v63
    %v193 = vunpack.c.h.bf16 %v63
    %v194 = vunpack.c.l.bf16 %v64
    %v195 = vunpack.c.h.bf16 %v64
    %v196 = vunpack.c.l.bf16 %v65
    %v197 = vunpack.c.h.bf16 %v65
    %v198 = vunpack.c.l.bf16 %v66
    %v199 = vunpack.c.h.bf16 %v66
    %v200 = vunpack.c.l.bf16 %v67
    %v201 = vunpack.c.h.bf16 %v67
    %v202 = vunpack.c.l.bf16 %v68
    %v203 = vunpack.c.h.bf16 %v68
    %v204 = vunpack.c.l.bf16 %v69
    %v205 = vunpack.c.h.bf16 %v69
    %v206 = vunpack.c.l.bf16 %v70
    %v207 = vunpack.c.h.bf16 %v70
    %v208 = vunpack.c.l.bf16 %v71
    %v209 = vunpack.c.h.bf16 %v71
    %v210 = vunpack.c.l.bf16 %v72
    %v211 = vunpack.c.h.bf16 %v72
    %v212 = vunpack.c.l.bf16 %v73
    %v213 = vunpack.c.h.bf16 %v73
    %v214 = vunpack.c.l.bf16 %v74
    %v215 = vunpack.c.h.bf16 %v74
    %v216 = vunpack.c.l.bf16 %v75
    %v217 = vunpack.c.h.bf16 %v75
    %v218 = vunpack.c.l.bf16 %v76
    %v219 = vunpack.c.h.bf16 %v76
    %v220 = vunpack.c.l.bf16 %v77
    %v221 = vunpack.c.h.bf16 %v77
    %v222 = vunpack.c.l.bf16 %v78
    %v223 = vunpack.c.h.bf16 %v78
    %v224 = vunpack.c.l.bf16 %v79
    %v225 = vunpack.c.h.bf16 %v79
    %v226 = vunpack.c.l.bf16 %v80
    %v227 = vunpack.c.h.bf16 %v80
    %v228 = vunpack.c.l.bf16 %v81
    %v229 = vunpack.c.h.bf16 %v81
    %v230 = vunpack.c.l.bf16 %v82
    %v231 = vunpack.c.h.bf16 %v82
    %v232 = vunpack.c.l.bf16 %v83
    %v233 = vunpack.c.h.bf16 %v83
    %v234 = vunpack.c.l.bf16 %v84
    %v235 = vunpack.c.h.bf16 %v84
    %v236 = vunpack.c.l.bf16 %v85
    %v237 = vunpack.c.h.bf16 %v85
    %v238 = vunpack.c.l.bf16 %v86
    %v239 = vunpack.c.h.bf16 %v86
    %v240 = vunpack.c.l.bf16 %v87
    %v241 = vunpack.c.h.bf16 %v87
    %v242 = vunpack.c.l.bf16 %v88
    %v243 = vunpack.c.h.bf16 %v88
    %v244 = vunpack.c.l.bf16 %v89
    %v245 = vunpack.c.h.bf16 %v89
    %v246 = vunpack.c.l.bf16 %v90
    %v247 = vunpack.c.h.bf16 %v90
    %v248 = vunpack.c.l.bf16 %v91
    %v249 = vunpack.c.h.bf16 %v91
    %v250 = vunpack.c.l.bf16 %v92
    %v251 = vunpack.c.h.bf16 %v92
    %v252 = vunpack.c.l.bf16 %v93
    %v253 = vunpack.c.h.bf16 %v93
    %v254 = vunpack.c.l.bf16 %v94
    %v255 = vunpack.c.h.bf16 %v94
    %v256 = vunpack.c.l.bf16 %v95
    %v257 = vunpack.c.h.bf16 %v95
    %v258 = vunpack.c.l.bf16 %v96
    %v259 = vunpack.c.h.bf16 %v96
    %v260 = vunpack.c.l.bf16 %v97
    %v261 = vunpack.c.h.bf16 %v97
    %v262 = vunpack.c.l.bf16 %v98
    %v263 = vunpack.c.h.bf16 %v98
    %v264 = vunpack.c.l.bf16 %v99
    %v265 = vunpack.c.h.bf16 %v99
    %v266 = vunpack.c.l.bf16 %v100
    %v267 = vunpack.c.h.bf16 %v100
    %v268 = vunpack.c.l.bf16 %v101
    %v269 = vunpack.c.h.bf16 %v101
    %v270 = vunpack.c.l.bf16 %v102
    %v271 = vunpack.c.h.bf16 %v102
    %v272 = vunpack.c.l.bf16 %v103
    %v273 = vunpack.c.h.bf16 %v103
    %v274 = vunpack.c.l.bf16 %v104
    %v275 = vunpack.c.h.bf16 %v104
    %v276 = vunpack.c.l.bf16 %v105
    %v277 = vunpack.c.h.bf16 %v105
    %v278 = vunpack.c.l.bf16 %v106
    %v279 = vunpack.c.h.bf16 %v106
    %v280 = vunpack.c.l.bf16 %v107
    %v281 = vunpack.c.h.bf16 %v107
    %v282 = vunpack.c.l.bf16 %v108
    %v283 = vunpack.c.h.bf16 %v108
    %v284 = vunpack.c.l.bf16 %v109
    %v285 = vunpack.c.h.bf16 %v109
    %v286 = vunpack.c.l.bf16 %v110
    %v287 = vunpack.c.h.bf16 %v110
    %v288 = vunpack.c.l.bf16 %v111
    %v289 = vunpack.c.h.bf16 %v111
    %v290 = vunpack.c.l.bf16 %v112
    %v291 = vunpack.c.h.bf16 %v112
    %v292 = vunpack.c.l.bf16 %v113
    %v293 = vunpack.c.h.bf16 %v113
    %v294 = vunpack.c.l.bf16 %v114
    %v295 = vunpack.c.h.bf16 %v114
    %v296 = vunpack.c.l.bf16 %v115
    %v297 = vunpack.c.h.bf16 %v115
    %v298 = vunpack.c.l.bf16 %v116
    %v299 = vunpack.c.h.bf16 %v116
    %v300 = vunpack.c.l.bf16 %v117
    %v301 = vunpack.c.h.bf16 %v117
    %v302 = vunpack.c.l.bf16 %v118
    %v303 = vunpack.c.h.bf16 %v118
    %v304 = vunpack.c.l.bf16 %v119
    %v305 = vunpack.c.h.bf16 %v119
    %v306 = vunpack.c.l.bf16 %v120
    %v307 = vunpack.c.h.bf16 %v120
    %v308 = vunpack.c.l.bf16 %v121
    %v309 = vunpack.c.h.bf16 %v121
    %v310 = vunpack.c.l.bf16 %v122
    %v311 = vunpack.c.h.bf16 %v122
    %v312 = vunpack.c.l.bf16 %v123
    %v313 = vunpack.c.h.bf16 %v123
    %v314 = vunpack.c.l.bf16 %v124
    %v315 = vunpack.c.h.bf16 %v124
    %v316 = vunpack.c.l.bf16 %v125
    %v317 = vunpack.c.h.bf16 %v125
    %v318 = vunpack.c.l.bf16 %v126
    %v319 = vunpack.c.h.bf16 %v126
    %v320 = vunpack.c.l.bf16 %v127
    %v321 = vunpack.c.h.bf16 %v127
    %v322 = vunpack.c.l.bf16 %v128
    %v323 = vunpack.c.h.bf16 %v128
    %v324 = vunpack.c.l.bf16 %v129
    %v325 = vunpack.c.h.bf16 %v129
    %v326 = vunpack.c.l.bf16 %v130
    %v327 = vunpack.c.h.bf16 %v130
    %v328 = vunpack.c.l.bf16 %v131
    %v329 = vunpack.c.h.bf16 %v131
    %v330 = vunpack.c.l.bf16 %v132
    %v331 = vunpack.c.h.bf16 %v132
    %v332 = vunpack.c.l.bf16 %v133
    %v333 = vunpack.c.h.bf16 %v133
    %v334 = vunpack.c.l.bf16 %v134
    %v335 = vunpack.c.h.bf16 %v134
    %v336 = vunpack.c.l.bf16 %v135
    %v337 = vunpack.c.h.bf16 %v135
    %v338 = vunpack.c.l.bf16 %v136
    %v339 = vunpack.c.h.bf16 %v136
    %v340 = vunpack.c.l.bf16 %v137
    %v341 = vunpack.c.h.bf16 %v137
    %v342 = vunpack.c.l.bf16 %v138
    %v343 = vunpack.c.h.bf16 %v138
    %v344 = vunpack.c.l.bf16 %v139
    %v345 = vunpack.c.h.bf16 %v139
    %v346 = vunpack.c.l.bf16 %v140
    %v347 = vunpack.c.h.bf16 %v140
    %v348 = vunpack.c.l.bf16 %v141
    %v349 = vunpack.c.h.bf16 %v141
    %v350 = vunpack.c.l.bf16 %v142
    %v351 = vunpack.c.h.bf16 %v142
    %v352 = vunpack.c.l.bf16 %v143
    %v353 = vunpack.c.h.bf16 %v143
    %v354 = vunpack.c.l.bf16 %v144
    %v355 = vunpack.c.h.bf16 %v144
    %v356 = vunpack.c.l.bf16 %v145
    %v357 = vunpack.c.h.bf16 %v145
    %v358 = vunpack.c.l.bf16 %v146
    %v359 = vunpack.c.h.bf16 %v146
    %v360 = vunpack.c.l.bf16 %v147
    %v361 = vunpack.c.h.bf16 %v147
    %v362 = vunpack.c.l.bf16 %v148
    %v363 = vunpack.c.h.bf16 %v148
    %v364 = vunpack.c.l.bf16 %v149
    %v365 = vunpack.c.h.bf16 %v149
    %v366 = vunpack.c.l.bf16 %v150
    %v367 = vunpack.c.h.bf16 %v150
    %v368 = vunpack.c.l.bf16 %v151
    %v369 = vunpack.c.h.bf16 %v151
    %v370 = vunpack.c.l.bf16 %v152
    %v371 = vunpack.c.h.bf16 %v152
    %v372 = vunpack.c.l.bf16 %v153
    %v373 = vunpack.c.h.bf16 %v153
    %v374 = vunpack.c.l.bf16 %v154
    %v375 = vunpack.c.h.bf16 %v154
    %v376 = vunpack.c.l.bf16 %v155
    %v377 = vunpack.c.h.bf16 %v155
    %v378 = vunpack.c.l.bf16 %v156
    %v379 = vunpack.c.h.bf16 %v156
    %v380 = vunpack.c.l.bf16 %v157
    %v381 = vunpack.c.h.bf16 %v157
    %v382 = vunpack.c.l.bf16 %v158
    %v383 = vunpack.c.h.bf16 %v158
    %v384 = vunpack.c.l.bf16 %v159
    %v385 = vunpack.c.h.bf16 %v159
    %v386 = vunpack.c.l.bf16 %v160
    %v387 = vunpack.c.h.bf16 %v160
    %v388 = vunpack.c.l.bf16 %v161
    %v389 = vunpack.c.h.bf16 %v161
    %v390 = vunpack.c.l.bf16 %v162
    %v391 = vunpack.c.h.bf16 %v162
    %v392 = vunpack.c.l.bf16 %v163
    %v393 = vunpack.c.h.bf16 %v163
    %v394 = vunpack.c.l.bf16 %v164
    %v395 = vunpack.c.h.bf16 %v164
    %v396 = vunpack.c.l.bf16 %v165
    %v397 = vunpack.c.h.bf16 %v165
    %v398 = vunpack.c.l.bf16 %v166
    %v399 = vunpack.c.h.bf16 %v166
    %v400 = vunpack.c.l.bf16 %v167
    %v401 = vunpack.c.h.bf16 %v167
    %v402 = vunpack.c.l.bf16 %v168
    %v403 = vunpack.c.h.bf16 %v168
    %v404 = vunpack.c.l.bf16 %v169
    %v405 = vunpack.c.h.bf16 %v169
    %v406 = vunpack.c.l.bf16 %v170
    %v407 = vunpack.c.h.bf16 %v170
    %v408 = vunpack.c.l.bf16 %v171
    %v409 = vunpack.c.h.bf16 %v171
    %v410 = vunpack.c.l.bf16 %v172
    %v411 = vunpack.c.h.bf16 %v172
    %v412 = vunpack.c.l.bf16 %v173
    %v413 = vunpack.c.h.bf16 %v173
    %v414 = vunpack.c.l.bf16 %v174
    %v415 = vunpack.c.h.bf16 %v174
    %v416 = vunpack.c.l.bf16 %v175
    %v417 = vunpack.c.h.bf16 %v175
    %v418 = vunpack.c.l.bf16 %v176
    %v419 = vunpack.c.h.bf16 %v176
    %v420 = vunpack.c.l.bf16 %v177
    %v421 = vunpack.c.h.bf16 %v177
    %v422 = vunpack.c.l.bf16 %v178
    %v423 = vunpack.c.h.bf16 %v178
    %v424 = vunpack.c.l.bf16 %v179
    %v425 = vunpack.c.h.bf16 %v179
    %v426 = vunpack.c.l.bf16 %v180
    %v427 = vunpack.c.h.bf16 %v180
    %v428 = vunpack.c.l.bf16 %v181
    %v429 = vunpack.c.h.bf16 %v181
    %v430 = vunpack.c.l.bf16 %v182
    %v431 = vunpack.c.h.bf16 %v182
    %v432 = vunpack.c.l.bf16 %v183
    %v433 = vunpack.c.h.bf16 %v183
    %v434 = vunpack.c.l.bf16 %v184
    %v435 = vunpack.c.h.bf16 %v184
    %v436 = vunpack.c.l.bf16 %v185
    %v437 = vunpack.c.h.bf16 %v185
    %v438 = vunpack.c.l.bf16 %v186
    %v439 = vunpack.c.h.bf16 %v186
    %v440 = vunpack.c.l.bf16 %v187
    %v441 = vunpack.c.h.bf16 %v187
    %v442 = vunpack.c.l.bf16 %v188
    %v443 = vunpack.c.h.bf16 %v188
    %v444 = vunpack.c.l.bf16 %v189
    %v445 = vunpack.c.h.bf16 %v189
    %v446 = vld [vmem:[#allocation2] sm:$0x3]
    %v447 = vld [vmem:[%s45] sm:$0xff]
    %v448 = vld [vmem:[%s45 + $0x8] sm:$0xff]
    %v449 = vld [vmem:[%s45 + $0x10] sm:$0xff]
    %v450 = vld [vmem:[%s45 + $0x18] sm:$0xff]
    %v451 = vld [vmem:[%s45 + $0x20] sm:$0xff]
    %v452 = vld [vmem:[%s45 + $0x28] sm:$0xff]
    %v453 = vld [vmem:[%s45 + $0x30] sm:$0xff]
    %v454 = vld [vmem:[%s45 + $0x38] sm:$0xff]
    %v455 = vld [vmem:[%s45 + $0x40] sm:$0xff]
    %v456 = vld [vmem:[%s45 + $0x48] sm:$0xff]
    %v457 = vld [vmem:[%s45 + $0x50] sm:$0xff]
    %v458 = vld [vmem:[%s45 + $0x58] sm:$0xff]
    %v459 = vld [vmem:[%s45 + $0x60] sm:$0xff]
    %v460 = vld [vmem:[%s45 + $0x68] sm:$0xff]
    %v461 = vld [vmem:[%s45 + $0x70] sm:$0xff]
    %v462 = vld [vmem:[%s45 + $0x78] sm:$0xff]
    %v463 = vld [vmem:[%s45 + $0x80] sm:$0xff]
    %v464 = vld [vmem:[%s45 + $0x88] sm:$0xff]
    %v465 = vld [vmem:[%s45 + $0x90] sm:$0xff]
    %v466 = vld [vmem:[%s45 + $0x98] sm:$0xff]
    %v467 = vld [vmem:[%s45 + $0xa0] sm:$0xff]
    %v468 = vld [vmem:[%s45 + $0xa8] sm:$0xff]
    %v469 = vld [vmem:[%s45 + $0xb0] sm:$0xff]
    %v470 = vld [vmem:[%s45 + $0xb8] sm:$0xff]
    %v471 = vld [vmem:[%s45 + $0xc0] sm:$0xff]
    %v472 = vld [vmem:[%s45 + $0xc8] sm:$0xff]
    %v473 = vld [vmem:[%s45 + $0xd0] sm:$0xff]
    %v474 = vld [vmem:[%s45 + $0xd8] sm:$0xff]
    %v475 = vld [vmem:[%s45 + $0xe0] sm:$0xff]
    %v476 = vld [vmem:[%s45 + $0xe8] sm:$0xff]
    %v477 = vld [vmem:[%s45 + $0xf0] sm:$0xff]
    %v478 = vld [vmem:[%s45 + $0xf8] sm:$0xff]
    %v511 = vcombine.high %v447, %v447
    %v513 = vunpack.c.l.s4 1983009808
    %v514 = vunpack.c.0.s8 %v513
    %v515 = vlaneseq
    %v516 = vshrl.u32 %v515, 7
    %v517 = vsub.s32 %v514, %v516
    %v518 = vrot.slane %v447, %v517
    %v520 = vunpack.c.l.s4 1983009808
    %v521 = vunpack.c.0.s8 %v520
    %v522 = vlaneseq
    %v523 = vshrl.u32 %v522, 7
    %v524 = vsub.s32 %v521, %v523
    %v525 = vrot.slane %v511, %v524
    %v526 = vcombine.high %v518, %v518
    %v527 = vcombine.high %v525, %v525
    %v528 = vcombine.high %v448, %v448
    %v530 = vunpack.c.l.s4 1983009808
    %v531 = vunpack.c.0.s8 %v530
    %v532 = vlaneseq
    %v533 = vshrl.u32 %v532, 7
    %v534 = vsub.s32 %v531, %v533
    %v535 = vrot.slane %v448, %v534
    %v537 = vunpack.c.l.s4 1983009808
    %v538 = vunpack.c.0.s8 %v537
    %v539 = vlaneseq
    %v540 = vshrl.u32 %v539, 7
    %v541 = vsub.s32 %v538, %v540
    %v542 = vrot.slane %v528, %v541
    %v543 = vcombine.high %v535, %v535
    %v544 = vcombine.high %v542, %v542
    %v545 = vcombine.high %v449, %v449
    %v547 = vunpack.c.l.s4 1983009808
    %v548 = vunpack.c.0.s8 %v547
    %v549 = vlaneseq
    %v550 = vshrl.u32 %v549, 7
    %v551 = vsub.s32 %v548, %v550
    %v552 = vrot.slane %v449, %v551
    %v554 = vunpack.c.l.s4 1983009808
    %v555 = vunpack.c.0.s8 %v554
    %v556 = vlaneseq
    %v557 = vshrl.u32 %v556, 7
    %v558 = vsub.s32 %v555, %v557
    %v559 = vrot.slane %v545, %v558
    %v560 = vcombine.high %v552, %v552
    %v561 = vcombine.high %v559, %v559
    %v562 = vcombine.high %v450, %v450
    %v564 = vunpack.c.l.s4 1983009808
    %v565 = vunpack.c.0.s8 %v564
    %v566 = vlaneseq
    %v567 = vshrl.u32 %v566, 7
    %v568 = vsub.s32 %v565, %v567
    %v569 = vrot.slane %v450, %v568
    %v571 = vunpack.c.l.s4 1983009808
    %v572 = vunpack.c.0.s8 %v571
    %v573 = vlaneseq
    %v574 = vshrl.u32 %v573, 7
    %v575 = vsub.s32 %v572, %v574
    %v576 = vrot.slane %v562, %v575
    %v577 = vcombine.high %v569, %v569
    %v578 = vcombine.high %v576, %v576
    %v579 = vcombine.high %v451, %v451
    %v581 = vunpack.c.l.s4 1983009808
    %v582 = vunpack.c.0.s8 %v581
    %v583 = vlaneseq
    %v584 = vshrl.u32 %v583, 7
    %v585 = vsub.s32 %v582, %v584
    %v586 = vrot.slane %v451, %v585
    %v588 = vunpack.c.l.s4 1983009808
    %v589 = vunpack.c.0.s8 %v588
    %v590 = vlaneseq
    %v591 = vshrl.u32 %v590, 7
    %v592 = vsub.s32 %v589, %v591
    %v593 = vrot.slane %v579, %v592
    %v594 = vcombine.high %v586, %v586
    %v595 = vcombine.high %v593, %v593
    %v596 = vcombine.high %v452, %v452
    %v598 = vunpack.c.l.s4 1983009808
    %v599 = vunpack.c.0.s8 %v598
    %v600 = vlaneseq
    %v601 = vshrl.u32 %v600, 7
    %v602 = vsub.s32 %v599, %v601
    %v603 = vrot.slane %v452, %v602
    %v605 = vunpack.c.l.s4 1983009808
    %v606 = vunpack.c.0.s8 %v605
    %v607 = vlaneseq
    %v608 = vshrl.u32 %v607, 7
    %v609 = vsub.s32 %v606, %v608
    %v610 = vrot.slane %v596, %v609
    %v611 = vcombine.high %v603, %v603
    %v612 = vcombine.high %v610, %v610
    %v613 = vcombine.high %v453, %v453
    %v615 = vunpack.c.l.s4 1983009808
    %v616 = vunpack.c.0.s8 %v615
    %v617 = vlaneseq
    %v618 = vshrl.u32 %v617, 7
    %v619 = vsub.s32 %v616, %v618
    %v620 = vrot.slane %v453, %v619
    %v622 = vunpack.c.l.s4 1983009808
    %v623 = vunpack.c.0.s8 %v622
    %v624 = vlaneseq
    %v625 = vshrl.u32 %v624, 7
    %v626 = vsub.s32 %v623, %v625
    %v627 = vrot.slane %v613, %v626
    %v628 = vcombine.high %v620, %v620
    %v629 = vcombine.high %v627, %v627
    %v630 = vcombine.high %v454, %v454
    %v632 = vunpack.c.l.s4 1983009808
    %v633 = vunpack.c.0.s8 %v632
    %v634 = vlaneseq
    %v635 = vshrl.u32 %v634, 7
    %v636 = vsub.s32 %v633, %v635
    %v637 = vrot.slane %v454, %v636
    %v639 = vunpack.c.l.s4 1983009808
    %v640 = vunpack.c.0.s8 %v639
    %v641 = vlaneseq
    %v642 = vshrl.u32 %v641, 7
    %v643 = vsub.s32 %v640, %v642
    %v644 = vrot.slane %v630, %v643
    %v645 = vcombine.high %v637, %v637
    %v646 = vcombine.high %v644, %v644
    %v647 = vcombine.high %v455, %v455
    %v649 = vunpack.c.l.s4 1983009808
    %v650 = vunpack.c.0.s8 %v649
    %v651 = vlaneseq
    %v652 = vshrl.u32 %v651, 7
    %v653 = vsub.s32 %v650, %v652
    %v654 = vrot.slane %v455, %v653
    %v656 = vunpack.c.l.s4 1983009808
    %v657 = vunpack.c.0.s8 %v656
    %v658 = vlaneseq
    %v659 = vshrl.u32 %v658, 7
    %v660 = vsub.s32 %v657, %v659
    %v661 = vrot.slane %v647, %v660
    %v662 = vcombine.high %v654, %v654
    %v663 = vcombine.high %v661, %v661
    %v664 = vcombine.high %v456, %v456
    %v666 = vunpack.c.l.s4 1983009808
    %v667 = vunpack.c.0.s8 %v666
    %v668 = vlaneseq
    %v669 = vshrl.u32 %v668, 7
    %v670 = vsub.s32 %v667, %v669
    %v671 = vrot.slane %v456, %v670
    %v673 = vunpack.c.l.s4 1983009808
    %v674 = vunpack.c.0.s8 %v673
    %v675 = vlaneseq
    %v676 = vshrl.u32 %v675, 7
    %v677 = vsub.s32 %v674, %v676
    %v678 = vrot.slane %v664, %v677
    %v679 = vcombine.high %v671, %v671
    %v680 = vcombine.high %v678, %v678
    %v681 = vcombine.high %v457, %v457
    %v683 = vunpack.c.l.s4 1983009808
    %v684 = vunpack.c.0.s8 %v683
    %v685 = vlaneseq
    %v686 = vshrl.u32 %v685, 7
    %v687 = vsub.s32 %v684, %v686
    %v688 = vrot.slane %v457, %v687
    %v690 = vunpack.c.l.s4 1983009808
    %v691 = vunpack.c.0.s8 %v690
    %v692 = vlaneseq
    %v693 = vshrl.u32 %v692, 7
    %v694 = vsub.s32 %v691, %v693
    %v695 = vrot.slane %v681, %v694
    %v696 = vcombine.high %v688, %v688
    %v697 = vcombine.high %v695, %v695
    %v698 = vcombine.high %v458, %v458
    %v700 = vunpack.c.l.s4 1983009808
    %v701 = vunpack.c.0.s8 %v700
    %v702 = vlaneseq
    %v703 = vshrl.u32 %v702, 7
    %v704 = vsub.s32 %v701, %v703
    %v705 = vrot.slane %v458, %v704
    %v707 = vunpack.c.l.s4 1983009808
    %v708 = vunpack.c.0.s8 %v707
    %v709 = vlaneseq
    %v710 = vshrl.u32 %v709, 7
    %v711 = vsub.s32 %v708, %v710
    %v712 = vrot.slane %v698, %v711
    %v713 = vcombine.high %v705, %v705
    %v714 = vcombine.high %v712, %v712
    %v715 = vcombine.high %v459, %v459
    %v717 = vunpack.c.l.s4 1983009808
    %v718 = vunpack.c.0.s8 %v717
    %v719 = vlaneseq
    %v720 = vshrl.u32 %v719, 7
    %v721 = vsub.s32 %v718, %v720
    %v722 = vrot.slane %v459, %v721
    %v724 = vunpack.c.l.s4 1983009808
    %v725 = vunpack.c.0.s8 %v724
    %v726 = vlaneseq
    %v727 = vshrl.u32 %v726, 7
    %v728 = vsub.s32 %v725, %v727
    %v729 = vrot.slane %v715, %v728
    %v730 = vcombine.high %v722, %v722
    %v731 = vcombine.high %v729, %v729
    %v732 = vcombine.high %v460, %v460
    %v734 = vunpack.c.l.s4 1983009808
    %v735 = vunpack.c.0.s8 %v734
    %v736 = vlaneseq
    %v737 = vshrl.u32 %v736, 7
    %v738 = vsub.s32 %v735, %v737
    %v739 = vrot.slane %v460, %v738
    %v741 = vunpack.c.l.s4 1983009808
    %v742 = vunpack.c.0.s8 %v741
    %v743 = vlaneseq
    %v744 = vshrl.u32 %v743, 7
    %v745 = vsub.s32 %v742, %v744
    %v746 = vrot.slane %v732, %v745
    %v747 = vcombine.high %v739, %v739
    %v748 = vcombine.high %v746, %v746
    %v749 = vcombine.high %v461, %v461
    %v751 = vunpack.c.l.s4 1983009808
    %v752 = vunpack.c.0.s8 %v751
    %v753 = vlaneseq
    %v754 = vshrl.u32 %v753, 7
    %v755 = vsub.s32 %v752, %v754
    %v756 = vrot.slane %v461, %v755
    %v758 = vunpack.c.l.s4 1983009808
    %v759 = vunpack.c.0.s8 %v758
    %v760 = vlaneseq
    %v761 = vshrl.u32 %v760, 7
    %v762 = vsub.s32 %v759, %v761
    %v763 = vrot.slane %v749, %v762
    %v764 = vcombine.high %v756, %v756
    %v765 = vcombine.high %v763, %v763
    %v766 = vcombine.high %v462, %v462
    %v768 = vunpack.c.l.s4 1983009808
    %v769 = vunpack.c.0.s8 %v768
    %v770 = vlaneseq
    %v771 = vshrl.u32 %v770, 7
    %v772 = vsub.s32 %v769, %v771
    %v773 = vrot.slane %v462, %v772
    %v775 = vunpack.c.l.s4 1983009808
    %v776 = vunpack.c.0.s8 %v775
    %v777 = vlaneseq
    %v778 = vshrl.u32 %v777, 7
    %v779 = vsub.s32 %v776, %v778
    %v780 = vrot.slane %v766, %v779
    %v781 = vcombine.high %v773, %v773
    %v782 = vcombine.high %v780, %v780
    %v783 = vcombine.high %v463, %v463
    %v785 = vunpack.c.l.s4 1983009808
    %v786 = vunpack.c.0.s8 %v785
    %v787 = vlaneseq
    %v788 = vshrl.u32 %v787, 7
    %v789 = vsub.s32 %v786, %v788
    %v790 = vrot.slane %v463, %v789
    %v792 = vunpack.c.l.s4 1983009808
    %v793 = vunpack.c.0.s8 %v792
    %v794 = vlaneseq
    %v795 = vshrl.u32 %v794, 7
    %v796 = vsub.s32 %v793, %v795
    %v797 = vrot.slane %v783, %v796
    %v798 = vcombine.high %v790, %v790
    %v799 = vcombine.high %v797, %v797
    %v800 = vcombine.high %v464, %v464
    %v802 = vunpack.c.l.s4 1983009808
    %v803 = vunpack.c.0.s8 %v802
    %v804 = vlaneseq
    %v805 = vshrl.u32 %v804, 7
    %v806 = vsub.s32 %v803, %v805
    %v807 = vrot.slane %v464, %v806
    %v809 = vunpack.c.l.s4 1983009808
    %v810 = vunpack.c.0.s8 %v809
    %v811 = vlaneseq
    %v812 = vshrl.u32 %v811, 7
    %v813 = vsub.s32 %v810, %v812
    %v814 = vrot.slane %v800, %v813
    %v815 = vcombine.high %v807, %v807
    %v816 = vcombine.high %v814, %v814
    %v817 = vcombine.high %v465, %v465
    %v819 = vunpack.c.l.s4 1983009808
    %v820 = vunpack.c.0.s8 %v819
    %v821 = vlaneseq
    %v822 = vshrl.u32 %v821, 7
    %v823 = vsub.s32 %v820, %v822
    %v824 = vrot.slane %v465, %v823
    %v826 = vunpack.c.l.s4 1983009808
    %v827 = vunpack.c.0.s8 %v826
    %v828 = vlaneseq
    %v829 = vshrl.u32 %v828, 7
    %v830 = vsub.s32 %v827, %v829
    %v831 = vrot.slane %v817, %v830
    %v832 = vcombine.high %v824, %v824
    %v833 = vcombine.high %v831, %v831
    %v834 = vcombine.high %v466, %v466
    %v836 = vunpack.c.l.s4 1983009808
    %v837 = vunpack.c.0.s8 %v836
    %v838 = vlaneseq
    %v839 = vshrl.u32 %v838, 7
    %v840 = vsub.s32 %v837, %v839
    %v841 = vrot.slane %v466, %v840
    %v843 = vunpack.c.l.s4 1983009808
    %v844 = vunpack.c.0.s8 %v843
    %v845 = vlaneseq
    %v846 = vshrl.u32 %v845, 7
    %v847 = vsub.s32 %v844, %v846
    %v848 = vrot.slane %v834, %v847
    %v849 = vcombine.high %v841, %v841
    %v850 = vcombine.high %v848, %v848
    %v851 = vcombine.high %v467, %v467
    %v853 = vunpack.c.l.s4 1983009808
    %v854 = vunpack.c.0.s8 %v853
    %v855 = vlaneseq
    %v856 = vshrl.u32 %v855, 7
    %v857 = vsub.s32 %v854, %v856
    %v858 = vrot.slane %v467, %v857
    %v860 = vunpack.c.l.s4 1983009808
    %v861 = vunpack.c.0.s8 %v860
    %v862 = vlaneseq
    %v863 = vshrl.u32 %v862, 7
    %v864 = vsub.s32 %v861, %v863
    %v865 = vrot.slane %v851, %v864
    %v866 = vcombine.high %v858, %v858
    %v867 = vcombine.high %v865, %v865
    %v868 = vcombine.high %v468, %v468
    %v870 = vunpack.c.l.s4 1983009808
    %v871 = vunpack.c.0.s8 %v870
    %v872 = vlaneseq
    %v873 = vshrl.u32 %v872, 7
    %v874 = vsub.s32 %v871, %v873
    %v875 = vrot.slane %v468, %v874
    %v877 = vunpack.c.l.s4 1983009808
    %v878 = vunpack.c.0.s8 %v877
    %v879 = vlaneseq
    %v880 = vshrl.u32 %v879, 7
    %v881 = vsub.s32 %v878, %v880
    %v882 = vrot.slane %v868, %v881
    %v883 = vcombine.high %v875, %v875
    %v884 = vcombine.high %v882, %v882
    %v885 = vcombine.high %v469, %v469
    %v887 = vunpack.c.l.s4 1983009808
    %v888 = vunpack.c.0.s8 %v887
    %v889 = vlaneseq
    %v890 = vshrl.u32 %v889, 7
    %v891 = vsub.s32 %v888, %v890
    %v892 = vrot.slane %v469, %v891
    %v894 = vunpack.c.l.s4 1983009808
    %v895 = vunpack.c.0.s8 %v894
    %v896 = vlaneseq
    %v897 = vshrl.u32 %v896, 7
    %v898 = vsub.s32 %v895, %v897
    %v899 = vrot.slane %v885, %v898
    %v900 = vcombine.high %v892, %v892
    %v901 = vcombine.high %v899, %v899
    %v902 = vcombine.high %v470, %v470
    %v904 = vunpack.c.l.s4 1983009808
    %v905 = vunpack.c.0.s8 %v904
    %v906 = vlaneseq
    %v907 = vshrl.u32 %v906, 7
    %v908 = vsub.s32 %v905, %v907
    %v909 = vrot.slane %v470, %v908
    %v911 = vunpack.c.l.s4 1983009808
    %v912 = vunpack.c.0.s8 %v911
    %v913 = vlaneseq
    %v914 = vshrl.u32 %v913, 7
    %v915 = vsub.s32 %v912, %v914
    %v916 = vrot.slane %v902, %v915
    %v917 = vcombine.high %v909, %v909
    %v918 = vcombine.high %v916, %v916
    %v919 = vcombine.high %v471, %v471
    %v921 = vunpack.c.l.s4 1983009808
    %v922 = vunpack.c.0.s8 %v921
    %v923 = vlaneseq
    %v924 = vshrl.u32 %v923, 7
    %v925 = vsub.s32 %v922, %v924
    %v926 = vrot.slane %v471, %v925
    %v928 = vunpack.c.l.s4 1983009808
    %v929 = vunpack.c.0.s8 %v928
    %v930 = vlaneseq
    %v931 = vshrl.u32 %v930, 7
    %v932 = vsub.s32 %v929, %v931
    %v933 = vrot.slane %v919, %v932
    %v934 = vcombine.high %v926, %v926
    %v935 = vcombine.high %v933, %v933
    %v936 = vcombine.high %v472, %v472
    %v938 = vunpack.c.l.s4 1983009808
    %v939 = vunpack.c.0.s8 %v938
    %v940 = vlaneseq
    %v941 = vshrl.u32 %v940, 7
    %v942 = vsub.s32 %v939, %v941
    %v943 = vrot.slane %v472, %v942
    %v945 = vunpack.c.l.s4 1983009808
    %v946 = vunpack.c.0.s8 %v945
    %v947 = vlaneseq
    %v948 = vshrl.u32 %v947, 7
    %v949 = vsub.s32 %v946, %v948
    %v950 = vrot.slane %v936, %v949
    %v951 = vcombine.high %v943, %v943
    %v952 = vcombine.high %v950, %v950
    %v953 = vcombine.high %v473, %v473
    %v955 = vunpack.c.l.s4 1983009808
    %v956 = vunpack.c.0.s8 %v955
    %v957 = vlaneseq
    %v958 = vshrl.u32 %v957, 7
    %v959 = vsub.s32 %v956, %v958
    %v960 = vrot.slane %v473, %v959
    %v962 = vunpack.c.l.s4 1983009808
    %v963 = vunpack.c.0.s8 %v962
    %v964 = vlaneseq
    %v965 = vshrl.u32 %v964, 7
    %v966 = vsub.s32 %v963, %v965
    %v967 = vrot.slane %v953, %v966
    %v968 = vcombine.high %v960, %v960
    %v969 = vcombine.high %v967, %v967
    %v970 = vcombine.high %v474, %v474
    %v972 = vunpack.c.l.s4 1983009808
    %v973 = vunpack.c.0.s8 %v972
    %v974 = vlaneseq
    %v975 = vshrl.u32 %v974, 7
    %v976 = vsub.s32 %v973, %v975
    %v977 = vrot.slane %v474, %v976
    %v979 = vunpack.c.l.s4 1983009808
    %v980 = vunpack.c.0.s8 %v979
    %v981 = vlaneseq
    %v982 = vshrl.u32 %v981, 7
    %v983 = vsub.s32 %v980, %v982
    %v984 = vrot.slane %v970, %v983
    %v985 = vcombine.high %v977, %v977
    %v986 = vcombine.high %v984, %v984
    %v987 = vcombine.high %v475, %v475
    %v989 = vunpack.c.l.s4 1983009808
    %v990 = vunpack.c.0.s8 %v989
    %v991 = vlaneseq
    %v992 = vshrl.u32 %v991, 7
    %v993 = vsub.s32 %v990, %v992
    %v994 = vrot.slane %v475, %v993
    %v996 = vunpack.c.l.s4 1983009808
    %v997 = vunpack.c.0.s8 %v996
    %v998 = vlaneseq
    %v999 = vshrl.u32 %v998, 7
    %v1000 = vsub.s32 %v997, %v999
    %v1001 = vrot.slane %v987, %v1000
    %v1002 = vcombine.high %v994, %v994
    %v1003 = vcombine.high %v1001, %v1001
    %v1004 = vcombine.high %v476, %v476
    %v1006 = vunpack.c.l.s4 1983009808
    %v1007 = vunpack.c.0.s8 %v1006
    %v1008 = vlaneseq
    %v1009 = vshrl.u32 %v1008, 7
    %v1010 = vsub.s32 %v1007, %v1009
    %v1011 = vrot.slane %v476, %v1010
    %v1013 = vunpack.c.l.s4 1983009808
    %v1014 = vunpack.c.0.s8 %v1013
    %v1015 = vlaneseq
    %v1016 = vshrl.u32 %v1015, 7
    %v1017 = vsub.s32 %v1014, %v1016
    %v1018 = vrot.slane %v1004, %v1017
    %v1019 = vcombine.high %v1011, %v1011
    %v1020 = vcombine.high %v1018, %v1018
    %v1021 = vcombine.high %v477, %v477
    %v1023 = vunpack.c.l.s4 1983009808
    %v1024 = vunpack.c.0.s8 %v1023
    %v1025 = vlaneseq
    %v1026 = vshrl.u32 %v1025, 7
    %v1027 = vsub.s32 %v1024, %v1026
    %v1028 = vrot.slane %v477, %v1027
    %v1030 = vunpack.c.l.s4 1983009808
    %v1031 = vunpack.c.0.s8 %v1030
    %v1032 = vlaneseq
    %v1033 = vshrl.u32 %v1032, 7
    %v1034 = vsub.s32 %v1031, %v1033
    %v1035 = vrot.slane %v1021, %v1034
    %v1036 = vcombine.high %v1028, %v1028
    %v1037 = vcombine.high %v1035, %v1035
    %v1038 = vcombine.high %v478, %v478
    %v1040 = vunpack.c.l.s4 1983009808
    %v1041 = vunpack.c.0.s8 %v1040
    %v1042 = vlaneseq
    %v1043 = vshrl.u32 %v1042, 7
    %v1044 = vsub.s32 %v1041, %v1043
    %v1045 = vrot.slane %v478, %v1044
    %v1047 = vunpack.c.l.s4 1983009808
    %v1048 = vunpack.c.0.s8 %v1047
    %v1049 = vlaneseq
    %v1050 = vshrl.u32 %v1049, 7
    %v1051 = vsub.s32 %v1048, %v1050
    %v1052 = vrot.slane %v1038, %v1051
    %v1053 = vcombine.high %v1045, %v1045
    %v1054 = vcombine.high %v1052, %v1052
    %1183 = vmatprep.subr.mxu0 %v191
    %1184 = vmatpush1.xpose.msra.mxu0 %v190
    %1185 = vmatprep.subr.mxu0 %v319
    %1186 = vmatpush1.xpose.msra.mxu0 %v318
    %1187 = vmatprep.subr.mxu0 0.0
    %1188 = vmatpush1.xpose.msra.mxu0 0.0
    %1189 = vmatprep.subr.mxu0 0.0
    %1190 = vmatpush1.xpose.msra.mxu0 0.0
    %1191 = vmatprep.subr.mxu0 0.0
    %1192 = vmatpush1.xpose.msra.mxu0 0.0
    %1193 = vmatprep.subr.mxu0 0.0
    %1194 = vmatpush1.xpose.msra.mxu0 0.0
    %1195 = vmatprep.subr.mxu0 0.0
    %1196 = vmatpush1.xpose.msra.mxu0 0.0
    %1197 = vmatprep.subr.mxu0 0.0
    %1198 = vmatpush1.xpose.msra.mxu0 0.0
    %1199 = vmatprep.subr.mxu0 0.0
    %1200 = vmatpush1.xpose.msra.mxu0 0.0
    %1201 = vmatprep.subr.mxu0 0.0
    %1202 = vmatpush1.xpose.msra.mxu0 0.0
    %1203 = vmatprep.subr.mxu0 0.0
    %1204 = vmatpush1.xpose.msra.mxu0 0.0
    %1205 = vmatprep.subr.mxu0 0.0
    %1206 = vmatpush1.xpose.msra.mxu0 0.0
    %1207 = vmatprep.subr.mxu0 0.0
    %1208 = vmatpush1.xpose.msra.mxu0 0.0
    %1209 = vmatprep.subr.mxu0 0.0
    %1210 = vmatpush1.xpose.msra.mxu0 0.0
    %1211 = vmatprep.subr.mxu0 0.0
    %1212 = vmatpush1.xpose.msra.mxu0 0.0
    %1213 = vmatprep.subr.mxu0 0.0
    %1214 = vmatpush1.xpose.msra.mxu0 0.0
    %1215 = vmatprep.subr.mxu0 0.0
    %1216 = vmatpush1.xpose.msra.mxu0 0.0
    %1217 = vmatprep.subr.mxu0 0.0
    %1218 = vmatpush1.xpose.msra.mxu0 0.0
    %1219 = vmatprep.subr.mxu0 0.0
    %1220 = vmatpush1.xpose.msra.mxu0 0.0
    %1221 = vmatprep.subr.mxu0 0.0
    %1222 = vmatpush1.xpose.msra.mxu0 0.0
    %1223 = vmatprep.subr.mxu0 0.0
    %1224 = vmatpush1.xpose.msra.mxu0 0.0
    %1225 = vmatprep.subr.mxu0 0.0
    %1226 = vmatpush1.xpose.msra.mxu0 0.0
    %1227 = vmatprep.subr.mxu0 0.0
    %1228 = vmatpush1.xpose.msra.mxu0 0.0
    %1229 = vmatprep.subr.mxu0 0.0
    %1230 = vmatpush1.xpose.msra.mxu0 0.0
    %1231 = vmatprep.subr.mxu0 0.0
    %1232 = vmatpush1.xpose.msra.mxu0 0.0
    %1233 = vmatprep.subr.mxu0 0.0
    %1234 = vmatpush1.xpose.msra.mxu0 0.0
    %1235 = vmatprep.subr.mxu0 0.0
    %1236 = vmatpush1.xpose.msra.mxu0 0.0
    %1237 = vmatprep.subr.mxu0 0.0
    %1238 = vmatpush1.xpose.msra.mxu0 0.0
    %1239 = vmatprep.subr.mxu0 0.0
    %1240 = vmatpush1.xpose.msra.mxu0 0.0
    %1241 = vmatprep.subr.mxu0 0.0
    %1242 = vmatpush1.xpose.msra.mxu0 0.0
    %1243 = vmatprep.subr.mxu0 0.0
    %1244 = vmatpush1.xpose.msra.mxu0 0.0
    %1245 = vmatprep.subr.mxu0 0.0
    %1246 = vmatpush1.xpose.msra.mxu0 0.0
    %1247 = vmatprep.mubr.f32.mxu0 %v526
    %1248 = vmatmul.mubr.f32.gmra.mrb[0].mxu0 %v518
    %v1249 = vpop.f32.mrb[0].mxu0
    %v1250 = vadd.f32 0.0, %v1249
    %v1251 = vpop.f32.mrb[0].mxu0
    %1252 = vdwg.mxu0
    %1253 = vmatprep.subr.mxu0 %v193
    %1254 = vmatpush1.xpose.msra.mxu0 %v192
    %1255 = vmatprep.subr.mxu0 %v321
    %1256 = vmatpush1.xpose.msra.mxu0 %v320
    %1257 = vmatprep.subr.mxu0 0.0
    %1258 = vmatpush1.xpose.msra.mxu0 0.0
    %1259 = vmatprep.subr.mxu0 0.0
    %1260 = vmatpush1.xpose.msra.mxu0 0.0
    %1261 = vmatprep.subr.mxu0 0.0
    %1262 = vmatpush1.xpose.msra.mxu0 0.0
    %1263 = vmatprep.subr.mxu0 0.0
    %1264 = vmatpush1.xpose.msra.mxu0 0.0
    %1265 = vmatprep.subr.mxu0 0.0
    %1266 = vmatpush1.xpose.msra.mxu0 0.0
    %1267 = vmatprep.subr.mxu0 0.0
    %1268 = vmatpush1.xpose.msra.mxu0 0.0
    %1269 = vmatprep.subr.mxu0 0.0
    %1270 = vmatpush1.xpose.msra.mxu0 0.0
    %1271 = vmatprep.subr.mxu0 0.0
    %1272 = vmatpush1.xpose.msra.mxu0 0.0
    %1273 = vmatprep.subr.mxu0 0.0
    %1274 = vmatpush1.xpose.msra.mxu0 0.0
    %1275 = vmatprep.subr.mxu0 0.0
    %1276 = vmatpush1.xpose.msra.mxu0 0.0
    %1277 = vmatprep.subr.mxu0 0.0
    %1278 = vmatpush1.xpose.msra.mxu0 0.0
    %1279 = vmatprep.subr.mxu0 0.0
    %1280 = vmatpush1.xpose.msra.mxu0 0.0
    %1281 = vmatprep.subr.mxu0 0.0
    %1282 = vmatpush1.xpose.msra.mxu0 0.0
    %1283 = vmatprep.subr.mxu0 0.0
    %1284 = vmatpush1.xpose.msra.mxu0 0.0
    %1285 = vmatprep.subr.mxu0 0.0
    %1286 = vmatpush1.xpose.msra.mxu0 0.0
    %1287 = vmatprep.subr.mxu0 0.0
    %1288 = vmatpush1.xpose.msra.mxu0 0.0
    %1289 = vmatprep.subr.mxu0 0.0
    %1290 = vmatpush1.xpose.msra.mxu0 0.0
    %1291 = vmatprep.subr.mxu0 0.0
    %1292 = vmatpush1.xpose.msra.mxu0 0.0
    %1293 = vmatprep.subr.mxu0 0.0
    %1294 = vmatpush1.xpose.msra.mxu0 0.0
    %1295 = vmatprep.subr.mxu0 0.0
    %1296 = vmatpush1.xpose.msra.mxu0 0.0
    %1297 = vmatprep.subr.mxu0 0.0
    %1298 = vmatpush1.xpose.msra.mxu0 0.0
    %1299 = vmatprep.subr.mxu0 0.0
    %1300 = vmatpush1.xpose.msra.mxu0 0.0
    %1301 = vmatprep.subr.mxu0 0.0
    %1302 = vmatpush1.xpose.msra.mxu0 0.0
    %1303 = vmatprep.subr.mxu0 0.0
    %1304 = vmatpush1.xpose.msra.mxu0 0.0
    %1305 = vmatprep.subr.mxu0 0.0
    %1306 = vmatpush1.xpose.msra.mxu0 0.0
    %1307 = vmatprep.subr.mxu0 0.0
    %1308 = vmatpush1.xpose.msra.mxu0 0.0
    %1309 = vmatprep.subr.mxu0 0.0
    %1310 = vmatpush1.xpose.msra.mxu0 0.0
    %1311 = vmatprep.subr.mxu0 0.0
    %1312 = vmatpush1.xpose.msra.mxu0 0.0
    %1313 = vmatprep.subr.mxu0 0.0
    %1314 = vmatpush1.xpose.msra.mxu0 0.0
    %1315 = vmatprep.subr.mxu0 0.0
    %1316 = vmatpush1.xpose.msra.mxu0 0.0
    %1317 = vmatprep.mubr.f32.mxu0 %v527
    %1318 = vmatmul.mubr.f32.gmra.mrb[0].mxu0 %v525
    %v1319 = vpop.f32.mrb[0].mxu0
    %v1320 = vadd.f32 %v1250, %v1319
    %v1321 = vpop.f32.mrb[0].mxu0
    %1322 = vdwg.mxu0
    %1323 = vmatprep.subr.mxu0 %v195
    %1324 = vmatpush1.xpose.msra.mxu0 %v194
    %1325 = vmatprep.subr.mxu0 %v323
    %1326 = vmatpush1.xpose.msra.mxu0 %v322
    %1327 = vmatprep.subr.mxu0 0.0
    %1328 = vmatpush1.xpose.msra.mxu0 0.0
    %1329 = vmatprep.subr.mxu0 0.0
    %1330 = vmatpush1.xpose.msra.mxu0 0.0
    %1331 = vmatprep.subr.mxu0 0.0
    %1332 = vmatpush1.xpose.msra.mxu0 0.0
    %1333 = vmatprep.subr.mxu0 0.0
    %1334 = vmatpush1.xpose.msra.mxu0 0.0
    %1335 = vmatprep.subr.mxu0 0.0
    %1336 = vmatpush1.xpose.msra.mxu0 0.0
    %1337 = vmatprep.subr.mxu0 0.0
    %1338 = vmatpush1.xpose.msra.mxu0 0.0
    %1339 = vmatprep.subr.mxu0 0.0
    %1340 = vmatpush1.xpose.msra.mxu0 0.0
    %1341 = vmatprep.subr.mxu0 0.0
    %1342 = vmatpush1.xpose.msra.mxu0 0.0
    %1343 = vmatprep.subr.mxu0 0.0
    %1344 = vmatpush1.xpose.msra.mxu0 0.0
    %1345 = vmatprep.subr.mxu0 0.0
    %1346 = vmatpush1.xpose.msra.mxu0 0.0
    %1347 = vmatprep.subr.mxu0 0.0
    %1348 = vmatpush1.xpose.msra.mxu0 0.0
    %1349 = vmatprep.subr.mxu0 0.0
    %1350 = vmatpush1.xpose.msra.mxu0 0.0
    %1351 = vmatprep.subr.mxu0 0.0
    %1352 = vmatpush1.xpose.msra.mxu0 0.0
    %1353 = vmatprep.subr.mxu0 0.0
    %1354 = vmatpush1.xpose.msra.mxu0 0.0
    %1355 = vmatprep.subr.mxu0 0.0
    %1356 = vmatpush1.xpose.msra.mxu0 0.0
    %1357 = vmatprep.subr.mxu0 0.0
    %1358 = vmatpush1.xpose.msra.mxu0 0.0
    %1359 = vmatprep.subr.mxu0 0.0
    %1360 = vmatpush1.xpose.msra.mxu0 0.0
    %1361 = vmatprep.subr.mxu0 0.0
    %1362 = vmatpush1.xpose.msra.mxu0 0.0
    %1363 = vmatprep.subr.mxu0 0.0
    %1364 = vmatpush1.xpose.msra.mxu0 0.0
    %1365 = vmatprep.subr.mxu0 0.0
    %1366 = vmatpush1.xpose.msra.mxu0 0.0
    %1367 = vmatprep.subr.mxu0 0.0
    %1368 = vmatpush1.xpose.msra.mxu0 0.0
    %1369 = vmatprep.subr.mxu0 0.0
    %1370 = vmatpush1.xpose.msra.mxu0 0.0
    %1371 = vmatprep.subr.mxu0 0.0
    %1372 = vmatpush1.xpose.msra.mxu0 0.0
    %1373 = vmatprep.subr.mxu0 0.0
    %1374 = vmatpush1.xpose.msra.mxu0 0.0
    %1375 = vmatprep.subr.mxu0 0.0
    %1376 = vmatpush1.xpose.msra.mxu0 0.0
    %1377 = vmatprep.subr.mxu0 0.0
    %1378 = vmatpush1.xpose.msra.mxu0 0.0
    %1379 = vmatprep.subr.mxu0 0.0
    %1380 = vmatpush1.xpose.msra.mxu0 0.0
    %1381 = vmatprep.subr.mxu0 0.0
    %1382 = vmatpush1.xpose.msra.mxu0 0.0
    %1383 = vmatprep.subr.mxu0 0.0
    %1384 = vmatpush1.xpose.msra.mxu0 0.0
    %1385 = vmatprep.subr.mxu0 0.0
    %1386 = vmatpush1.xpose.msra.mxu0 0.0
    %1387 = vmatprep.mubr.f32.mxu0 %v543
    %1388 = vmatmul.mubr.f32.gmra.mrb[0].mxu0 %v535
    %v1389 = vpop.f32.mrb[0].mxu0
    %v1390 = vadd.f32 %v1320, %v1389
    %v1391 = vpop.f32.mrb[0].mxu0
    %1392 = vdwg.mxu0
    %1393 = vmatprep.subr.mxu0 %v197
    %1394 = vmatpush1.xpose.msra.mxu0 %v196
    %1395 = vmatprep.subr.mxu0 %v325
    %1396 = vmatpush1.xpose.msra.mxu0 %v324
    %1397 = vmatprep.subr.mxu0 0.0
    %1398 = vmatpush1.xpose.msra.mxu0 0.0
    %1399 = vmatprep.subr.mxu0 0.0
    %1400 = vmatpush1.xpose.msra.mxu0 0.0
    %1401 = vmatprep.subr.mxu0 0.0
    %1402 = vmatpush1.xpose.msra.mxu0 0.0
    %1403 = vmatprep.subr.mxu0 0.0
    %1404 = vmatpush1.xpose.msra.mxu0 0.0
    %1405 = vmatprep.subr.mxu0 0.0
    %1406 = vmatpush1.xpose.msra.mxu0 0.0
    %1407 = vmatprep.subr.mxu0 0.0
    %1408 = vmatpush1.xpose.msra.mxu0 0.0
    %1409 = vmatprep.subr.mxu0 0.0
    %1410 = vmatpush1.xpose.msra.mxu0 0.0
    %1411 = vmatprep.subr.mxu0 0.0
    %1412 = vmatpush1.xpose.msra.mxu0 0.0
    %1413 = vmatprep.subr.mxu0 0.0
    %1414 = vmatpush1.xpose.msra.mxu0 0.0
    %1415 = vmatprep.subr.mxu0 0.0
    %1416 = vmatpush1.xpose.msra.mxu0 0.0
    %1417 = vmatprep.subr.mxu0 0.0
    %1418 = vmatpush1.xpose.msra.mxu0 0.0
    %1419 = vmatprep.subr.mxu0 0.0
    %1420 = vmatpush1.xpose.msra.mxu0 0.0
    %1421 = vmatprep.subr.mxu0 0.0
    %1422 = vmatpush1.xpose.msra.mxu0 0.0
    %1423 = vmatprep.subr.mxu0 0.0
    %1424 = vmatpush1.xpose.msra.mxu0 0.0
    %1425 = vmatprep.subr.mxu0 0.0
    %1426 = vmatpush1.xpose.msra.mxu0 0.0
    %1427 = vmatprep.subr.mxu0 0.0
    %1428 = vmatpush1.xpose.msra.mxu0 0.0
    %1429 = vmatprep.subr.mxu0 0.0
    %1430 = vmatpush1.xpose.msra.mxu0 0.0
    %1431 = vmatprep.subr.mxu0 0.0
    %1432 = vmatpush1.xpose.msra.mxu0 0.0
    %1433 = vmatprep.subr.mxu0 0.0
    %1434 = vmatpush1.xpose.msra.mxu0 0.0
    %1435 = vmatprep.subr.mxu0 0.0
    %1436 = vmatpush1.xpose.msra.mxu0 0.0
    %1437 = vmatprep.subr.mxu0 0.0
    %1438 = vmatpush1.xpose.msra.mxu0 0.0
    %1439 = vmatprep.subr.mxu0 0.0
    %1440 = vmatpush1.xpose.msra.mxu0 0.0
    %1441 = vmatprep.subr.mxu0 0.0
    %1442 = vmatpush1.xpose.msra.mxu0 0.0
    %1443 = vmatprep.subr.mxu0 0.0
    %1444 = vmatpush1.xpose.msra.mxu0 0.0
    %1445 = vmatprep.subr.mxu0 0.0
    %1446 = vmatpush1.xpose.msra.mxu0 0.0
    %1447 = vmatprep.subr.mxu0 0.0
    %1448 = vmatpush1.xpose.msra.mxu0 0.0
    %1449 = vmatprep.subr.mxu0 0.0
    %1450 = vmatpush1.xpose.msra.mxu0 0.0
    %1451 = vmatprep.subr.mxu0 0.0
    %1452 = vmatpush1.xpose.msra.mxu0 0.0
    %1453 = vmatprep.subr.mxu0 0.0
    %1454 = vmatpush1.xpose.msra.mxu0 0.0
    %1455 = vmatprep.subr.mxu0 0.0
    %1456 = vmatpush1.xpose.msra.mxu0 0.0
    %1457 = vmatprep.mubr.f32.mxu0 %v544
    %1458 = vmatmul.mubr.f32.gmra.mrb[0].mxu0 %v542
    %v1459 = vpop.f32.mrb[0].mxu0
    %v1460 = vadd.f32 %v1390, %v1459
    %v1461 = vpop.f32.mrb[0].mxu0
    %1462 = vdwg.mxu0
    %1463 = vmatprep.subr.mxu0 %v199
    %1464 = vmatpush1.xpose.msra.mxu0 %v198
    %1465 = vmatprep.subr.mxu0 %v327
    %1466 = vmatpush1.xpose.msra.mxu0 %v326
    %1467 = vmatprep.subr.mxu0 0.0
    %1468 = vmatpush1.xpose.msra.mxu0 0.0
    %1469 = vmatprep.subr.mxu0 0.0
    %1470 = vmatpush1.xpose.msra.mxu0 0.0
    %1471 = vmatprep.subr.mxu0 0.0
    %1472 = vmatpush1.xpose.msra.mxu0 0.0
    %1473 = vmatprep.subr.mxu0 0.0
    %1474 = vmatpush1.xpose.msra.mxu0 0.0
    %1475 = vmatprep.subr.mxu0 0.0
    %1476 = vmatpush1.xpose.msra.mxu0 0.0
    %1477 = vmatprep.subr.mxu0 0.0
    %1478 = vmatpush1.xpose.msra.mxu0 0.0
    %1479 = vmatprep.subr.mxu0 0.0
    %1480 = vmatpush1.xpose.msra.mxu0 0.0
    %1481 = vmatprep.subr.mxu0 0.0
    %1482 = vmatpush1.xpose.msra.mxu0 0.0
    %1483 = vmatprep.subr.mxu0 0.0
    %1484 = vmatpush1.xpose.msra.mxu0 0.0
    %1485 = vmatprep.subr.mxu0 0.0
    %1486 = vmatpush1.xpose.msra.mxu0 0.0
    %1487 = vmatprep.subr.mxu0 0.0
    %1488 = vmatpush1.xpose.msra.mxu0 0.0
    %1489 = vmatprep.subr.mxu0 0.0
    %1490 = vmatpush1.xpose.msra.mxu0 0.0
    %1491 = vmatprep.subr.mxu0 0.0
    %1492 = vmatpush1.xpose.msra.mxu0 0.0
    %1493 = vmatprep.subr.mxu0 0.0
    %1494 = vmatpush1.xpose.msra.mxu0 0.0
    %1495 = vmatprep.subr.mxu0 0.0
    %1496 = vmatpush1.xpose.msra.mxu0 0.0
    %1497 = vmatprep.subr.mxu0 0.0
    %1498 = vmatpush1.xpose.msra.mxu0 0.0
    %1499 = vmatprep.subr.mxu0 0.0
    %1500 = vmatpush1.xpose.msra.mxu0 0.0
    %1501 = vmatprep.subr.mxu0 0.0
    %1502 = vmatpush1.xpose.msra.mxu0 0.0
    %1503 = vmatprep.subr.mxu0 0.0
    %1504 = vmatpush1.xpose.msra.mxu0 0.0
    %1505 = vmatprep.subr.mxu0 0.0
    %1506 = vmatpush1.xpose.msra.mxu0 0.0
    %1507 = vmatprep.subr.mxu0 0.0
    %1508 = vmatpush1.xpose.msra.mxu0 0.0
    %1509 = vmatprep.subr.mxu0 0.0
    %1510 = vmatpush1.xpose.msra.mxu0 0.0
    %1511 = vmatprep.subr.mxu0 0.0
    %1512 = vmatpush1.xpose.msra.mxu0 0.0
    %1513 = vmatprep.subr.mxu0 0.0
    %1514 = vmatpush1.xpose.msra.mxu0 0.0
    %1515 = vmatprep.subr.mxu0 0.0
    %1516 = vmatpush1.xpose.msra.mxu0 0.0
    %1517 = vmatprep.subr.mxu0 0.0
    %1518 = vmatpush1.xpose.msra.mxu0 0.0
    %1519 = vmatprep.subr.mxu0 0.0
    %1520 = vmatpush1.xpose.msra.mxu0 0.0
    %1521 = vmatprep.subr.mxu0 0.0
    %1522 = vmatpush1.xpose.msra.mxu0 0.0
    %1523 = vmatprep.subr.mxu0 0.0
    %1524 = vmatpush1.xpose.msra.mxu0 0.0
    %1525 = vmatprep.subr.mxu0 0.0
    %1526 = vmatpush1.xpose.msra.mxu0 0.0
    %1527 = vmatprep.mubr.f32.mxu0 %v560
    %1528 = vmatmul.mubr.f32.gmra.mrb[0].mxu0 %v552
    %v1529 = vpop.f32.mrb[0].mxu0
    %v1530 = vadd.f32 %v1460, %v1529
    %v1531 = vpop.f32.mrb[0].mxu0
    %1532 = vdwg.mxu0
    %1533 = vmatprep.subr.mxu0 %v201
    %1534 = vmatpush1.xpose.msra.mxu0 %v200
    %1535 = vmatprep.subr.mxu0 %v329
    %1536 = vmatpush1.xpose.msra.mxu0 %v328
    %1537 = vmatprep.subr.mxu0 0.0
    %1538 = vmatpush1.xpose.msra.mxu0 0.0
    %1539 = vmatprep.subr.mxu0 0.0
    %1540 = vmatpush1.xpose.msra.mxu0 0.0
    %1541 = vmatprep.subr.mxu0 0.0
    %1542 = vmatpush1.xpose.msra.mxu0 0.0
    %1543 = vmatprep.subr.mxu0 0.0
    %1544 = vmatpush1.xpose.msra.mxu0 0.0
    %1545 = vmatprep.subr.mxu0 0.0
    %1546 = vmatpush1.xpose.msra.mxu0 0.0
    %1547 = vmatprep.subr.mxu0 0.0
    %1548 = vmatpush1.xpose.msra.mxu0 0.0
    %1549 = vmatprep.subr.mxu0 0.0
    %1550 = vmatpush1.xpose.msra.mxu0 0.0
    %1551 = vmatprep.subr.mxu0 0.0
    %1552 = vmatpush1.xpose.msra.mxu0 0.0
    %1553 = vmatprep.subr.mxu0 0.0
    %1554 = vmatpush1.xpose.msra.mxu0 0.0
    %1555 = vmatprep.subr.mxu0 0.0
    %1556 = vmatpush1.xpose.msra.mxu0 0.0
    %1557 = vmatprep.subr.mxu0 0.0
    %1558 = vmatpush1.xpose.msra.mxu0 0.0
    %1559 = vmatprep.subr.mxu0 0.0
    %1560 = vmatpush1.xpose.msra.mxu0 0.0
    %1561 = vmatprep.subr.mxu0 0.0
    %1562 = vmatpush1.xpose.msra.mxu0 0.0
    %1563 = vmatprep.subr.mxu0 0.0
    %1564 = vmatpush1.xpose.msra.mxu0 0.0
    %1565 = vmatprep.subr.mxu0 0.0
    %1566 = vmatpush1.xpose.msra.mxu0 0.0
    %1567 = vmatprep.subr.mxu0 0.0
    %1568 = vmatpush1.xpose.msra.mxu0 0.0
    %1569 = vmatprep.subr.mxu0 0.0
    %1570 = vmatpush1.xpose.msra.mxu0 0.0
    %1571 = vmatprep.subr.mxu0 0.0
    %1572 = vmatpush1.xpose.msra.mxu0 0.0
    %1573 = vmatprep.subr.mxu0 0.0
    %1574 = vmatpush1.xpose.msra.mxu0 0.0
    %1575 = vmatprep.subr.mxu0 0.0
    %1576 = vmatpush1.xpose.msra.mxu0 0.0
    %1577 = vmatprep.subr.mxu0 0.0
    %1578 = vmatpush1.xpose.msra.mxu0 0.0
    %1579 = vmatprep.subr.mxu0 0.0
    %1580 = vmatpush1.xpose.msra.mxu0 0.0
    %1581 = vmatprep.subr.mxu0 0.0
    %1582 = vmatpush1.xpose.msra.mxu0 0.0
    %1583 = vmatprep.subr.mxu0 0.0
    %1584 = vmatpush1.xpose.msra.mxu0 0.0
    %1585 = vmatprep.subr.mxu0 0.0
    %1586 = vmatpush1.xpose.msra.mxu0 0.0
    %1587 = vmatprep.subr.mxu0 0.0
    %1588 = vmatpush1.xpose.msra.mxu0 0.0
    %1589 = vmatprep.subr.mxu0 0.0
    %1590 = vmatpush1.xpose.msra.mxu0 0.0
    %1591 = vmatprep.subr.mxu0 0.0
    %1592 = vmatpush1.xpose.msra.mxu0 0.0
    %1593 = vmatprep.subr.mxu0 0.0
    %1594 = vmatpush1.xpose.msra.mxu0 0.0
    %1595 = vmatprep.subr.mxu0 0.0
    %1596 = vmatpush1.xpose.msra.mxu0 0.0
    %1597 = vmatprep.mubr.f32.mxu0 %v561
    %1598 = vmatmul.mubr.f32.gmra.mrb[0].mxu0 %v559
    %v1599 = vpop.f32.mrb[0].mxu0
    %v1600 = vadd.f32 %v1530, %v1599
    %v1601 = vpop.f32.mrb[0].mxu0
    %1602 = vdwg.mxu0
    %1603 = vmatprep.subr.mxu0 %v203
    %1604 = vmatpush1.xpose.msra.mxu0 %v202
    %1605 = vmatprep.subr.mxu0 %v331
    %1606 = vmatpush1.xpose.msra.mxu0 %v330
    %1607 = vmatprep.subr.mxu0 0.0
    %1608 = vmatpush1.xpose.msra.mxu0 0.0
    %1609 = vmatprep.subr.mxu0 0.0
    %1610 = vmatpush1.xpose.msra.mxu0 0.0
    %1611 = vmatprep.subr.mxu0 0.0
    %1612 = vmatpush1.xpose.msra.mxu0 0.0
    %1613 = vmatprep.subr.mxu0 0.0
    %1614 = vmatpush1.xpose.msra.mxu0 0.0
    %1615 = vmatprep.subr.mxu0 0.0
    %1616 = vmatpush1.xpose.msra.mxu0 0.0
    %1617 = vmatprep.subr.mxu0 0.0
    %1618 = vmatpush1.xpose.msra.mxu0 0.0
    %1619 = vmatprep.subr.mxu0 0.0
    %1620 = vmatpush1.xpose.msra.mxu0 0.0
    %1621 = vmatprep.subr.mxu0 0.0
    %1622 = vmatpush1.xpose.msra.mxu0 0.0
    %1623 = vmatprep.subr.mxu0 0.0
    %1624 = vmatpush1.xpose.msra.mxu0 0.0
    %1625 = vmatprep.subr.mxu0 0.0
    %1626 = vmatpush1.xpose.msra.mxu0 0.0
    %1627 = vmatprep.subr.mxu0 0.0
    %1628 = vmatpush1.xpose.msra.mxu0 0.0
    %1629 = vmatprep.subr.mxu0 0.0
    %1630 = vmatpush1.xpose.msra.mxu0 0.0
    %1631 = vmatprep.subr.mxu0 0.0
    %1632 = vmatpush1.xpose.msra.mxu0 0.0
    %1633 = vmatprep.subr.mxu0 0.0
    %1634 = vmatpush1.xpose.msra.mxu0 0.0
    %1635 = vmatprep.subr.mxu0 0.0
    %1636 = vmatpush1.xpose.msra.mxu0 0.0
    %1637 = vmatprep.subr.mxu0 0.0
    %1638 = vmatpush1.xpose.msra.mxu0 0.0
    %1639 = vmatprep.subr.mxu0 0.0
    %1640 = vmatpush1.xpose.msra.mxu0 0.0
    %1641 = vmatprep.subr.mxu0 0.0
    %1642 = vmatpush1.xpose.msra.mxu0 0.0
    %1643 = vmatprep.subr.mxu0 0.0
    %1644 = vmatpush1.xpose.msra.mxu0 0.0
    %1645 = vmatprep.subr.mxu0 0.0
    %1646 = vmatpush1.xpose.msra.mxu0 0.0
    %1647 = vmatprep.subr.mxu0 0.0
    %1648 = vmatpush1.xpose.msra.mxu0 0.0
    %1649 = vmatprep.subr.mxu0 0.0
    %1650 = vmatpush1.xpose.msra.mxu0 0.0
    %1651 = vmatprep.subr.mxu0 0.0
    %1652 = vmatpush1.xpose.msra.mxu0 0.0
    %1653 = vmatprep.subr.mxu0 0.0
    %1654 = vmatpush1.xpose.msra.mxu0 0.0
    %1655 = vmatprep.subr.mxu0 0.0
    %1656 = vmatpush1.xpose.msra.mxu0 0.0
    %1657 = vmatprep.subr.mxu0 0.0
    %1658 = vmatpush1.xpose.msra.mxu0 0.0
    %1659 = vmatprep.subr.mxu0 0.0
    %1660 = vmatpush1.xpose.msra.mxu0 0.0
    %1661 = vmatprep.subr.mxu0 0.0
    %1662 = vmatpush1.xpose.msra.mxu0 0.0
    %1663 = vmatprep.subr.mxu0 0.0
    %1664 = vmatpush1.xpose.msra.mxu0 0.0
    %1665 = vmatprep.subr.mxu0 0.0
    %1666 = vmatpush1.xpose.msra.mxu0 0.0
    %1667 = vmatprep.mubr.f32.mxu0 %v577
    %1668 = vmatmul.mubr.f32.gmra.mrb[0].mxu0 %v569
    %v1669 = vpop.f32.mrb[0].mxu0
    %v1670 = vadd.f32 %v1600, %v1669
    %v1671 = vpop.f32.mrb[0].mxu0
    %1672 = vdwg.mxu0
    %1673 = vmatprep.subr.mxu0 %v205
    %1674 = vmatpush1.xpose.msra.mxu0 %v204
    %1675 = vmatprep.subr.mxu0 %v333
    %1676 = vmatpush1.xpose.msra.mxu0 %v332
    %1677 = vmatprep.subr.mxu0 0.0
    %1678 = vmatpush1.xpose.msra.mxu0 0.0
    %1679 = vmatprep.subr.mxu0 0.0
    %1680 = vmatpush1.xpose.msra.mxu0 0.0
    %1681 = vmatprep.subr.mxu0 0.0
    %1682 = vmatpush1.xpose.msra.mxu0 0.0
    %1683 = vmatprep.subr.mxu0 0.0
    %1684 = vmatpush1.xpose.msra.mxu0 0.0
    %1685 = vmatprep.subr.mxu0 0.0
    %1686 = vmatpush1.xpose.msra.mxu0 0.0
    %1687 = vmatprep.subr.mxu0 0.0
    %1688 = vmatpush1.xpose.msra.mxu0 0.0
    %1689 = vmatprep.subr.mxu0 0.0
    %1690 = vmatpush1.xpose.msra.mxu0 0.0
    %1691 = vmatprep.subr.mxu0 0.0
    %1692 = vmatpush1.xpose.msra.mxu0 0.0
    %1693 = vmatprep.subr.mxu0 0.0
    %1694 = vmatpush1.xpose.msra.mxu0 0.0
    %1695 = vmatprep.subr.mxu0 0.0
    %1696 = vmatpush1.xpose.msra.mxu0 0.0
    %1697 = vmatprep.subr.mxu0 0.0
    %1698 = vmatpush1.xpose.msra.mxu0 0.0
    %1699 = vmatprep.subr.mxu0 0.0
    %1700 = vmatpush1.xpose.msra.mxu0 0.0
    %1701 = vmatprep.subr.mxu0 0.0
    %1702 = vmatpush1.xpose.msra.mxu0 0.0
    %1703 = vmatprep.subr.mxu0 0.0
    %1704 = vmatpush1.xpose.msra.mxu0 0.0
    %1705 = vmatprep.subr.mxu0 0.0
    %1706 = vmatpush1.xpose.msra.mxu0 0.0
    %1707 = vmatprep.subr.mxu0 0.0
    %1708 = vmatpush1.xpose.msra.mxu0 0.0
    %1709 = vmatprep.subr.mxu0 0.0
    %1710 = vmatpush1.xpose.msra.mxu0 0.0
    %1711 = vmatprep.subr.mxu0 0.0
    %1712 = vmatpush1.xpose.msra.mxu0 0.0
    %1713 = vmatprep.subr.mxu0 0.0
    %1714 = vmatpush1.xpose.msra.mxu0 0.0
    %1715 = vmatprep.subr.mxu0 0.0
    %1716 = vmatpush1.xpose.msra.mxu0 0.0
    %1717 = vmatprep.subr.mxu0 0.0
    %1718 = vmatpush1.xpose.msra.mxu0 0.0
    %1719 = vmatprep.subr.mxu0 0.0
    %1720 = vmatpush1.xpose.msra.mxu0 0.0
    %1721 = vmatprep.subr.mxu0 0.0
    %1722 = vmatpush1.xpose.msra.mxu0 0.0
    %1723 = vmatprep.subr.mxu0 0.0
    %1724 = vmatpush1.xpose.msra.mxu0 0.0
    %1725 = vmatprep.subr.mxu0 0.0
    %1726 = vmatpush1.xpose.msra.mxu0 0.0
    %1727 = vmatprep.subr.mxu0 0.0
    %1728 = vmatpush1.xpose.msra.mxu0 0.0
    %1729 = vmatprep.subr.mxu0 0.0
    %1730 = vmatpush1.xpose.msra.mxu0 0.0
    %1731 = vmatprep.subr.mxu0 0.0
    %1732 = vmatpush1.xpose.msra.mxu0 0.0
    %1733 = vmatprep.subr.mxu0 0.0
    %1734 = vmatpush1.xpose.msra.mxu0 0.0
    %1735 = vmatprep.subr.mxu0 0.0
    %1736 = vmatpush1.xpose.msra.mxu0 0.0
    %1737 = vmatprep.mubr.f32.mxu0 %v578
    %1738 = vmatmul.mubr.f32.gmra.mrb[0].mxu0 %v576
    %v1739 = vpop.f32.mrb[0].mxu0
    %v1740 = vadd.f32 %v1670, %v1739
    %v1741 = vpop.f32.mrb[0].mxu0
    %1742 = vdwg.mxu0
    %1743 = vmatprep.subr.mxu0 %v207
    %1744 = vmatpush1.xpose.msra.mxu0 %v206
    %1745 = vmatprep.subr.mxu0 %v335
    %1746 = vmatpush1.xpose.msra.mxu0 %v334
    %1747 = vmatprep.subr.mxu0 0.0
    %1748 = vmatpush1.xpose.msra.mxu0 0.0
    %1749 = vmatprep.subr.mxu0 0.0
    %1750 = vmatpush1.xpose.msra.mxu0 0.0
    %1751 = vmatprep.subr.mxu0 0.0
    %1752 = vmatpush1.xpose.msra.mxu0 0.0
    %1753 = vmatprep.subr.mxu0 0.0
    %1754 = vmatpush1.xpose.msra.mxu0 0.0
    %1755 = vmatprep.subr.mxu0 0.0
    %1756 = vmatpush1.xpose.msra.mxu0 0.0
    %1757 = vmatprep.subr.mxu0 0.0
    %1758 = vmatpush1.xpose.msra.mxu0 0.0
    %1759 = vmatprep.subr.mxu0 0.0
    %1760 = vmatpush1.xpose.msra.mxu0 0.0
    %1761 = vmatprep.subr.mxu0 0.0
    %1762 = vmatpush1.xpose.msra.mxu0 0.0
    %1763 = vmatprep.subr.mxu0 0.0
    %1764 = vmatpush1.xpose.msra.mxu0 0.0
    %1765 = vmatprep.subr.mxu0 0.0
    %1766 = vmatpush1.xpose.msra.mxu0 0.0
    %1767 = vmatprep.subr.mxu0 0.0
    %1768 = vmatpush1.xpose.msra.mxu0 0.0
    %1769 = vmatprep.subr.mxu0 0.0
    %1770 = vmatpush1.xpose.msra.mxu0 0.0
    %1771 = vmatprep.subr.mxu0 0.0
    %1772 = vmatpush1.xpose.msra.mxu0 0.0
    %1773 = vmatprep.subr.mxu0 0.0
    %1774 = vmatpush1.xpose.msra.mxu0 0.0
    %1775 = vmatprep.subr.mxu0 0.0
    %1776 = vmatpush1.xpose.msra.mxu0 0.0
    %1777 = vmatprep.subr.mxu0 0.0
    %1778 = vmatpush1.xpose.msra.mxu0 0.0
    %1779 = vmatprep.subr.mxu0 0.0
    %1780 = vmatpush1.xpose.msra.mxu0 0.0
    %1781 = vmatprep.subr.mxu0 0.0
    %1782 = vmatpush1.xpose.msra.mxu0 0.0
    %1783 = vmatprep.subr.mxu0 0.0
    %1784 = vmatpush1.xpose.msra.mxu0 0.0
    %1785 = vmatprep.subr.mxu0 0.0
    %1786 = vmatpush1.xpose.msra.mxu0 0.0
    %1787 = vmatprep.subr.mxu0 0.0
    %1788 = vmatpush1.xpose.msra.mxu0 0.0
    %1789 = vmatprep.subr.mxu0 0.0
    %1790 = vmatpush1.xpose.msra.mxu0 0.0
    %1791 = vmatprep.subr.mxu0 0.0
    %1792 = vmatpush1.xpose.msra.mxu0 0.0
    %1793 = vmatprep.subr.mxu0 0.0
    %1794 = vmatpush1.xpose.msra.mxu0 0.0
    %1795 = vmatprep.subr.mxu0 0.0
    %1796 = vmatpush1.xpose.msra.mxu0 0.0
    %1797 = vmatprep.subr.mxu0 0.0
    %1798 = vmatpush1.xpose.msra.mxu0 0.0
    %1799 = vmatprep.subr.mxu0 0.0
    %1800 = vmatpush1.xpose.msra.mxu0 0.0
    %1801 = vmatprep.subr.mxu0 0.0
    %1802 = vmatpush1.xpose.msra.mxu0 0.0
    %1803 = vmatprep.subr.mxu0 0.0
    %1804 = vmatpush1.xpose.msra.mxu0 0.0
    %1805 = vmatprep.subr.mxu0 0.0
    %1806 = vmatpush1.xpose.msra.mxu0 0.0
    %1807 = vmatprep.mubr.f32.mxu0 %v594
    %1808 = vmatmul.mubr.f32.gmra.mrb[0].mxu0 %v586
    %v1809 = vpop.f32.mrb[0].mxu0
    %v1810 = vadd.f32 %v1740, %v1809
    %v1811 = vpop.f32.mrb[0].mxu0
    %1812 = vdwg.mxu0
    %1813 = vmatprep.subr.mxu0 %v209
    %1814 = vmatpush1.xpose.msra.mxu0 %v208
    %1815 = vmatprep.subr.mxu0 %v337
    %1816 = vmatpush1.xpose.msra.mxu0 %v336
    %1817 = vmatprep.subr.mxu0 0.0
    %1818 = vmatpush1.xpose.msra.mxu0 0.0
    %1819 = vmatprep.subr.mxu0 0.0
    %1820 = vmatpush1.xpose.msra.mxu0 0.0
    %1821 = vmatprep.subr.mxu0 0.0
    %1822 = vmatpush1.xpose.msra.mxu0 0.0
    %1823 = vmatprep.subr.mxu0 0.0
    %1824 = vmatpush1.xpose.msra.mxu0 0.0
    %1825 = vmatprep.subr.mxu0 0.0
    %1826 = vmatpush1.xpose.msra.mxu0 0.0
    %1827 = vmatprep.subr.mxu0 0.0
    %1828 = vmatpush1.xpose.msra.mxu0 0.0
    %1829 = vmatprep.subr.mxu0 0.0
    %1830 = vmatpush1.xpose.msra.mxu0 0.0
    %1831 = vmatprep.subr.mxu0 0.0
    %1832 = vmatpush1.xpose.msra.mxu0 0.0
    %1833 = vmatprep.subr.mxu0 0.0
    %1834 = vmatpush1.xpose.msra.mxu0 0.0
    %1835 = vmatprep.subr.mxu0 0.0
    %1836 = vmatpush1.xpose.msra.mxu0 0.0
    %1837 = vmatprep.subr.mxu0 0.0
    %1838 = vmatpush1.xpose.msra.mxu0 0.0
    %1839 = vmatprep.subr.mxu0 0.0
    %1840 = vmatpush1.xpose.msra.mxu0 0.0
    %1841 = vmatprep.subr.mxu0 0.0
    %1842 = vmatpush1.xpose.msra.mxu0 0.0
    %1843 = vmatprep.subr.mxu0 0.0
    %1844 = vmatpush1.xpose.msra.mxu0 0.0
    %1845 = vmatprep.subr.mxu0 0.0
    %1846 = vmatpush1.xpose.msra.mxu0 0.0
    %1847 = vmatprep.subr.mxu0 0.0
    %1848 = vmatpush1.xpose.msra.mxu0 0.0
    %1849 = vmatprep.subr.mxu0 0.0
    %1850 = vmatpush1.xpose.msra.mxu0 0.0
    %1851 = vmatprep.subr.mxu0 0.0
    %1852 = vmatpush1.xpose.msra.mxu0 0.0
    %1853 = vmatprep.subr.mxu0 0.0
    %1854 = vmatpush1.xpose.msra.mxu0 0.0
    %1855 = vmatprep.subr.mxu0 0.0
    %1856 = vmatpush1.xpose.msra.mxu0 0.0
    %1857 = vmatprep.subr.mxu0 0.0
    %1858 = vmatpush1.xpose.msra.mxu0 0.0
    %1859 = vmatprep.subr.mxu0 0.0
    %1860 = vmatpush1.xpose.msra.mxu0 0.0
    %1861 = vmatprep.subr.mxu0 0.0
    %1862 = vmatpush1.xpose.msra.mxu0 0.0
    %1863 = vmatprep.subr.mxu0 0.0
    %1864 = vmatpush1.xpose.msra.mxu0 0.0
    %1865 = vmatprep.subr.mxu0 0.0
    %1866 = vmatpush1.xpose.msra.mxu0 0.0
    %1867 = vmatprep.subr.mxu0 0.0
    %1868 = vmatpush1.xpose.msra.mxu0 0.0
    %1869 = vmatprep.subr.mxu0 0.0
    %1870 = vmatpush1.xpose.msra.mxu0 0.0
    %1871 = vmatprep.subr.mxu0 0.0
    %1872 = vmatpush1.xpose.msra.mxu0 0.0
    %1873 = vmatprep.subr.mxu0 0.0
    %1874 = vmatpush1.xpose.msra.mxu0 0.0
    %1875 = vmatprep.subr.mxu0 0.0
    %1876 = vmatpush1.xpose.msra.mxu0 0.0
    %1877 = vmatprep.mubr.f32.mxu0 %v595
    %1878 = vmatmul.mubr.f32.gmra.mrb[0].mxu0 %v593
    %v1879 = vpop.f32.mrb[0].mxu0
    %v1880 = vadd.f32 %v1810, %v1879
    %v1881 = vpop.f32.mrb[0].mxu0
    %1882 = vdwg.mxu0
    %1883 = vmatprep.subr.mxu0 %v211
    %1884 = vmatpush1.xpose.msra.mxu0 %v210
    %1885 = vmatprep.subr.mxu0 %v339
    %1886 = vmatpush1.xpose.msra.mxu0 %v338
    %1887 = vmatprep.subr.mxu0 0.0
    %1888 = vmatpush1.xpose.msra.mxu0 0.0
    %1889 = vmatprep.subr.mxu0 0.0
    %1890 = vmatpush1.xpose.msra.mxu0 0.0
    %1891 = vmatprep.subr.mxu0 0.0
    %1892 = vmatpush1.xpose.msra.mxu0 0.0
    %1893 = vmatprep.subr.mxu0 0.0
    %1894 = vmatpush1.xpose.msra.mxu0 0.0
    %1895 = vmatprep.subr.mxu0 0.0
    %1896 = vmatpush1.xpose.msra.mxu0 0.0
    %1897 = vmatprep.subr.mxu0 0.0
    %1898 = vmatpush1.xpose.msra.mxu0 0.0
    %1899 = vmatprep.subr.mxu0 0.0
    %1900 = vmatpush1.xpose.msra.mxu0 0.0
    %1901 = vmatprep.subr.mxu0 0.0
    %1902 = vmatpush1.xpose.msra.mxu0 0.0
    %1903 = vmatprep.subr.mxu0 0.0
    %1904 = vmatpush1.xpose.msra.mxu0 0.0
    %1905 = vmatprep.subr.mxu0 0.0
    %1906 = vmatpush1.xpose.msra.mxu0 0.0
    %1907 = vmatprep.subr.mxu0 0.0
    %1908 = vmatpush1.xpose.msra.mxu0 0.0
    %1909 = vmatprep.subr.mxu0 0.0
    %1910 = vmatpush1.xpose.msra.mxu0 0.0
    %1911 = vmatprep.subr.mxu0 0.0
    %1912 = vmatpush1.xpose.msra.mxu0 0.0
    %1913 = vmatprep.subr.mxu0 0.0
    %1914 = vmatpush1.xpose.msra.mxu0 0.0
    %1915 = vmatprep.subr.mxu0 0.0
    %1916 = vmatpush1.xpose.msra.mxu0 0.0
    %1917 = vmatprep.subr.mxu0 0.0
    %1918 = vmatpush1.xpose.msra.mxu0 0.0
    %1919 = vmatprep.subr.mxu0 0.0
    %1920 = vmatpush1.xpose.msra.mxu0 0.0
    %1921 = vmatprep.subr.mxu0 0.0
    %1922 = vmatpush1.xpose.msra.mxu0 0.0
    %1923 = vmatprep.subr.mxu0 0.0
    %1924 = vmatpush1.xpose.msra.mxu0 0.0
    %1925 = vmatprep.subr.mxu0 0.0
    %1926 = vmatpush1.xpose.msra.mxu0 0.0
    %1927 = vmatprep.subr.mxu0 0.0
    %1928 = vmatpush1.xpose.msra.mxu0 0.0
    %1929 = vmatprep.subr.mxu0 0.0
    %1930 = vmatpush1.xpose.msra.mxu0 0.0
    %1931 = vmatprep.subr.mxu0 0.0
    %1932 = vmatpush1.xpose.msra.mxu0 0.0
    %1933 = vmatprep.subr.mxu0 0.0
    %1934 = vmatpush1.xpose.msra.mxu0 0.0
    %1935 = vmatprep.subr.mxu0 0.0
    %1936 = vmatpush1.xpose.msra.mxu0 0.0
    %1937 = vmatprep.subr.mxu0 0.0
    %1938 = vmatpush1.xpose.msra.mxu0 0.0
    %1939 = vmatprep.subr.mxu0 0.0
    %1940 = vmatpush1.xpose.msra.mxu0 0.0
    %1941 = vmatprep.subr.mxu0 0.0
    %1942 = vmatpush1.xpose.msra.mxu0 0.0
    %1943 = vmatprep.subr.mxu0 0.0
    %1944 = vmatpush1.xpose.msra.mxu0 0.0
    %1945 = vmatprep.subr.mxu0 0.0
    %1946 = vmatpush1.xpose.msra.mxu0 0.0
    %1947 = vmatprep.mubr.f32.mxu0 %v611
    %1948 = vmatmul.mubr.f32.gmra.mrb[0].mxu0 %v603
    %v1949 = vpop.f32.mrb[0].mxu0
    %v1950 = vadd.f32 %v1880, %v1949
    %v1951 = vpop.f32.mrb[0].mxu0
    %1952 = vdwg.mxu0
    %1953 = vmatprep.subr.mxu0 %v213
    %1954 = vmatpush1.xpose.msra.mxu0 %v212
    %1955 = vmatprep.subr.mxu0 %v341
    %1956 = vmatpush1.xpose.msra.mxu0 %v340
    %1957 = vmatprep.subr.mxu0 0.0
    %1958 = vmatpush1.xpose.msra.mxu0 0.0
    %1959 = vmatprep.subr.mxu0 0.0
    %1960 = vmatpush1.xpose.msra.mxu0 0.0
    %1961 = vmatprep.subr.mxu0 0.0
    %1962 = vmatpush1.xpose.msra.mxu0 0.0
    %1963 = vmatprep.subr.mxu0 0.0
    %1964 = vmatpush1.xpose.msra.mxu0 0.0
    %1965 = vmatprep.subr.mxu0 0.0
    %1966 = vmatpush1.xpose.msra.mxu0 0.0
    %1967 = vmatprep.subr.mxu0 0.0
    %1968 = vmatpush1.xpose.msra.mxu0 0.0
    %1969 = vmatprep.subr.mxu0 0.0
    %1970 = vmatpush1.xpose.msra.mxu0 0.0
    %1971 = vmatprep.subr.mxu0 0.0
    %1972 = vmatpush1.xpose.msra.mxu0 0.0
    %1973 = vmatprep.subr.mxu0 0.0
    %1974 = vmatpush1.xpose.msra.mxu0 0.0
    %1975 = vmatprep.subr.mxu0 0.0
    %1976 = vmatpush1.xpose.msra.mxu0 0.0
    %1977 = vmatprep.subr.mxu0 0.0
    %1978 = vmatpush1.xpose.msra.mxu0 0.0
    %1979 = vmatprep.subr.mxu0 0.0
    %1980 = vmatpush1.xpose.msra.mxu0 0.0
    %1981 = vmatprep.subr.mxu0 0.0
    %1982 = vmatpush1.xpose.msra.mxu0 0.0
    %1983 = vmatprep.subr.mxu0 0.0
    %1984 = vmatpush1.xpose.msra.mxu0 0.0
    %1985 = vmatprep.subr.mxu0 0.0
    %1986 = vmatpush1.xpose.msra.mxu0 0.0
    %1987 = vmatprep.subr.mxu0 0.0
    %1988 = vmatpush1.xpose.msra.mxu0 0.0
    %1989 = vmatprep.subr.mxu0 0.0
    %1990 = vmatpush1.xpose.msra.mxu0 0.0
    %1991 = vmatprep.subr.mxu0 0.0
    %1992 = vmatpush1.xpose.msra.mxu0 0.0
    %1993 = vmatprep.subr.mxu0 0.0
    %1994 = vmatpush1.xpose.msra.mxu0 0.0
    %1995 = vmatprep.subr.mxu0 0.0
    %1996 = vmatpush1.xpose.msra.mxu0 0.0
    %1997 = vmatprep.subr.mxu0 0.0
    %1998 = vmatpush1.xpose.msra.mxu0 0.0
    %1999 = vmatprep.subr.mxu0 0.0
    %2000 = vmatpush1.xpose.msra.mxu0 0.0
    %2001 = vmatprep.subr.mxu0 0.0
    %2002 = vmatpush1.xpose.msra.mxu0 0.0
    %2003 = vmatprep.subr.mxu0 0.0
    %2004 = vmatpush1.xpose.msra.mxu0 0.0
    %2005 = vmatprep.subr.mxu0 0.0
    %2006 = vmatpush1.xpose.msra.mxu0 0.0
    %2007 = vmatprep.subr.mxu0 0.0
    %2008 = vmatpush1.xpose.msra.mxu0 0.0
    %2009 = vmatprep.subr.mxu0 0.0
    %2010 = vmatpush1.xpose.msra.mxu0 0.0
    %2011 = vmatprep.subr.mxu0 0.0
    %2012 = vmatpush1.xpose.msra.mxu0 0.0
    %2013 = vmatprep.subr.mxu0 0.0
    %2014 = vmatpush1.xpose.msra.mxu0 0.0
    %2015 = vmatprep.subr.mxu0 0.0
    %2016 = vmatpush1.xpose.msra.mxu0 0.0
    %2017 = vmatprep.mubr.f32.mxu0 %v612
    %2018 = vmatmul.mubr.f32.gmra.mrb[0].mxu0 %v610
    %v2019 = vpop.f32.mrb[0].mxu0
    %v2020 = vadd.f32 %v1950, %v2019
    %v2021 = vpop.f32.mrb[0].mxu0
    %2022 = vdwg.mxu0
    %2023 = vmatprep.subr.mxu0 %v215
    %2024 = vmatpush1.xpose.msra.mxu0 %v214
    %2025 = vmatprep.subr.mxu0 %v343
    %2026 = vmatpush1.xpose.msra.mxu0 %v342
    %2027 = vmatprep.subr.mxu0 0.0
    %2028 = vmatpush1.xpose.msra.mxu0 0.0
    %2029 = vmatprep.subr.mxu0 0.0
    %2030 = vmatpush1.xpose.msra.mxu0 0.0
    %2031 = vmatprep.subr.mxu0 0.0
    %2032 = vmatpush1.xpose.msra.mxu0 0.0
    %2033 = vmatprep.subr.mxu0 0.0
    %2034 = vmatpush1.xpose.msra.mxu0 0.0
    %2035 = vmatprep.subr.mxu0 0.0
    %2036 = vmatpush1.xpose.msra.mxu0 0.0
    %2037 = vmatprep.subr.mxu0 0.0
    %2038 = vmatpush1.xpose.msra.mxu0 0.0
    %2039 = vmatprep.subr.mxu0 0.0
    %2040 = vmatpush1.xpose.msra.mxu0 0.0
    %2041 = vmatprep.subr.mxu0 0.0
    %2042 = vmatpush1.xpose.msra.mxu0 0.0
    %2043 = vmatprep.subr.mxu0 0.0
    %2044 = vmatpush1.xpose.msra.mxu0 0.0
    %2045 = vmatprep.subr.mxu0 0.0
    %2046 = vmatpush1.xpose.msra.mxu0 0.0
    %2047 = vmatprep.subr.mxu0 0.0
    %2048 = vmatpush1.xpose.msra.mxu0 0.0
    %2049 = vmatprep.subr.mxu0 0.0
    %2050 = vmatpush1.xpose.msra.mxu0 0.0
    %2051 = vmatprep.subr.mxu0 0.0
    %2052 = vmatpush1.xpose.msra.mxu0 0.0
    %2053 = vmatprep.subr.mxu0 0.0
    %2054 = vmatpush1.xpose.msra.mxu0 0.0
    %2055 = vmatprep.subr.mxu0 0.0
    %2056 = vmatpush1.xpose.msra.mxu0 0.0
    %2057 = vmatprep.subr.mxu0 0.0
    %2058 = vmatpush1.xpose.msra.mxu0 0.0
    %2059 = vmatprep.subr.mxu0 0.0
    %2060 = vmatpush1.xpose.msra.mxu0 0.0
    %2061 = vmatprep.subr.mxu0 0.0
    %2062 = vmatpush1.xpose.msra.mxu0 0.0
    %2063 = vmatprep.subr.mxu0 0.0
    %2064 = vmatpush1.xpose.msra.mxu0 0.0
    %2065 = vmatprep.subr.mxu0 0.0
    %2066 = vmatpush1.xpose.msra.mxu0 0.0
    %2067 = vmatprep.subr.mxu0 0.0
    %2068 = vmatpush1.xpose.msra.mxu0 0.0
    %2069 = vmatprep.subr.mxu0 0.0
    %2070 = vmatpush1.xpose.msra.mxu0 0.0
    %2071 = vmatprep.subr.mxu0 0.0
    %2072 = vmatpush1.xpose.msra.mxu0 0.0
    %2073 = vmatprep.subr.mxu0 0.0
    %2074 = vmatpush1.xpose.msra.mxu0 0.0
    %2075 = vmatprep.subr.mxu0 0.0
    %2076 = vmatpush1.xpose.msra.mxu0 0.0
    %2077 = vmatprep.subr.mxu0 0.0
    %2078 = vmatpush1.xpose.msra.mxu0 0.0
    %2079 = vmatprep.subr.mxu0 0.0
    %2080 = vmatpush1.xpose.msra.mxu0 0.0
    %2081 = vmatprep.subr.mxu0 0.0
    %2082 = vmatpush1.xpose.msra.mxu0 0.0
    %2083 = vmatprep.subr.mxu0 0.0
    %2084 = vmatpush1.xpose.msra.mxu0 0.0
    %2085 = vmatprep.subr.mxu0 0.0
    %2086 = vmatpush1.xpose.msra.mxu0 0.0
    %2087 = vmatprep.mubr.f32.mxu0 %v628
    %2088 = vmatmul.mubr.f32.gmra.mrb[0].mxu0 %v620
    %v2089 = vpop.f32.mrb[0].mxu0
    %v2090 = vadd.f32 %v2020, %v2089
    %v2091 = vpop.f32.mrb[0].mxu0
    %2092 = vdwg.mxu0
    %2093 = vmatprep.subr.mxu0 %v217
    %2094 = vmatpush1.xpose.msra.mxu0 %v216
    %2095 = vmatprep.subr.mxu0 %v345
    %2096 = vmatpush1.xpose.msra.mxu0 %v344
    %2097 = vmatprep.subr.mxu0 0.0
    %2098 = vmatpush1.xpose.msra.mxu0 0.0
    %2099 = vmatprep.subr.mxu0 0.0
    %2100 = vmatpush1.xpose.msra.mxu0 0.0
    %2101 = vmatprep.subr.mxu0 0.0
    %2102 = vmatpush1.xpose.msra.mxu0 0.0
    %2103 = vmatprep.subr.mxu0 0.0
    %2104 = vmatpush1.xpose.msra.mxu0 0.0
    %2105 = vmatprep.subr.mxu0 0.0
    %2106 = vmatpush1.xpose.msra.mxu0 0.0
    %2107 = vmatprep.subr.mxu0 0.0
    %2108 = vmatpush1.xpose.msra.mxu0 0.0
    %2109 = vmatprep.subr.mxu0 0.0
    %2110 = vmatpush1.xpose.msra.mxu0 0.0
    %2111 = vmatprep.subr.mxu0 0.0
    %2112 = vmatpush1.xpose.msra.mxu0 0.0
    %2113 = vmatprep.subr.mxu0 0.0
    %2114 = vmatpush1.xpose.msra.mxu0 0.0
    %2115 = vmatprep.subr.mxu0 0.0
    %2116 = vmatpush1.xpose.msra.mxu0 0.0
    %2117 = vmatprep.subr.mxu0 0.0
    %2118 = vmatpush1.xpose.msra.mxu0 0.0
    %2119 = vmatprep.subr.mxu0 0.0
    %2120 = vmatpush1.xpose.msra.mxu0 0.0
    %2121 = vmatprep.subr.mxu0 0.0
    %2122 = vmatpush1.xpose.msra.mxu0 0.0
    %2123 = vmatprep.subr.mxu0 0.0
    %2124 = vmatpush1.xpose.msra.mxu0 0.0
    %2125 = vmatprep.subr.mxu0 0.0
    %2126 = vmatpush1.xpose.msra.mxu0 0.0
    %2127 = vmatprep.subr.mxu0 0.0
    %2128 = vmatpush1.xpose.msra.mxu0 0.0
    %2129 = vmatprep.subr.mxu0 0.0
    %2130 = vmatpush1.xpose.msra.mxu0 0.0
    %2131 = vmatprep.subr.mxu0 0.0
    %2132 = vmatpush1.xpose.msra.mxu0 0.0
    %2133 = vmatprep.subr.mxu0 0.0
    %2134 = vmatpush1.xpose.msra.mxu0 0.0
    %2135 = vmatprep.subr.mxu0 0.0
    %2136 = vmatpush1.xpose.msra.mxu0 0.0
    %2137 = vmatprep.subr.mxu0 0.0
    %2138 = vmatpush1.xpose.msra.mxu0 0.0
    %2139 = vmatprep.subr.mxu0 0.0
    %2140 = vmatpush1.xpose.msra.mxu0 0.0
    %2141 = vmatprep.subr.mxu0 0.0
    %2142 = vmatpush1.xpose.msra.mxu0 0.0
    %2143 = vmatprep.subr.mxu0 0.0
    %2144 = vmatpush1.xpose.msra.mxu0 0.0
    %2145 = vmatprep.subr.mxu0 0.0
    %2146 = vmatpush1.xpose.msra.mxu0 0.0
    %2147 = vmatprep.subr.mxu0 0.0
    %2148 = vmatpush1.xpose.msra.mxu0 0.0
    %2149 = vmatprep.subr.mxu0 0.0
    %2150 = vmatpush1.xpose.msra.mxu0 0.0
    %2151 = vmatprep.subr.mxu0 0.0
    %2152 = vmatpush1.xpose.msra.mxu0 0.0
    %2153 = vmatprep.subr.mxu0 0.0
    %2154 = vmatpush1.xpose.msra.mxu0 0.0
    %2155 = vmatprep.subr.mxu0 0.0
    %2156 = vmatpush1.xpose.msra.mxu0 0.0
    %2157 = vmatprep.mubr.f32.mxu0 %v629
    %2158 = vmatmul.mubr.f32.gmra.mrb[0].mxu0 %v627
    %v2159 = vpop.f32.mrb[0].mxu0
    %v2160 = vadd.f32 %v2090, %v2159
    %v2161 = vpop.f32.mrb[0].mxu0
    %2162 = vdwg.mxu0
    %2163 = vmatprep.subr.mxu0 %v219
    %2164 = vmatpush1.xpose.msra.mxu0 %v218
    %2165 = vmatprep.subr.mxu0 %v347
    %2166 = vmatpush1.xpose.msra.mxu0 %v346
    %2167 = vmatprep.subr.mxu0 0.0
    %2168 = vmatpush1.xpose.msra.mxu0 0.0
    %2169 = vmatprep.subr.mxu0 0.0
    %2170 = vmatpush1.xpose.msra.mxu0 0.0
    %2171 = vmatprep.subr.mxu0 0.0
    %2172 = vmatpush1.xpose.msra.mxu0 0.0
    %2173 = vmatprep.subr.mxu0 0.0
    %2174 = vmatpush1.xpose.msra.mxu0 0.0
    %2175 = vmatprep.subr.mxu0 0.0
    %2176 = vmatpush1.xpose.msra.mxu0 0.0
    %2177 = vmatprep.subr.mxu0 0.0
    %2178 = vmatpush1.xpose.msra.mxu0 0.0
    %2179 = vmatprep.subr.mxu0 0.0
    %2180 = vmatpush1.xpose.msra.mxu0 0.0
    %2181 = vmatprep.subr.mxu0 0.0
    %2182 = vmatpush1.xpose.msra.mxu0 0.0
    %2183 = vmatprep.subr.mxu0 0.0
    %2184 = vmatpush1.xpose.msra.mxu0 0.0
    %2185 = vmatprep.subr.mxu0 0.0
    %2186 = vmatpush1.xpose.msra.mxu0 0.0
    %2187 = vmatprep.subr.mxu0 0.0
    %2188 = vmatpush1.xpose.msra.mxu0 0.0
    %2189 = vmatprep.subr.mxu0 0.0
    %2190 = vmatpush1.xpose.msra.mxu0 0.0
    %2191 = vmatprep.subr.mxu0 0.0
    %2192 = vmatpush1.xpose.msra.mxu0 0.0
    %2193 = vmatprep.subr.mxu0 0.0
    %2194 = vmatpush1.xpose.msra.mxu0 0.0
    %2195 = vmatprep.subr.mxu0 0.0
    %2196 = vmatpush1.xpose.msra.mxu0 0.0
    %2197 = vmatprep.subr.mxu0 0.0
    %2198 = vmatpush1.xpose.msra.mxu0 0.0
    %2199 = vmatprep.subr.mxu0 0.0
    %2200 = vmatpush1.xpose.msra.mxu0 0.0
    %2201 = vmatprep.subr.mxu0 0.0
    %2202 = vmatpush1.xpose.msra.mxu0 0.0
    %2203 = vmatprep.subr.mxu0 0.0
    %2204 = vmatpush1.xpose.msra.mxu0 0.0
    %2205 = vmatprep.subr.mxu0 0.0
    %2206 = vmatpush1.xpose.msra.mxu0 0.0
    %2207 = vmatprep.subr.mxu0 0.0
    %2208 = vmatpush1.xpose.msra.mxu0 0.0
    %2209 = vmatprep.subr.mxu0 0.0
    %2210 = vmatpush1.xpose.msra.mxu0 0.0
    %2211 = vmatprep.subr.mxu0 0.0
    %2212 = vmatpush1.xpose.msra.mxu0 0.0
    %2213 = vmatprep.subr.mxu0 0.0
    %2214 = vmatpush1.xpose.msra.mxu0 0.0
    %2215 = vmatprep.subr.mxu0 0.0
    %2216 = vmatpush1.xpose.msra.mxu0 0.0
    %2217 = vmatprep.subr.mxu0 0.0
    %2218 = vmatpush1.xpose.msra.mxu0 0.0
    %2219 = vmatprep.subr.mxu0 0.0
    %2220 = vmatpush1.xpose.msra.mxu0 0.0
    %2221 = vmatprep.subr.mxu0 0.0
    %2222 = vmatpush1.xpose.msra.mxu0 0.0
    %2223 = vmatprep.subr.mxu0 0.0
    %2224 = vmatpush1.xpose.msra.mxu0 0.0
    %2225 = vmatprep.subr.mxu0 0.0
    %2226 = vmatpush1.xpose.msra.mxu0 0.0
    %2227 = vmatprep.mubr.f32.mxu0 %v645
    %2228 = vmatmul.mubr.f32.gmra.mrb[0].mxu0 %v637
    %v2229 = vpop.f32.mrb[0].mxu0
    %v2230 = vadd.f32 %v2160, %v2229
    %v2231 = vpop.f32.mrb[0].mxu0
    %2232 = vdwg.mxu0
    %2233 = vmatprep.subr.mxu0 %v221
    %2234 = vmatpush1.xpose.msra.mxu0 %v220
    %2235 = vmatprep.subr.mxu0 %v349
    %2236 = vmatpush1.xpose.msra.mxu0 %v348
    %2237 = vmatprep.subr.mxu0 0.0
    %2238 = vmatpush1.xpose.msra.mxu0 0.0
    %2239 = vmatprep.subr.mxu0 0.0
    %2240 = vmatpush1.xpose.msra.mxu0 0.0
    %2241 = vmatprep.subr.mxu0 0.0
    %2242 = vmatpush1.xpose.msra.mxu0 0.0
    %2243 = vmatprep.subr.mxu0 0.0
    %2244 = vmatpush1.xpose.msra.mxu0 0.0
    %2245 = vmatprep.subr.mxu0 0.0
    %2246 = vmatpush1.xpose.msra.mxu0 0.0
    %2247 = vmatprep.subr.mxu0 0.0
    %2248 = vmatpush1.xpose.msra.mxu0 0.0
    %2249 = vmatprep.subr.mxu0 0.0
    %2250 = vmatpush1.xpose.msra.mxu0 0.0
    %2251 = vmatprep.subr.mxu0 0.0
    %2252 = vmatpush1.xpose.msra.mxu0 0.0
    %2253 = vmatprep.subr.mxu0 0.0
    %2254 = vmatpush1.xpose.msra.mxu0 0.0
    %2255 = vmatprep.subr.mxu0 0.0
    %2256 = vmatpush1.xpose.msra.mxu0 0.0
    %2257 = vmatprep.subr.mxu0 0.0
    %2258 = vmatpush1.xpose.msra.mxu0 0.0
    %2259 = vmatprep.subr.mxu0 0.0
    %2260 = vmatpush1.xpose.msra.mxu0 0.0
    %2261 = vmatprep.subr.mxu0 0.0
    %2262 = vmatpush1.xpose.msra.mxu0 0.0
    %2263 = vmatprep.subr.mxu0 0.0
    %2264 = vmatpush1.xpose.msra.mxu0 0.0
    %2265 = vmatprep.subr.mxu0 0.0
    %2266 = vmatpush1.xpose.msra.mxu0 0.0
    %2267 = vmatprep.subr.mxu0 0.0
    %2268 = vmatpush1.xpose.msra.mxu0 0.0
    %2269 = vmatprep.subr.mxu0 0.0
    %2270 = vmatpush1.xpose.msra.mxu0 0.0
    %2271 = vmatprep.subr.mxu0 0.0
    %2272 = vmatpush1.xpose.msra.mxu0 0.0
    %2273 = vmatprep.subr.mxu0 0.0
    %2274 = vmatpush1.xpose.msra.mxu0 0.0
    %2275 = vmatprep.subr.mxu0 0.0
    %2276 = vmatpush1.xpose.msra.mxu0 0.0
    %2277 = vmatprep.subr.mxu0 0.0
    %2278 = vmatpush1.xpose.msra.mxu0 0.0
    %2279 = vmatprep.subr.mxu0 0.0
    %2280 = vmatpush1.xpose.msra.mxu0 0.0
    %2281 = vmatprep.subr.mxu0 0.0
    %2282 = vmatpush1.xpose.msra.mxu0 0.0
    %2283 = vmatprep.subr.mxu0 0.0
    %2284 = vmatpush1.xpose.msra.mxu0 0.0
    %2285 = vmatprep.subr.mxu0 0.0
    %2286 = vmatpush1.xpose.msra.mxu0 0.0
    %2287 = vmatprep.subr.mxu0 0.0
    %2288 = vmatpush1.xpose.msra.mxu0 0.0
    %2289 = vmatprep.subr.mxu0 0.0
    %2290 = vmatpush1.xpose.msra.mxu0 0.0
    %2291 = vmatprep.subr.mxu0 0.0
    %2292 = vmatpush1.xpose.msra.mxu0 0.0
    %2293 = vmatprep.subr.mxu0 0.0
    %2294 = vmatpush1.xpose.msra.mxu0 0.0
    %2295 = vmatprep.subr.mxu0 0.0
    %2296 = vmatpush1.xpose.msra.mxu0 0.0
    %2297 = vmatprep.mubr.f32.mxu0 %v646
    %2298 = vmatmul.mubr.f32.gmra.mrb[0].mxu0 %v644
    %v2299 = vpop.f32.mrb[0].mxu0
    %v2300 = vadd.f32 %v2230, %v2299
    %v2301 = vpop.f32.mrb[0].mxu0
    %2302 = vdwg.mxu0
    %2303 = vmatprep.subr.mxu0 %v223
    %2304 = vmatpush1.xpose.msra.mxu0 %v222
    %2305 = vmatprep.subr.mxu0 %v351
    %2306 = vmatpush1.xpose.msra.mxu0 %v350
    %2307 = vmatprep.subr.mxu0 0.0
    %2308 = vmatpush1.xpose.msra.mxu0 0.0
    %2309 = vmatprep.subr.mxu0 0.0
    %2310 = vmatpush1.xpose.msra.mxu0 0.0
    %2311 = vmatprep.subr.mxu0 0.0
    %2312 = vmatpush1.xpose.msra.mxu0 0.0
    %2313 = vmatprep.subr.mxu0 0.0
    %2314 = vmatpush1.xpose.msra.mxu0 0.0
    %2315 = vmatprep.subr.mxu0 0.0
    %2316 = vmatpush1.xpose.msra.mxu0 0.0
    %2317 = vmatprep.subr.mxu0 0.0
    %2318 = vmatpush1.xpose.msra.mxu0 0.0
    %2319 = vmatprep.subr.mxu0 0.0
    %2320 = vmatpush1.xpose.msra.mxu0 0.0
    %2321 = vmatprep.subr.mxu0 0.0
    %2322 = vmatpush1.xpose.msra.mxu0 0.0
    %2323 = vmatprep.subr.mxu0 0.0
    %2324 = vmatpush1.xpose.msra.mxu0 0.0
    %2325 = vmatprep.subr.mxu0 0.0
    %2326 = vmatpush1.xpose.msra.mxu0 0.0
    %2327 = vmatprep.subr.mxu0 0.0
    %2328 = vmatpush1.xpose.msra.mxu0 0.0
    %2329 = vmatprep.subr.mxu0 0.0
    %2330 = vmatpush1.xpose.msra.mxu0 0.0
    %2331 = vmatprep.subr.mxu0 0.0
    %2332 = vmatpush1.xpose.msra.mxu0 0.0
    %2333 = vmatprep.subr.mxu0 0.0
    %2334 = vmatpush1.xpose.msra.mxu0 0.0
    %2335 = vmatprep.subr.mxu0 0.0
    %2336 = vmatpush1.xpose.msra.mxu0 0.0
    %2337 = vmatprep.subr.mxu0 0.0
    %2338 = vmatpush1.xpose.msra.mxu0 0.0
    %2339 = vmatprep.subr.mxu0 0.0
    %2340 = vmatpush1.xpose.msra.mxu0 0.0
    %2341 = vmatprep.subr.mxu0 0.0
    %2342 = vmatpush1.xpose.msra.mxu0 0.0
    %2343 = vmatprep.subr.mxu0 0.0
    %2344 = vmatpush1.xpose.msra.mxu0 0.0
    %2345 = vmatprep.subr.mxu0 0.0
    %2346 = vmatpush1.xpose.msra.mxu0 0.0
    %2347 = vmatprep.subr.mxu0 0.0
    %2348 = vmatpush1.xpose.msra.mxu0 0.0
    %2349 = vmatprep.subr.mxu0 0.0
    %2350 = vmatpush1.xpose.msra.mxu0 0.0
    %2351 = vmatprep.subr.mxu0 0.0
    %2352 = vmatpush1.xpose.msra.mxu0 0.0
    %2353 = vmatprep.subr.mxu0 0.0
    %2354 = vmatpush1.xpose.msra.mxu0 0.0
    %2355 = vmatprep.subr.mxu0 0.0
    %2356 = vmatpush1.xpose.msra.mxu0 0.0
    %2357 = vmatprep.subr.mxu0 0.0
    %2358 = vmatpush1.xpose.msra.mxu0 0.0
    %2359 = vmatprep.subr.mxu0 0.0
    %2360 = vmatpush1.xpose.msra.mxu0 0.0
    %2361 = vmatprep.subr.mxu0 0.0
    %2362 = vmatpush1.xpose.msra.mxu0 0.0
    %2363 = vmatprep.subr.mxu0 0.0
    %2364 = vmatpush1.xpose.msra.mxu0 0.0
    %2365 = vmatprep.subr.mxu0 0.0
    %2366 = vmatpush1.xpose.msra.mxu0 0.0
    %2367 = vmatprep.mubr.f32.mxu0 %v662
    %2368 = vmatmul.mubr.f32.gmra.mrb[0].mxu0 %v654
    %v2369 = vpop.f32.mrb[0].mxu0
    %v2370 = vadd.f32 %v2300, %v2369
    %v2371 = vpop.f32.mrb[0].mxu0
    %2372 = vdwg.mxu0
    %2373 = vmatprep.subr.mxu0 %v225
    %2374 = vmatpush1.xpose.msra.mxu0 %v224
    %2375 = vmatprep.subr.mxu0 %v353
    %2376 = vmatpush1.xpose.msra.mxu0 %v352
    %2377 = vmatprep.subr.mxu0 0.0
    %2378 = vmatpush1.xpose.msra.mxu0 0.0
    %2379 = vmatprep.subr.mxu0 0.0
    %2380 = vmatpush1.xpose.msra.mxu0 0.0
    %2381 = vmatprep.subr.mxu0 0.0
    %2382 = vmatpush1.xpose.msra.mxu0 0.0
    %2383 = vmatprep.subr.mxu0 0.0
    %2384 = vmatpush1.xpose.msra.mxu0 0.0
    %2385 = vmatprep.subr.mxu0 0.0
    %2386 = vmatpush1.xpose.msra.mxu0 0.0
    %2387 = vmatprep.subr.mxu0 0.0
    %2388 = vmatpush1.xpose.msra.mxu0 0.0
    %2389 = vmatprep.subr.mxu0 0.0
    %2390 = vmatpush1.xpose.msra.mxu0 0.0
    %2391 = vmatprep.subr.mxu0 0.0
    %2392 = vmatpush1.xpose.msra.mxu0 0.0
    %2393 = vmatprep.subr.mxu0 0.0
    %2394 = vmatpush1.xpose.msra.mxu0 0.0
    %2395 = vmatprep.subr.mxu0 0.0
    %2396 = vmatpush1.xpose.msra.mxu0 0.0
    %2397 = vmatprep.subr.mxu0 0.0
    %2398 = vmatpush1.xpose.msra.mxu0 0.0
    %2399 = vmatprep.subr.mxu0 0.0
    %2400 = vmatpush1.xpose.msra.mxu0 0.0
    %2401 = vmatprep.subr.mxu0 0.0
    %2402 = vmatpush1.xpose.msra.mxu0 0.0
    %2403 = vmatprep.subr.mxu0 0.0
    %2404 = vmatpush1.xpose.msra.mxu0 0.0
    %2405 = vmatprep.subr.mxu0 0.0
    %2406 = vmatpush1.xpose.msra.mxu0 0.0
    %2407 = vmatprep.subr.mxu0 0.0
    %2408 = vmatpush1.xpose.msra.mxu0 0.0
    %2409 = vmatprep.subr.mxu0 0.0
    %2410 = vmatpush1.xpose.msra.mxu0 0.0
    %2411 = vmatprep.subr.mxu0 0.0
    %2412 = vmatpush1.xpose.msra.mxu0 0.0
    %2413 = vmatprep.subr.mxu0 0.0
    %2414 = vmatpush1.xpose.msra.mxu0 0.0
    %2415 = vmatprep.subr.mxu0 0.0
    %2416 = vmatpush1.xpose.msra.mxu0 0.0
    %2417 = vmatprep.subr.mxu0 0.0
    %2418 = vmatpush1.xpose.msra.mxu0 0.0
    %2419 = vmatprep.subr.mxu0 0.0
    %2420 = vmatpush1.xpose.msra.mxu0 0.0
    %2421 = vmatprep.subr.mxu0 0.0
    %2422 = vmatpush1.xpose.msra.mxu0 0.0
    %2423 = vmatprep.subr.mxu0 0.0
    %2424 = vmatpush1.xpose.msra.mxu0 0.0
    %2425 = vmatprep.subr.mxu0 0.0
    %2426 = vmatpush1.xpose.msra.mxu0 0.0
    %2427 = vmatprep.subr.mxu0 0.0
    %2428 = vmatpush1.xpose.msra.mxu0 0.0
    %2429 = vmatprep.subr.mxu0 0.0
    %2430 = vmatpush1.xpose.msra.mxu0 0.0
    %2431 = vmatprep.subr.mxu0 0.0
    %2432 = vmatpush1.xpose.msra.mxu0 0.0
    %2433 = vmatprep.subr.mxu0 0.0
    %2434 = vmatpush1.xpose.msra.mxu0 0.0
    %2435 = vmatprep.subr.mxu0 0.0
    %2436 = vmatpush1.xpose.msra.mxu0 0.0
    %2437 = vmatprep.mubr.f32.mxu0 %v663
    %2438 = vmatmul.mubr.f32.gmra.mrb[0].mxu0 %v661
    %v2439 = vpop.f32.mrb[0].mxu0
    %v2440 = vadd.f32 %v2370, %v2439
    %v2441 = vpop.f32.mrb[0].mxu0
    %2442 = vdwg.mxu0
    %2443 = vmatprep.subr.mxu0 %v227
    %2444 = vmatpush1.xpose.msra.mxu0 %v226
    %2445 = vmatprep.subr.mxu0 %v355
    %2446 = vmatpush1.xpose.msra.mxu0 %v354
    %2447 = vmatprep.subr.mxu0 0.0
    %2448 = vmatpush1.xpose.msra.mxu0 0.0
    %2449 = vmatprep.subr.mxu0 0.0
    %2450 = vmatpush1.xpose.msra.mxu0 0.0
    %2451 = vmatprep.subr.mxu0 0.0
    %2452 = vmatpush1.xpose.msra.mxu0 0.0
    %2453 = vmatprep.subr.mxu0 0.0
    %2454 = vmatpush1.xpose.msra.mxu0 0.0
    %2455 = vmatprep.subr.mxu0 0.0
    %2456 = vmatpush1.xpose.msra.mxu0 0.0
    %2457 = vmatprep.subr.mxu0 0.0
    %2458 = vmatpush1.xpose.msra.mxu0 0.0
    %2459 = vmatprep.subr.mxu0 0.0
    %2460 = vmatpush1.xpose.msra.mxu0 0.0
    %2461 = vmatprep.subr.mxu0 0.0
    %2462 = vmatpush1.xpose.msra.mxu0 0.0
    %2463 = vmatprep.subr.mxu0 0.0
    %2464 = vmatpush1.xpose.msra.mxu0 0.0
    %2465 = vmatprep.subr.mxu0 0.0
    %2466 = vmatpush1.xpose.msra.mxu0 0.0
    %2467 = vmatprep.subr.mxu0 0.0
    %2468 = vmatpush1.xpose.msra.mxu0 0.0
    %2469 = vmatprep.subr.mxu0 0.0
    %2470 = vmatpush1.xpose.msra.mxu0 0.0
    %2471 = vmatprep.subr.mxu0 0.0
    %2472 = vmatpush1.xpose.msra.mxu0 0.0
    %2473 = vmatprep.subr.mxu0 0.0
    %2474 = vmatpush1.xpose.msra.mxu0 0.0
    %2475 = vmatprep.subr.mxu0 0.0
    %2476 = vmatpush1.xpose.msra.mxu0 0.0
    %2477 = vmatprep.subr.mxu0 0.0
    %2478 = vmatpush1.xpose.msra.mxu0 0.0
    %2479 = vmatprep.subr.mxu0 0.0
    %2480 = vmatpush1.xpose.msra.mxu0 0.0
    %2481 = vmatprep.subr.mxu0 0.0
    %2482 = vmatpush1.xpose.msra.mxu0 0.0
    %2483 = vmatprep.subr.mxu0 0.0
    %2484 = vmatpush1.xpose.msra.mxu0 0.0
    %2485 = vmatprep.subr.mxu0 0.0
    %2486 = vmatpush1.xpose.msra.mxu0 0.0
    %2487 = vmatprep.subr.mxu0 0.0
    %2488 = vmatpush1.xpose.msra.mxu0 0.0
    %2489 = vmatprep.subr.mxu0 0.0
    %2490 = vmatpush1.xpose.msra.mxu0 0.0
    %2491 = vmatprep.subr.mxu0 0.0
    %2492 = vmatpush1.xpose.msra.mxu0 0.0
    %2493 = vmatprep.subr.mxu0 0.0
    %2494 = vmatpush1.xpose.msra.mxu0 0.0
    %2495 = vmatprep.subr.mxu0 0.0
    %2496 = vmatpush1.xpose.msra.mxu0 0.0
    %2497 = vmatprep.subr.mxu0 0.0
    %2498 = vmatpush1.xpose.msra.mxu0 0.0
    %2499 = vmatprep.subr.mxu0 0.0
    %2500 = vmatpush1.xpose.msra.mxu0 0.0
    %2501 = vmatprep.subr.mxu0 0.0
    %2502 = vmatpush1.xpose.msra.mxu0 0.0
    %2503 = vmatprep.subr.mxu0 0.0
    %2504 = vmatpush1.xpose.msra.mxu0 0.0
    %2505 = vmatprep.subr.mxu0 0.0
    %2506 = vmatpush1.xpose.msra.mxu0 0.0
    %2507 = vmatprep.mubr.f32.mxu0 %v679
    %2508 = vmatmul.mubr.f32.gmra.mrb[0].mxu0 %v671
    %v2509 = vpop.f32.mrb[0].mxu0
    %v2510 = vadd.f32 %v2440, %v2509
    %v2511 = vpop.f32.mrb[0].mxu0
    %2512 = vdwg.mxu0
    %2513 = vmatprep.subr.mxu0 %v229
    %2514 = vmatpush1.xpose.msra.mxu0 %v228
    %2515 = vmatprep.subr.mxu0 %v357
    %2516 = vmatpush1.xpose.msra.mxu0 %v356
    %2517 = vmatprep.subr.mxu0 0.0
    %2518 = vmatpush1.xpose.msra.mxu0 0.0
    %2519 = vmatprep.subr.mxu0 0.0
    %2520 = vmatpush1.xpose.msra.mxu0 0.0
    %2521 = vmatprep.subr.mxu0 0.0
    %2522 = vmatpush1.xpose.msra.mxu0 0.0
    %2523 = vmatprep.subr.mxu0 0.0
    %2524 = vmatpush1.xpose.msra.mxu0 0.0
    %2525 = vmatprep.subr.mxu0 0.0
    %2526 = vmatpush1.xpose.msra.mxu0 0.0
    %2527 = vmatprep.subr.mxu0 0.0
    %2528 = vmatpush1.xpose.msra.mxu0 0.0
    %2529 = vmatprep.subr.mxu0 0.0
    %2530 = vmatpush1.xpose.msra.mxu0 0.0
    %2531 = vmatprep.subr.mxu0 0.0
    %2532 = vmatpush1.xpose.msra.mxu0 0.0
    %2533 = vmatprep.subr.mxu0 0.0
    %2534 = vmatpush1.xpose.msra.mxu0 0.0
    %2535 = vmatprep.subr.mxu0 0.0
    %2536 = vmatpush1.xpose.msra.mxu0 0.0
    %2537 = vmatprep.subr.mxu0 0.0
    %2538 = vmatpush1.xpose.msra.mxu0 0.0
    %2539 = vmatprep.subr.mxu0 0.0
    %2540 = vmatpush1.xpose.msra.mxu0 0.0
    %2541 = vmatprep.subr.mxu0 0.0
    %2542 = vmatpush1.xpose.msra.mxu0 0.0
    %2543 = vmatprep.subr.mxu0 0.0
    %2544 = vmatpush1.xpose.msra.mxu0 0.0
    %2545 = vmatprep.subr.mxu0 0.0
    %2546 = vmatpush1.xpose.msra.mxu0 0.0
    %2547 = vmatprep.subr.mxu0 0.0
    %2548 = vmatpush1.xpose.msra.mxu0 0.0
    %2549 = vmatprep.subr.mxu0 0.0
    %2550 = vmatpush1.xpose.msra.mxu0 0.0
    %2551 = vmatprep.subr.mxu0 0.0
    %2552 = vmatpush1.xpose.msra.mxu0 0.0
    %2553 = vmatprep.subr.mxu0 0.0
    %2554 = vmatpush1.xpose.msra.mxu0 0.0
    %2555 = vmatprep.subr.mxu0 0.0
    %2556 = vmatpush1.xpose.msra.mxu0 0.0
    %2557 = vmatprep.subr.mxu0 0.0
    %2558 = vmatpush1.xpose.msra.mxu0 0.0
    %2559 = vmatprep.subr.mxu0 0.0
    %2560 = vmatpush1.xpose.msra.mxu0 0.0
    %2561 = vmatprep.subr.mxu0 0.0
    %2562 = vmatpush1.xpose.msra.mxu0 0.0
    %2563 = vmatprep.subr.mxu0 0.0
    %2564 = vmatpush1.xpose.msra.mxu0 0.0
    %2565 = vmatprep.subr.mxu0 0.0
    %2566 = vmatpush1.xpose.msra.mxu0 0.0
    %2567 = vmatprep.subr.mxu0 0.0
    %2568 = vmatpush1.xpose.msra.mxu0 0.0
    %2569 = vmatprep.subr.mxu0 0.0
    %2570 = vmatpush1.xpose.msra.mxu0 0.0
    %2571 = vmatprep.subr.mxu0 0.0
    %2572 = vmatpush1.xpose.msra.mxu0 0.0
    %2573 = vmatprep.subr.mxu0 0.0
    %2574 = vmatpush1.xpose.msra.mxu0 0.0
    %2575 = vmatprep.subr.mxu0 0.0
    %2576 = vmatpush1.xpose.msra.mxu0 0.0
    %2577 = vmatprep.mubr.f32.mxu0 %v680
    %2578 = vmatmul.mubr.f32.gmra.mrb[0].mxu0 %v678
    %v2579 = vpop.f32.mrb[0].mxu0
    %v2580 = vadd.f32 %v2510, %v2579
    %v2581 = vpop.f32.mrb[0].mxu0
    %2582 = vdwg.mxu0
    %2583 = vmatprep.subr.mxu0 %v231
    %2584 = vmatpush1.xpose.msra.mxu0 %v230
    %2585 = vmatprep.subr.mxu0 %v359
    %2586 = vmatpush1.xpose.msra.mxu0 %v358
    %2587 = vmatprep.subr.mxu0 0.0
    %2588 = vmatpush1.xpose.msra.mxu0 0.0
    %2589 = vmatprep.subr.mxu0 0.0
    %2590 = vmatpush1.xpose.msra.mxu0 0.0
    %2591 = vmatprep.subr.mxu0 0.0
    %2592 = vmatpush1.xpose.msra.mxu0 0.0
    %2593 = vmatprep.subr.mxu0 0.0
    %2594 = vmatpush1.xpose.msra.mxu0 0.0
    %2595 = vmatprep.subr.mxu0 0.0
    %2596 = vmatpush1.xpose.msra.mxu0 0.0
    %2597 = vmatprep.subr.mxu0 0.0
    %2598 = vmatpush1.xpose.msra.mxu0 0.0
    %2599 = vmatprep.subr.mxu0 0.0
    %2600 = vmatpush1.xpose.msra.mxu0 0.0
    %2601 = vmatprep.subr.mxu0 0.0
    %2602 = vmatpush1.xpose.msra.mxu0 0.0
    %2603 = vmatprep.subr.mxu0 0.0
    %2604 = vmatpush1.xpose.msra.mxu0 0.0
    %2605 = vmatprep.subr.mxu0 0.0
    %2606 = vmatpush1.xpose.msra.mxu0 0.0
    %2607 = vmatprep.subr.mxu0 0.0
    %2608 = vmatpush1.xpose.msra.mxu0 0.0
    %2609 = vmatprep.subr.mxu0 0.0
    %2610 = vmatpush1.xpose.msra.mxu0 0.0
    %2611 = vmatprep.subr.mxu0 0.0
    %2612 = vmatpush1.xpose.msra.mxu0 0.0
    %2613 = vmatprep.subr.mxu0 0.0
    %2614 = vmatpush1.xpose.msra.mxu0 0.0
    %2615 = vmatprep.subr.mxu0 0.0
    %2616 = vmatpush1.xpose.msra.mxu0 0.0
    %2617 = vmatprep.subr.mxu0 0.0
    %2618 = vmatpush1.xpose.msra.mxu0 0.0
    %2619 = vmatprep.subr.mxu0 0.0
    %2620 = vmatpush1.xpose.msra.mxu0 0.0
    %2621 = vmatprep.subr.mxu0 0.0
    %2622 = vmatpush1.xpose.msra.mxu0 0.0
    %2623 = vmatprep.subr.mxu0 0.0
    %2624 = vmatpush1.xpose.msra.mxu0 0.0
    %2625 = vmatprep.subr.mxu0 0.0
    %2626 = vmatpush1.xpose.msra.mxu0 0.0
    %2627 = vmatprep.subr.mxu0 0.0
    %2628 = vmatpush1.xpose.msra.mxu0 0.0
    %2629 = vmatprep.subr.mxu0 0.0
    %2630 = vmatpush1.xpose.msra.mxu0 0.0
    %2631 = vmatprep.subr.mxu0 0.0
    %2632 = vmatpush1.xpose.msra.mxu0 0.0
    %2633 = vmatprep.subr.mxu0 0.0
    %2634 = vmatpush1.xpose.msra.mxu0 0.0
    %2635 = vmatprep.subr.mxu0 0.0
    %2636 = vmatpush1.xpose.msra.mxu0 0.0
    %2637 = vmatprep.subr.mxu0 0.0
    %2638 = vmatpush1.xpose.msra.mxu0 0.0
    %2639 = vmatprep.subr.mxu0 0.0
    %2640 = vmatpush1.xpose.msra.mxu0 0.0
    %2641 = vmatprep.subr.mxu0 0.0
    %2642 = vmatpush1.xpose.msra.mxu0 0.0
    %2643 = vmatprep.subr.mxu0 0.0
    %2644 = vmatpush1.xpose.msra.mxu0 0.0
    %2645 = vmatprep.subr.mxu0 0.0
    %2646 = vmatpush1.xpose.msra.mxu0 0.0
    %2647 = vmatprep.mubr.f32.mxu0 %v696
    %2648 = vmatmul.mubr.f32.gmra.mrb[0].mxu0 %v688
    %v2649 = vpop.f32.mrb[0].mxu0
    %v2650 = vadd.f32 %v2580, %v2649
    %v2651 = vpop.f32.mrb[0].mxu0
    %2652 = vdwg.mxu0
    %2653 = vmatprep.subr.mxu0 %v233
    %2654 = vmatpush1.xpose.msra.mxu0 %v232
    %2655 = vmatprep.subr.mxu0 %v361
    %2656 = vmatpush1.xpose.msra.mxu0 %v360
    %2657 = vmatprep.subr.mxu0 0.0
    %2658 = vmatpush1.xpose.msra.mxu0 0.0
    %2659 = vmatprep.subr.mxu0 0.0
    %2660 = vmatpush1.xpose.msra.mxu0 0.0
    %2661 = vmatprep.subr.mxu0 0.0
    %2662 = vmatpush1.xpose.msra.mxu0 0.0
    %2663 = vmatprep.subr.mxu0 0.0
    %2664 = vmatpush1.xpose.msra.mxu0 0.0
    %2665 = vmatprep.subr.mxu0 0.0
    %2666 = vmatpush1.xpose.msra.mxu0 0.0
    %2667 = vmatprep.subr.mxu0 0.0
    %2668 = vmatpush1.xpose.msra.mxu0 0.0
    %2669 = vmatprep.subr.mxu0 0.0
    %2670 = vmatpush1.xpose.msra.mxu0 0.0
    %2671 = vmatprep.subr.mxu0 0.0
    %2672 = vmatpush1.xpose.msra.mxu0 0.0
    %2673 = vmatprep.subr.mxu0 0.0
    %2674 = vmatpush1.xpose.msra.mxu0 0.0
    %2675 = vmatprep.subr.mxu0 0.0
    %2676 = vmatpush1.xpose.msra.mxu0 0.0
    %2677 = vmatprep.subr.mxu0 0.0
    %2678 = vmatpush1.xpose.msra.mxu0 0.0
    %2679 = vmatprep.subr.mxu0 0.0
    %2680 = vmatpush1.xpose.msra.mxu0 0.0
    %2681 = vmatprep.subr.mxu0 0.0
    %2682 = vmatpush1.xpose.msra.mxu0 0.0
    %2683 = vmatprep.subr.mxu0 0.0
    %2684 = vmatpush1.xpose.msra.mxu0 0.0
    %2685 = vmatprep.subr.mxu0 0.0
    %2686 = vmatpush1.xpose.msra.mxu0 0.0
    %2687 = vmatprep.subr.mxu0 0.0
    %2688 = vmatpush1.xpose.msra.mxu0 0.0
    %2689 = vmatprep.subr.mxu0 0.0
    %2690 = vmatpush1.xpose.msra.mxu0 0.0
    %2691 = vmatprep.subr.mxu0 0.0
    %2692 = vmatpush1.xpose.msra.mxu0 0.0
    %2693 = vmatprep.subr.mxu0 0.0
    %2694 = vmatpush1.xpose.msra.mxu0 0.0
    %2695 = vmatprep.subr.mxu0 0.0
    %2696 = vmatpush1.xpose.msra.mxu0 0.0
    %2697 = vmatprep.subr.mxu0 0.0
    %2698 = vmatpush1.xpose.msra.mxu0 0.0
    %2699 = vmatprep.subr.mxu0 0.0
    %2700 = vmatpush1.xpose.msra.mxu0 0.0
    %2701 = vmatprep.subr.mxu0 0.0
    %2702 = vmatpush1.xpose.msra.mxu0 0.0
    %2703 = vmatprep.subr.mxu0 0.0
    %2704 = vmatpush1.xpose.msra.mxu0 0.0
    %2705 = vmatprep.subr.mxu0 0.0
    %2706 = vmatpush1.xpose.msra.mxu0 0.0
    %2707 = vmatprep.subr.mxu0 0.0
    %2708 = vmatpush1.xpose.msra.mxu0 0.0
    %2709 = vmatprep.subr.mxu0 0.0
    %2710 = vmatpush1.xpose.msra.mxu0 0.0
    %2711 = vmatprep.subr.mxu0 0.0
    %2712 = vmatpush1.xpose.msra.mxu0 0.0
    %2713 = vmatprep.subr.mxu0 0.0
    %2714 = vmatpush1.xpose.msra.mxu0 0.0
    %2715 = vmatprep.subr.mxu0 0.0
    %2716 = vmatpush1.xpose.msra.mxu0 0.0
    %2717 = vmatprep.mubr.f32.mxu0 %v697
    %2718 = vmatmul.mubr.f32.gmra.mrb[0].mxu0 %v695
    %v2719 = vpop.f32.mrb[0].mxu0
    %v2720 = vadd.f32 %v2650, %v2719
    %v2721 = vpop.f32.mrb[0].mxu0
    %2722 = vdwg.mxu0
    %2723 = vmatprep.subr.mxu0 %v235
    %2724 = vmatpush1.xpose.msra.mxu0 %v234
    %2725 = vmatprep.subr.mxu0 %v363
    %2726 = vmatpush1.xpose.msra.mxu0 %v362
    %2727 = vmatprep.subr.mxu0 0.0
    %2728 = vmatpush1.xpose.msra.mxu0 0.0
    %2729 = vmatprep.subr.mxu0 0.0
    %2730 = vmatpush1.xpose.msra.mxu0 0.0
    %2731 = vmatprep.subr.mxu0 0.0
    %2732 = vmatpush1.xpose.msra.mxu0 0.0
    %2733 = vmatprep.subr.mxu0 0.0
    %2734 = vmatpush1.xpose.msra.mxu0 0.0
    %2735 = vmatprep.subr.mxu0 0.0
    %2736 = vmatpush1.xpose.msra.mxu0 0.0
    %2737 = vmatprep.subr.mxu0 0.0
    %2738 = vmatpush1.xpose.msra.mxu0 0.0
    %2739 = vmatprep.subr.mxu0 0.0
    %2740 = vmatpush1.xpose.msra.mxu0 0.0
    %2741 = vmatprep.subr.mxu0 0.0
    %2742 = vmatpush1.xpose.msra.mxu0 0.0
    %2743 = vmatprep.subr.mxu0 0.0
    %2744 = vmatpush1.xpose.msra.mxu0 0.0
    %2745 = vmatprep.subr.mxu0 0.0
    %2746 = vmatpush1.xpose.msra.mxu0 0.0
    %2747 = vmatprep.subr.mxu0 0.0
    %2748 = vmatpush1.xpose.msra.mxu0 0.0
    %2749 = vmatprep.subr.mxu0 0.0
    %2750 = vmatpush1.xpose.msra.mxu0 0.0
    %2751 = vmatprep.subr.mxu0 0.0
    %2752 = vmatpush1.xpose.msra.mxu0 0.0
    %2753 = vmatprep.subr.mxu0 0.0
    %2754 = vmatpush1.xpose.msra.mxu0 0.0
    %2755 = vmatprep.subr.mxu0 0.0
    %2756 = vmatpush1.xpose.msra.mxu0 0.0
    %2757 = vmatprep.subr.mxu0 0.0
    %2758 = vmatpush1.xpose.msra.mxu0 0.0
    %2759 = vmatprep.subr.mxu0 0.0
    %2760 = vmatpush1.xpose.msra.mxu0 0.0
    %2761 = vmatprep.subr.mxu0 0.0
    %2762 = vmatpush1.xpose.msra.mxu0 0.0
    %2763 = vmatprep.subr.mxu0 0.0
    %2764 = vmatpush1.xpose.msra.mxu0 0.0
    %2765 = vmatprep.subr.mxu0 0.0
    %2766 = vmatpush1.xpose.msra.mxu0 0.0
    %2767 = vmatprep.subr.mxu0 0.0
    %2768 = vmatpush1.xpose.msra.mxu0 0.0
    %2769 = vmatprep.subr.mxu0 0.0
    %2770 = vmatpush1.xpose.msra.mxu0 0.0
    %2771 = vmatprep.subr.mxu0 0.0
    %2772 = vmatpush1.xpose.msra.mxu0 0.0
    %2773 = vmatprep.subr.mxu0 0.0
    %2774 = vmatpush1.xpose.msra.mxu0 0.0
    %2775 = vmatprep.subr.mxu0 0.0
    %2776 = vmatpush1.xpose.msra.mxu0 0.0
    %2777 = vmatprep.subr.mxu0 0.0
    %2778 = vmatpush1.xpose.msra.mxu0 0.0
    %2779 = vmatprep.subr.mxu0 0.0
    %2780 = vmatpush1.xpose.msra.mxu0 0.0
    %2781 = vmatprep.subr.mxu0 0.0
    %2782 = vmatpush1.xpose.msra.mxu0 0.0
    %2783 = vmatprep.subr.mxu0 0.0
    %2784 = vmatpush1.xpose.msra.mxu0 0.0
    %2785 = vmatprep.subr.mxu0 0.0
    %2786 = vmatpush1.xpose.msra.mxu0 0.0
    %2787 = vmatprep.mubr.f32.mxu0 %v713
    %2788 = vmatmul.mubr.f32.gmra.mrb[0].mxu0 %v705
    %v2789 = vpop.f32.mrb[0].mxu0
    %v2790 = vadd.f32 %v2720, %v2789
    %v2791 = vpop.f32.mrb[0].mxu0
    %2792 = vdwg.mxu0
    %2793 = vmatprep.subr.mxu0 %v237
    %2794 = vmatpush1.xpose.msra.mxu0 %v236
    %2795 = vmatprep.subr.mxu0 %v365
    %2796 = vmatpush1.xpose.msra.mxu0 %v364
    %2797 = vmatprep.subr.mxu0 0.0
    %2798 = vmatpush1.xpose.msra.mxu0 0.0
    %2799 = vmatprep.subr.mxu0 0.0
    %2800 = vmatpush1.xpose.msra.mxu0 0.0
    %2801 = vmatprep.subr.mxu0 0.0
    %2802 = vmatpush1.xpose.msra.mxu0 0.0
    %2803 = vmatprep.subr.mxu0 0.0
    %2804 = vmatpush1.xpose.msra.mxu0 0.0
    %2805 = vmatprep.subr.mxu0 0.0
    %2806 = vmatpush1.xpose.msra.mxu0 0.0
    %2807 = vmatprep.subr.mxu0 0.0
    %2808 = vmatpush1.xpose.msra.mxu0 0.0
    %2809 = vmatprep.subr.mxu0 0.0
    %2810 = vmatpush1.xpose.msra.mxu0 0.0
    %2811 = vmatprep.subr.mxu0 0.0
    %2812 = vmatpush1.xpose.msra.mxu0 0.0
    %2813 = vmatprep.subr.mxu0 0.0
    %2814 = vmatpush1.xpose.msra.mxu0 0.0
    %2815 = vmatprep.subr.mxu0 0.0
    %2816 = vmatpush1.xpose.msra.mxu0 0.0
    %2817 = vmatprep.subr.mxu0 0.0
    %2818 = vmatpush1.xpose.msra.mxu0 0.0
    %2819 = vmatprep.subr.mxu0 0.0
    %2820 = vmatpush1.xpose.msra.mxu0 0.0
    %2821 = vmatprep.subr.mxu0 0.0
    %2822 = vmatpush1.xpose.msra.mxu0 0.0
    %2823 = vmatprep.subr.mxu0 0.0
    %2824 = vmatpush1.xpose.msra.mxu0 0.0
    %2825 = vmatprep.subr.mxu0 0.0
    %2826 = vmatpush1.xpose.msra.mxu0 0.0
    %2827 = vmatprep.subr.mxu0 0.0
    %2828 = vmatpush1.xpose.msra.mxu0 0.0
    %2829 = vmatprep.subr.mxu0 0.0
    %2830 = vmatpush1.xpose.msra.mxu0 0.0
    %2831 = vmatprep.subr.mxu0 0.0
    %2832 = vmatpush1.xpose.msra.mxu0 0.0
    %2833 = vmatprep.subr.mxu0 0.0
    %2834 = vmatpush1.xpose.msra.mxu0 0.0
    %2835 = vmatprep.subr.mxu0 0.0
    %2836 = vmatpush1.xpose.msra.mxu0 0.0
    %2837 = vmatprep.subr.mxu0 0.0
    %2838 = vmatpush1.xpose.msra.mxu0 0.0
    %2839 = vmatprep.subr.mxu0 0.0
    %2840 = vmatpush1.xpose.msra.mxu0 0.0
    %2841 = vmatprep.subr.mxu0 0.0
    %2842 = vmatpush1.xpose.msra.mxu0 0.0
    %2843 = vmatprep.subr.mxu0 0.0
    %2844 = vmatpush1.xpose.msra.mxu0 0.0
    %2845 = vmatprep.subr.mxu0 0.0
    %2846 = vmatpush1.xpose.msra.mxu0 0.0
    %2847 = vmatprep.subr.mxu0 0.0
    %2848 = vmatpush1.xpose.msra.mxu0 0.0
    %2849 = vmatprep.subr.mxu0 0.0
    %2850 = vmatpush1.xpose.msra.mxu0 0.0
    %2851 = vmatprep.subr.mxu0 0.0
    %2852 = vmatpush1.xpose.msra.mxu0 0.0
    %2853 = vmatprep.subr.mxu0 0.0
    %2854 = vmatpush1.xpose.msra.mxu0 0.0
    %2855 = vmatprep.subr.mxu0 0.0
    %2856 = vmatpush1.xpose.msra.mxu0 0.0
    %2857 = vmatprep.mubr.f32.mxu0 %v714
    %2858 = vmatmul.mubr.f32.gmra.mrb[0].mxu0 %v712
    %v2859 = vpop.f32.mrb[0].mxu0
    %v2860 = vadd.f32 %v2790, %v2859
    %v2861 = vpop.f32.mrb[0].mxu0
    %2862 = vdwg.mxu0
    %2863 = vmatprep.subr.mxu0 %v239
    %2864 = vmatpush1.xpose.msra.mxu0 %v238
    %2865 = vmatprep.subr.mxu0 %v367
    %2866 = vmatpush1.xpose.msra.mxu0 %v366
    %2867 = vmatprep.subr.mxu0 0.0
    %2868 = vmatpush1.xpose.msra.mxu0 0.0
    %2869 = vmatprep.subr.mxu0 0.0
    %2870 = vmatpush1.xpose.msra.mxu0 0.0
    %2871 = vmatprep.subr.mxu0 0.0
    %2872 = vmatpush1.xpose.msra.mxu0 0.0
    %2873 = vmatprep.subr.mxu0 0.0
    %2874 = vmatpush1.xpose.msra.mxu0 0.0
    %2875 = vmatprep.subr.mxu0 0.0
    %2876 = vmatpush1.xpose.msra.mxu0 0.0
    %2877 = vmatprep.subr.mxu0 0.0
    %2878 = vmatpush1.xpose.msra.mxu0 0.0
    %2879 = vmatprep.subr.mxu0 0.0
    %2880 = vmatpush1.xpose.msra.mxu0 0.0
    %2881 = vmatprep.subr.mxu0 0.0
    %2882 = vmatpush1.xpose.msra.mxu0 0.0
    %2883 = vmatprep.subr.mxu0 0.0
    %2884 = vmatpush1.xpose.msra.mxu0 0.0
    %2885 = vmatprep.subr.mxu0 0.0
    %2886 = vmatpush1.xpose.msra.mxu0 0.0
    %2887 = vmatprep.subr.mxu0 0.0
    %2888 = vmatpush1.xpose.msra.mxu0 0.0
    %2889 = vmatprep.subr.mxu0 0.0
    %2890 = vmatpush1.xpose.msra.mxu0 0.0
    %2891 = vmatprep.subr.mxu0 0.0
    %2892 = vmatpush1.xpose.msra.mxu0 0.0
    %2893 = vmatprep.subr.mxu0 0.0
    %2894 = vmatpush1.xpose.msra.mxu0 0.0
    %2895 = vmatprep.subr.mxu0 0.0
    %2896 = vmatpush1.xpose.msra.mxu0 0.0
    %2897 = vmatprep.subr.mxu0 0.0
    %2898 = vmatpush1.xpose.msra.mxu0 0.0
    %2899 = vmatprep.subr.mxu0 0.0
    %2900 = vmatpush1.xpose.msra.mxu0 0.0
    %2901 = vmatprep.subr.mxu0 0.0
    %2902 = vmatpush1.xpose.msra.mxu0 0.0
    %2903 = vmatprep.subr.mxu0 0.0
    %2904 = vmatpush1.xpose.msra.mxu0 0.0
    %2905 = vmatprep.subr.mxu0 0.0
    %2906 = vmatpush1.xpose.msra.mxu0 0.0
    %2907 = vmatprep.subr.mxu0 0.0
    %2908 = vmatpush1.xpose.msra.mxu0 0.0
    %2909 = vmatprep.subr.mxu0 0.0
    %2910 = vmatpush1.xpose.msra.mxu0 0.0
    %2911 = vmatprep.subr.mxu0 0.0
    %2912 = vmatpush1.xpose.msra.mxu0 0.0
    %2913 = vmatprep.subr.mxu0 0.0
    %2914 = vmatpush1.xpose.msra.mxu0 0.0
    %2915 = vmatprep.subr.mxu0 0.0
    %2916 = vmatpush1.xpose.msra.mxu0 0.0
    %2917 = vmatprep.subr.mxu0 0.0
    %2918 = vmatpush1.xpose.msra.mxu0 0.0
    %2919 = vmatprep.subr.mxu0 0.0
    %2920 = vmatpush1.xpose.msra.mxu0 0.0
    %2921 = vmatprep.subr.mxu0 0.0
    %2922 = vmatpush1.xpose.msra.mxu0 0.0
    %2923 = vmatprep.subr.mxu0 0.0
    %2924 = vmatpush1.xpose.msra.mxu0 0.0
    %2925 = vmatprep.subr.mxu0 0.0
    %2926 = vmatpush1.xpose.msra.mxu0 0.0
    %2927 = vmatprep.mubr.f32.mxu0 %v730
    %2928 = vmatmul.mubr.f32.gmra.mrb[0].mxu0 %v722
    %v2929 = vpop.f32.mrb[0].mxu0
    %v2930 = vadd.f32 %v2860, %v2929
    %v2931 = vpop.f32.mrb[0].mxu0
    %2932 = vdwg.mxu0
    %2933 = vmatprep.subr.mxu0 %v241
    %2934 = vmatpush1.xpose.msra.mxu0 %v240
    %2935 = vmatprep.subr.mxu0 %v369
    %2936 = vmatpush1.xpose.msra.mxu0 %v368
    %2937 = vmatprep.subr.mxu0 0.0
    %2938 = vmatpush1.xpose.msra.mxu0 0.0
    %2939 = vmatprep.subr.mxu0 0.0
    %2940 = vmatpush1.xpose.msra.mxu0 0.0
    %2941 = vmatprep.subr.mxu0 0.0
    %2942 = vmatpush1.xpose.msra.mxu0 0.0
    %2943 = vmatprep.subr.mxu0 0.0
    %2944 = vmatpush1.xpose.msra.mxu0 0.0
    %2945 = vmatprep.subr.mxu0 0.0
    %2946 = vmatpush1.xpose.msra.mxu0 0.0
    %2947 = vmatprep.subr.mxu0 0.0
    %2948 = vmatpush1.xpose.msra.mxu0 0.0
    %2949 = vmatprep.subr.mxu0 0.0
    %2950 = vmatpush1.xpose.msra.mxu0 0.0
    %2951 = vmatprep.subr.mxu0 0.0
    %2952 = vmatpush1.xpose.msra.mxu0 0.0
    %2953 = vmatprep.subr.mxu0 0.0
    %2954 = vmatpush1.xpose.msra.mxu0 0.0
    %2955 = vmatprep.subr.mxu0 0.0
    %2956 = vmatpush1.xpose.msra.mxu0 0.0
    %2957 = vmatprep.subr.mxu0 0.0
    %2958 = vmatpush1.xpose.msra.mxu0 0.0
    %2959 = vmatprep.subr.mxu0 0.0
    %2960 = vmatpush1.xpose.msra.mxu0 0.0
    %2961 = vmatprep.subr.mxu0 0.0
    %2962 = vmatpush1.xpose.msra.mxu0 0.0
    %2963 = vmatprep.subr.mxu0 0.0
    %2964 = vmatpush1.xpose.msra.mxu0 0.0
    %2965 = vmatprep.subr.mxu0 0.0
    %2966 = vmatpush1.xpose.msra.mxu0 0.0
    %2967 = vmatprep.subr.mxu0 0.0
    %2968 = vmatpush1.xpose.msra.mxu0 0.0
    %2969 = vmatprep.subr.mxu0 0.0
    %2970 = vmatpush1.xpose.msra.mxu0 0.0
    %2971 = vmatprep.subr.mxu0 0.0
    %2972 = vmatpush1.xpose.msra.mxu0 0.0
    %2973 = vmatprep.subr.mxu0 0.0
    %2974 = vmatpush1.xpose.msra.mxu0 0.0
    %2975 = vmatprep.subr.mxu0 0.0
    %2976 = vmatpush1.xpose.msra.mxu0 0.0
    %2977 = vmatprep.subr.mxu0 0.0
    %2978 = vmatpush1.xpose.msra.mxu0 0.0
    %2979 = vmatprep.subr.mxu0 0.0
    %2980 = vmatpush1.xpose.msra.mxu0 0.0
    %2981 = vmatprep.subr.mxu0 0.0
    %2982 = vmatpush1.xpose.msra.mxu0 0.0
    %2983 = vmatprep.subr.mxu0 0.0
    %2984 = vmatpush1.xpose.msra.mxu0 0.0
    %2985 = vmatprep.subr.mxu0 0.0
    %2986 = vmatpush1.xpose.msra.mxu0 0.0
    %2987 = vmatprep.subr.mxu0 0.0
    %2988 = vmatpush1.xpose.msra.mxu0 0.0
    %2989 = vmatprep.subr.mxu0 0.0
    %2990 = vmatpush1.xpose.msra.mxu0 0.0
    %2991 = vmatprep.subr.mxu0 0.0
    %2992 = vmatpush1.xpose.msra.mxu0 0.0
    %2993 = vmatprep.subr.mxu0 0.0
    %2994 = vmatpush1.xpose.msra.mxu0 0.0
    %2995 = vmatprep.subr.mxu0 0.0
    %2996 = vmatpush1.xpose.msra.mxu0 0.0
    %2997 = vmatprep.mubr.f32.mxu0 %v731
    %2998 = vmatmul.mubr.f32.gmra.mrb[0].mxu0 %v729
    %v2999 = vpop.f32.mrb[0].mxu0
    %v3000 = vadd.f32 %v2930, %v2999
    %v3001 = vpop.f32.mrb[0].mxu0
    %3002 = vdwg.mxu0
    %3003 = vmatprep.subr.mxu0 %v243
    %3004 = vmatpush1.xpose.msra.mxu0 %v242
    %3005 = vmatprep.subr.mxu0 %v371
    %3006 = vmatpush1.xpose.msra.mxu0 %v370
    %3007 = vmatprep.subr.mxu0 0.0
    %3008 = vmatpush1.xpose.msra.mxu0 0.0
    %3009 = vmatprep.subr.mxu0 0.0
    %3010 = vmatpush1.xpose.msra.mxu0 0.0
    %3011 = vmatprep.subr.mxu0 0.0
    %3012 = vmatpush1.xpose.msra.mxu0 0.0
    %3013 = vmatprep.subr.mxu0 0.0
    %3014 = vmatpush1.xpose.msra.mxu0 0.0
    %3015 = vmatprep.subr.mxu0 0.0
    %3016 = vmatpush1.xpose.msra.mxu0 0.0
    %3017 = vmatprep.subr.mxu0 0.0
    %3018 = vmatpush1.xpose.msra.mxu0 0.0
    %3019 = vmatprep.subr.mxu0 0.0
    %3020 = vmatpush1.xpose.msra.mxu0 0.0
    %3021 = vmatprep.subr.mxu0 0.0
    %3022 = vmatpush1.xpose.msra.mxu0 0.0
    %3023 = vmatprep.subr.mxu0 0.0
    %3024 = vmatpush1.xpose.msra.mxu0 0.0
    %3025 = vmatprep.subr.mxu0 0.0
    %3026 = vmatpush1.xpose.msra.mxu0 0.0
    %3027 = vmatprep.subr.mxu0 0.0
    %3028 = vmatpush1.xpose.msra.mxu0 0.0
    %3029 = vmatprep.subr.mxu0 0.0
    %3030 = vmatpush1.xpose.msra.mxu0 0.0
    %3031 = vmatprep.subr.mxu0 0.0
    %3032 = vmatpush1.xpose.msra.mxu0 0.0
    %3033 = vmatprep.subr.mxu0 0.0
    %3034 = vmatpush1.xpose.msra.mxu0 0.0
    %3035 = vmatprep.subr.mxu0 0.0
    %3036 = vmatpush1.xpose.msra.mxu0 0.0
    %3037 = vmatprep.subr.mxu0 0.0
    %3038 = vmatpush1.xpose.msra.mxu0 0.0
    %3039 = vmatprep.subr.mxu0 0.0
    %3040 = vmatpush1.xpose.msra.mxu0 0.0
    %3041 = vmatprep.subr.mxu0 0.0
    %3042 = vmatpush1.xpose.msra.mxu0 0.0
    %3043 = vmatprep.subr.mxu0 0.0
    %3044 = vmatpush1.xpose.msra.mxu0 0.0
    %3045 = vmatprep.subr.mxu0 0.0
    %3046 = vmatpush1.xpose.msra.mxu0 0.0
    %3047 = vmatprep.subr.mxu0 0.0
    %3048 = vmatpush1.xpose.msra.mxu0 0.0
    %3049 = vmatprep.subr.mxu0 0.0
    %3050 = vmatpush1.xpose.msra.mxu0 0.0
    %3051 = vmatprep.subr.mxu0 0.0
    %3052 = vmatpush1.xpose.msra.mxu0 0.0
    %3053 = vmatprep.subr.mxu0 0.0
    %3054 = vmatpush1.xpose.msra.mxu0 0.0
    %3055 = vmatprep.subr.mxu0 0.0
    %3056 = vmatpush1.xpose.msra.mxu0 0.0
    %3057 = vmatprep.subr.mxu0 0.0
    %3058 = vmatpush1.xpose.msra.mxu0 0.0
    %3059 = vmatprep.subr.mxu0 0.0
    %3060 = vmatpush1.xpose.msra.mxu0 0.0
    %3061 = vmatprep.subr.mxu0 0.0
    %3062 = vmatpush1.xpose.msra.mxu0 0.0
    %3063 = vmatprep.subr.mxu0 0.0
    %3064 = vmatpush1.xpose.msra.mxu0 0.0
    %3065 = vmatprep.subr.mxu0 0.0
    %3066 = vmatpush1.xpose.msra.mxu0 0.0
    %3067 = vmatprep.mubr.f32.mxu0 %v747
    %3068 = vmatmul.mubr.f32.gmra.mrb[0].mxu0 %v739
    %v3069 = vpop.f32.mrb[0].mxu0
    %v3070 = vadd.f32 %v3000, %v3069
    %v3071 = vpop.f32.mrb[0].mxu0
    %3072 = vdwg.mxu0
    %3073 = vmatprep.subr.mxu0 %v245
    %3074 = vmatpush1.xpose.msra.mxu0 %v244
    %3075 = vmatprep.subr.mxu0 %v373
    %3076 = vmatpush1.xpose.msra.mxu0 %v372
    %3077 = vmatprep.subr.mxu0 0.0
    %3078 = vmatpush1.xpose.msra.mxu0 0.0
    %3079 = vmatprep.subr.mxu0 0.0
    %3080 = vmatpush1.xpose.msra.mxu0 0.0
    %3081 = vmatprep.subr.mxu0 0.0
    %3082 = vmatpush1.xpose.msra.mxu0 0.0
    %3083 = vmatprep.subr.mxu0 0.0
    %3084 = vmatpush1.xpose.msra.mxu0 0.0
    %3085 = vmatprep.subr.mxu0 0.0
    %3086 = vmatpush1.xpose.msra.mxu0 0.0
    %3087 = vmatprep.subr.mxu0 0.0
    %3088 = vmatpush1.xpose.msra.mxu0 0.0
    %3089 = vmatprep.subr.mxu0 0.0
    %3090 = vmatpush1.xpose.msra.mxu0 0.0
    %3091 = vmatprep.subr.mxu0 0.0
    %3092 = vmatpush1.xpose.msra.mxu0 0.0
    %3093 = vmatprep.subr.mxu0 0.0
    %3094 = vmatpush1.xpose.msra.mxu0 0.0
    %3095 = vmatprep.subr.mxu0 0.0
    %3096 = vmatpush1.xpose.msra.mxu0 0.0
    %3097 = vmatprep.subr.mxu0 0.0
    %3098 = vmatpush1.xpose.msra.mxu0 0.0
    %3099 = vmatprep.subr.mxu0 0.0
    %3100 = vmatpush1.xpose.msra.mxu0 0.0
    %3101 = vmatprep.subr.mxu0 0.0
    %3102 = vmatpush1.xpose.msra.mxu0 0.0
    %3103 = vmatprep.subr.mxu0 0.0
    %3104 = vmatpush1.xpose.msra.mxu0 0.0
    %3105 = vmatprep.subr.mxu0 0.0
    %3106 = vmatpush1.xpose.msra.mxu0 0.0
    %3107 = vmatprep.subr.mxu0 0.0
    %3108 = vmatpush1.xpose.msra.mxu0 0.0
    %3109 = vmatprep.subr.mxu0 0.0
    %3110 = vmatpush1.xpose.msra.mxu0 0.0
    %3111 = vmatprep.subr.mxu0 0.0
    %3112 = vmatpush1.xpose.msra.mxu0 0.0
    %3113 = vmatprep.subr.mxu0 0.0
    %3114 = vmatpush1.xpose.msra.mxu0 0.0
    %3115 = vmatprep.subr.mxu0 0.0
    %3116 = vmatpush1.xpose.msra.mxu0 0.0
    %3117 = vmatprep.subr.mxu0 0.0
    %3118 = vmatpush1.xpose.msra.mxu0 0.0
    %3119 = vmatprep.subr.mxu0 0.0
    %3120 = vmatpush1.xpose.msra.mxu0 0.0
    %3121 = vmatprep.subr.mxu0 0.0
    %3122 = vmatpush1.xpose.msra.mxu0 0.0
    %3123 = vmatprep.subr.mxu0 0.0
    %3124 = vmatpush1.xpose.msra.mxu0 0.0
    %3125 = vmatprep.subr.mxu0 0.0
    %3126 = vmatpush1.xpose.msra.mxu0 0.0
    %3127 = vmatprep.subr.mxu0 0.0
    %3128 = vmatpush1.xpose.msra.mxu0 0.0
    %3129 = vmatprep.subr.mxu0 0.0
    %3130 = vmatpush1.xpose.msra.mxu0 0.0
    %3131 = vmatprep.subr.mxu0 0.0
    %3132 = vmatpush1.xpose.msra.mxu0 0.0
    %3133 = vmatprep.subr.mxu0 0.0
    %3134 = vmatpush1.xpose.msra.mxu0 0.0
    %3135 = vmatprep.subr.mxu0 0.0
    %3136 = vmatpush1.xpose.msra.mxu0 0.0
    %3137 = vmatprep.mubr.f32.mxu0 %v748
    %3138 = vmatmul.mubr.f32.gmra.mrb[0].mxu0 %v746
    %v3139 = vpop.f32.mrb[0].mxu0
    %v3140 = vadd.f32 %v3070, %v3139
    %v3141 = vpop.f32.mrb[0].mxu0
    %3142 = vdwg.mxu0
    %3143 = vmatprep.subr.mxu0 %v247
    %3144 = vmatpush1.xpose.msra.mxu0 %v246
    %3145 = vmatprep.subr.mxu0 %v375
    %3146 = vmatpush1.xpose.msra.mxu0 %v374
    %3147 = vmatprep.subr.mxu0 0.0
    %3148 = vmatpush1.xpose.msra.mxu0 0.0
    %3149 = vmatprep.subr.mxu0 0.0
    %3150 = vmatpush1.xpose.msra.mxu0 0.0
    %3151 = vmatprep.subr.mxu0 0.0
    %3152 = vmatpush1.xpose.msra.mxu0 0.0
    %3153 = vmatprep.subr.mxu0 0.0
    %3154 = vmatpush1.xpose.msra.mxu0 0.0
    %3155 = vmatprep.subr.mxu0 0.0
    %3156 = vmatpush1.xpose.msra.mxu0 0.0
    %3157 = vmatprep.subr.mxu0 0.0
    %3158 = vmatpush1.xpose.msra.mxu0 0.0
    %3159 = vmatprep.subr.mxu0 0.0
    %3160 = vmatpush1.xpose.msra.mxu0 0.0
    %3161 = vmatprep.subr.mxu0 0.0
    %3162 = vmatpush1.xpose.msra.mxu0 0.0
    %3163 = vmatprep.subr.mxu0 0.0
    %3164 = vmatpush1.xpose.msra.mxu0 0.0
    %3165 = vmatprep.subr.mxu0 0.0
    %3166 = vmatpush1.xpose.msra.mxu0 0.0
    %3167 = vmatprep.subr.mxu0 0.0
    %3168 = vmatpush1.xpose.msra.mxu0 0.0
    %3169 = vmatprep.subr.mxu0 0.0
    %3170 = vmatpush1.xpose.msra.mxu0 0.0
    %3171 = vmatprep.subr.mxu0 0.0
    %3172 = vmatpush1.xpose.msra.mxu0 0.0
    %3173 = vmatprep.subr.mxu0 0.0
    %3174 = vmatpush1.xpose.msra.mxu0 0.0
    %3175 = vmatprep.subr.mxu0 0.0
    %3176 = vmatpush1.xpose.msra.mxu0 0.0
    %3177 = vmatprep.subr.mxu0 0.0
    %3178 = vmatpush1.xpose.msra.mxu0 0.0
    %3179 = vmatprep.subr.mxu0 0.0
    %3180 = vmatpush1.xpose.msra.mxu0 0.0
    %3181 = vmatprep.subr.mxu0 0.0
    %3182 = vmatpush1.xpose.msra.mxu0 0.0
    %3183 = vmatprep.subr.mxu0 0.0
    %3184 = vmatpush1.xpose.msra.mxu0 0.0
    %3185 = vmatprep.subr.mxu0 0.0
    %3186 = vmatpush1.xpose.msra.mxu0 0.0
    %3187 = vmatprep.subr.mxu0 0.0
    %3188 = vmatpush1.xpose.msra.mxu0 0.0
    %3189 = vmatprep.subr.mxu0 0.0
    %3190 = vmatpush1.xpose.msra.mxu0 0.0
    %3191 = vmatprep.subr.mxu0 0.0
    %3192 = vmatpush1.xpose.msra.mxu0 0.0
    %3193 = vmatprep.subr.mxu0 0.0
    %3194 = vmatpush1.xpose.msra.mxu0 0.0
    %3195 = vmatprep.subr.mxu0 0.0
    %3196 = vmatpush1.xpose.msra.mxu0 0.0
    %3197 = vmatprep.subr.mxu0 0.0
    %3198 = vmatpush1.xpose.msra.mxu0 0.0
    %3199 = vmatprep.subr.mxu0 0.0
    %3200 = vmatpush1.xpose.msra.mxu0 0.0
    %3201 = vmatprep.subr.mxu0 0.0
    %3202 = vmatpush1.xpose.msra.mxu0 0.0
    %3203 = vmatprep.subr.mxu0 0.0
    %3204 = vmatpush1.xpose.msra.mxu0 0.0
    %3205 = vmatprep.subr.mxu0 0.0
    %3206 = vmatpush1.xpose.msra.mxu0 0.0
    %3207 = vmatprep.mubr.f32.mxu0 %v764
    %3208 = vmatmul.mubr.f32.gmra.mrb[0].mxu0 %v756
    %v3209 = vpop.f32.mrb[0].mxu0
    %v3210 = vadd.f32 %v3140, %v3209
    %v3211 = vpop.f32.mrb[0].mxu0
    %3212 = vdwg.mxu0
    %3213 = vmatprep.subr.mxu0 %v249
    %3214 = vmatpush1.xpose.msra.mxu0 %v248
    %3215 = vmatprep.subr.mxu0 %v377
    %3216 = vmatpush1.xpose.msra.mxu0 %v376
    %3217 = vmatprep.subr.mxu0 0.0
    %3218 = vmatpush1.xpose.msra.mxu0 0.0
    %3219 = vmatprep.subr.mxu0 0.0
    %3220 = vmatpush1.xpose.msra.mxu0 0.0
    %3221 = vmatprep.subr.mxu0 0.0
    %3222 = vmatpush1.xpose.msra.mxu0 0.0
    %3223 = vmatprep.subr.mxu0 0.0
    %3224 = vmatpush1.xpose.msra.mxu0 0.0
    %3225 = vmatprep.subr.mxu0 0.0
    %3226 = vmatpush1.xpose.msra.mxu0 0.0
    %3227 = vmatprep.subr.mxu0 0.0
    %3228 = vmatpush1.xpose.msra.mxu0 0.0
    %3229 = vmatprep.subr.mxu0 0.0
    %3230 = vmatpush1.xpose.msra.mxu0 0.0
    %3231 = vmatprep.subr.mxu0 0.0
    %3232 = vmatpush1.xpose.msra.mxu0 0.0
    %3233 = vmatprep.subr.mxu0 0.0
    %3234 = vmatpush1.xpose.msra.mxu0 0.0
    %3235 = vmatprep.subr.mxu0 0.0
    %3236 = vmatpush1.xpose.msra.mxu0 0.0
    %3237 = vmatprep.subr.mxu0 0.0
    %3238 = vmatpush1.xpose.msra.mxu0 0.0
    %3239 = vmatprep.subr.mxu0 0.0
    %3240 = vmatpush1.xpose.msra.mxu0 0.0
    %3241 = vmatprep.subr.mxu0 0.0
    %3242 = vmatpush1.xpose.msra.mxu0 0.0
    %3243 = vmatprep.subr.mxu0 0.0
    %3244 = vmatpush1.xpose.msra.mxu0 0.0
    %3245 = vmatprep.subr.mxu0 0.0
    %3246 = vmatpush1.xpose.msra.mxu0 0.0
    %3247 = vmatprep.subr.mxu0 0.0
    %3248 = vmatpush1.xpose.msra.mxu0 0.0
    %3249 = vmatprep.subr.mxu0 0.0
    %3250 = vmatpush1.xpose.msra.mxu0 0.0
    %3251 = vmatprep.subr.mxu0 0.0
    %3252 = vmatpush1.xpose.msra.mxu0 0.0
    %3253 = vmatprep.subr.mxu0 0.0
    %3254 = vmatpush1.xpose.msra.mxu0 0.0
    %3255 = vmatprep.subr.mxu0 0.0
    %3256 = vmatpush1.xpose.msra.mxu0 0.0
    %3257 = vmatprep.subr.mxu0 0.0
    %3258 = vmatpush1.xpose.msra.mxu0 0.0
    %3259 = vmatprep.subr.mxu0 0.0
    %3260 = vmatpush1.xpose.msra.mxu0 0.0
    %3261 = vmatprep.subr.mxu0 0.0
    %3262 = vmatpush1.xpose.msra.mxu0 0.0
    %3263 = vmatprep.subr.mxu0 0.0
    %3264 = vmatpush1.xpose.msra.mxu0 0.0
    %3265 = vmatprep.subr.mxu0 0.0
    %3266 = vmatpush1.xpose.msra.mxu0 0.0
    %3267 = vmatprep.subr.mxu0 0.0
    %3268 = vmatpush1.xpose.msra.mxu0 0.0
    %3269 = vmatprep.subr.mxu0 0.0
    %3270 = vmatpush1.xpose.msra.mxu0 0.0
    %3271 = vmatprep.subr.mxu0 0.0
    %3272 = vmatpush1.xpose.msra.mxu0 0.0
    %3273 = vmatprep.subr.mxu0 0.0
    %3274 = vmatpush1.xpose.msra.mxu0 0.0
    %3275 = vmatprep.subr.mxu0 0.0
    %3276 = vmatpush1.xpose.msra.mxu0 0.0
    %3277 = vmatprep.mubr.f32.mxu0 %v765
    %3278 = vmatmul.mubr.f32.gmra.mrb[0].mxu0 %v763
    %v3279 = vpop.f32.mrb[0].mxu0
    %v3280 = vadd.f32 %v3210, %v3279
    %v3281 = vpop.f32.mrb[0].mxu0
    %3282 = vdwg.mxu0
    %3283 = vmatprep.subr.mxu0 %v251
    %3284 = vmatpush1.xpose.msra.mxu0 %v250
    %3285 = vmatprep.subr.mxu0 %v379
    %3286 = vmatpush1.xpose.msra.mxu0 %v378
    %3287 = vmatprep.subr.mxu0 0.0
    %3288 = vmatpush1.xpose.msra.mxu0 0.0
    %3289 = vmatprep.subr.mxu0 0.0
    %3290 = vmatpush1.xpose.msra.mxu0 0.0
    %3291 = vmatprep.subr.mxu0 0.0
    %3292 = vmatpush1.xpose.msra.mxu0 0.0
    %3293 = vmatprep.subr.mxu0 0.0
    %3294 = vmatpush1.xpose.msra.mxu0 0.0
    %3295 = vmatprep.subr.mxu0 0.0
    %3296 = vmatpush1.xpose.msra.mxu0 0.0
    %3297 = vmatprep.subr.mxu0 0.0
    %3298 = vmatpush1.xpose.msra.mxu0 0.0
    %3299 = vmatprep.subr.mxu0 0.0
    %3300 = vmatpush1.xpose.msra.mxu0 0.0
    %3301 = vmatprep.subr.mxu0 0.0
    %3302 = vmatpush1.xpose.msra.mxu0 0.0
    %3303 = vmatprep.subr.mxu0 0.0
    %3304 = vmatpush1.xpose.msra.mxu0 0.0
    %3305 = vmatprep.subr.mxu0 0.0
    %3306 = vmatpush1.xpose.msra.mxu0 0.0
    %3307 = vmatprep.subr.mxu0 0.0
    %3308 = vmatpush1.xpose.msra.mxu0 0.0
    %3309 = vmatprep.subr.mxu0 0.0
    %3310 = vmatpush1.xpose.msra.mxu0 0.0
    %3311 = vmatprep.subr.mxu0 0.0
    %3312 = vmatpush1.xpose.msra.mxu0 0.0
    %3313 = vmatprep.subr.mxu0 0.0
    %3314 = vmatpush1.xpose.msra.mxu0 0.0
    %3315 = vmatprep.subr.mxu0 0.0
    %3316 = vmatpush1.xpose.msra.mxu0 0.0
    %3317 = vmatprep.subr.mxu0 0.0
    %3318 = vmatpush1.xpose.msra.mxu0 0.0
    %3319 = vmatprep.subr.mxu0 0.0
    %3320 = vmatpush1.xpose.msra.mxu0 0.0
    %3321 = vmatprep.subr.mxu0 0.0
    %3322 = vmatpush1.xpose.msra.mxu0 0.0
    %3323 = vmatprep.subr.mxu0 0.0
    %3324 = vmatpush1.xpose.msra.mxu0 0.0
    %3325 = vmatprep.subr.mxu0 0.0
    %3326 = vmatpush1.xpose.msra.mxu0 0.0
    %3327 = vmatprep.subr.mxu0 0.0
    %3328 = vmatpush1.xpose.msra.mxu0 0.0
    %3329 = vmatprep.subr.mxu0 0.0
    %3330 = vmatpush1.xpose.msra.mxu0 0.0
    %3331 = vmatprep.subr.mxu0 0.0
    %3332 = vmatpush1.xpose.msra.mxu0 0.0
    %3333 = vmatprep.subr.mxu0 0.0
    %3334 = vmatpush1.xpose.msra.mxu0 0.0
    %3335 = vmatprep.subr.mxu0 0.0
    %3336 = vmatpush1.xpose.msra.mxu0 0.0
    %3337 = vmatprep.subr.mxu0 0.0
    %3338 = vmatpush1.xpose.msra.mxu0 0.0
    %3339 = vmatprep.subr.mxu0 0.0
    %3340 = vmatpush1.xpose.msra.mxu0 0.0
    %3341 = vmatprep.subr.mxu0 0.0
    %3342 = vmatpush1.xpose.msra.mxu0 0.0
    %3343 = vmatprep.subr.mxu0 0.0
    %3344 = vmatpush1.xpose.msra.mxu0 0.0
    %3345 = vmatprep.subr.mxu0 0.0
    %3346 = vmatpush1.xpose.msra.mxu0 0.0
    %3347 = vmatprep.mubr.f32.mxu0 %v781
    %3348 = vmatmul.mubr.f32.gmra.mrb[0].mxu0 %v773
    %v3349 = vpop.f32.mrb[0].mxu0
    %v3350 = vadd.f32 %v3280, %v3349
    %v3351 = vpop.f32.mrb[0].mxu0
    %3352 = vdwg.mxu0
    %3353 = vmatprep.subr.mxu0 %v253
    %3354 = vmatpush1.xpose.msra.mxu0 %v252
    %3355 = vmatprep.subr.mxu0 %v381
    %3356 = vmatpush1.xpose.msra.mxu0 %v380
    %3357 = vmatprep.subr.mxu0 0.0
    %3358 = vmatpush1.xpose.msra.mxu0 0.0
    %3359 = vmatprep.subr.mxu0 0.0
    %3360 = vmatpush1.xpose.msra.mxu0 0.0
    %3361 = vmatprep.subr.mxu0 0.0
    %3362 = vmatpush1.xpose.msra.mxu0 0.0
    %3363 = vmatprep.subr.mxu0 0.0
    %3364 = vmatpush1.xpose.msra.mxu0 0.0
    %3365 = vmatprep.subr.mxu0 0.0
    %3366 = vmatpush1.xpose.msra.mxu0 0.0
    %3367 = vmatprep.subr.mxu0 0.0
    %3368 = vmatpush1.xpose.msra.mxu0 0.0
    %3369 = vmatprep.subr.mxu0 0.0
    %3370 = vmatpush1.xpose.msra.mxu0 0.0
    %3371 = vmatprep.subr.mxu0 0.0
    %3372 = vmatpush1.xpose.msra.mxu0 0.0
    %3373 = vmatprep.subr.mxu0 0.0
    %3374 = vmatpush1.xpose.msra.mxu0 0.0
    %3375 = vmatprep.subr.mxu0 0.0
    %3376 = vmatpush1.xpose.msra.mxu0 0.0
    %3377 = vmatprep.subr.mxu0 0.0
    %3378 = vmatpush1.xpose.msra.mxu0 0.0
    %3379 = vmatprep.subr.mxu0 0.0
    %3380 = vmatpush1.xpose.msra.mxu0 0.0
    %3381 = vmatprep.subr.mxu0 0.0
    %3382 = vmatpush1.xpose.msra.mxu0 0.0
    %3383 = vmatprep.subr.mxu0 0.0
    %3384 = vmatpush1.xpose.msra.mxu0 0.0
    %3385 = vmatprep.subr.mxu0 0.0
    %3386 = vmatpush1.xpose.msra.mxu0 0.0
    %3387 = vmatprep.subr.mxu0 0.0
    %3388 = vmatpush1.xpose.msra.mxu0 0.0
    %3389 = vmatprep.subr.mxu0 0.0
    %3390 = vmatpush1.xpose.msra.mxu0 0.0
    %3391 = vmatprep.subr.mxu0 0.0
    %3392 = vmatpush1.xpose.msra.mxu0 0.0
    %3393 = vmatprep.subr.mxu0 0.0
    %3394 = vmatpush1.xpose.msra.mxu0 0.0
    %3395 = vmatprep.subr.mxu0 0.0
    %3396 = vmatpush1.xpose.msra.mxu0 0.0
    %3397 = vmatprep.subr.mxu0 0.0
    %3398 = vmatpush1.xpose.msra.mxu0 0.0
    %3399 = vmatprep.subr.mxu0 0.0
    %3400 = vmatpush1.xpose.msra.mxu0 0.0
    %3401 = vmatprep.subr.mxu0 0.0
    %3402 = vmatpush1.xpose.msra.mxu0 0.0
    %3403 = vmatprep.subr.mxu0 0.0
    %3404 = vmatpush1.xpose.msra.mxu0 0.0
    %3405 = vmatprep.subr.mxu0 0.0
    %3406 = vmatpush1.xpose.msra.mxu0 0.0
    %3407 = vmatprep.subr.mxu0 0.0
    %3408 = vmatpush1.xpose.msra.mxu0 0.0
    %3409 = vmatprep.subr.mxu0 0.0
    %3410 = vmatpush1.xpose.msra.mxu0 0.0
    %3411 = vmatprep.subr.mxu0 0.0
    %3412 = vmatpush1.xpose.msra.mxu0 0.0
    %3413 = vmatprep.subr.mxu0 0.0
    %3414 = vmatpush1.xpose.msra.mxu0 0.0
    %3415 = vmatprep.subr.mxu0 0.0
    %3416 = vmatpush1.xpose.msra.mxu0 0.0
    %3417 = vmatprep.mubr.f32.mxu0 %v782
    %3418 = vmatmul.mubr.f32.gmra.mrb[0].mxu0 %v780
    %v3419 = vpop.f32.mrb[0].mxu0
    %v3420 = vadd.f32 %v3350, %v3419
    %v3421 = vpop.f32.mrb[0].mxu0
    %3422 = vdwg.mxu0
    %3423 = vmatprep.subr.mxu0 %v255
    %3424 = vmatpush1.xpose.msra.mxu0 %v254
    %3425 = vmatprep.subr.mxu0 %v383
    %3426 = vmatpush1.xpose.msra.mxu0 %v382
    %3427 = vmatprep.subr.mxu0 0.0
    %3428 = vmatpush1.xpose.msra.mxu0 0.0
    %3429 = vmatprep.subr.mxu0 0.0
    %3430 = vmatpush1.xpose.msra.mxu0 0.0
    %3431 = vmatprep.subr.mxu0 0.0
    %3432 = vmatpush1.xpose.msra.mxu0 0.0
    %3433 = vmatprep.subr.mxu0 0.0
    %3434 = vmatpush1.xpose.msra.mxu0 0.0
    %3435 = vmatprep.subr.mxu0 0.0
    %3436 = vmatpush1.xpose.msra.mxu0 0.0
    %3437 = vmatprep.subr.mxu0 0.0
    %3438 = vmatpush1.xpose.msra.mxu0 0.0
    %3439 = vmatprep.subr.mxu0 0.0
    %3440 = vmatpush1.xpose.msra.mxu0 0.0
    %3441 = vmatprep.subr.mxu0 0.0
    %3442 = vmatpush1.xpose.msra.mxu0 0.0
    %3443 = vmatprep.subr.mxu0 0.0
    %3444 = vmatpush1.xpose.msra.mxu0 0.0
    %3445 = vmatprep.subr.mxu0 0.0
    %3446 = vmatpush1.xpose.msra.mxu0 0.0
    %3447 = vmatprep.subr.mxu0 0.0
    %3448 = vmatpush1.xpose.msra.mxu0 0.0
    %3449 = vmatprep.subr.mxu0 0.0
    %3450 = vmatpush1.xpose.msra.mxu0 0.0
    %3451 = vmatprep.subr.mxu0 0.0
    %3452 = vmatpush1.xpose.msra.mxu0 0.0
    %3453 = vmatprep.subr.mxu0 0.0
    %3454 = vmatpush1.xpose.msra.mxu0 0.0
    %3455 = vmatprep.subr.mxu0 0.0
    %3456 = vmatpush1.xpose.msra.mxu0 0.0
    %3457 = vmatprep.subr.mxu0 0.0
    %3458 = vmatpush1.xpose.msra.mxu0 0.0
    %3459 = vmatprep.subr.mxu0 0.0
    %3460 = vmatpush1.xpose.msra.mxu0 0.0
    %3461 = vmatprep.subr.mxu0 0.0
    %3462 = vmatpush1.xpose.msra.mxu0 0.0
    %3463 = vmatprep.subr.mxu0 0.0
    %3464 = vmatpush1.xpose.msra.mxu0 0.0
    %3465 = vmatprep.subr.mxu0 0.0
    %3466 = vmatpush1.xpose.msra.mxu0 0.0
    %3467 = vmatprep.subr.mxu0 0.0
    %3468 = vmatpush1.xpose.msra.mxu0 0.0
    %3469 = vmatprep.subr.mxu0 0.0
    %3470 = vmatpush1.xpose.msra.mxu0 0.0
    %3471 = vmatprep.subr.mxu0 0.0
    %3472 = vmatpush1.xpose.msra.mxu0 0.0
    %3473 = vmatprep.subr.mxu0 0.0
    %3474 = vmatpush1.xpose.msra.mxu0 0.0
    %3475 = vmatprep.subr.mxu0 0.0
    %3476 = vmatpush1.xpose.msra.mxu0 0.0
    %3477 = vmatprep.subr.mxu0 0.0
    %3478 = vmatpush1.xpose.msra.mxu0 0.0
    %3479 = vmatprep.subr.mxu0 0.0
    %3480 = vmatpush1.xpose.msra.mxu0 0.0
    %3481 = vmatprep.subr.mxu0 0.0
    %3482 = vmatpush1.xpose.msra.mxu0 0.0
    %3483 = vmatprep.subr.mxu0 0.0
    %3484 = vmatpush1.xpose.msra.mxu0 0.0
    %3485 = vmatprep.subr.mxu0 0.0
    %3486 = vmatpush1.xpose.msra.mxu0 0.0
    %3487 = vmatprep.mubr.f32.mxu0 %v798
    %3488 = vmatmul.mubr.f32.gmra.mrb[0].mxu0 %v790
    %v3489 = vpop.f32.mrb[0].mxu0
    %v3490 = vadd.f32 %v3420, %v3489
    %v3491 = vpop.f32.mrb[0].mxu0
    %3492 = vdwg.mxu0
    %3493 = vmatprep.subr.mxu0 %v257
    %3494 = vmatpush1.xpose.msra.mxu0 %v256
    %3495 = vmatprep.subr.mxu0 %v385
    %3496 = vmatpush1.xpose.msra.mxu0 %v384
    %3497 = vmatprep.subr.mxu0 0.0
    %3498 = vmatpush1.xpose.msra.mxu0 0.0
    %3499 = vmatprep.subr.mxu0 0.0
    %3500 = vmatpush1.xpose.msra.mxu0 0.0
    %3501 = vmatprep.subr.mxu0 0.0
    %3502 = vmatpush1.xpose.msra.mxu0 0.0
    %3503 = vmatprep.subr.mxu0 0.0
    %3504 = vmatpush1.xpose.msra.mxu0 0.0
    %3505 = vmatprep.subr.mxu0 0.0
    %3506 = vmatpush1.xpose.msra.mxu0 0.0
    %3507 = vmatprep.subr.mxu0 0.0
    %3508 = vmatpush1.xpose.msra.mxu0 0.0
    %3509 = vmatprep.subr.mxu0 0.0
    %3510 = vmatpush1.xpose.msra.mxu0 0.0
    %3511 = vmatprep.subr.mxu0 0.0
    %3512 = vmatpush1.xpose.msra.mxu0 0.0
    %3513 = vmatprep.subr.mxu0 0.0
    %3514 = vmatpush1.xpose.msra.mxu0 0.0
    %3515 = vmatprep.subr.mxu0 0.0
    %3516 = vmatpush1.xpose.msra.mxu0 0.0
    %3517 = vmatprep.subr.mxu0 0.0
    %3518 = vmatpush1.xpose.msra.mxu0 0.0
    %3519 = vmatprep.subr.mxu0 0.0
    %3520 = vmatpush1.xpose.msra.mxu0 0.0
    %3521 = vmatprep.subr.mxu0 0.0
    %3522 = vmatpush1.xpose.msra.mxu0 0.0
    %3523 = vmatprep.subr.mxu0 0.0
    %3524 = vmatpush1.xpose.msra.mxu0 0.0
    %3525 = vmatprep.subr.mxu0 0.0
    %3526 = vmatpush1.xpose.msra.mxu0 0.0
    %3527 = vmatprep.subr.mxu0 0.0
    %3528 = vmatpush1.xpose.msra.mxu0 0.0
    %3529 = vmatprep.subr.mxu0 0.0
    %3530 = vmatpush1.xpose.msra.mxu0 0.0
    %3531 = vmatprep.subr.mxu0 0.0
    %3532 = vmatpush1.xpose.msra.mxu0 0.0
    %3533 = vmatprep.subr.mxu0 0.0
    %3534 = vmatpush1.xpose.msra.mxu0 0.0
    %3535 = vmatprep.subr.mxu0 0.0
    %3536 = vmatpush1.xpose.msra.mxu0 0.0
    %3537 = vmatprep.subr.mxu0 0.0
    %3538 = vmatpush1.xpose.msra.mxu0 0.0
    %3539 = vmatprep.subr.mxu0 0.0
    %3540 = vmatpush1.xpose.msra.mxu0 0.0
    %3541 = vmatprep.subr.mxu0 0.0
    %3542 = vmatpush1.xpose.msra.mxu0 0.0
    %3543 = vmatprep.subr.mxu0 0.0
    %3544 = vmatpush1.xpose.msra.mxu0 0.0
    %3545 = vmatprep.subr.mxu0 0.0
    %3546 = vmatpush1.xpose.msra.mxu0 0.0
    %3547 = vmatprep.subr.mxu0 0.0
    %3548 = vmatpush1.xpose.msra.mxu0 0.0
    %3549 = vmatprep.subr.mxu0 0.0
    %3550 = vmatpush1.xpose.msra.mxu0 0.0
    %3551 = vmatprep.subr.mxu0 0.0
    %3552 = vmatpush1.xpose.msra.mxu0 0.0
    %3553 = vmatprep.subr.mxu0 0.0
    %3554 = vmatpush1.xpose.msra.mxu0 0.0
    %3555 = vmatprep.subr.mxu0 0.0
    %3556 = vmatpush1.xpose.msra.mxu0 0.0
    %3557 = vmatprep.mubr.f32.mxu0 %v799
    %3558 = vmatmul.mubr.f32.gmra.mrb[0].mxu0 %v797
    %v3559 = vpop.f32.mrb[0].mxu0
    %v3560 = vadd.f32 %v3490, %v3559
    %v3561 = vpop.f32.mrb[0].mxu0
    %3562 = vdwg.mxu0
    %3563 = vmatprep.subr.mxu0 %v259
    %3564 = vmatpush1.xpose.msra.mxu0 %v258
    %3565 = vmatprep.subr.mxu0 %v387
    %3566 = vmatpush1.xpose.msra.mxu0 %v386
    %3567 = vmatprep.subr.mxu0 0.0
    %3568 = vmatpush1.xpose.msra.mxu0 0.0
    %3569 = vmatprep.subr.mxu0 0.0
    %3570 = vmatpush1.xpose.msra.mxu0 0.0
    %3571 = vmatprep.subr.mxu0 0.0
    %3572 = vmatpush1.xpose.msra.mxu0 0.0
    %3573 = vmatprep.subr.mxu0 0.0
    %3574 = vmatpush1.xpose.msra.mxu0 0.0
    %3575 = vmatprep.subr.mxu0 0.0
    %3576 = vmatpush1.xpose.msra.mxu0 0.0
    %3577 = vmatprep.subr.mxu0 0.0
    %3578 = vmatpush1.xpose.msra.mxu0 0.0
    %3579 = vmatprep.subr.mxu0 0.0
    %3580 = vmatpush1.xpose.msra.mxu0 0.0
    %3581 = vmatprep.subr.mxu0 0.0
    %3582 = vmatpush1.xpose.msra.mxu0 0.0
    %3583 = vmatprep.subr.mxu0 0.0
    %3584 = vmatpush1.xpose.msra.mxu0 0.0
    %3585 = vmatprep.subr.mxu0 0.0
    %3586 = vmatpush1.xpose.msra.mxu0 0.0
    %3587 = vmatprep.subr.mxu0 0.0
    %3588 = vmatpush1.xpose.msra.mxu0 0.0
    %3589 = vmatprep.subr.mxu0 0.0
    %3590 = vmatpush1.xpose.msra.mxu0 0.0
    %3591 = vmatprep.subr.mxu0 0.0
    %3592 = vmatpush1.xpose.msra.mxu0 0.0
    %3593 = vmatprep.subr.mxu0 0.0
    %3594 = vmatpush1.xpose.msra.mxu0 0.0
    %3595 = vmatprep.subr.mxu0 0.0
    %3596 = vmatpush1.xpose.msra.mxu0 0.0
    %3597 = vmatprep.subr.mxu0 0.0
    %3598 = vmatpush1.xpose.msra.mxu0 0.0
    %3599 = vmatprep.subr.mxu0 0.0
    %3600 = vmatpush1.xpose.msra.mxu0 0.0
    %3601 = vmatprep.subr.mxu0 0.0
    %3602 = vmatpush1.xpose.msra.mxu0 0.0
    %3603 = vmatprep.subr.mxu0 0.0
    %3604 = vmatpush1.xpose.msra.mxu0 0.0
    %3605 = vmatprep.subr.mxu0 0.0
    %3606 = vmatpush1.xpose.msra.mxu0 0.0
    %3607 = vmatprep.subr.mxu0 0.0
    %3608 = vmatpush1.xpose.msra.mxu0 0.0
    %3609 = vmatprep.subr.mxu0 0.0
    %3610 = vmatpush1.xpose.msra.mxu0 0.0
    %3611 = vmatprep.subr.mxu0 0.0
    %3612 = vmatpush1.xpose.msra.mxu0 0.0
    %3613 = vmatprep.subr.mxu0 0.0
    %3614 = vmatpush1.xpose.msra.mxu0 0.0
    %3615 = vmatprep.subr.mxu0 0.0
    %3616 = vmatpush1.xpose.msra.mxu0 0.0
    %3617 = vmatprep.subr.mxu0 0.0
    %3618 = vmatpush1.xpose.msra.mxu0 0.0
    %3619 = vmatprep.subr.mxu0 0.0
    %3620 = vmatpush1.xpose.msra.mxu0 0.0
    %3621 = vmatprep.subr.mxu0 0.0
    %3622 = vmatpush1.xpose.msra.mxu0 0.0
    %3623 = vmatprep.subr.mxu0 0.0
    %3624 = vmatpush1.xpose.msra.mxu0 0.0
    %3625 = vmatprep.subr.mxu0 0.0
    %3626 = vmatpush1.xpose.msra.mxu0 0.0
    %3627 = vmatprep.mubr.f32.mxu0 %v815
    %3628 = vmatmul.mubr.f32.gmra.mrb[0].mxu0 %v807
    %v3629 = vpop.f32.mrb[0].mxu0
    %v3630 = vadd.f32 %v3560, %v3629
    %v3631 = vpop.f32.mrb[0].mxu0
    %3632 = vdwg.mxu0
    %3633 = vmatprep.subr.mxu0 %v261
    %3634 = vmatpush1.xpose.msra.mxu0 %v260
    %3635 = vmatprep.subr.mxu0 %v389
    %3636 = vmatpush1.xpose.msra.mxu0 %v388
    %3637 = vmatprep.subr.mxu0 0.0
    %3638 = vmatpush1.xpose.msra.mxu0 0.0
    %3639 = vmatprep.subr.mxu0 0.0
    %3640 = vmatpush1.xpose.msra.mxu0 0.0
    %3641 = vmatprep.subr.mxu0 0.0
    %3642 = vmatpush1.xpose.msra.mxu0 0.0
    %3643 = vmatprep.subr.mxu0 0.0
    %3644 = vmatpush1.xpose.msra.mxu0 0.0
    %3645 = vmatprep.subr.mxu0 0.0
    %3646 = vmatpush1.xpose.msra.mxu0 0.0
    %3647 = vmatprep.subr.mxu0 0.0
    %3648 = vmatpush1.xpose.msra.mxu0 0.0
    %3649 = vmatprep.subr.mxu0 0.0
    %3650 = vmatpush1.xpose.msra.mxu0 0.0
    %3651 = vmatprep.subr.mxu0 0.0
    %3652 = vmatpush1.xpose.msra.mxu0 0.0
    %3653 = vmatprep.subr.mxu0 0.0
    %3654 = vmatpush1.xpose.msra.mxu0 0.0
    %3655 = vmatprep.subr.mxu0 0.0
    %3656 = vmatpush1.xpose.msra.mxu0 0.0
    %3657 = vmatprep.subr.mxu0 0.0
    %3658 = vmatpush1.xpose.msra.mxu0 0.0
    %3659 = vmatprep.subr.mxu0 0.0
    %3660 = vmatpush1.xpose.msra.mxu0 0.0
    %3661 = vmatprep.subr.mxu0 0.0
    %3662 = vmatpush1.xpose.msra.mxu0 0.0
    %3663 = vmatprep.subr.mxu0 0.0
    %3664 = vmatpush1.xpose.msra.mxu0 0.0
    %3665 = vmatprep.subr.mxu0 0.0
    %3666 = vmatpush1.xpose.msra.mxu0 0.0
    %3667 = vmatprep.subr.mxu0 0.0
    %3668 = vmatpush1.xpose.msra.mxu0 0.0
    %3669 = vmatprep.subr.mxu0 0.0
    %3670 = vmatpush1.xpose.msra.mxu0 0.0
    %3671 = vmatprep.subr.mxu0 0.0
    %3672 = vmatpush1.xpose.msra.mxu0 0.0
    %3673 = vmatprep.subr.mxu0 0.0
    %3674 = vmatpush1.xpose.msra.mxu0 0.0
    %3675 = vmatprep.subr.mxu0 0.0
    %3676 = vmatpush1.xpose.msra.mxu0 0.0
    %3677 = vmatprep.subr.mxu0 0.0
    %3678 = vmatpush1.xpose.msra.mxu0 0.0
    %3679 = vmatprep.subr.mxu0 0.0
    %3680 = vmatpush1.xpose.msra.mxu0 0.0
    %3681 = vmatprep.subr.mxu0 0.0
    %3682 = vmatpush1.xpose.msra.mxu0 0.0
    %3683 = vmatprep.subr.mxu0 0.0
    %3684 = vmatpush1.xpose.msra.mxu0 0.0
    %3685 = vmatprep.subr.mxu0 0.0
    %3686 = vmatpush1.xpose.msra.mxu0 0.0
    %3687 = vmatprep.subr.mxu0 0.0
    %3688 = vmatpush1.xpose.msra.mxu0 0.0
    %3689 = vmatprep.subr.mxu0 0.0
    %3690 = vmatpush1.xpose.msra.mxu0 0.0
    %3691 = vmatprep.subr.mxu0 0.0
    %3692 = vmatpush1.xpose.msra.mxu0 0.0
    %3693 = vmatprep.subr.mxu0 0.0
    %3694 = vmatpush1.xpose.msra.mxu0 0.0
    %3695 = vmatprep.subr.mxu0 0.0
    %3696 = vmatpush1.xpose.msra.mxu0 0.0
    %3697 = vmatprep.mubr.f32.mxu0 %v816
    %3698 = vmatmul.mubr.f32.gmra.mrb[0].mxu0 %v814
    %v3699 = vpop.f32.mrb[0].mxu0
    %v3700 = vadd.f32 %v3630, %v3699
    %v3701 = vpop.f32.mrb[0].mxu0
    %3702 = vdwg.mxu0
    %3703 = vmatprep.subr.mxu0 %v263
    %3704 = vmatpush1.xpose.msra.mxu0 %v262
    %3705 = vmatprep.subr.mxu0 %v391
    %3706 = vmatpush1.xpose.msra.mxu0 %v390
    %3707 = vmatprep.subr.mxu0 0.0
    %3708 = vmatpush1.xpose.msra.mxu0 0.0
    %3709 = vmatprep.subr.mxu0 0.0
    %3710 = vmatpush1.xpose.msra.mxu0 0.0
    %3711 = vmatprep.subr.mxu0 0.0
    %3712 = vmatpush1.xpose.msra.mxu0 0.0
    %3713 = vmatprep.subr.mxu0 0.0
    %3714 = vmatpush1.xpose.msra.mxu0 0.0
    %3715 = vmatprep.subr.mxu0 0.0
    %3716 = vmatpush1.xpose.msra.mxu0 0.0
    %3717 = vmatprep.subr.mxu0 0.0
    %3718 = vmatpush1.xpose.msra.mxu0 0.0
    %3719 = vmatprep.subr.mxu0 0.0
    %3720 = vmatpush1.xpose.msra.mxu0 0.0
    %3721 = vmatprep.subr.mxu0 0.0
    %3722 = vmatpush1.xpose.msra.mxu0 0.0
    %3723 = vmatprep.subr.mxu0 0.0
    %3724 = vmatpush1.xpose.msra.mxu0 0.0
    %3725 = vmatprep.subr.mxu0 0.0
    %3726 = vmatpush1.xpose.msra.mxu0 0.0
    %3727 = vmatprep.subr.mxu0 0.0
    %3728 = vmatpush1.xpose.msra.mxu0 0.0
    %3729 = vmatprep.subr.mxu0 0.0
    %3730 = vmatpush1.xpose.msra.mxu0 0.0
    %3731 = vmatprep.subr.mxu0 0.0
    %3732 = vmatpush1.xpose.msra.mxu0 0.0
    %3733 = vmatprep.subr.mxu0 0.0
    %3734 = vmatpush1.xpose.msra.mxu0 0.0
    %3735 = vmatprep.subr.mxu0 0.0
    %3736 = vmatpush1.xpose.msra.mxu0 0.0
    %3737 = vmatprep.subr.mxu0 0.0
    %3738 = vmatpush1.xpose.msra.mxu0 0.0
    %3739 = vmatprep.subr.mxu0 0.0
    %3740 = vmatpush1.xpose.msra.mxu0 0.0
    %3741 = vmatprep.subr.mxu0 0.0
    %3742 = vmatpush1.xpose.msra.mxu0 0.0
    %3743 = vmatprep.subr.mxu0 0.0
    %3744 = vmatpush1.xpose.msra.mxu0 0.0
    %3745 = vmatprep.subr.mxu0 0.0
    %3746 = vmatpush1.xpose.msra.mxu0 0.0
    %3747 = vmatprep.subr.mxu0 0.0
    %3748 = vmatpush1.xpose.msra.mxu0 0.0
    %3749 = vmatprep.subr.mxu0 0.0
    %3750 = vmatpush1.xpose.msra.mxu0 0.0
    %3751 = vmatprep.subr.mxu0 0.0
    %3752 = vmatpush1.xpose.msra.mxu0 0.0
    %3753 = vmatprep.subr.mxu0 0.0
    %3754 = vmatpush1.xpose.msra.mxu0 0.0
    %3755 = vmatprep.subr.mxu0 0.0
    %3756 = vmatpush1.xpose.msra.mxu0 0.0
    %3757 = vmatprep.subr.mxu0 0.0
    %3758 = vmatpush1.xpose.msra.mxu0 0.0
    %3759 = vmatprep.subr.mxu0 0.0
    %3760 = vmatpush1.xpose.msra.mxu0 0.0
    %3761 = vmatprep.subr.mxu0 0.0
    %3762 = vmatpush1.xpose.msra.mxu0 0.0
    %3763 = vmatprep.subr.mxu0 0.0
    %3764 = vmatpush1.xpose.msra.mxu0 0.0
    %3765 = vmatprep.subr.mxu0 0.0
    %3766 = vmatpush1.xpose.msra.mxu0 0.0
    %3767 = vmatprep.mubr.f32.mxu0 %v832
    %3768 = vmatmul.mubr.f32.gmra.mrb[0].mxu0 %v824
    %v3769 = vpop.f32.mrb[0].mxu0
    %v3770 = vadd.f32 %v3700, %v3769
    %v3771 = vpop.f32.mrb[0].mxu0
    %3772 = vdwg.mxu0
    %3773 = vmatprep.subr.mxu0 %v265
    %3774 = vmatpush1.xpose.msra.mxu0 %v264
    %3775 = vmatprep.subr.mxu0 %v393
    %3776 = vmatpush1.xpose.msra.mxu0 %v392
    %3777 = vmatprep.subr.mxu0 0.0
    %3778 = vmatpush1.xpose.msra.mxu0 0.0
    %3779 = vmatprep.subr.mxu0 0.0
    %3780 = vmatpush1.xpose.msra.mxu0 0.0
    %3781 = vmatprep.subr.mxu0 0.0
    %3782 = vmatpush1.xpose.msra.mxu0 0.0
    %3783 = vmatprep.subr.mxu0 0.0
    %3784 = vmatpush1.xpose.msra.mxu0 0.0
    %3785 = vmatprep.subr.mxu0 0.0
    %3786 = vmatpush1.xpose.msra.mxu0 0.0
    %3787 = vmatprep.subr.mxu0 0.0
    %3788 = vmatpush1.xpose.msra.mxu0 0.0
    %3789 = vmatprep.subr.mxu0 0.0
    %3790 = vmatpush1.xpose.msra.mxu0 0.0
    %3791 = vmatprep.subr.mxu0 0.0
    %3792 = vmatpush1.xpose.msra.mxu0 0.0
    %3793 = vmatprep.subr.mxu0 0.0
    %3794 = vmatpush1.xpose.msra.mxu0 0.0
    %3795 = vmatprep.subr.mxu0 0.0
    %3796 = vmatpush1.xpose.msra.mxu0 0.0
    %3797 = vmatprep.subr.mxu0 0.0
    %3798 = vmatpush1.xpose.msra.mxu0 0.0
    %3799 = vmatprep.subr.mxu0 0.0
    %3800 = vmatpush1.xpose.msra.mxu0 0.0
    %3801 = vmatprep.subr.mxu0 0.0
    %3802 = vmatpush1.xpose.msra.mxu0 0.0
    %3803 = vmatprep.subr.mxu0 0.0
    %3804 = vmatpush1.xpose.msra.mxu0 0.0
    %3805 = vmatprep.subr.mxu0 0.0
    %3806 = vmatpush1.xpose.msra.mxu0 0.0
    %3807 = vmatprep.subr.mxu0 0.0
    %3808 = vmatpush1.xpose.msra.mxu0 0.0
    %3809 = vmatprep.subr.mxu0 0.0
    %3810 = vmatpush1.xpose.msra.mxu0 0.0
    %3811 = vmatprep.subr.mxu0 0.0
    %3812 = vmatpush1.xpose.msra.mxu0 0.0
    %3813 = vmatprep.subr.mxu0 0.0
    %3814 = vmatpush1.xpose.msra.mxu0 0.0
    %3815 = vmatprep.subr.mxu0 0.0
    %3816 = vmatpush1.xpose.msra.mxu0 0.0
    %3817 = vmatprep.subr.mxu0 0.0
    %3818 = vmatpush1.xpose.msra.mxu0 0.0
    %3819 = vmatprep.subr.mxu0 0.0
    %3820 = vmatpush1.xpose.msra.mxu0 0.0
    %3821 = vmatprep.subr.mxu0 0.0
    %3822 = vmatpush1.xpose.msra.mxu0 0.0
    %3823 = vmatprep.subr.mxu0 0.0
    %3824 = vmatpush1.xpose.msra.mxu0 0.0
    %3825 = vmatprep.subr.mxu0 0.0
    %3826 = vmatpush1.xpose.msra.mxu0 0.0
    %3827 = vmatprep.subr.mxu0 0.0
    %3828 = vmatpush1.xpose.msra.mxu0 0.0
    %3829 = vmatprep.subr.mxu0 0.0
    %3830 = vmatpush1.xpose.msra.mxu0 0.0
    %3831 = vmatprep.subr.mxu0 0.0
    %3832 = vmatpush1.xpose.msra.mxu0 0.0
    %3833 = vmatprep.subr.mxu0 0.0
    %3834 = vmatpush1.xpose.msra.mxu0 0.0
    %3835 = vmatprep.subr.mxu0 0.0
    %3836 = vmatpush1.xpose.msra.mxu0 0.0
    %3837 = vmatprep.mubr.f32.mxu0 %v833
    %3838 = vmatmul.mubr.f32.gmra.mrb[0].mxu0 %v831
    %v3839 = vpop.f32.mrb[0].mxu0
    %v3840 = vadd.f32 %v3770, %v3839
    %v3841 = vpop.f32.mrb[0].mxu0
    %3842 = vdwg.mxu0
    %3843 = vmatprep.subr.mxu0 %v267
    %3844 = vmatpush1.xpose.msra.mxu0 %v266
    %3845 = vmatprep.subr.mxu0 %v395
    %3846 = vmatpush1.xpose.msra.mxu0 %v394
    %3847 = vmatprep.subr.mxu0 0.0
    %3848 = vmatpush1.xpose.msra.mxu0 0.0
    %3849 = vmatprep.subr.mxu0 0.0
    %3850 = vmatpush1.xpose.msra.mxu0 0.0
    %3851 = vmatprep.subr.mxu0 0.0
    %3852 = vmatpush1.xpose.msra.mxu0 0.0
    %3853 = vmatprep.subr.mxu0 0.0
    %3854 = vmatpush1.xpose.msra.mxu0 0.0
    %3855 = vmatprep.subr.mxu0 0.0
    %3856 = vmatpush1.xpose.msra.mxu0 0.0
    %3857 = vmatprep.subr.mxu0 0.0
    %3858 = vmatpush1.xpose.msra.mxu0 0.0
    %3859 = vmatprep.subr.mxu0 0.0
    %3860 = vmatpush1.xpose.msra.mxu0 0.0
    %3861 = vmatprep.subr.mxu0 0.0
    %3862 = vmatpush1.xpose.msra.mxu0 0.0
    %3863 = vmatprep.subr.mxu0 0.0
    %3864 = vmatpush1.xpose.msra.mxu0 0.0
    %3865 = vmatprep.subr.mxu0 0.0
    %3866 = vmatpush1.xpose.msra.mxu0 0.0
    %3867 = vmatprep.subr.mxu0 0.0
    %3868 = vmatpush1.xpose.msra.mxu0 0.0
    %3869 = vmatprep.subr.mxu0 0.0
    %3870 = vmatpush1.xpose.msra.mxu0 0.0
    %3871 = vmatprep.subr.mxu0 0.0
    %3872 = vmatpush1.xpose.msra.mxu0 0.0
    %3873 = vmatprep.subr.mxu0 0.0
    %3874 = vmatpush1.xpose.msra.mxu0 0.0
    %3875 = vmatprep.subr.mxu0 0.0
    %3876 = vmatpush1.xpose.msra.mxu0 0.0
    %3877 = vmatprep.subr.mxu0 0.0
    %3878 = vmatpush1.xpose.msra.mxu0 0.0
    %3879 = vmatprep.subr.mxu0 0.0
    %3880 = vmatpush1.xpose.msra.mxu0 0.0
    %3881 = vmatprep.subr.mxu0 0.0
    %3882 = vmatpush1.xpose.msra.mxu0 0.0
    %3883 = vmatprep.subr.mxu0 0.0
    %3884 = vmatpush1.xpose.msra.mxu0 0.0
    %3885 = vmatprep.subr.mxu0 0.0
    %3886 = vmatpush1.xpose.msra.mxu0 0.0
    %3887 = vmatprep.subr.mxu0 0.0
    %3888 = vmatpush1.xpose.msra.mxu0 0.0
    %3889 = vmatprep.subr.mxu0 0.0
    %3890 = vmatpush1.xpose.msra.mxu0 0.0
    %3891 = vmatprep.subr.mxu0 0.0
    %3892 = vmatpush1.xpose.msra.mxu0 0.0
    %3893 = vmatprep.subr.mxu0 0.0
    %3894 = vmatpush1.xpose.msra.mxu0 0.0
    %3895 = vmatprep.subr.mxu0 0.0
    %3896 = vmatpush1.xpose.msra.mxu0 0.0
    %3897 = vmatprep.subr.mxu0 0.0
    %3898 = vmatpush1.xpose.msra.mxu0 0.0
    %3899 = vmatprep.subr.mxu0 0.0
    %3900 = vmatpush1.xpose.msra.mxu0 0.0
    %3901 = vmatprep.subr.mxu0 0.0
    %3902 = vmatpush1.xpose.msra.mxu0 0.0
    %3903 = vmatprep.subr.mxu0 0.0
    %3904 = vmatpush1.xpose.msra.mxu0 0.0
    %3905 = vmatprep.subr.mxu0 0.0
    %3906 = vmatpush1.xpose.msra.mxu0 0.0
    %3907 = vmatprep.mubr.f32.mxu0 %v849
    %3908 = vmatmul.mubr.f32.gmra.mrb[0].mxu0 %v841
    %v3909 = vpop.f32.mrb[0].mxu0
    %v3910 = vadd.f32 %v3840, %v3909
    %v3911 = vpop.f32.mrb[0].mxu0
    %3912 = vdwg.mxu0
    %3913 = vmatprep.subr.mxu0 %v269
    %3914 = vmatpush1.xpose.msra.mxu0 %v268
    %3915 = vmatprep.subr.mxu0 %v397
    %3916 = vmatpush1.xpose.msra.mxu0 %v396
    %3917 = vmatprep.subr.mxu0 0.0
    %3918 = vmatpush1.xpose.msra.mxu0 0.0
    %3919 = vmatprep.subr.mxu0 0.0
    %3920 = vmatpush1.xpose.msra.mxu0 0.0
    %3921 = vmatprep.subr.mxu0 0.0
    %3922 = vmatpush1.xpose.msra.mxu0 0.0
    %3923 = vmatprep.subr.mxu0 0.0
    %3924 = vmatpush1.xpose.msra.mxu0 0.0
    %3925 = vmatprep.subr.mxu0 0.0
    %3926 = vmatpush1.xpose.msra.mxu0 0.0
    %3927 = vmatprep.subr.mxu0 0.0
    %3928 = vmatpush1.xpose.msra.mxu0 0.0
    %3929 = vmatprep.subr.mxu0 0.0
    %3930 = vmatpush1.xpose.msra.mxu0 0.0
    %3931 = vmatprep.subr.mxu0 0.0
    %3932 = vmatpush1.xpose.msra.mxu0 0.0
    %3933 = vmatprep.subr.mxu0 0.0
    %3934 = vmatpush1.xpose.msra.mxu0 0.0
    %3935 = vmatprep.subr.mxu0 0.0
    %3936 = vmatpush1.xpose.msra.mxu0 0.0
    %3937 = vmatprep.subr.mxu0 0.0
    %3938 = vmatpush1.xpose.msra.mxu0 0.0
    %3939 = vmatprep.subr.mxu0 0.0
    %3940 = vmatpush1.xpose.msra.mxu0 0.0
    %3941 = vmatprep.subr.mxu0 0.0
    %3942 = vmatpush1.xpose.msra.mxu0 0.0
    %3943 = vmatprep.subr.mxu0 0.0
    %3944 = vmatpush1.xpose.msra.mxu0 0.0
    %3945 = vmatprep.subr.mxu0 0.0
    %3946 = vmatpush1.xpose.msra.mxu0 0.0
    %3947 = vmatprep.subr.mxu0 0.0
    %3948 = vmatpush1.xpose.msra.mxu0 0.0
    %3949 = vmatprep.subr.mxu0 0.0
    %3950 = vmatpush1.xpose.msra.mxu0 0.0
    %3951 = vmatprep.subr.mxu0 0.0
    %3952 = vmatpush1.xpose.msra.mxu0 0.0
    %3953 = vmatprep.subr.mxu0 0.0
    %3954 = vmatpush1.xpose.msra.mxu0 0.0
    %3955 = vmatprep.subr.mxu0 0.0
    %3956 = vmatpush1.xpose.msra.mxu0 0.0
    %3957 = vmatprep.subr.mxu0 0.0
    %3958 = vmatpush1.xpose.msra.mxu0 0.0
    %3959 = vmatprep.subr.mxu0 0.0
    %3960 = vmatpush1.xpose.msra.mxu0 0.0
    %3961 = vmatprep.subr.mxu0 0.0
    %3962 = vmatpush1.xpose.msra.mxu0 0.0
    %3963 = vmatprep.subr.mxu0 0.0
    %3964 = vmatpush1.xpose.msra.mxu0 0.0
    %3965 = vmatprep.subr.mxu0 0.0
    %3966 = vmatpush1.xpose.msra.mxu0 0.0
    %3967 = vmatprep.subr.mxu0 0.0
    %3968 = vmatpush1.xpose.msra.mxu0 0.0
    %3969 = vmatprep.subr.mxu0 0.0
    %3970 = vmatpush1.xpose.msra.mxu0 0.0
    %3971 = vmatprep.subr.mxu0 0.0
    %3972 = vmatpush1.xpose.msra.mxu0 0.0
    %3973 = vmatprep.subr.mxu0 0.0
    %3974 = vmatpush1.xpose.msra.mxu0 0.0
    %3975 = vmatprep.subr.mxu0 0.0
    %3976 = vmatpush1.xpose.msra.mxu0 0.0
    %3977 = vmatprep.mubr.f32.mxu0 %v850
    %3978 = vmatmul.mubr.f32.gmra.mrb[0].mxu0 %v848
    %v3979 = vpop.f32.mrb[0].mxu0
    %v3980 = vadd.f32 %v3910, %v3979
    %v3981 = vpop.f32.mrb[0].mxu0
    %3982 = vdwg.mxu0
    %3983 = vmatprep.subr.mxu0 %v271
    %3984 = vmatpush1.xpose.msra.mxu0 %v270
    %3985 = vmatprep.subr.mxu0 %v399
    %3986 = vmatpush1.xpose.msra.mxu0 %v398
    %3987 = vmatprep.subr.mxu0 0.0
    %3988 = vmatpush1.xpose.msra.mxu0 0.0
    %3989 = vmatprep.subr.mxu0 0.0
    %3990 = vmatpush1.xpose.msra.mxu0 0.0
    %3991 = vmatprep.subr.mxu0 0.0
    %3992 = vmatpush1.xpose.msra.mxu0 0.0
    %3993 = vmatprep.subr.mxu0 0.0
    %3994 = vmatpush1.xpose.msra.mxu0 0.0
    %3995 = vmatprep.subr.mxu0 0.0
    %3996 = vmatpush1.xpose.msra.mxu0 0.0
    %3997 = vmatprep.subr.mxu0 0.0
    %3998 = vmatpush1.xpose.msra.mxu0 0.0
    %3999 = vmatprep.subr.mxu0 0.0
    %4000 = vmatpush1.xpose.msra.mxu0 0.0
    %4001 = vmatprep.subr.mxu0 0.0
    %4002 = vmatpush1.xpose.msra.mxu0 0.0
    %4003 = vmatprep.subr.mxu0 0.0
    %4004 = vmatpush1.xpose.msra.mxu0 0.0
    %4005 = vmatprep.subr.mxu0 0.0
    %4006 = vmatpush1.xpose.msra.mxu0 0.0
    %4007 = vmatprep.subr.mxu0 0.0
    %4008 = vmatpush1.xpose.msra.mxu0 0.0
    %4009 = vmatprep.subr.mxu0 0.0
    %4010 = vmatpush1.xpose.msra.mxu0 0.0
    %4011 = vmatprep.subr.mxu0 0.0
    %4012 = vmatpush1.xpose.msra.mxu0 0.0
    %4013 = vmatprep.subr.mxu0 0.0
    %4014 = vmatpush1.xpose.msra.mxu0 0.0
    %4015 = vmatprep.subr.mxu0 0.0
    %4016 = vmatpush1.xpose.msra.mxu0 0.0
    %4017 = vmatprep.subr.mxu0 0.0
    %4018 = vmatpush1.xpose.msra.mxu0 0.0
    %4019 = vmatprep.subr.mxu0 0.0
    %4020 = vmatpush1.xpose.msra.mxu0 0.0
    %4021 = vmatprep.subr.mxu0 0.0
    %4022 = vmatpush1.xpose.msra.mxu0 0.0
    %4023 = vmatprep.subr.mxu0 0.0
    %4024 = vmatpush1.xpose.msra.mxu0 0.0
    %4025 = vmatprep.subr.mxu0 0.0
    %4026 = vmatpush1.xpose.msra.mxu0 0.0
    %4027 = vmatprep.subr.mxu0 0.0
    %4028 = vmatpush1.xpose.msra.mxu0 0.0
    %4029 = vmatprep.subr.mxu0 0.0
    %4030 = vmatpush1.xpose.msra.mxu0 0.0
    %4031 = vmatprep.subr.mxu0 0.0
    %4032 = vmatpush1.xpose.msra.mxu0 0.0
    %4033 = vmatprep.subr.mxu0 0.0
    %4034 = vmatpush1.xpose.msra.mxu0 0.0
    %4035 = vmatprep.subr.mxu0 0.0
    %4036 = vmatpush1.xpose.msra.mxu0 0.0
    %4037 = vmatprep.subr.mxu0 0.0
    %4038 = vmatpush1.xpose.msra.mxu0 0.0
    %4039 = vmatprep.subr.mxu0 0.0
    %4040 = vmatpush1.xpose.msra.mxu0 0.0
    %4041 = vmatprep.subr.mxu0 0.0
    %4042 = vmatpush1.xpose.msra.mxu0 0.0
    %4043 = vmatprep.subr.mxu0 0.0
    %4044 = vmatpush1.xpose.msra.mxu0 0.0
    %4045 = vmatprep.subr.mxu0 0.0
    %4046 = vmatpush1.xpose.msra.mxu0 0.0
    %4047 = vmatprep.mubr.f32.mxu0 %v866
    %4048 = vmatmul.mubr.f32.gmra.mrb[0].mxu0 %v858
    %v4049 = vpop.f32.mrb[0].mxu0
    %v4050 = vadd.f32 %v3980, %v4049
    %v4051 = vpop.f32.mrb[0].mxu0
    %4052 = vdwg.mxu0
    %4053 = vmatprep.subr.mxu0 %v273
    %4054 = vmatpush1.xpose.msra.mxu0 %v272
    %4055 = vmatprep.subr.mxu0 %v401
    %4056 = vmatpush1.xpose.msra.mxu0 %v400
    %4057 = vmatprep.subr.mxu0 0.0
    %4058 = vmatpush1.xpose.msra.mxu0 0.0
    %4059 = vmatprep.subr.mxu0 0.0
    %4060 = vmatpush1.xpose.msra.mxu0 0.0
    %4061 = vmatprep.subr.mxu0 0.0
    %4062 = vmatpush1.xpose.msra.mxu0 0.0
    %4063 = vmatprep.subr.mxu0 0.0
    %4064 = vmatpush1.xpose.msra.mxu0 0.0
    %4065 = vmatprep.subr.mxu0 0.0
    %4066 = vmatpush1.xpose.msra.mxu0 0.0
    %4067 = vmatprep.subr.mxu0 0.0
    %4068 = vmatpush1.xpose.msra.mxu0 0.0
    %4069 = vmatprep.subr.mxu0 0.0
    %4070 = vmatpush1.xpose.msra.mxu0 0.0
    %4071 = vmatprep.subr.mxu0 0.0
    %4072 = vmatpush1.xpose.msra.mxu0 0.0
    %4073 = vmatprep.subr.mxu0 0.0
    %4074 = vmatpush1.xpose.msra.mxu0 0.0
    %4075 = vmatprep.subr.mxu0 0.0
    %4076 = vmatpush1.xpose.msra.mxu0 0.0
    %4077 = vmatprep.subr.mxu0 0.0
    %4078 = vmatpush1.xpose.msra.mxu0 0.0
    %4079 = vmatprep.subr.mxu0 0.0
    %4080 = vmatpush1.xpose.msra.mxu0 0.0
    %4081 = vmatprep.subr.mxu0 0.0
    %4082 = vmatpush1.xpose.msra.mxu0 0.0
    %4083 = vmatprep.subr.mxu0 0.0
    %4084 = vmatpush1.xpose.msra.mxu0 0.0
    %4085 = vmatprep.subr.mxu0 0.0
    %4086 = vmatpush1.xpose.msra.mxu0 0.0
    %4087 = vmatprep.subr.mxu0 0.0
    %4088 = vmatpush1.xpose.msra.mxu0 0.0
    %4089 = vmatprep.subr.mxu0 0.0
    %4090 = vmatpush1.xpose.msra.mxu0 0.0
    %4091 = vmatprep.subr.mxu0 0.0
    %4092 = vmatpush1.xpose.msra.mxu0 0.0
    %4093 = vmatprep.subr.mxu0 0.0
    %4094 = vmatpush1.xpose.msra.mxu0 0.0
    %4095 = vmatprep.subr.mxu0 0.0
    %4096 = vmatpush1.xpose.msra.mxu0 0.0
    %4097 = vmatprep.subr.mxu0 0.0
    %4098 = vmatpush1.xpose.msra.mxu0 0.0
    %4099 = vmatprep.subr.mxu0 0.0
    %4100 = vmatpush1.xpose.msra.mxu0 0.0
    %4101 = vmatprep.subr.mxu0 0.0
    %4102 = vmatpush1.xpose.msra.mxu0 0.0
    %4103 = vmatprep.subr.mxu0 0.0
    %4104 = vmatpush1.xpose.msra.mxu0 0.0
    %4105 = vmatprep.subr.mxu0 0.0
    %4106 = vmatpush1.xpose.msra.mxu0 0.0
    %4107 = vmatprep.subr.mxu0 0.0
    %4108 = vmatpush1.xpose.msra.mxu0 0.0
    %4109 = vmatprep.subr.mxu0 0.0
    %4110 = vmatpush1.xpose.msra.mxu0 0.0
    %4111 = vmatprep.subr.mxu0 0.0
    %4112 = vmatpush1.xpose.msra.mxu0 0.0
    %4113 = vmatprep.subr.mxu0 0.0
    %4114 = vmatpush1.xpose.msra.mxu0 0.0
    %4115 = vmatprep.subr.mxu0 0.0
    %4116 = vmatpush1.xpose.msra.mxu0 0.0
    %4117 = vmatprep.mubr.f32.mxu0 %v867
    %4118 = vmatmul.mubr.f32.gmra.mrb[0].mxu0 %v865
    %v4119 = vpop.f32.mrb[0].mxu0
    %v4120 = vadd.f32 %v4050, %v4119
    %v4121 = vpop.f32.mrb[0].mxu0
    %4122 = vdwg.mxu0
    %4123 = vmatprep.subr.mxu0 %v275
    %4124 = vmatpush1.xpose.msra.mxu0 %v274
    %4125 = vmatprep.subr.mxu0 %v403
    %4126 = vmatpush1.xpose.msra.mxu0 %v402
    %4127 = vmatprep.subr.mxu0 0.0
    %4128 = vmatpush1.xpose.msra.mxu0 0.0
    %4129 = vmatprep.subr.mxu0 0.0
    %4130 = vmatpush1.xpose.msra.mxu0 0.0
    %4131 = vmatprep.subr.mxu0 0.0
    %4132 = vmatpush1.xpose.msra.mxu0 0.0
    %4133 = vmatprep.subr.mxu0 0.0
    %4134 = vmatpush1.xpose.msra.mxu0 0.0
    %4135 = vmatprep.subr.mxu0 0.0
    %4136 = vmatpush1.xpose.msra.mxu0 0.0
    %4137 = vmatprep.subr.mxu0 0.0
    %4138 = vmatpush1.xpose.msra.mxu0 0.0
    %4139 = vmatprep.subr.mxu0 0.0
    %4140 = vmatpush1.xpose.msra.mxu0 0.0
    %4141 = vmatprep.subr.mxu0 0.0
    %4142 = vmatpush1.xpose.msra.mxu0 0.0
    %4143 = vmatprep.subr.mxu0 0.0
    %4144 = vmatpush1.xpose.msra.mxu0 0.0
    %4145 = vmatprep.subr.mxu0 0.0
    %4146 = vmatpush1.xpose.msra.mxu0 0.0
    %4147 = vmatprep.subr.mxu0 0.0
    %4148 = vmatpush1.xpose.msra.mxu0 0.0
    %4149 = vmatprep.subr.mxu0 0.0
    %4150 = vmatpush1.xpose.msra.mxu0 0.0
    %4151 = vmatprep.subr.mxu0 0.0
    %4152 = vmatpush1.xpose.msra.mxu0 0.0
    %4153 = vmatprep.subr.mxu0 0.0
    %4154 = vmatpush1.xpose.msra.mxu0 0.0
    %4155 = vmatprep.subr.mxu0 0.0
    %4156 = vmatpush1.xpose.msra.mxu0 0.0
    %4157 = vmatprep.subr.mxu0 0.0
    %4158 = vmatpush1.xpose.msra.mxu0 0.0
    %4159 = vmatprep.subr.mxu0 0.0
    %4160 = vmatpush1.xpose.msra.mxu0 0.0
    %4161 = vmatprep.subr.mxu0 0.0
    %4162 = vmatpush1.xpose.msra.mxu0 0.0
    %4163 = vmatprep.subr.mxu0 0.0
    %4164 = vmatpush1.xpose.msra.mxu0 0.0
    %4165 = vmatprep.subr.mxu0 0.0
    %4166 = vmatpush1.xpose.msra.mxu0 0.0
    %4167 = vmatprep.subr.mxu0 0.0
    %4168 = vmatpush1.xpose.msra.mxu0 0.0
    %4169 = vmatprep.subr.mxu0 0.0
    %4170 = vmatpush1.xpose.msra.mxu0 0.0
    %4171 = vmatprep.subr.mxu0 0.0
    %4172 = vmatpush1.xpose.msra.mxu0 0.0
    %4173 = vmatprep.subr.mxu0 0.0
    %4174 = vmatpush1.xpose.msra.mxu0 0.0
    %4175 = vmatprep.subr.mxu0 0.0
    %4176 = vmatpush1.xpose.msra.mxu0 0.0
    %4177 = vmatprep.subr.mxu0 0.0
    %4178 = vmatpush1.xpose.msra.mxu0 0.0
    %4179 = vmatprep.subr.mxu0 0.0
    %4180 = vmatpush1.xpose.msra.mxu0 0.0
    %4181 = vmatprep.subr.mxu0 0.0
    %4182 = vmatpush1.xpose.msra.mxu0 0.0
    %4183 = vmatprep.subr.mxu0 0.0
    %4184 = vmatpush1.xpose.msra.mxu0 0.0
    %4185 = vmatprep.subr.mxu0 0.0
    %4186 = vmatpush1.xpose.msra.mxu0 0.0
    %4187 = vmatprep.mubr.f32.mxu0 %v883
    %4188 = vmatmul.mubr.f32.gmra.mrb[0].mxu0 %v875
    %v4189 = vpop.f32.mrb[0].mxu0
    %v4190 = vadd.f32 %v4120, %v4189
    %v4191 = vpop.f32.mrb[0].mxu0
    %4192 = vdwg.mxu0
    %4193 = vmatprep.subr.mxu0 %v277
    %4194 = vmatpush1.xpose.msra.mxu0 %v276
    %4195 = vmatprep.subr.mxu0 %v405
    %4196 = vmatpush1.xpose.msra.mxu0 %v404
    %4197 = vmatprep.subr.mxu0 0.0
    %4198 = vmatpush1.xpose.msra.mxu0 0.0
    %4199 = vmatprep.subr.mxu0 0.0
    %4200 = vmatpush1.xpose.msra.mxu0 0.0
    %4201 = vmatprep.subr.mxu0 0.0
    %4202 = vmatpush1.xpose.msra.mxu0 0.0
    %4203 = vmatprep.subr.mxu0 0.0
    %4204 = vmatpush1.xpose.msra.mxu0 0.0
    %4205 = vmatprep.subr.mxu0 0.0
    %4206 = vmatpush1.xpose.msra.mxu0 0.0
    %4207 = vmatprep.subr.mxu0 0.0
    %4208 = vmatpush1.xpose.msra.mxu0 0.0
    %4209 = vmatprep.subr.mxu0 0.0
    %4210 = vmatpush1.xpose.msra.mxu0 0.0
    %4211 = vmatprep.subr.mxu0 0.0
    %4212 = vmatpush1.xpose.msra.mxu0 0.0
    %4213 = vmatprep.subr.mxu0 0.0
    %4214 = vmatpush1.xpose.msra.mxu0 0.0
    %4215 = vmatprep.subr.mxu0 0.0
    %4216 = vmatpush1.xpose.msra.mxu0 0.0
    %4217 = vmatprep.subr.mxu0 0.0
    %4218 = vmatpush1.xpose.msra.mxu0 0.0
    %4219 = vmatprep.subr.mxu0 0.0
    %4220 = vmatpush1.xpose.msra.mxu0 0.0
    %4221 = vmatprep.subr.mxu0 0.0
    %4222 = vmatpush1.xpose.msra.mxu0 0.0
    %4223 = vmatprep.subr.mxu0 0.0
    %4224 = vmatpush1.xpose.msra.mxu0 0.0
    %4225 = vmatprep.subr.mxu0 0.0
    %4226 = vmatpush1.xpose.msra.mxu0 0.0
    %4227 = vmatprep.subr.mxu0 0.0
    %4228 = vmatpush1.xpose.msra.mxu0 0.0
    %4229 = vmatprep.subr.mxu0 0.0
    %4230 = vmatpush1.xpose.msra.mxu0 0.0
    %4231 = vmatprep.subr.mxu0 0.0
    %4232 = vmatpush1.xpose.msra.mxu0 0.0
    %4233 = vmatprep.subr.mxu0 0.0
    %4234 = vmatpush1.xpose.msra.mxu0 0.0
    %4235 = vmatprep.subr.mxu0 0.0
    %4236 = vmatpush1.xpose.msra.mxu0 0.0
    %4237 = vmatprep.subr.mxu0 0.0
    %4238 = vmatpush1.xpose.msra.mxu0 0.0
    %4239 = vmatprep.subr.mxu0 0.0
    %4240 = vmatpush1.xpose.msra.mxu0 0.0
    %4241 = vmatprep.subr.mxu0 0.0
    %4242 = vmatpush1.xpose.msra.mxu0 0.0
    %4243 = vmatprep.subr.mxu0 0.0
    %4244 = vmatpush1.xpose.msra.mxu0 0.0
    %4245 = vmatprep.subr.mxu0 0.0
    %4246 = vmatpush1.xpose.msra.mxu0 0.0
    %4247 = vmatprep.subr.mxu0 0.0
    %4248 = vmatpush1.xpose.msra.mxu0 0.0
    %4249 = vmatprep.subr.mxu0 0.0
    %4250 = vmatpush1.xpose.msra.mxu0 0.0
    %4251 = vmatprep.subr.mxu0 0.0
    %4252 = vmatpush1.xpose.msra.mxu0 0.0
    %4253 = vmatprep.subr.mxu0 0.0
    %4254 = vmatpush1.xpose.msra.mxu0 0.0
    %4255 = vmatprep.subr.mxu0 0.0
    %4256 = vmatpush1.xpose.msra.mxu0 0.0
    %4257 = vmatprep.mubr.f32.mxu0 %v884
    %4258 = vmatmul.mubr.f32.gmra.mrb[0].mxu0 %v882
    %v4259 = vpop.f32.mrb[0].mxu0
    %v4260 = vadd.f32 %v4190, %v4259
    %v4261 = vpop.f32.mrb[0].mxu0
    %4262 = vdwg.mxu0
    %4263 = vmatprep.subr.mxu0 %v279
    %4264 = vmatpush1.xpose.msra.mxu0 %v278
    %4265 = vmatprep.subr.mxu0 %v407
    %4266 = vmatpush1.xpose.msra.mxu0 %v406
    %4267 = vmatprep.subr.mxu0 0.0
    %4268 = vmatpush1.xpose.msra.mxu0 0.0
    %4269 = vmatprep.subr.mxu0 0.0
    %4270 = vmatpush1.xpose.msra.mxu0 0.0
    %4271 = vmatprep.subr.mxu0 0.0
    %4272 = vmatpush1.xpose.msra.mxu0 0.0
    %4273 = vmatprep.subr.mxu0 0.0
    %4274 = vmatpush1.xpose.msra.mxu0 0.0
    %4275 = vmatprep.subr.mxu0 0.0
    %4276 = vmatpush1.xpose.msra.mxu0 0.0
    %4277 = vmatprep.subr.mxu0 0.0
    %4278 = vmatpush1.xpose.msra.mxu0 0.0
    %4279 = vmatprep.subr.mxu0 0.0
    %4280 = vmatpush1.xpose.msra.mxu0 0.0
    %4281 = vmatprep.subr.mxu0 0.0
    %4282 = vmatpush1.xpose.msra.mxu0 0.0
    %4283 = vmatprep.subr.mxu0 0.0
    %4284 = vmatpush1.xpose.msra.mxu0 0.0
    %4285 = vmatprep.subr.mxu0 0.0
    %4286 = vmatpush1.xpose.msra.mxu0 0.0
    %4287 = vmatprep.subr.mxu0 0.0
    %4288 = vmatpush1.xpose.msra.mxu0 0.0
    %4289 = vmatprep.subr.mxu0 0.0
    %4290 = vmatpush1.xpose.msra.mxu0 0.0
    %4291 = vmatprep.subr.mxu0 0.0
    %4292 = vmatpush1.xpose.msra.mxu0 0.0
    %4293 = vmatprep.subr.mxu0 0.0
    %4294 = vmatpush1.xpose.msra.mxu0 0.0
    %4295 = vmatprep.subr.mxu0 0.0
    %4296 = vmatpush1.xpose.msra.mxu0 0.0
    %4297 = vmatprep.subr.mxu0 0.0
    %4298 = vmatpush1.xpose.msra.mxu0 0.0
    %4299 = vmatprep.subr.mxu0 0.0
    %4300 = vmatpush1.xpose.msra.mxu0 0.0
    %4301 = vmatprep.subr.mxu0 0.0
    %4302 = vmatpush1.xpose.msra.mxu0 0.0
    %4303 = vmatprep.subr.mxu0 0.0
    %4304 = vmatpush1.xpose.msra.mxu0 0.0
    %4305 = vmatprep.subr.mxu0 0.0
    %4306 = vmatpush1.xpose.msra.mxu0 0.0
    %4307 = vmatprep.subr.mxu0 0.0
    %4308 = vmatpush1.xpose.msra.mxu0 0.0
    %4309 = vmatprep.subr.mxu0 0.0
    %4310 = vmatpush1.xpose.msra.mxu0 0.0
    %4311 = vmatprep.subr.mxu0 0.0
    %4312 = vmatpush1.xpose.msra.mxu0 0.0
    %4313 = vmatprep.subr.mxu0 0.0
    %4314 = vmatpush1.xpose.msra.mxu0 0.0
    %4315 = vmatprep.subr.mxu0 0.0
    %4316 = vmatpush1.xpose.msra.mxu0 0.0
    %4317 = vmatprep.subr.mxu0 0.0
    %4318 = vmatpush1.xpose.msra.mxu0 0.0
    %4319 = vmatprep.subr.mxu0 0.0
    %4320 = vmatpush1.xpose.msra.mxu0 0.0
    %4321 = vmatprep.subr.mxu0 0.0
    %4322 = vmatpush1.xpose.msra.mxu0 0.0
    %4323 = vmatprep.subr.mxu0 0.0
    %4324 = vmatpush1.xpose.msra.mxu0 0.0
    %4325 = vmatprep.subr.mxu0 0.0
    %4326 = vmatpush1.xpose.msra.mxu0 0.0
    %4327 = vmatprep.mubr.f32.mxu0 %v900
    %4328 = vmatmul.mubr.f32.gmra.mrb[0].mxu0 %v892
    %v4329 = vpop.f32.mrb[0].mxu0
    %v4330 = vadd.f32 %v4260, %v4329
    %v4331 = vpop.f32.mrb[0].mxu0
    %4332 = vdwg.mxu0
    %4333 = vmatprep.subr.mxu0 %v281
    %4334 = vmatpush1.xpose.msra.mxu0 %v280
    %4335 = vmatprep.subr.mxu0 %v409
    %4336 = vmatpush1.xpose.msra.mxu0 %v408
    %4337 = vmatprep.subr.mxu0 0.0
    %4338 = vmatpush1.xpose.msra.mxu0 0.0
    %4339 = vmatprep.subr.mxu0 0.0
    %4340 = vmatpush1.xpose.msra.mxu0 0.0
    %4341 = vmatprep.subr.mxu0 0.0
    %4342 = vmatpush1.xpose.msra.mxu0 0.0
    %4343 = vmatprep.subr.mxu0 0.0
    %4344 = vmatpush1.xpose.msra.mxu0 0.0
    %4345 = vmatprep.subr.mxu0 0.0
    %4346 = vmatpush1.xpose.msra.mxu0 0.0
    %4347 = vmatprep.subr.mxu0 0.0
    %4348 = vmatpush1.xpose.msra.mxu0 0.0
    %4349 = vmatprep.subr.mxu0 0.0
    %4350 = vmatpush1.xpose.msra.mxu0 0.0
    %4351 = vmatprep.subr.mxu0 0.0
    %4352 = vmatpush1.xpose.msra.mxu0 0.0
    %4353 = vmatprep.subr.mxu0 0.0
    %4354 = vmatpush1.xpose.msra.mxu0 0.0
    %4355 = vmatprep.subr.mxu0 0.0
    %4356 = vmatpush1.xpose.msra.mxu0 0.0
    %4357 = vmatprep.subr.mxu0 0.0
    %4358 = vmatpush1.xpose.msra.mxu0 0.0
    %4359 = vmatprep.subr.mxu0 0.0
    %4360 = vmatpush1.xpose.msra.mxu0 0.0
    %4361 = vmatprep.subr.mxu0 0.0
    %4362 = vmatpush1.xpose.msra.mxu0 0.0
    %4363 = vmatprep.subr.mxu0 0.0
    %4364 = vmatpush1.xpose.msra.mxu0 0.0
    %4365 = vmatprep.subr.mxu0 0.0
    %4366 = vmatpush1.xpose.msra.mxu0 0.0
    %4367 = vmatprep.subr.mxu0 0.0
    %4368 = vmatpush1.xpose.msra.mxu0 0.0
    %4369 = vmatprep.subr.mxu0 0.0
    %4370 = vmatpush1.xpose.msra.mxu0 0.0
    %4371 = vmatprep.subr.mxu0 0.0
    %4372 = vmatpush1.xpose.msra.mxu0 0.0
    %4373 = vmatprep.subr.mxu0 0.0
    %4374 = vmatpush1.xpose.msra.mxu0 0.0
    %4375 = vmatprep.subr.mxu0 0.0
    %4376 = vmatpush1.xpose.msra.mxu0 0.0
    %4377 = vmatprep.subr.mxu0 0.0
    %4378 = vmatpush1.xpose.msra.mxu0 0.0
    %4379 = vmatprep.subr.mxu0 0.0
    %4380 = vmatpush1.xpose.msra.mxu0 0.0
    %4381 = vmatprep.subr.mxu0 0.0
    %4382 = vmatpush1.xpose.msra.mxu0 0.0
    %4383 = vmatprep.subr.mxu0 0.0
    %4384 = vmatpush1.xpose.msra.mxu0 0.0
    %4385 = vmatprep.subr.mxu0 0.0
    %4386 = vmatpush1.xpose.msra.mxu0 0.0
    %4387 = vmatprep.subr.mxu0 0.0
    %4388 = vmatpush1.xpose.msra.mxu0 0.0
    %4389 = vmatprep.subr.mxu0 0.0
    %4390 = vmatpush1.xpose.msra.mxu0 0.0
    %4391 = vmatprep.subr.mxu0 0.0
    %4392 = vmatpush1.xpose.msra.mxu0 0.0
    %4393 = vmatprep.subr.mxu0 0.0
    %4394 = vmatpush1.xpose.msra.mxu0 0.0
    %4395 = vmatprep.subr.mxu0 0.0
    %4396 = vmatpush1.xpose.msra.mxu0 0.0
    %4397 = vmatprep.mubr.f32.mxu0 %v901
    %4398 = vmatmul.mubr.f32.gmra.mrb[0].mxu0 %v899
    %v4399 = vpop.f32.mrb[0].mxu0
    %v4400 = vadd.f32 %v4330, %v4399
    %v4401 = vpop.f32.mrb[0].mxu0
    %4402 = vdwg.mxu0
    %4403 = vmatprep.subr.mxu0 %v283
    %4404 = vmatpush1.xpose.msra.mxu0 %v282
    %4405 = vmatprep.subr.mxu0 %v411
    %4406 = vmatpush1.xpose.msra.mxu0 %v410
    %4407 = vmatprep.subr.mxu0 0.0
    %4408 = vmatpush1.xpose.msra.mxu0 0.0
    %4409 = vmatprep.subr.mxu0 0.0
    %4410 = vmatpush1.xpose.msra.mxu0 0.0
    %4411 = vmatprep.subr.mxu0 0.0
    %4412 = vmatpush1.xpose.msra.mxu0 0.0
    %4413 = vmatprep.subr.mxu0 0.0
    %4414 = vmatpush1.xpose.msra.mxu0 0.0
    %4415 = vmatprep.subr.mxu0 0.0
    %4416 = vmatpush1.xpose.msra.mxu0 0.0
    %4417 = vmatprep.subr.mxu0 0.0
    %4418 = vmatpush1.xpose.msra.mxu0 0.0
    %4419 = vmatprep.subr.mxu0 0.0
    %4420 = vmatpush1.xpose.msra.mxu0 0.0
    %4421 = vmatprep.subr.mxu0 0.0
    %4422 = vmatpush1.xpose.msra.mxu0 0.0
    %4423 = vmatprep.subr.mxu0 0.0
    %4424 = vmatpush1.xpose.msra.mxu0 0.0
    %4425 = vmatprep.subr.mxu0 0.0
    %4426 = vmatpush1.xpose.msra.mxu0 0.0
    %4427 = vmatprep.subr.mxu0 0.0
    %4428 = vmatpush1.xpose.msra.mxu0 0.0
    %4429 = vmatprep.subr.mxu0 0.0
    %4430 = vmatpush1.xpose.msra.mxu0 0.0
    %4431 = vmatprep.subr.mxu0 0.0
    %4432 = vmatpush1.xpose.msra.mxu0 0.0
    %4433 = vmatprep.subr.mxu0 0.0
    %4434 = vmatpush1.xpose.msra.mxu0 0.0
    %4435 = vmatprep.subr.mxu0 0.0
    %4436 = vmatpush1.xpose.msra.mxu0 0.0
    %4437 = vmatprep.subr.mxu0 0.0
    %4438 = vmatpush1.xpose.msra.mxu0 0.0
    %4439 = vmatprep.subr.mxu0 0.0
    %4440 = vmatpush1.xpose.msra.mxu0 0.0
    %4441 = vmatprep.subr.mxu0 0.0
    %4442 = vmatpush1.xpose.msra.mxu0 0.0
    %4443 = vmatprep.subr.mxu0 0.0
    %4444 = vmatpush1.xpose.msra.mxu0 0.0
    %4445 = vmatprep.subr.mxu0 0.0
    %4446 = vmatpush1.xpose.msra.mxu0 0.0
    %4447 = vmatprep.subr.mxu0 0.0
    %4448 = vmatpush1.xpose.msra.mxu0 0.0
    %4449 = vmatprep.subr.mxu0 0.0
    %4450 = vmatpush1.xpose.msra.mxu0 0.0
    %4451 = vmatprep.subr.mxu0 0.0
    %4452 = vmatpush1.xpose.msra.mxu0 0.0
    %4453 = vmatprep.subr.mxu0 0.0
    %4454 = vmatpush1.xpose.msra.mxu0 0.0
    %4455 = vmatprep.subr.mxu0 0.0
    %4456 = vmatpush1.xpose.msra.mxu0 0.0
    %4457 = vmatprep.subr.mxu0 0.0
    %4458 = vmatpush1.xpose.msra.mxu0 0.0
    %4459 = vmatprep.subr.mxu0 0.0
    %4460 = vmatpush1.xpose.msra.mxu0 0.0
    %4461 = vmatprep.subr.mxu0 0.0
    %4462 = vmatpush1.xpose.msra.mxu0 0.0
    %4463 = vmatprep.subr.mxu0 0.0
    %4464 = vmatpush1.xpose.msra.mxu0 0.0
    %4465 = vmatprep.subr.mxu0 0.0
    %4466 = vmatpush1.xpose.msra.mxu0 0.0
    %4467 = vmatprep.mubr.f32.mxu0 %v917
    %4468 = vmatmul.mubr.f32.gmra.mrb[0].mxu0 %v909
    %v4469 = vpop.f32.mrb[0].mxu0
    %v4470 = vadd.f32 %v4400, %v4469
    %v4471 = vpop.f32.mrb[0].mxu0
    %4472 = vdwg.mxu0
    %4473 = vmatprep.subr.mxu0 %v285
    %4474 = vmatpush1.xpose.msra.mxu0 %v284
    %4475 = vmatprep.subr.mxu0 %v413
    %4476 = vmatpush1.xpose.msra.mxu0 %v412
    %4477 = vmatprep.subr.mxu0 0.0
    %4478 = vmatpush1.xpose.msra.mxu0 0.0
    %4479 = vmatprep.subr.mxu0 0.0
    %4480 = vmatpush1.xpose.msra.mxu0 0.0
    %4481 = vmatprep.subr.mxu0 0.0
    %4482 = vmatpush1.xpose.msra.mxu0 0.0
    %4483 = vmatprep.subr.mxu0 0.0
    %4484 = vmatpush1.xpose.msra.mxu0 0.0
    %4485 = vmatprep.subr.mxu0 0.0
    %4486 = vmatpush1.xpose.msra.mxu0 0.0
    %4487 = vmatprep.subr.mxu0 0.0
    %4488 = vmatpush1.xpose.msra.mxu0 0.0
    %4489 = vmatprep.subr.mxu0 0.0
    %4490 = vmatpush1.xpose.msra.mxu0 0.0
    %4491 = vmatprep.subr.mxu0 0.0
    %4492 = vmatpush1.xpose.msra.mxu0 0.0
    %4493 = vmatprep.subr.mxu0 0.0
    %4494 = vmatpush1.xpose.msra.mxu0 0.0
    %4495 = vmatprep.subr.mxu0 0.0
    %4496 = vmatpush1.xpose.msra.mxu0 0.0
    %4497 = vmatprep.subr.mxu0 0.0
    %4498 = vmatpush1.xpose.msra.mxu0 0.0
    %4499 = vmatprep.subr.mxu0 0.0
    %4500 = vmatpush1.xpose.msra.mxu0 0.0
    %4501 = vmatprep.subr.mxu0 0.0
    %4502 = vmatpush1.xpose.msra.mxu0 0.0
    %4503 = vmatprep.subr.mxu0 0.0
    %4504 = vmatpush1.xpose.msra.mxu0 0.0
    %4505 = vmatprep.subr.mxu0 0.0
    %4506 = vmatpush1.xpose.msra.mxu0 0.0
    %4507 = vmatprep.subr.mxu0 0.0
    %4508 = vmatpush1.xpose.msra.mxu0 0.0
    %4509 = vmatprep.subr.mxu0 0.0
    %4510 = vmatpush1.xpose.msra.mxu0 0.0
    %4511 = vmatprep.subr.mxu0 0.0
    %4512 = vmatpush1.xpose.msra.mxu0 0.0
    %4513 = vmatprep.subr.mxu0 0.0
    %4514 = vmatpush1.xpose.msra.mxu0 0.0
    %4515 = vmatprep.subr.mxu0 0.0
    %4516 = vmatpush1.xpose.msra.mxu0 0.0
    %4517 = vmatprep.subr.mxu0 0.0
    %4518 = vmatpush1.xpose.msra.mxu0 0.0
    %4519 = vmatprep.subr.mxu0 0.0
    %4520 = vmatpush1.xpose.msra.mxu0 0.0
    %4521 = vmatprep.subr.mxu0 0.0
    %4522 = vmatpush1.xpose.msra.mxu0 0.0
    %4523 = vmatprep.subr.mxu0 0.0
    %4524 = vmatpush1.xpose.msra.mxu0 0.0
    %4525 = vmatprep.subr.mxu0 0.0
    %4526 = vmatpush1.xpose.msra.mxu0 0.0
    %4527 = vmatprep.subr.mxu0 0.0
    %4528 = vmatpush1.xpose.msra.mxu0 0.0
    %4529 = vmatprep.subr.mxu0 0.0
    %4530 = vmatpush1.xpose.msra.mxu0 0.0
    %4531 = vmatprep.subr.mxu0 0.0
    %4532 = vmatpush1.xpose.msra.mxu0 0.0
    %4533 = vmatprep.subr.mxu0 0.0
    %4534 = vmatpush1.xpose.msra.mxu0 0.0
    %4535 = vmatprep.subr.mxu0 0.0
    %4536 = vmatpush1.xpose.msra.mxu0 0.0
    %4537 = vmatprep.mubr.f32.mxu0 %v918
    %4538 = vmatmul.mubr.f32.gmra.mrb[0].mxu0 %v916
    %v4539 = vpop.f32.mrb[0].mxu0
    %v4540 = vadd.f32 %v4470, %v4539
    %v4541 = vpop.f32.mrb[0].mxu0
    %4542 = vdwg.mxu0
    %4543 = vmatprep.subr.mxu0 %v287
    %4544 = vmatpush1.xpose.msra.mxu0 %v286
    %4545 = vmatprep.subr.mxu0 %v415
    %4546 = vmatpush1.xpose.msra.mxu0 %v414
    %4547 = vmatprep.subr.mxu0 0.0
    %4548 = vmatpush1.xpose.msra.mxu0 0.0
    %4549 = vmatprep.subr.mxu0 0.0
    %4550 = vmatpush1.xpose.msra.mxu0 0.0
    %4551 = vmatprep.subr.mxu0 0.0
    %4552 = vmatpush1.xpose.msra.mxu0 0.0
    %4553 = vmatprep.subr.mxu0 0.0
    %4554 = vmatpush1.xpose.msra.mxu0 0.0
    %4555 = vmatprep.subr.mxu0 0.0
    %4556 = vmatpush1.xpose.msra.mxu0 0.0
    %4557 = vmatprep.subr.mxu0 0.0
    %4558 = vmatpush1.xpose.msra.mxu0 0.0
    %4559 = vmatprep.subr.mxu0 0.0
    %4560 = vmatpush1.xpose.msra.mxu0 0.0
    %4561 = vmatprep.subr.mxu0 0.0
    %4562 = vmatpush1.xpose.msra.mxu0 0.0
    %4563 = vmatprep.subr.mxu0 0.0
    %4564 = vmatpush1.xpose.msra.mxu0 0.0
    %4565 = vmatprep.subr.mxu0 0.0
    %4566 = vmatpush1.xpose.msra.mxu0 0.0
    %4567 = vmatprep.subr.mxu0 0.0
    %4568 = vmatpush1.xpose.msra.mxu0 0.0
    %4569 = vmatprep.subr.mxu0 0.0
    %4570 = vmatpush1.xpose.msra.mxu0 0.0
    %4571 = vmatprep.subr.mxu0 0.0
    %4572 = vmatpush1.xpose.msra.mxu0 0.0
    %4573 = vmatprep.subr.mxu0 0.0
    %4574 = vmatpush1.xpose.msra.mxu0 0.0
    %4575 = vmatprep.subr.mxu0 0.0
    %4576 = vmatpush1.xpose.msra.mxu0 0.0
    %4577 = vmatprep.subr.mxu0 0.0
    %4578 = vmatpush1.xpose.msra.mxu0 0.0
    %4579 = vmatprep.subr.mxu0 0.0
    %4580 = vmatpush1.xpose.msra.mxu0 0.0
    %4581 = vmatprep.subr.mxu0 0.0
    %4582 = vmatpush1.xpose.msra.mxu0 0.0
    %4583 = vmatprep.subr.mxu0 0.0
    %4584 = vmatpush1.xpose.msra.mxu0 0.0
    %4585 = vmatprep.subr.mxu0 0.0
    %4586 = vmatpush1.xpose.msra.mxu0 0.0
    %4587 = vmatprep.subr.mxu0 0.0
    %4588 = vmatpush1.xpose.msra.mxu0 0.0
    %4589 = vmatprep.subr.mxu0 0.0
    %4590 = vmatpush1.xpose.msra.mxu0 0.0
    %4591 = vmatprep.subr.mxu0 0.0
    %4592 = vmatpush1.xpose.msra.mxu0 0.0
    %4593 = vmatprep.subr.mxu0 0.0
    %4594 = vmatpush1.xpose.msra.mxu0 0.0
    %4595 = vmatprep.subr.mxu0 0.0
    %4596 = vmatpush1.xpose.msra.mxu0 0.0
    %4597 = vmatprep.subr.mxu0 0.0
    %4598 = vmatpush1.xpose.msra.mxu0 0.0
    %4599 = vmatprep.subr.mxu0 0.0
    %4600 = vmatpush1.xpose.msra.mxu0 0.0
    %4601 = vmatprep.subr.mxu0 0.0
    %4602 = vmatpush1.xpose.msra.mxu0 0.0
    %4603 = vmatprep.subr.mxu0 0.0
    %4604 = vmatpush1.xpose.msra.mxu0 0.0
    %4605 = vmatprep.subr.mxu0 0.0
    %4606 = vmatpush1.xpose.msra.mxu0 0.0
    %4607 = vmatprep.mubr.f32.mxu0 %v934
    %4608 = vmatmul.mubr.f32.gmra.mrb[0].mxu0 %v926
    %v4609 = vpop.f32.mrb[0].mxu0
    %v4610 = vadd.f32 %v4540, %v4609
    %v4611 = vpop.f32.mrb[0].mxu0
    %4612 = vdwg.mxu0
    %4613 = vmatprep.subr.mxu0 %v289
    %4614 = vmatpush1.xpose.msra.mxu0 %v288
    %4615 = vmatprep.subr.mxu0 %v417
    %4616 = vmatpush1.xpose.msra.mxu0 %v416
    %4617 = vmatprep.subr.mxu0 0.0
    %4618 = vmatpush1.xpose.msra.mxu0 0.0
    %4619 = vmatprep.subr.mxu0 0.0
    %4620 = vmatpush1.xpose.msra.mxu0 0.0
    %4621 = vmatprep.subr.mxu0 0.0
    %4622 = vmatpush1.xpose.msra.mxu0 0.0
    %4623 = vmatprep.subr.mxu0 0.0
    %4624 = vmatpush1.xpose.msra.mxu0 0.0
    %4625 = vmatprep.subr.mxu0 0.0
    %4626 = vmatpush1.xpose.msra.mxu0 0.0
    %4627 = vmatprep.subr.mxu0 0.0
    %4628 = vmatpush1.xpose.msra.mxu0 0.0
    %4629 = vmatprep.subr.mxu0 0.0
    %4630 = vmatpush1.xpose.msra.mxu0 0.0
    %4631 = vmatprep.subr.mxu0 0.0
    %4632 = vmatpush1.xpose.msra.mxu0 0.0
    %4633 = vmatprep.subr.mxu0 0.0
    %4634 = vmatpush1.xpose.msra.mxu0 0.0
    %4635 = vmatprep.subr.mxu0 0.0
    %4636 = vmatpush1.xpose.msra.mxu0 0.0
    %4637 = vmatprep.subr.mxu0 0.0
    %4638 = vmatpush1.xpose.msra.mxu0 0.0
    %4639 = vmatprep.subr.mxu0 0.0
    %4640 = vmatpush1.xpose.msra.mxu0 0.0
    %4641 = vmatprep.subr.mxu0 0.0
    %4642 = vmatpush1.xpose.msra.mxu0 0.0
    %4643 = vmatprep.subr.mxu0 0.0
    %4644 = vmatpush1.xpose.msra.mxu0 0.0
    %4645 = vmatprep.subr.mxu0 0.0
    %4646 = vmatpush1.xpose.msra.mxu0 0.0
    %4647 = vmatprep.subr.mxu0 0.0
    %4648 = vmatpush1.xpose.msra.mxu0 0.0
    %4649 = vmatprep.subr.mxu0 0.0
    %4650 = vmatpush1.xpose.msra.mxu0 0.0
    %4651 = vmatprep.subr.mxu0 0.0
    %4652 = vmatpush1.xpose.msra.mxu0 0.0
    %4653 = vmatprep.subr.mxu0 0.0
    %4654 = vmatpush1.xpose.msra.mxu0 0.0
    %4655 = vmatprep.subr.mxu0 0.0
    %4656 = vmatpush1.xpose.msra.mxu0 0.0
    %4657 = vmatprep.subr.mxu0 0.0
    %4658 = vmatpush1.xpose.msra.mxu0 0.0
    %4659 = vmatprep.subr.mxu0 0.0
    %4660 = vmatpush1.xpose.msra.mxu0 0.0
    %4661 = vmatprep.subr.mxu0 0.0
    %4662 = vmatpush1.xpose.msra.mxu0 0.0
    %4663 = vmatprep.subr.mxu0 0.0
    %4664 = vmatpush1.xpose.msra.mxu0 0.0
    %4665 = vmatprep.subr.mxu0 0.0
    %4666 = vmatpush1.xpose.msra.mxu0 0.0
    %4667 = vmatprep.subr.mxu0 0.0
    %4668 = vmatpush1.xpose.msra.mxu0 0.0
    %4669 = vmatprep.subr.mxu0 0.0
    %4670 = vmatpush1.xpose.msra.mxu0 0.0
    %4671 = vmatprep.subr.mxu0 0.0
    %4672 = vmatpush1.xpose.msra.mxu0 0.0
    %4673 = vmatprep.subr.mxu0 0.0
    %4674 = vmatpush1.xpose.msra.mxu0 0.0
    %4675 = vmatprep.subr.mxu0 0.0
    %4676 = vmatpush1.xpose.msra.mxu0 0.0
    %4677 = vmatprep.mubr.f32.mxu0 %v935
    %4678 = vmatmul.mubr.f32.gmra.mrb[0].mxu0 %v933
    %v4679 = vpop.f32.mrb[0].mxu0
    %v4680 = vadd.f32 %v4610, %v4679
    %v4681 = vpop.f32.mrb[0].mxu0
    %4682 = vdwg.mxu0
    %4683 = vmatprep.subr.mxu0 %v291
    %4684 = vmatpush1.xpose.msra.mxu0 %v290
    %4685 = vmatprep.subr.mxu0 %v419
    %4686 = vmatpush1.xpose.msra.mxu0 %v418
    %4687 = vmatprep.subr.mxu0 0.0
    %4688 = vmatpush1.xpose.msra.mxu0 0.0
    %4689 = vmatprep.subr.mxu0 0.0
    %4690 = vmatpush1.xpose.msra.mxu0 0.0
    %4691 = vmatprep.subr.mxu0 0.0
    %4692 = vmatpush1.xpose.msra.mxu0 0.0
    %4693 = vmatprep.subr.mxu0 0.0
    %4694 = vmatpush1.xpose.msra.mxu0 0.0
    %4695 = vmatprep.subr.mxu0 0.0
    %4696 = vmatpush1.xpose.msra.mxu0 0.0
    %4697 = vmatprep.subr.mxu0 0.0
    %4698 = vmatpush1.xpose.msra.mxu0 0.0
    %4699 = vmatprep.subr.mxu0 0.0
    %4700 = vmatpush1.xpose.msra.mxu0 0.0
    %4701 = vmatprep.subr.mxu0 0.0
    %4702 = vmatpush1.xpose.msra.mxu0 0.0
    %4703 = vmatprep.subr.mxu0 0.0
    %4704 = vmatpush1.xpose.msra.mxu0 0.0
    %4705 = vmatprep.subr.mxu0 0.0
    %4706 = vmatpush1.xpose.msra.mxu0 0.0
    %4707 = vmatprep.subr.mxu0 0.0
    %4708 = vmatpush1.xpose.msra.mxu0 0.0
    %4709 = vmatprep.subr.mxu0 0.0
    %4710 = vmatpush1.xpose.msra.mxu0 0.0
    %4711 = vmatprep.subr.mxu0 0.0
    %4712 = vmatpush1.xpose.msra.mxu0 0.0
    %4713 = vmatprep.subr.mxu0 0.0
    %4714 = vmatpush1.xpose.msra.mxu0 0.0
    %4715 = vmatprep.subr.mxu0 0.0
    %4716 = vmatpush1.xpose.msra.mxu0 0.0
    %4717 = vmatprep.subr.mxu0 0.0
    %4718 = vmatpush1.xpose.msra.mxu0 0.0
    %4719 = vmatprep.subr.mxu0 0.0
    %4720 = vmatpush1.xpose.msra.mxu0 0.0
    %4721 = vmatprep.subr.mxu0 0.0
    %4722 = vmatpush1.xpose.msra.mxu0 0.0
    %4723 = vmatprep.subr.mxu0 0.0
    %4724 = vmatpush1.xpose.msra.mxu0 0.0
    %4725 = vmatprep.subr.mxu0 0.0
    %4726 = vmatpush1.xpose.msra.mxu0 0.0
    %4727 = vmatprep.subr.mxu0 0.0
    %4728 = vmatpush1.xpose.msra.mxu0 0.0
    %4729 = vmatprep.subr.mxu0 0.0
    %4730 = vmatpush1.xpose.msra.mxu0 0.0
    %4731 = vmatprep.subr.mxu0 0.0
    %4732 = vmatpush1.xpose.msra.mxu0 0.0
    %4733 = vmatprep.subr.mxu0 0.0
    %4734 = vmatpush1.xpose.msra.mxu0 0.0
    %4735 = vmatprep.subr.mxu0 0.0
    %4736 = vmatpush1.xpose.msra.mxu0 0.0
    %4737 = vmatprep.subr.mxu0 0.0
    %4738 = vmatpush1.xpose.msra.mxu0 0.0
    %4739 = vmatprep.subr.mxu0 0.0
    %4740 = vmatpush1.xpose.msra.mxu0 0.0
    %4741 = vmatprep.subr.mxu0 0.0
    %4742 = vmatpush1.xpose.msra.mxu0 0.0
    %4743 = vmatprep.subr.mxu0 0.0
    %4744 = vmatpush1.xpose.msra.mxu0 0.0
    %4745 = vmatprep.subr.mxu0 0.0
    %4746 = vmatpush1.xpose.msra.mxu0 0.0
    %4747 = vmatprep.mubr.f32.mxu0 %v951
    %4748 = vmatmul.mubr.f32.gmra.mrb[0].mxu0 %v943
    %v4749 = vpop.f32.mrb[0].mxu0
    %v4750 = vadd.f32 %v4680, %v4749
    %v4751 = vpop.f32.mrb[0].mxu0
    %4752 = vdwg.mxu0
    %4753 = vmatprep.subr.mxu0 %v293
    %4754 = vmatpush1.xpose.msra.mxu0 %v292
    %4755 = vmatprep.subr.mxu0 %v421
    %4756 = vmatpush1.xpose.msra.mxu0 %v420
    %4757 = vmatprep.subr.mxu0 0.0
    %4758 = vmatpush1.xpose.msra.mxu0 0.0
    %4759 = vmatprep.subr.mxu0 0.0
    %4760 = vmatpush1.xpose.msra.mxu0 0.0
    %4761 = vmatprep.subr.mxu0 0.0
    %4762 = vmatpush1.xpose.msra.mxu0 0.0
    %4763 = vmatprep.subr.mxu0 0.0
    %4764 = vmatpush1.xpose.msra.mxu0 0.0
    %4765 = vmatprep.subr.mxu0 0.0
    %4766 = vmatpush1.xpose.msra.mxu0 0.0
    %4767 = vmatprep.subr.mxu0 0.0
    %4768 = vmatpush1.xpose.msra.mxu0 0.0
    %4769 = vmatprep.subr.mxu0 0.0
    %4770 = vmatpush1.xpose.msra.mxu0 0.0
    %4771 = vmatprep.subr.mxu0 0.0
    %4772 = vmatpush1.xpose.msra.mxu0 0.0
    %4773 = vmatprep.subr.mxu0 0.0
    %4774 = vmatpush1.xpose.msra.mxu0 0.0
    %4775 = vmatprep.subr.mxu0 0.0
    %4776 = vmatpush1.xpose.msra.mxu0 0.0
    %4777 = vmatprep.subr.mxu0 0.0
    %4778 = vmatpush1.xpose.msra.mxu0 0.0
    %4779 = vmatprep.subr.mxu0 0.0
    %4780 = vmatpush1.xpose.msra.mxu0 0.0
    %4781 = vmatprep.subr.mxu0 0.0
    %4782 = vmatpush1.xpose.msra.mxu0 0.0
    %4783 = vmatprep.subr.mxu0 0.0
    %4784 = vmatpush1.xpose.msra.mxu0 0.0
    %4785 = vmatprep.subr.mxu0 0.0
    %4786 = vmatpush1.xpose.msra.mxu0 0.0
    %4787 = vmatprep.subr.mxu0 0.0
    %4788 = vmatpush1.xpose.msra.mxu0 0.0
    %4789 = vmatprep.subr.mxu0 0.0
    %4790 = vmatpush1.xpose.msra.mxu0 0.0
    %4791 = vmatprep.subr.mxu0 0.0
    %4792 = vmatpush1.xpose.msra.mxu0 0.0
    %4793 = vmatprep.subr.mxu0 0.0
    %4794 = vmatpush1.xpose.msra.mxu0 0.0
    %4795 = vmatprep.subr.mxu0 0.0
    %4796 = vmatpush1.xpose.msra.mxu0 0.0
    %4797 = vmatprep.subr.mxu0 0.0
    %4798 = vmatpush1.xpose.msra.mxu0 0.0
    %4799 = vmatprep.subr.mxu0 0.0
    %4800 = vmatpush1.xpose.msra.mxu0 0.0
    %4801 = vmatprep.subr.mxu0 0.0
    %4802 = vmatpush1.xpose.msra.mxu0 0.0
    %4803 = vmatprep.subr.mxu0 0.0
    %4804 = vmatpush1.xpose.msra.mxu0 0.0
    %4805 = vmatprep.subr.mxu0 0.0
    %4806 = vmatpush1.xpose.msra.mxu0 0.0
    %4807 = vmatprep.subr.mxu0 0.0
    %4808 = vmatpush1.xpose.msra.mxu0 0.0
    %4809 = vmatprep.subr.mxu0 0.0
    %4810 = vmatpush1.xpose.msra.mxu0 0.0
    %4811 = vmatprep.subr.mxu0 0.0
    %4812 = vmatpush1.xpose.msra.mxu0 0.0
    %4813 = vmatprep.subr.mxu0 0.0
    %4814 = vmatpush1.xpose.msra.mxu0 0.0
    %4815 = vmatprep.subr.mxu0 0.0
    %4816 = vmatpush1.xpose.msra.mxu0 0.0
    %4817 = vmatprep.mubr.f32.mxu0 %v952
    %4818 = vmatmul.mubr.f32.gmra.mrb[0].mxu0 %v950
    %v4819 = vpop.f32.mrb[0].mxu0
    %v4820 = vadd.f32 %v4750, %v4819
    %v4821 = vpop.f32.mrb[0].mxu0
    %4822 = vdwg.mxu0
    %4823 = vmatprep.subr.mxu0 %v295
    %4824 = vmatpush1.xpose.msra.mxu0 %v294
    %4825 = vmatprep.subr.mxu0 %v423
    %4826 = vmatpush1.xpose.msra.mxu0 %v422
    %4827 = vmatprep.subr.mxu0 0.0
    %4828 = vmatpush1.xpose.msra.mxu0 0.0
    %4829 = vmatprep.subr.mxu0 0.0
    %4830 = vmatpush1.xpose.msra.mxu0 0.0
    %4831 = vmatprep.subr.mxu0 0.0
    %4832 = vmatpush1.xpose.msra.mxu0 0.0
    %4833 = vmatprep.subr.mxu0 0.0
    %4834 = vmatpush1.xpose.msra.mxu0 0.0
    %4835 = vmatprep.subr.mxu0 0.0
    %4836 = vmatpush1.xpose.msra.mxu0 0.0
    %4837 = vmatprep.subr.mxu0 0.0
    %4838 = vmatpush1.xpose.msra.mxu0 0.0
    %4839 = vmatprep.subr.mxu0 0.0
    %4840 = vmatpush1.xpose.msra.mxu0 0.0
    %4841 = vmatprep.subr.mxu0 0.0
    %4842 = vmatpush1.xpose.msra.mxu0 0.0
    %4843 = vmatprep.subr.mxu0 0.0
    %4844 = vmatpush1.xpose.msra.mxu0 0.0
    %4845 = vmatprep.subr.mxu0 0.0
    %4846 = vmatpush1.xpose.msra.mxu0 0.0
    %4847 = vmatprep.subr.mxu0 0.0
    %4848 = vmatpush1.xpose.msra.mxu0 0.0
    %4849 = vmatprep.subr.mxu0 0.0
    %4850 = vmatpush1.xpose.msra.mxu0 0.0
    %4851 = vmatprep.subr.mxu0 0.0
    %4852 = vmatpush1.xpose.msra.mxu0 0.0
    %4853 = vmatprep.subr.mxu0 0.0
    %4854 = vmatpush1.xpose.msra.mxu0 0.0
    %4855 = vmatprep.subr.mxu0 0.0
    %4856 = vmatpush1.xpose.msra.mxu0 0.0
    %4857 = vmatprep.subr.mxu0 0.0
    %4858 = vmatpush1.xpose.msra.mxu0 0.0
    %4859 = vmatprep.subr.mxu0 0.0
    %4860 = vmatpush1.xpose.msra.mxu0 0.0
    %4861 = vmatprep.subr.mxu0 0.0
    %4862 = vmatpush1.xpose.msra.mxu0 0.0
    %4863 = vmatprep.subr.mxu0 0.0
    %4864 = vmatpush1.xpose.msra.mxu0 0.0
    %4865 = vmatprep.subr.mxu0 0.0
    %4866 = vmatpush1.xpose.msra.mxu0 0.0
    %4867 = vmatprep.subr.mxu0 0.0
    %4868 = vmatpush1.xpose.msra.mxu0 0.0
    %4869 = vmatprep.subr.mxu0 0.0
    %4870 = vmatpush1.xpose.msra.mxu0 0.0
    %4871 = vmatprep.subr.mxu0 0.0
    %4872 = vmatpush1.xpose.msra.mxu0 0.0
    %4873 = vmatprep.subr.mxu0 0.0
    %4874 = vmatpush1.xpose.msra.mxu0 0.0
    %4875 = vmatprep.subr.mxu0 0.0
    %4876 = vmatpush1.xpose.msra.mxu0 0.0
    %4877 = vmatprep.subr.mxu0 0.0
    %4878 = vmatpush1.xpose.msra.mxu0 0.0
    %4879 = vmatprep.subr.mxu0 0.0
    %4880 = vmatpush1.xpose.msra.mxu0 0.0
    %4881 = vmatprep.subr.mxu0 0.0
    %4882 = vmatpush1.xpose.msra.mxu0 0.0
    %4883 = vmatprep.subr.mxu0 0.0
    %4884 = vmatpush1.xpose.msra.mxu0 0.0
    %4885 = vmatprep.subr.mxu0 0.0
    %4886 = vmatpush1.xpose.msra.mxu0 0.0
    %4887 = vmatprep.mubr.f32.mxu0 %v968
    %4888 = vmatmul.mubr.f32.gmra.mrb[0].mxu0 %v960
    %v4889 = vpop.f32.mrb[0].mxu0
    %v4890 = vadd.f32 %v4820, %v4889
    %v4891 = vpop.f32.mrb[0].mxu0
    %4892 = vdwg.mxu0
    %4893 = vmatprep.subr.mxu0 %v297
    %4894 = vmatpush1.xpose.msra.mxu0 %v296
    %4895 = vmatprep.subr.mxu0 %v425
    %4896 = vmatpush1.xpose.msra.mxu0 %v424
    %4897 = vmatprep.subr.mxu0 0.0
    %4898 = vmatpush1.xpose.msra.mxu0 0.0
    %4899 = vmatprep.subr.mxu0 0.0
    %4900 = vmatpush1.xpose.msra.mxu0 0.0
    %4901 = vmatprep.subr.mxu0 0.0
    %4902 = vmatpush1.xpose.msra.mxu0 0.0
    %4903 = vmatprep.subr.mxu0 0.0
    %4904 = vmatpush1.xpose.msra.mxu0 0.0
    %4905 = vmatprep.subr.mxu0 0.0
    %4906 = vmatpush1.xpose.msra.mxu0 0.0
    %4907 = vmatprep.subr.mxu0 0.0
    %4908 = vmatpush1.xpose.msra.mxu0 0.0
    %4909 = vmatprep.subr.mxu0 0.0
    %4910 = vmatpush1.xpose.msra.mxu0 0.0
    %4911 = vmatprep.subr.mxu0 0.0
    %4912 = vmatpush1.xpose.msra.mxu0 0.0
    %4913 = vmatprep.subr.mxu0 0.0
    %4914 = vmatpush1.xpose.msra.mxu0 0.0
    %4915 = vmatprep.subr.mxu0 0.0
    %4916 = vmatpush1.xpose.msra.mxu0 0.0
    %4917 = vmatprep.subr.mxu0 0.0
    %4918 = vmatpush1.xpose.msra.mxu0 0.0
    %4919 = vmatprep.subr.mxu0 0.0
    %4920 = vmatpush1.xpose.msra.mxu0 0.0
    %4921 = vmatprep.subr.mxu0 0.0
    %4922 = vmatpush1.xpose.msra.mxu0 0.0
    %4923 = vmatprep.subr.mxu0 0.0
    %4924 = vmatpush1.xpose.msra.mxu0 0.0
    %4925 = vmatprep.subr.mxu0 0.0
    %4926 = vmatpush1.xpose.msra.mxu0 0.0
    %4927 = vmatprep.subr.mxu0 0.0
    %4928 = vmatpush1.xpose.msra.mxu0 0.0
    %4929 = vmatprep.subr.mxu0 0.0
    %4930 = vmatpush1.xpose.msra.mxu0 0.0
    %4931 = vmatprep.subr.mxu0 0.0
    %4932 = vmatpush1.xpose.msra.mxu0 0.0
    %4933 = vmatprep.subr.mxu0 0.0
    %4934 = vmatpush1.xpose.msra.mxu0 0.0
    %4935 = vmatprep.subr.mxu0 0.0
    %4936 = vmatpush1.xpose.msra.mxu0 0.0
    %4937 = vmatprep.subr.mxu0 0.0
    %4938 = vmatpush1.xpose.msra.mxu0 0.0
    %4939 = vmatprep.subr.mxu0 0.0
    %4940 = vmatpush1.xpose.msra.mxu0 0.0
    %4941 = vmatprep.subr.mxu0 0.0
    %4942 = vmatpush1.xpose.msra.mxu0 0.0
    %4943 = vmatprep.subr.mxu0 0.0
    %4944 = vmatpush1.xpose.msra.mxu0 0.0
    %4945 = vmatprep.subr.mxu0 0.0
    %4946 = vmatpush1.xpose.msra.mxu0 0.0
    %4947 = vmatprep.subr.mxu0 0.0
    %4948 = vmatpush1.xpose.msra.mxu0 0.0
    %4949 = vmatprep.subr.mxu0 0.0
    %4950 = vmatpush1.xpose.msra.mxu0 0.0
    %4951 = vmatprep.subr.mxu0 0.0
    %4952 = vmatpush1.xpose.msra.mxu0 0.0
    %4953 = vmatprep.subr.mxu0 0.0
    %4954 = vmatpush1.xpose.msra.mxu0 0.0
    %4955 = vmatprep.subr.mxu0 0.0
    %4956 = vmatpush1.xpose.msra.mxu0 0.0
    %4957 = vmatprep.mubr.f32.mxu0 %v969
    %4958 = vmatmul.mubr.f32.gmra.mrb[0].mxu0 %v967
    %v4959 = vpop.f32.mrb[0].mxu0
    %v4960 = vadd.f32 %v4890, %v4959
    %v4961 = vpop.f32.mrb[0].mxu0
    %4962 = vdwg.mxu0
    %4963 = vmatprep.subr.mxu0 %v299
    %4964 = vmatpush1.xpose.msra.mxu0 %v298
    %4965 = vmatprep.subr.mxu0 %v427
    %4966 = vmatpush1.xpose.msra.mxu0 %v426
    %4967 = vmatprep.subr.mxu0 0.0
    %4968 = vmatpush1.xpose.msra.mxu0 0.0
    %4969 = vmatprep.subr.mxu0 0.0
    %4970 = vmatpush1.xpose.msra.mxu0 0.0
    %4971 = vmatprep.subr.mxu0 0.0
    %4972 = vmatpush1.xpose.msra.mxu0 0.0
    %4973 = vmatprep.subr.mxu0 0.0
    %4974 = vmatpush1.xpose.msra.mxu0 0.0
    %4975 = vmatprep.subr.mxu0 0.0
    %4976 = vmatpush1.xpose.msra.mxu0 0.0
    %4977 = vmatprep.subr.mxu0 0.0
    %4978 = vmatpush1.xpose.msra.mxu0 0.0
    %4979 = vmatprep.subr.mxu0 0.0
    %4980 = vmatpush1.xpose.msra.mxu0 0.0
    %4981 = vmatprep.subr.mxu0 0.0
    %4982 = vmatpush1.xpose.msra.mxu0 0.0
    %4983 = vmatprep.subr.mxu0 0.0
    %4984 = vmatpush1.xpose.msra.mxu0 0.0
    %4985 = vmatprep.subr.mxu0 0.0
    %4986 = vmatpush1.xpose.msra.mxu0 0.0
    %4987 = vmatprep.subr.mxu0 0.0
    %4988 = vmatpush1.xpose.msra.mxu0 0.0
    %4989 = vmatprep.subr.mxu0 0.0
    %4990 = vmatpush1.xpose.msra.mxu0 0.0
    %4991 = vmatprep.subr.mxu0 0.0
    %4992 = vmatpush1.xpose.msra.mxu0 0.0
    %4993 = vmatprep.subr.mxu0 0.0
    %4994 = vmatpush1.xpose.msra.mxu0 0.0
    %4995 = vmatprep.subr.mxu0 0.0
    %4996 = vmatpush1.xpose.msra.mxu0 0.0
    %4997 = vmatprep.subr.mxu0 0.0
    %4998 = vmatpush1.xpose.msra.mxu0 0.0
    %4999 = vmatprep.subr.mxu0 0.0
    %5000 = vmatpush1.xpose.msra.mxu0 0.0
    %5001 = vmatprep.subr.mxu0 0.0
    %5002 = vmatpush1.xpose.msra.mxu0 0.0
    %5003 = vmatprep.subr.mxu0 0.0
    %5004 = vmatpush1.xpose.msra.mxu0 0.0
    %5005 = vmatprep.subr.mxu0 0.0
    %5006 = vmatpush1.xpose.msra.mxu0 0.0
    %5007 = vmatprep.subr.mxu0 0.0
    %5008 = vmatpush1.xpose.msra.mxu0 0.0
    %5009 = vmatprep.subr.mxu0 0.0
    %5010 = vmatpush1.xpose.msra.mxu0 0.0
    %5011 = vmatprep.subr.mxu0 0.0
    %5012 = vmatpush1.xpose.msra.mxu0 0.0
    %5013 = vmatprep.subr.mxu0 0.0
    %5014 = vmatpush1.xpose.msra.mxu0 0.0
    %5015 = vmatprep.subr.mxu0 0.0
    %5016 = vmatpush1.xpose.msra.mxu0 0.0
    %5017 = vmatprep.subr.mxu0 0.0
    %5018 = vmatpush1.xpose.msra.mxu0 0.0
    %5019 = vmatprep.subr.mxu0 0.0
    %5020 = vmatpush1.xpose.msra.mxu0 0.0
    %5021 = vmatprep.subr.mxu0 0.0
    %5022 = vmatpush1.xpose.msra.mxu0 0.0
    %5023 = vmatprep.subr.mxu0 0.0
    %5024 = vmatpush1.xpose.msra.mxu0 0.0
    %5025 = vmatprep.subr.mxu0 0.0
    %5026 = vmatpush1.xpose.msra.mxu0 0.0
    %5027 = vmatprep.mubr.f32.mxu0 %v985
    %5028 = vmatmul.mubr.f32.gmra.mrb[0].mxu0 %v977
    %v5029 = vpop.f32.mrb[0].mxu0
    %v5030 = vadd.f32 %v4960, %v5029
    %v5031 = vpop.f32.mrb[0].mxu0
    %5032 = vdwg.mxu0
    %5033 = vmatprep.subr.mxu0 %v301
    %5034 = vmatpush1.xpose.msra.mxu0 %v300
    %5035 = vmatprep.subr.mxu0 %v429
    %5036 = vmatpush1.xpose.msra.mxu0 %v428
    %5037 = vmatprep.subr.mxu0 0.0
    %5038 = vmatpush1.xpose.msra.mxu0 0.0
    %5039 = vmatprep.subr.mxu0 0.0
    %5040 = vmatpush1.xpose.msra.mxu0 0.0
    %5041 = vmatprep.subr.mxu0 0.0
    %5042 = vmatpush1.xpose.msra.mxu0 0.0
    %5043 = vmatprep.subr.mxu0 0.0
    %5044 = vmatpush1.xpose.msra.mxu0 0.0
    %5045 = vmatprep.subr.mxu0 0.0
    %5046 = vmatpush1.xpose.msra.mxu0 0.0
    %5047 = vmatprep.subr.mxu0 0.0
    %5048 = vmatpush1.xpose.msra.mxu0 0.0
    %5049 = vmatprep.subr.mxu0 0.0
    %5050 = vmatpush1.xpose.msra.mxu0 0.0
    %5051 = vmatprep.subr.mxu0 0.0
    %5052 = vmatpush1.xpose.msra.mxu0 0.0
    %5053 = vmatprep.subr.mxu0 0.0
    %5054 = vmatpush1.xpose.msra.mxu0 0.0
    %5055 = vmatprep.subr.mxu0 0.0
    %5056 = vmatpush1.xpose.msra.mxu0 0.0
    %5057 = vmatprep.subr.mxu0 0.0
    %5058 = vmatpush1.xpose.msra.mxu0 0.0
    %5059 = vmatprep.subr.mxu0 0.0
    %5060 = vmatpush1.xpose.msra.mxu0 0.0
    %5061 = vmatprep.subr.mxu0 0.0
    %5062 = vmatpush1.xpose.msra.mxu0 0.0
    %5063 = vmatprep.subr.mxu0 0.0
    %5064 = vmatpush1.xpose.msra.mxu0 0.0
    %5065 = vmatprep.subr.mxu0 0.0
    %5066 = vmatpush1.xpose.msra.mxu0 0.0
    %5067 = vmatprep.subr.mxu0 0.0
    %5068 = vmatpush1.xpose.msra.mxu0 0.0
    %5069 = vmatprep.subr.mxu0 0.0
    %5070 = vmatpush1.xpose.msra.mxu0 0.0
    %5071 = vmatprep.subr.mxu0 0.0
    %5072 = vmatpush1.xpose.msra.mxu0 0.0
    %5073 = vmatprep.subr.mxu0 0.0
    %5074 = vmatpush1.xpose.msra.mxu0 0.0
    %5075 = vmatprep.subr.mxu0 0.0
    %5076 = vmatpush1.xpose.msra.mxu0 0.0
    %5077 = vmatprep.subr.mxu0 0.0
    %5078 = vmatpush1.xpose.msra.mxu0 0.0
    %5079 = vmatprep.subr.mxu0 0.0
    %5080 = vmatpush1.xpose.msra.mxu0 0.0
    %5081 = vmatprep.subr.mxu0 0.0
    %5082 = vmatpush1.xpose.msra.mxu0 0.0
    %5083 = vmatprep.subr.mxu0 0.0
    %5084 = vmatpush1.xpose.msra.mxu0 0.0
    %5085 = vmatprep.subr.mxu0 0.0
    %5086 = vmatpush1.xpose.msra.mxu0 0.0
    %5087 = vmatprep.subr.mxu0 0.0
    %5088 = vmatpush1.xpose.msra.mxu0 0.0
    %5089 = vmatprep.subr.mxu0 0.0
    %5090 = vmatpush1.xpose.msra.mxu0 0.0
    %5091 = vmatprep.subr.mxu0 0.0
    %5092 = vmatpush1.xpose.msra.mxu0 0.0
    %5093 = vmatprep.subr.mxu0 0.0
    %5094 = vmatpush1.xpose.msra.mxu0 0.0
    %5095 = vmatprep.subr.mxu0 0.0
    %5096 = vmatpush1.xpose.msra.mxu0 0.0
    %5097 = vmatprep.mubr.f32.mxu0 %v986
    %5098 = vmatmul.mubr.f32.gmra.mrb[0].mxu0 %v984
    %v5099 = vpop.f32.mrb[0].mxu0
    %v5100 = vadd.f32 %v5030, %v5099
    %v5101 = vpop.f32.mrb[0].mxu0
    %5102 = vdwg.mxu0
    %5103 = vmatprep.subr.mxu0 %v303
    %5104 = vmatpush1.xpose.msra.mxu0 %v302
    %5105 = vmatprep.subr.mxu0 %v431
    %5106 = vmatpush1.xpose.msra.mxu0 %v430
    %5107 = vmatprep.subr.mxu0 0.0
    %5108 = vmatpush1.xpose.msra.mxu0 0.0
    %5109 = vmatprep.subr.mxu0 0.0
    %5110 = vmatpush1.xpose.msra.mxu0 0.0
    %5111 = vmatprep.subr.mxu0 0.0
    %5112 = vmatpush1.xpose.msra.mxu0 0.0
    %5113 = vmatprep.subr.mxu0 0.0
    %5114 = vmatpush1.xpose.msra.mxu0 0.0
    %5115 = vmatprep.subr.mxu0 0.0
    %5116 = vmatpush1.xpose.msra.mxu0 0.0
    %5117 = vmatprep.subr.mxu0 0.0
    %5118 = vmatpush1.xpose.msra.mxu0 0.0
    %5119 = vmatprep.subr.mxu0 0.0
    %5120 = vmatpush1.xpose.msra.mxu0 0.0
    %5121 = vmatprep.subr.mxu0 0.0
    %5122 = vmatpush1.xpose.msra.mxu0 0.0
    %5123 = vmatprep.subr.mxu0 0.0
    %5124 = vmatpush1.xpose.msra.mxu0 0.0
    %5125 = vmatprep.subr.mxu0 0.0
    %5126 = vmatpush1.xpose.msra.mxu0 0.0
    %5127 = vmatprep.subr.mxu0 0.0
    %5128 = vmatpush1.xpose.msra.mxu0 0.0
    %5129 = vmatprep.subr.mxu0 0.0
    %5130 = vmatpush1.xpose.msra.mxu0 0.0
    %5131 = vmatprep.subr.mxu0 0.0
    %5132 = vmatpush1.xpose.msra.mxu0 0.0
    %5133 = vmatprep.subr.mxu0 0.0
    %5134 = vmatpush1.xpose.msra.mxu0 0.0
    %5135 = vmatprep.subr.mxu0 0.0
    %5136 = vmatpush1.xpose.msra.mxu0 0.0
    %5137 = vmatprep.subr.mxu0 0.0
    %5138 = vmatpush1.xpose.msra.mxu0 0.0
    %5139 = vmatprep.subr.mxu0 0.0
    %5140 = vmatpush1.xpose.msra.mxu0 0.0
    %5141 = vmatprep.subr.mxu0 0.0
    %5142 = vmatpush1.xpose.msra.mxu0 0.0
    %5143 = vmatprep.subr.mxu0 0.0
    %5144 = vmatpush1.xpose.msra.mxu0 0.0
    %5145 = vmatprep.subr.mxu0 0.0
    %5146 = vmatpush1.xpose.msra.mxu0 0.0
    %5147 = vmatprep.subr.mxu0 0.0
    %5148 = vmatpush1.xpose.msra.mxu0 0.0
    %5149 = vmatprep.subr.mxu0 0.0
    %5150 = vmatpush1.xpose.msra.mxu0 0.0
    %5151 = vmatprep.subr.mxu0 0.0
    %5152 = vmatpush1.xpose.msra.mxu0 0.0
    %5153 = vmatprep.subr.mxu0 0.0
    %5154 = vmatpush1.xpose.msra.mxu0 0.0
    %5155 = vmatprep.subr.mxu0 0.0
    %5156 = vmatpush1.xpose.msra.mxu0 0.0
    %5157 = vmatprep.subr.mxu0 0.0
    %5158 = vmatpush1.xpose.msra.mxu0 0.0
    %5159 = vmatprep.subr.mxu0 0.0
    %5160 = vmatpush1.xpose.msra.mxu0 0.0
    %5161 = vmatprep.subr.mxu0 0.0
    %5162 = vmatpush1.xpose.msra.mxu0 0.0
    %5163 = vmatprep.subr.mxu0 0.0
    %5164 = vmatpush1.xpose.msra.mxu0 0.0
    %5165 = vmatprep.subr.mxu0 0.0
    %5166 = vmatpush1.xpose.msra.mxu0 0.0
    %5167 = vmatprep.mubr.f32.mxu0 %v1002
    %5168 = vmatmul.mubr.f32.gmra.mrb[0].mxu0 %v994
    %v5169 = vpop.f32.mrb[0].mxu0
    %v5170 = vadd.f32 %v5100, %v5169
    %v5171 = vpop.f32.mrb[0].mxu0
    %5172 = vdwg.mxu0
    %5173 = vmatprep.subr.mxu0 %v305
    %5174 = vmatpush1.xpose.msra.mxu0 %v304
    %5175 = vmatprep.subr.mxu0 %v433
    %5176 = vmatpush1.xpose.msra.mxu0 %v432
    %5177 = vmatprep.subr.mxu0 0.0
    %5178 = vmatpush1.xpose.msra.mxu0 0.0
    %5179 = vmatprep.subr.mxu0 0.0
    %5180 = vmatpush1.xpose.msra.mxu0 0.0
    %5181 = vmatprep.subr.mxu0 0.0
    %5182 = vmatpush1.xpose.msra.mxu0 0.0
    %5183 = vmatprep.subr.mxu0 0.0
    %5184 = vmatpush1.xpose.msra.mxu0 0.0
    %5185 = vmatprep.subr.mxu0 0.0
    %5186 = vmatpush1.xpose.msra.mxu0 0.0
    %5187 = vmatprep.subr.mxu0 0.0
    %5188 = vmatpush1.xpose.msra.mxu0 0.0
    %5189 = vmatprep.subr.mxu0 0.0
    %5190 = vmatpush1.xpose.msra.mxu0 0.0
    %5191 = vmatprep.subr.mxu0 0.0
    %5192 = vmatpush1.xpose.msra.mxu0 0.0
    %5193 = vmatprep.subr.mxu0 0.0
    %5194 = vmatpush1.xpose.msra.mxu0 0.0
    %5195 = vmatprep.subr.mxu0 0.0
    %5196 = vmatpush1.xpose.msra.mxu0 0.0
    %5197 = vmatprep.subr.mxu0 0.0
    %5198 = vmatpush1.xpose.msra.mxu0 0.0
    %5199 = vmatprep.subr.mxu0 0.0
    %5200 = vmatpush1.xpose.msra.mxu0 0.0
    %5201 = vmatprep.subr.mxu0 0.0
    %5202 = vmatpush1.xpose.msra.mxu0 0.0
    %5203 = vmatprep.subr.mxu0 0.0
    %5204 = vmatpush1.xpose.msra.mxu0 0.0
    %5205 = vmatprep.subr.mxu0 0.0
    %5206 = vmatpush1.xpose.msra.mxu0 0.0
    %5207 = vmatprep.subr.mxu0 0.0
    %5208 = vmatpush1.xpose.msra.mxu0 0.0
    %5209 = vmatprep.subr.mxu0 0.0
    %5210 = vmatpush1.xpose.msra.mxu0 0.0
    %5211 = vmatprep.subr.mxu0 0.0
    %5212 = vmatpush1.xpose.msra.mxu0 0.0
    %5213 = vmatprep.subr.mxu0 0.0
    %5214 = vmatpush1.xpose.msra.mxu0 0.0
    %5215 = vmatprep.subr.mxu0 0.0
    %5216 = vmatpush1.xpose.msra.mxu0 0.0
    %5217 = vmatprep.subr.mxu0 0.0
    %5218 = vmatpush1.xpose.msra.mxu0 0.0
    %5219 = vmatprep.subr.mxu0 0.0
    %5220 = vmatpush1.xpose.msra.mxu0 0.0
    %5221 = vmatprep.subr.mxu0 0.0
    %5222 = vmatpush1.xpose.msra.mxu0 0.0
    %5223 = vmatprep.subr.mxu0 0.0
    %5224 = vmatpush1.xpose.msra.mxu0 0.0
    %5225 = vmatprep.subr.mxu0 0.0
    %5226 = vmatpush1.xpose.msra.mxu0 0.0
    %5227 = vmatprep.subr.mxu0 0.0
    %5228 = vmatpush1.xpose.msra.mxu0 0.0
    %5229 = vmatprep.subr.mxu0 0.0
    %5230 = vmatpush1.xpose.msra.mxu0 0.0
    %5231 = vmatprep.subr.mxu0 0.0
    %5232 = vmatpush1.xpose.msra.mxu0 0.0
    %5233 = vmatprep.subr.mxu0 0.0
    %5234 = vmatpush1.xpose.msra.mxu0 0.0
    %5235 = vmatprep.subr.mxu0 0.0
    %5236 = vmatpush1.xpose.msra.mxu0 0.0
    %5237 = vmatprep.mubr.f32.mxu0 %v1003
    %5238 = vmatmul.mubr.f32.gmra.mrb[0].mxu0 %v1001
    %v5239 = vpop.f32.mrb[0].mxu0
    %v5240 = vadd.f32 %v5170, %v5239
    %v5241 = vpop.f32.mrb[0].mxu0
    %5242 = vdwg.mxu0
    %5243 = vmatprep.subr.mxu0 %v307
    %5244 = vmatpush1.xpose.msra.mxu0 %v306
    %5245 = vmatprep.subr.mxu0 %v435
    %5246 = vmatpush1.xpose.msra.mxu0 %v434
    %5247 = vmatprep.subr.mxu0 0.0
    %5248 = vmatpush1.xpose.msra.mxu0 0.0
    %5249 = vmatprep.subr.mxu0 0.0
    %5250 = vmatpush1.xpose.msra.mxu0 0.0
    %5251 = vmatprep.subr.mxu0 0.0
    %5252 = vmatpush1.xpose.msra.mxu0 0.0
    %5253 = vmatprep.subr.mxu0 0.0
    %5254 = vmatpush1.xpose.msra.mxu0 0.0
    %5255 = vmatprep.subr.mxu0 0.0
    %5256 = vmatpush1.xpose.msra.mxu0 0.0
    %5257 = vmatprep.subr.mxu0 0.0
    %5258 = vmatpush1.xpose.msra.mxu0 0.0
    %5259 = vmatprep.subr.mxu0 0.0
    %5260 = vmatpush1.xpose.msra.mxu0 0.0
    %5261 = vmatprep.subr.mxu0 0.0
    %5262 = vmatpush1.xpose.msra.mxu0 0.0
    %5263 = vmatprep.subr.mxu0 0.0
    %5264 = vmatpush1.xpose.msra.mxu0 0.0
    %5265 = vmatprep.subr.mxu0 0.0
    %5266 = vmatpush1.xpose.msra.mxu0 0.0
    %5267 = vmatprep.subr.mxu0 0.0
    %5268 = vmatpush1.xpose.msra.mxu0 0.0
    %5269 = vmatprep.subr.mxu0 0.0
    %5270 = vmatpush1.xpose.msra.mxu0 0.0
    %5271 = vmatprep.subr.mxu0 0.0
    %5272 = vmatpush1.xpose.msra.mxu0 0.0
    %5273 = vmatprep.subr.mxu0 0.0
    %5274 = vmatpush1.xpose.msra.mxu0 0.0
    %5275 = vmatprep.subr.mxu0 0.0
    %5276 = vmatpush1.xpose.msra.mxu0 0.0
    %5277 = vmatprep.subr.mxu0 0.0
    %5278 = vmatpush1.xpose.msra.mxu0 0.0
    %5279 = vmatprep.subr.mxu0 0.0
    %5280 = vmatpush1.xpose.msra.mxu0 0.0
    %5281 = vmatprep.subr.mxu0 0.0
    %5282 = vmatpush1.xpose.msra.mxu0 0.0
    %5283 = vmatprep.subr.mxu0 0.0
    %5284 = vmatpush1.xpose.msra.mxu0 0.0
    %5285 = vmatprep.subr.mxu0 0.0
    %5286 = vmatpush1.xpose.msra.mxu0 0.0
    %5287 = vmatprep.subr.mxu0 0.0
    %5288 = vmatpush1.xpose.msra.mxu0 0.0
    %5289 = vmatprep.subr.mxu0 0.0
    %5290 = vmatpush1.xpose.msra.mxu0 0.0
    %5291 = vmatprep.subr.mxu0 0.0
    %5292 = vmatpush1.xpose.msra.mxu0 0.0
    %5293 = vmatprep.subr.mxu0 0.0
    %5294 = vmatpush1.xpose.msra.mxu0 0.0
    %5295 = vmatprep.subr.mxu0 0.0
    %5296 = vmatpush1.xpose.msra.mxu0 0.0
    %5297 = vmatprep.subr.mxu0 0.0
    %5298 = vmatpush1.xpose.msra.mxu0 0.0
    %5299 = vmatprep.subr.mxu0 0.0
    %5300 = vmatpush1.xpose.msra.mxu0 0.0
    %5301 = vmatprep.subr.mxu0 0.0
    %5302 = vmatpush1.xpose.msra.mxu0 0.0
    %5303 = vmatprep.subr.mxu0 0.0
    %5304 = vmatpush1.xpose.msra.mxu0 0.0
    %5305 = vmatprep.subr.mxu0 0.0
    %5306 = vmatpush1.xpose.msra.mxu0 0.0
    %5307 = vmatprep.mubr.f32.mxu0 %v1019
    %5308 = vmatmul.mubr.f32.gmra.mrb[0].mxu0 %v1011
    %v5309 = vpop.f32.mrb[0].mxu0
    %v5310 = vadd.f32 %v5240, %v5309
    %v5311 = vpop.f32.mrb[0].mxu0
    %5312 = vdwg.mxu0
    %5313 = vmatprep.subr.mxu0 %v309
    %5314 = vmatpush1.xpose.msra.mxu0 %v308
    %5315 = vmatprep.subr.mxu0 %v437
    %5316 = vmatpush1.xpose.msra.mxu0 %v436
    %5317 = vmatprep.subr.mxu0 0.0
    %5318 = vmatpush1.xpose.msra.mxu0 0.0
    %5319 = vmatprep.subr.mxu0 0.0
    %5320 = vmatpush1.xpose.msra.mxu0 0.0
    %5321 = vmatprep.subr.mxu0 0.0
    %5322 = vmatpush1.xpose.msra.mxu0 0.0
    %5323 = vmatprep.subr.mxu0 0.0
    %5324 = vmatpush1.xpose.msra.mxu0 0.0
    %5325 = vmatprep.subr.mxu0 0.0
    %5326 = vmatpush1.xpose.msra.mxu0 0.0
    %5327 = vmatprep.subr.mxu0 0.0
    %5328 = vmatpush1.xpose.msra.mxu0 0.0
    %5329 = vmatprep.subr.mxu0 0.0
    %5330 = vmatpush1.xpose.msra.mxu0 0.0
    %5331 = vmatprep.subr.mxu0 0.0
    %5332 = vmatpush1.xpose.msra.mxu0 0.0
    %5333 = vmatprep.subr.mxu0 0.0
    %5334 = vmatpush1.xpose.msra.mxu0 0.0
    %5335 = vmatprep.subr.mxu0 0.0
    %5336 = vmatpush1.xpose.msra.mxu0 0.0
    %5337 = vmatprep.subr.mxu0 0.0
    %5338 = vmatpush1.xpose.msra.mxu0 0.0
    %5339 = vmatprep.subr.mxu0 0.0
    %5340 = vmatpush1.xpose.msra.mxu0 0.0
    %5341 = vmatprep.subr.mxu0 0.0
    %5342 = vmatpush1.xpose.msra.mxu0 0.0
    %5343 = vmatprep.subr.mxu0 0.0
    %5344 = vmatpush1.xpose.msra.mxu0 0.0
    %5345 = vmatprep.subr.mxu0 0.0
    %5346 = vmatpush1.xpose.msra.mxu0 0.0
    %5347 = vmatprep.subr.mxu0 0.0
    %5348 = vmatpush1.xpose.msra.mxu0 0.0
    %5349 = vmatprep.subr.mxu0 0.0
    %5350 = vmatpush1.xpose.msra.mxu0 0.0
    %5351 = vmatprep.subr.mxu0 0.0
    %5352 = vmatpush1.xpose.msra.mxu0 0.0
    %5353 = vmatprep.subr.mxu0 0.0
    %5354 = vmatpush1.xpose.msra.mxu0 0.0
    %5355 = vmatprep.subr.mxu0 0.0
    %5356 = vmatpush1.xpose.msra.mxu0 0.0
    %5357 = vmatprep.subr.mxu0 0.0
    %5358 = vmatpush1.xpose.msra.mxu0 0.0
    %5359 = vmatprep.subr.mxu0 0.0
    %5360 = vmatpush1.xpose.msra.mxu0 0.0
    %5361 = vmatprep.subr.mxu0 0.0
    %5362 = vmatpush1.xpose.msra.mxu0 0.0
    %5363 = vmatprep.subr.mxu0 0.0
    %5364 = vmatpush1.xpose.msra.mxu0 0.0
    %5365 = vmatprep.subr.mxu0 0.0
    %5366 = vmatpush1.xpose.msra.mxu0 0.0
    %5367 = vmatprep.subr.mxu0 0.0
    %5368 = vmatpush1.xpose.msra.mxu0 0.0
    %5369 = vmatprep.subr.mxu0 0.0
    %5370 = vmatpush1.xpose.msra.mxu0 0.0
    %5371 = vmatprep.subr.mxu0 0.0
    %5372 = vmatpush1.xpose.msra.mxu0 0.0
    %5373 = vmatprep.subr.mxu0 0.0
    %5374 = vmatpush1.xpose.msra.mxu0 0.0
    %5375 = vmatprep.subr.mxu0 0.0
    %5376 = vmatpush1.xpose.msra.mxu0 0.0
    %5377 = vmatprep.mubr.f32.mxu0 %v1020
    %5378 = vmatmul.mubr.f32.gmra.mrb[0].mxu0 %v1018
    %v5379 = vpop.f32.mrb[0].mxu0
    %v5380 = vadd.f32 %v5310, %v5379
    %v5381 = vpop.f32.mrb[0].mxu0
    %5382 = vdwg.mxu0
    %5383 = vmatprep.subr.mxu0 %v311
    %5384 = vmatpush1.xpose.msra.mxu0 %v310
    %5385 = vmatprep.subr.mxu0 %v439
    %5386 = vmatpush1.xpose.msra.mxu0 %v438
    %5387 = vmatprep.subr.mxu0 0.0
    %5388 = vmatpush1.xpose.msra.mxu0 0.0
    %5389 = vmatprep.subr.mxu0 0.0
    %5390 = vmatpush1.xpose.msra.mxu0 0.0
    %5391 = vmatprep.subr.mxu0 0.0
    %5392 = vmatpush1.xpose.msra.mxu0 0.0
    %5393 = vmatprep.subr.mxu0 0.0
    %5394 = vmatpush1.xpose.msra.mxu0 0.0
    %5395 = vmatprep.subr.mxu0 0.0
    %5396 = vmatpush1.xpose.msra.mxu0 0.0
    %5397 = vmatprep.subr.mxu0 0.0
    %5398 = vmatpush1.xpose.msra.mxu0 0.0
    %5399 = vmatprep.subr.mxu0 0.0
    %5400 = vmatpush1.xpose.msra.mxu0 0.0
    %5401 = vmatprep.subr.mxu0 0.0
    %5402 = vmatpush1.xpose.msra.mxu0 0.0
    %5403 = vmatprep.subr.mxu0 0.0
    %5404 = vmatpush1.xpose.msra.mxu0 0.0
    %5405 = vmatprep.subr.mxu0 0.0
    %5406 = vmatpush1.xpose.msra.mxu0 0.0
    %5407 = vmatprep.subr.mxu0 0.0
    %5408 = vmatpush1.xpose.msra.mxu0 0.0
    %5409 = vmatprep.subr.mxu0 0.0
    %5410 = vmatpush1.xpose.msra.mxu0 0.0
    %5411 = vmatprep.subr.mxu0 0.0
    %5412 = vmatpush1.xpose.msra.mxu0 0.0
    %5413 = vmatprep.subr.mxu0 0.0
    %5414 = vmatpush1.xpose.msra.mxu0 0.0
    %5415 = vmatprep.subr.mxu0 0.0
    %5416 = vmatpush1.xpose.msra.mxu0 0.0
    %5417 = vmatprep.subr.mxu0 0.0
    %5418 = vmatpush1.xpose.msra.mxu0 0.0
    %5419 = vmatprep.subr.mxu0 0.0
    %5420 = vmatpush1.xpose.msra.mxu0 0.0
    %5421 = vmatprep.subr.mxu0 0.0
    %5422 = vmatpush1.xpose.msra.mxu0 0.0
    %5423 = vmatprep.subr.mxu0 0.0
    %5424 = vmatpush1.xpose.msra.mxu0 0.0
    %5425 = vmatprep.subr.mxu0 0.0
    %5426 = vmatpush1.xpose.msra.mxu0 0.0
    %5427 = vmatprep.subr.mxu0 0.0
    %5428 = vmatpush1.xpose.msra.mxu0 0.0
    %5429 = vmatprep.subr.mxu0 0.0
    %5430 = vmatpush1.xpose.msra.mxu0 0.0
    %5431 = vmatprep.subr.mxu0 0.0
    %5432 = vmatpush1.xpose.msra.mxu0 0.0
    %5433 = vmatprep.subr.mxu0 0.0
    %5434 = vmatpush1.xpose.msra.mxu0 0.0
    %5435 = vmatprep.subr.mxu0 0.0
    %5436 = vmatpush1.xpose.msra.mxu0 0.0
    %5437 = vmatprep.subr.mxu0 0.0
    %5438 = vmatpush1.xpose.msra.mxu0 0.0
    %5439 = vmatprep.subr.mxu0 0.0
    %5440 = vmatpush1.xpose.msra.mxu0 0.0
    %5441 = vmatprep.subr.mxu0 0.0
    %5442 = vmatpush1.xpose.msra.mxu0 0.0
    %5443 = vmatprep.subr.mxu0 0.0
    %5444 = vmatpush1.xpose.msra.mxu0 0.0
    %5445 = vmatprep.subr.mxu0 0.0
    %5446 = vmatpush1.xpose.msra.mxu0 0.0
    %5447 = vmatprep.mubr.f32.mxu0 %v1036
    %5448 = vmatmul.mubr.f32.gmra.mrb[0].mxu0 %v1028
    %v5449 = vpop.f32.mrb[0].mxu0
    %v5450 = vadd.f32 %v5380, %v5449
    %v5451 = vpop.f32.mrb[0].mxu0
    %5452 = vdwg.mxu0
    %5453 = vmatprep.subr.mxu0 %v313
    %5454 = vmatpush1.xpose.msra.mxu0 %v312
    %5455 = vmatprep.subr.mxu0 %v441
    %5456 = vmatpush1.xpose.msra.mxu0 %v440
    %5457 = vmatprep.subr.mxu0 0.0
    %5458 = vmatpush1.xpose.msra.mxu0 0.0
    %5459 = vmatprep.subr.mxu0 0.0
    %5460 = vmatpush1.xpose.msra.mxu0 0.0
    %5461 = vmatprep.subr.mxu0 0.0
    %5462 = vmatpush1.xpose.msra.mxu0 0.0
    %5463 = vmatprep.subr.mxu0 0.0
    %5464 = vmatpush1.xpose.msra.mxu0 0.0
    %5465 = vmatprep.subr.mxu0 0.0
    %5466 = vmatpush1.xpose.msra.mxu0 0.0
    %5467 = vmatprep.subr.mxu0 0.0
    %5468 = vmatpush1.xpose.msra.mxu0 0.0
    %5469 = vmatprep.subr.mxu0 0.0
    %5470 = vmatpush1.xpose.msra.mxu0 0.0
    %5471 = vmatprep.subr.mxu0 0.0
    %5472 = vmatpush1.xpose.msra.mxu0 0.0
    %5473 = vmatprep.subr.mxu0 0.0
    %5474 = vmatpush1.xpose.msra.mxu0 0.0
    %5475 = vmatprep.subr.mxu0 0.0
    %5476 = vmatpush1.xpose.msra.mxu0 0.0
    %5477 = vmatprep.subr.mxu0 0.0
    %5478 = vmatpush1.xpose.msra.mxu0 0.0
    %5479 = vmatprep.subr.mxu0 0.0
    %5480 = vmatpush1.xpose.msra.mxu0 0.0
    %5481 = vmatprep.subr.mxu0 0.0
    %5482 = vmatpush1.xpose.msra.mxu0 0.0
    %5483 = vmatprep.subr.mxu0 0.0
    %5484 = vmatpush1.xpose.msra.mxu0 0.0
    %5485 = vmatprep.subr.mxu0 0.0
    %5486 = vmatpush1.xpose.msra.mxu0 0.0
    %5487 = vmatprep.subr.mxu0 0.0
    %5488 = vmatpush1.xpose.msra.mxu0 0.0
    %5489 = vmatprep.subr.mxu0 0.0
    %5490 = vmatpush1.xpose.msra.mxu0 0.0
    %5491 = vmatprep.subr.mxu0 0.0
    %5492 = vmatpush1.xpose.msra.mxu0 0.0
    %5493 = vmatprep.subr.mxu0 0.0
    %5494 = vmatpush1.xpose.msra.mxu0 0.0
    %5495 = vmatprep.subr.mxu0 0.0
    %5496 = vmatpush1.xpose.msra.mxu0 0.0
    %5497 = vmatprep.subr.mxu0 0.0
    %5498 = vmatpush1.xpose.msra.mxu0 0.0
    %5499 = vmatprep.subr.mxu0 0.0
    %5500 = vmatpush1.xpose.msra.mxu0 0.0
    %5501 = vmatprep.subr.mxu0 0.0
    %5502 = vmatpush1.xpose.msra.mxu0 0.0
    %5503 = vmatprep.subr.mxu0 0.0
    %5504 = vmatpush1.xpose.msra.mxu0 0.0
    %5505 = vmatprep.subr.mxu0 0.0
    %5506 = vmatpush1.xpose.msra.mxu0 0.0
    %5507 = vmatprep.subr.mxu0 0.0
    %5508 = vmatpush1.xpose.msra.mxu0 0.0
    %5509 = vmatprep.subr.mxu0 0.0
    %5510 = vmatpush1.xpose.msra.mxu0 0.0
    %5511 = vmatprep.subr.mxu0 0.0
    %5512 = vmatpush1.xpose.msra.mxu0 0.0
    %5513 = vmatprep.subr.mxu0 0.0
    %5514 = vmatpush1.xpose.msra.mxu0 0.0
    %5515 = vmatprep.subr.mxu0 0.0
    %5516 = vmatpush1.xpose.msra.mxu0 0.0
    %5517 = vmatprep.mubr.f32.mxu0 %v1037
    %5518 = vmatmul.mubr.f32.gmra.mrb[0].mxu0 %v1035
    %v5519 = vpop.f32.mrb[0].mxu0
    %v5520 = vadd.f32 %v5450, %v5519
    %v5521 = vpop.f32.mrb[0].mxu0
    %5522 = vdwg.mxu0
    %5523 = vmatprep.subr.mxu0 %v315
    %5524 = vmatpush1.xpose.msra.mxu0 %v314
    %5525 = vmatprep.subr.mxu0 %v443
    %5526 = vmatpush1.xpose.msra.mxu0 %v442
    %5527 = vmatprep.subr.mxu0 0.0
    %5528 = vmatpush1.xpose.msra.mxu0 0.0
    %5529 = vmatprep.subr.mxu0 0.0
    %5530 = vmatpush1.xpose.msra.mxu0 0.0
    %5531 = vmatprep.subr.mxu0 0.0
    %5532 = vmatpush1.xpose.msra.mxu0 0.0
    %5533 = vmatprep.subr.mxu0 0.0
    %5534 = vmatpush1.xpose.msra.mxu0 0.0
    %5535 = vmatprep.subr.mxu0 0.0
    %5536 = vmatpush1.xpose.msra.mxu0 0.0
    %5537 = vmatprep.subr.mxu0 0.0
    %5538 = vmatpush1.xpose.msra.mxu0 0.0
    %5539 = vmatprep.subr.mxu0 0.0
    %5540 = vmatpush1.xpose.msra.mxu0 0.0
    %5541 = vmatprep.subr.mxu0 0.0
    %5542 = vmatpush1.xpose.msra.mxu0 0.0
    %5543 = vmatprep.subr.mxu0 0.0
    %5544 = vmatpush1.xpose.msra.mxu0 0.0
    %5545 = vmatprep.subr.mxu0 0.0
    %5546 = vmatpush1.xpose.msra.mxu0 0.0
    %5547 = vmatprep.subr.mxu0 0.0
    %5548 = vmatpush1.xpose.msra.mxu0 0.0
    %5549 = vmatprep.subr.mxu0 0.0
    %5550 = vmatpush1.xpose.msra.mxu0 0.0
    %5551 = vmatprep.subr.mxu0 0.0
    %5552 = vmatpush1.xpose.msra.mxu0 0.0
    %5553 = vmatprep.subr.mxu0 0.0
    %5554 = vmatpush1.xpose.msra.mxu0 0.0
    %5555 = vmatprep.subr.mxu0 0.0
    %5556 = vmatpush1.xpose.msra.mxu0 0.0
    %5557 = vmatprep.subr.mxu0 0.0
    %5558 = vmatpush1.xpose.msra.mxu0 0.0
    %5559 = vmatprep.subr.mxu0 0.0
    %5560 = vmatpush1.xpose.msra.mxu0 0.0
    %5561 = vmatprep.subr.mxu0 0.0
    %5562 = vmatpush1.xpose.msra.mxu0 0.0
    %5563 = vmatprep.subr.mxu0 0.0
    %5564 = vmatpush1.xpose.msra.mxu0 0.0
    %5565 = vmatprep.subr.mxu0 0.0
    %5566 = vmatpush1.xpose.msra.mxu0 0.0
    %5567 = vmatprep.subr.mxu0 0.0
    %5568 = vmatpush1.xpose.msra.mxu0 0.0
    %5569 = vmatprep.subr.mxu0 0.0
    %5570 = vmatpush1.xpose.msra.mxu0 0.0
    %5571 = vmatprep.subr.mxu0 0.0
    %5572 = vmatpush1.xpose.msra.mxu0 0.0
    %5573 = vmatprep.subr.mxu0 0.0
    %5574 = vmatpush1.xpose.msra.mxu0 0.0
    %5575 = vmatprep.subr.mxu0 0.0
    %5576 = vmatpush1.xpose.msra.mxu0 0.0
    %5577 = vmatprep.subr.mxu0 0.0
    %5578 = vmatpush1.xpose.msra.mxu0 0.0
    %5579 = vmatprep.subr.mxu0 0.0
    %5580 = vmatpush1.xpose.msra.mxu0 0.0
    %5581 = vmatprep.subr.mxu0 0.0
    %5582 = vmatpush1.xpose.msra.mxu0 0.0
    %5583 = vmatprep.subr.mxu0 0.0
    %5584 = vmatpush1.xpose.msra.mxu0 0.0
    %5585 = vmatprep.subr.mxu0 0.0
    %5586 = vmatpush1.xpose.msra.mxu0 0.0
    %5587 = vmatprep.mubr.f32.mxu0 %v1053
    %5588 = vmatmul.mubr.f32.gmra.mrb[0].mxu0 %v1045
    %v5589 = vpop.f32.mrb[0].mxu0
    %v5590 = vadd.f32 %v5520, %v5589
    %v5591 = vpop.f32.mrb[0].mxu0
    %5592 = vdwg.mxu0
    %5593 = vmatprep.subr.mxu0 %v317
    %5594 = vmatpush1.xpose.msra.mxu0 %v316
    %5595 = vmatprep.subr.mxu0 %v445
    %5596 = vmatpush1.xpose.msra.mxu0 %v444
    %5597 = vmatprep.subr.mxu0 0.0
    %5598 = vmatpush1.xpose.msra.mxu0 0.0
    %5599 = vmatprep.subr.mxu0 0.0
    %5600 = vmatpush1.xpose.msra.mxu0 0.0
    %5601 = vmatprep.subr.mxu0 0.0
    %5602 = vmatpush1.xpose.msra.mxu0 0.0
    %5603 = vmatprep.subr.mxu0 0.0
    %5604 = vmatpush1.xpose.msra.mxu0 0.0
    %5605 = vmatprep.subr.mxu0 0.0
    %5606 = vmatpush1.xpose.msra.mxu0 0.0
    %5607 = vmatprep.subr.mxu0 0.0
    %5608 = vmatpush1.xpose.msra.mxu0 0.0
    %5609 = vmatprep.subr.mxu0 0.0
    %5610 = vmatpush1.xpose.msra.mxu0 0.0
    %5611 = vmatprep.subr.mxu0 0.0
    %5612 = vmatpush1.xpose.msra.mxu0 0.0
    %5613 = vmatprep.subr.mxu0 0.0
    %5614 = vmatpush1.xpose.msra.mxu0 0.0
    %5615 = vmatprep.subr.mxu0 0.0
    %5616 = vmatpush1.xpose.msra.mxu0 0.0
    %5617 = vmatprep.subr.mxu0 0.0
    %5618 = vmatpush1.xpose.msra.mxu0 0.0
    %5619 = vmatprep.subr.mxu0 0.0
    %5620 = vmatpush1.xpose.msra.mxu0 0.0
    %5621 = vmatprep.subr.mxu0 0.0
    %5622 = vmatpush1.xpose.msra.mxu0 0.0
    %5623 = vmatprep.subr.mxu0 0.0
    %5624 = vmatpush1.xpose.msra.mxu0 0.0
    %5625 = vmatprep.subr.mxu0 0.0
    %5626 = vmatpush1.xpose.msra.mxu0 0.0
    %5627 = vmatprep.subr.mxu0 0.0
    %5628 = vmatpush1.xpose.msra.mxu0 0.0
    %5629 = vmatprep.subr.mxu0 0.0
    %5630 = vmatpush1.xpose.msra.mxu0 0.0
    %5631 = vmatprep.subr.mxu0 0.0
    %5632 = vmatpush1.xpose.msra.mxu0 0.0
    %5633 = vmatprep.subr.mxu0 0.0
    %5634 = vmatpush1.xpose.msra.mxu0 0.0
    %5635 = vmatprep.subr.mxu0 0.0
    %5636 = vmatpush1.xpose.msra.mxu0 0.0
    %5637 = vmatprep.subr.mxu0 0.0
    %5638 = vmatpush1.xpose.msra.mxu0 0.0
    %5639 = vmatprep.subr.mxu0 0.0
    %5640 = vmatpush1.xpose.msra.mxu0 0.0
    %5641 = vmatprep.subr.mxu0 0.0
    %5642 = vmatpush1.xpose.msra.mxu0 0.0
    %5643 = vmatprep.subr.mxu0 0.0
    %5644 = vmatpush1.xpose.msra.mxu0 0.0
    %5645 = vmatprep.subr.mxu0 0.0
    %5646 = vmatpush1.xpose.msra.mxu0 0.0
    %5647 = vmatprep.subr.mxu0 0.0
    %5648 = vmatpush1.xpose.msra.mxu0 0.0
    %5649 = vmatprep.subr.mxu0 0.0
    %5650 = vmatpush1.xpose.msra.mxu0 0.0
    %5651 = vmatprep.subr.mxu0 0.0
    %5652 = vmatpush1.xpose.msra.mxu0 0.0
    %5653 = vmatprep.subr.mxu0 0.0
    %5654 = vmatpush1.xpose.msra.mxu0 0.0
    %5655 = vmatprep.subr.mxu0 0.0
    %5656 = vmatpush1.xpose.msra.mxu0 0.0
    %5657 = vmatprep.mubr.f32.mxu0 %v1054
    %5658 = vmatmul.mubr.f32.gmra.mrb[0].mxu0 %v1052
    %v5659 = vpop.f32.mrb[0].mxu0
    %v5660 = vadd.f32 %v5590, %v5659
    %v5661 = vpop.f32.mrb[0].mxu0
    %5662 = vdwg.mxu0
    %v5663 = vadd.f32 %v446, %v5660
    %vm5664 = vcmask 74752
    %5665 = vst.msk [vmem:[#allocation2] sm:$0x3] %vm5664, %v5663
    // Predicated region
    $region14: #{onn2_forward.7} parent=1 // pred_check
      _
    $region15: #{onn2_forward.7} parent=1 // pred_check_branch
      %5667 = sbr.rel (0) target = $region17
    $region16: #{onn2_forward.7} parent=1 // pred_region
      %s5669 = ssub.s32 32, 32
      %5670 = vsyncadd [#allocation3], %s5669
      %s5672 = sshll.u32 [#allocation2], 4
      %s5673 = int_to_ptr.vmem [resolvable:$true] %s5672
      %5675 = dma.vmem_to_hbm [thread:$0]  %s5673, 32, %s2, [#allocation3]
    $region17: #{onn2_forward.7} parent=1 // pred_fallthru
      _
    // Predicated region
    $region18: #{onn2_forward.7} parent=1 // pred_check
      _
    $region19: #{onn2_forward.7} parent=1 // pred_check_branch
      %5677 = sbr.rel (0) target = $region21
    $region20: #{onn2_forward.7} parent=1 // pred_region
      %5678 = dma.done [#allocation3], 32
    $region21: #{onn2_forward.7} parent=1 // pred_fallthru
      _
    %5679 = vsyncpa [#allocation3], 1

</llo_original>
